<compile_context>
chip_gen: v7x
topology: tpu7x:2x2x1
jax: 0.10.0
libtpu: 0.0.40
codegen_flags: <defaults>
</compile_context>

<pallas_src>
import functools

import jax
import jax.numpy as jnp
from jax.experimental import pallas as pl
from jax.experimental.pallas import tpu as pltpu


def _finer_gauss(z, scale, omega_f, out_dtype=jnp.float32):
    # TODO(synk): exact gaussian_activation(with_finer=True) source is not in
    # the provided module; using the FINER-scaled Gaussian
    #   g(z) = exp(-0.5 * (scale * omega_f * (|z| + 1) * z)^2)
    # with the constant folded at trace time.  Verify multiply-vs-divide scale
    # placement against the real implementation before trusting accuracy.
    c2 = -0.5 * float(scale * omega_f) ** 2       # python float, trace-time constant
    t = (jnp.abs(z) + 1.0) * z                    # f32 on the VPU
    arg = c2 * (t * t)                            # keep argument in f32 (accuracy)
    return jnp.exp(arg).astype(out_dtype)         # EUP exp; emit bf16 for next matmul


def _gaussian_finer_mlp_kernel(x_ref, w0_ref, b0_ref, wh_ref, bh_ref, wf_ref,
                               o_ref, *, scale, omega_f, hidden_layers, d_in):
    # ---- first GaussianFinerLayer (f32 math) --------------------------------
    x = x_ref[...].astype(jnp.float32)                         # (tn, d_in)
    if d_in <= 8:
        # Tiny contraction depth: broadcast FMAs on the VPU (no MXU round trip).
        z = x[:, 0:1] * w0_ref[0:1, :]
        for j in range(1, d_in):
            z = z + x[:, j:j + 1] * w0_ref[j:j + 1, :]
        z = z + b0_ref[...]
    else:
        z = jnp.dot(x, w0_ref[...],
                    preferred_element_type=jnp.float32) + b0_ref[...]
    h = _finer_gauss(z, scale, omega_f, out_dtype=jnp.bfloat16)

    # ---- hidden GaussianFinerLayers (bf16 MXU matmul, f32 accumulate) -------
    for l in range(hidden_layers):
        z = jnp.dot(h, wh_ref[l], preferred_element_type=jnp.float32) + bh_ref[l]
        h = _finer_gauss(z, scale, omega_f, out_dtype=jnp.bfloat16)

    # ---- final Linear (bias=False), lane-dense padded output ----------------
    o_ref[...] = jnp.dot(h, wf_ref[...],
                         preferred_element_type=jnp.float32).astype(o_ref.dtype)


def _pick_row_tile(N, max_rows=2048):
    """Largest row tile (multiple of 8, divisor of N, <= max_rows) leaving at
    least 2 grid steps per TensorCore (4 on dual-TC chips, 2 otherwise)."""
    kind = ""
    try:
        kind = jax.devices()[0].device_kind.lower()
    except Exception:
        pass
    dual_tc = any(t in kind for t in ("v7", "v4", "v5p"))
    min_steps = 4 if dual_tc else 2

    candidates = [d for d in range(8, min(max_rows, N) + 1, 8) if N % d == 0]
    if not candidates:
        return N                       # tiny / odd N: single full-extent tile
    for d in reversed(candidates):     # prefer big tiles with >= min_steps
        if N // d >= min_steps:
            return d
    for d in reversed(candidates):     # relax to >= 2 steps
        if N // d >= 2:
            return d
    return candidates[-1]


def gaussian_finer_forward(x, params, *, scale=30.0, omega_f=2.5, tn=None):
    w0, b0, wh, bh, wf = params
    N, d_in = x.shape
    H = w0.shape[1]
    d_out = wf.shape[1]
    L = wh.shape[0]

    if tn is None:
        tn = _pick_row_tile(N)
    tn = min(tn, N)
    assert N % tn == 0, "N must be a multiple of the row tile tn"

    # bf16 weights for the MXU (f32 accumulation in-kernel); biases stay f32.
    wh16 = wh.astype(jnp.bfloat16)
    # Zero-pad final weight so the output block is a lane-dense multiple of 128.
    d_out_p = max(128, ((d_out + 127) // 128) * 128)
    wf16 = jnp.pad(wf.astype(jnp.bfloat16), ((0, 0), (0, d_out_p - d_out)))

    kernel = functools.partial(_gaussian_finer_mlp_kernel, scale=scale,
                               omega_f=omega_f, hidden_layers=L, d_in=d_in)

    flops = 2 * N * (d_in * H + L * H * H + H * d_out_p)
    transcendentals = N * H * (L + 1)
    bytes_accessed = (x.size * 4 + N * d_out_p * 4
                      + w0.size * 4 + b0.size * 4 + bh.size * 4
                      + wh16.size * 2 + wf16.size * 2)

    out_padded = pl.pallas_call(
        kernel,
        out_shape=jax.ShapeDtypeStruct((N, d_out_p), x.dtype),
        grid_spec=pltpu.PrefetchScalarGridSpec(
            num_scalar_prefetch=0,
            grid=(N // tn,),
            in_specs=[
                pl.BlockSpec((tn, d_in), lambda i: (i, 0)),      # x rows
                pl.BlockSpec((d_in, H), lambda i: (0, 0)),       # first weight (f32)
                pl.BlockSpec((1, H), lambda i: (0, 0)),          # first bias
                pl.BlockSpec((L, H, H), lambda i: (0, 0, 0)),    # hidden weights (bf16)
                pl.BlockSpec((L, 1, H), lambda i: (0, 0, 0)),    # hidden biases
                pl.BlockSpec((H, d_out_p), lambda i: (0, 0)),    # final weight (bf16, padded)
            ],
            out_specs=pl.BlockSpec((tn, d_out_p), lambda i: (i, 0)),
        ),
        compiler_params=pltpu.CompilerParams(
            dimension_semantics=("parallel",)),
        cost_estimate=pl.CostEstimate(
            flops=flops, transcendentals=transcendentals,
            bytes_accessed=bytes_accessed),
    )(x, w0, b0, wh16, bh, wf16)

    return out_padded[:, :d_out]


def init_params(key, in_features, out_features, hidden_features, hidden_layers,
                omega_f=2.5, first_k=10.0, hidden_k=10.0):
    """gaussian_finer_init-style init: weight ~ U(-sqrt(6/fan_in)/omega_f, +),
    bias ~ U(-k, +k); final layer same weight bound, no bias."""
    keys = jax.random.split(key, 2 * hidden_layers + 3)

    def w_init(k, fan_in, shape):
        bound = jnp.sqrt(6.0 / fan_in) / omega_f
        return jax.random.uniform(k, shape, jnp.float32, -bound, bound)

    w0 = w_init(keys[0], in_features, (in_features, hidden_features))
    b0 = jax.random.uniform(keys[1], (1, hidden_features), jnp.float32,
                            -first_k, first_k)
    wh = jnp.stack([
        w_init(keys[2 + 2 * l], hidden_features,
               (hidden_features, hidden_features))
        for l in range(hidden_layers)])
    bh = jnp.stack([
        jax.random.uniform(keys[3 + 2 * l], (1, hidden_features), jnp.float32,
                           -hidden_k, hidden_k)
        for l in range(hidden_layers)])
    wf = w_init(keys[-1], hidden_features, (hidden_features, out_features))
    return w0, b0, wh, bh, wf


def reference_forward(x, params, *, scale=30.0, omega_f=2.5):
    """Pure-JAX reference mirroring the kernel numerics (f32 activation math,
    bf16 MXU matmul inputs with f32 accumulation)."""
    w0, b0, wh, bh, wf = params
    x = x.astype(jnp.float32)
    d_in = x.shape[1]
    if d_in <= 8:
        z = x[:, 0:1] * w0[0:1, :]
        for j in range(1, d_in):
            z = z + x[:, j:j + 1] * w0[j:j + 1, :]
        z = z + b0
    else:
        z = jnp.dot(x, w0, preferred_element_type=jnp.float32) + b0
    h = _finer_gauss(z, scale, omega_f, out_dtype=jnp.bfloat16)
    for l in range(wh.shape[0]):
        z = jnp.dot(h, wh[l].astype(jnp.bfloat16),
                    preferred_element_type=jnp.float32) + bh[l]
        h = _finer_gauss(z, scale, omega_f, out_dtype=jnp.bfloat16)
    return jnp.dot(h, wf.astype(jnp.bfloat16),
                   preferred_element_type=jnp.float32)


if __name__ == "__main__":
    # INR-style shapes: a batch of 2-D coordinates -> 3 output channels.
    N = 2048                # coordinate samples
    in_features = 2
    out_features = 3
    hidden_features = 128
    hidden_layers = 3
    scale_gaussian = 30.0
    omega_f = 2.5

    key = jax.random.PRNGKey(0)
    k_x, k_p = jax.random.split(key)
    x = jax.random.uniform(k_x, (N, in_features), jnp.float32, -1.0, 1.0)
    params = init_params(k_p, in_features, out_features, hidden_features,
                         hidden_layers, omega_f=omega_f)

    out = gaussian_finer_forward(x, params, scale=scale_gaussian,
                                 omega_f=omega_f)
    out = jax.block_until_ready(out)

    ref = reference_forward(x, params, scale=scale_gaussian, omega_f=omega_f)
    assert out.shape == (N, out_features)
    assert bool(jnp.all(jnp.isfinite(out)))
    assert jnp.allclose(out, ref[:, :out_features], atol=1e-2, rtol=1e-2), \
        "mismatch vs JAX reference"

    print("KERNEL_OK")
</pallas_src>

<mosaic_0001>
module attributes {stable_mosaic.version = 11 : i64} {
  func.func @_gaussian_finer_mlp_kernel(%arg0: i32, %arg1: memref<1024x2xf32, #tpu.memory_space<vmem>>, %arg2: memref<2x128xf32, #tpu.memory_space<vmem>>, %arg3: memref<1x128xf32, #tpu.memory_space<vmem>>, %arg4: memref<3x128x128xbf16, #tpu.memory_space<vmem>>, %arg5: memref<3x1x128xf32, #tpu.memory_space<vmem>>, %arg6: memref<128x128xbf16, #tpu.memory_space<vmem>>, %arg7: memref<1024x128xf32, #tpu.memory_space<vmem>>) attributes {dimension_semantics = [#tpu.dimension_semantics<parallel>], iteration_bounds = array<i64: 2>, scalar_prefetch = 0 : i64, scratch_operands = 0 : i64, tpu.core_type = #tpu.core_type<tc>, window_params = [{transform_indices = @transform_0, window_bounds = array<i64: 1024, 2>}, {pipeline_mode = #tpu.pipeline_mode<synchronous>, transform_indices = @transform_1, window_bounds = array<i64: 2, 128>}, {pipeline_mode = #tpu.pipeline_mode<synchronous>, transform_indices = @transform_2, window_bounds = array<i64: 1, 128>}, {pipeline_mode = #tpu.pipeline_mode<synchronous>, transform_indices = @transform_3, window_bounds = array<i64: 3, 128, 128>}, {pipeline_mode = #tpu.pipeline_mode<synchronous>, transform_indices = @transform_4, window_bounds = array<i64: 3, 1, 128>}, {pipeline_mode = #tpu.pipeline_mode<synchronous>, transform_indices = @transform_5, window_bounds = array<i64: 128, 128>}, {transform_indices = @transform_6, window_bounds = array<i64: 1024, 128>}]} {
    %c0 = arith.constant 0 : index
    %c0_0 = arith.constant 0 : index
    %0 = vector.load %arg1[%c0, %c0_0] : memref<1024x2xf32, #tpu.memory_space<vmem>>, vector<1024x2xf32>
    %1 = vector.extract_strided_slice %0 {offsets = [0, 0], sizes = [1024, 1], strides = [1, 1]} : vector<1024x2xf32> to vector<1024x1xf32>
    %c0_1 = arith.constant 0 : index
    %c0_2 = arith.constant 0 : index
    %2 = vector.load %arg2[%c0_1, %c0_2] : memref<2x128xf32, #tpu.memory_space<vmem>>, vector<1x128xf32>
    %3 = vector.broadcast %1 : vector<1024x1xf32> to vector<1024x128xf32>
    %4 = vector.broadcast %2 : vector<1x128xf32> to vector<1024x128xf32>
    %5 = arith.mulf %3, %4 : vector<1024x128xf32>
    %6 = vector.extract_strided_slice %0 {offsets = [0, 1], sizes = [1024, 1], strides = [1, 1]} : vector<1024x2xf32> to vector<1024x1xf32>
    %c1 = arith.constant 1 : index
    %c0_3 = arith.constant 0 : index
    %7 = vector.load %arg2[%c1, %c0_3] : memref<2x128xf32, #tpu.memory_space<vmem>>, vector<1x128xf32>
    %8 = vector.broadcast %6 : vector<1024x1xf32> to vector<1024x128xf32>
    %9 = vector.broadcast %7 : vector<1x128xf32> to vector<1024x128xf32>
    %10 = arith.mulf %8, %9 : vector<1024x128xf32>
    %11 = arith.addf %5, %10 : vector<1024x128xf32>
    %c0_4 = arith.constant 0 : index
    %c0_5 = arith.constant 0 : index
    %12 = vector.load %arg3[%c0_4, %c0_5] : memref<1x128xf32, #tpu.memory_space<vmem>>, vector<1x128xf32>
    %13 = vector.broadcast %12 : vector<1x128xf32> to vector<1024x128xf32>
    %14 = arith.addf %11, %13 : vector<1024x128xf32>
    %15 = math.absf %14 : vector<1024x128xf32>
    %cst = arith.constant 1.000000e+00 : f32
    %16 = vector.broadcast %cst : f32 to vector<1024x128xf32>
    %17 = arith.addf %15, %16 : vector<1024x128xf32>
    %18 = arith.mulf %17, %14 : vector<1024x128xf32>
    %19 = arith.mulf %18, %18 : vector<1024x128xf32>
    %cst_6 = arith.constant -2.812500e+03 : f32
    %20 = vector.broadcast %cst_6 : f32 to vector<1024x128xf32>
    %21 = arith.mulf %20, %19 : vector<1024x128xf32>
    %22 = math.exp %21 : vector<1024x128xf32>
    %23 = arith.truncf %22 : vector<1024x128xf32> to vector<1024x128xbf16>
    %c0_7 = arith.constant 0 : index
    %c0_8 = arith.constant 0 : index
    %c0_9 = arith.constant 0 : index
    %24 = vector.load %arg4[%c0_7, %c0_8, %c0_9] : memref<3x128x128xbf16, #tpu.memory_space<vmem>>, vector<1x128x128xbf16>
    %25 = vector.shape_cast %24 : vector<1x128x128xbf16> to vector<128x128xbf16>
    %cst_10 = arith.constant dense<0.000000e+00> : vector<1024x128xf32>
    %26 = tpu.matmul %23, %25, %cst_10 {dimension_numbers = #tpu.dot_dimension_numbers<[1], [0], [0], [1], [0, 0, 1, 1], [], []>} : vector<1024x128xbf16>, vector<128x128xbf16>, vector<1024x128xf32> -> vector<1024x128xf32>
    %c0_11 = arith.constant 0 : index
    %c0_12 = arith.constant 0 : index
    %c0_13 = arith.constant 0 : index
    %27 = vector.load %arg5[%c0_11, %c0_12, %c0_13] : memref<3x1x128xf32, #tpu.memory_space<vmem>>, vector<1x1x128xf32>
    %28 = vector.shape_cast %27 : vector<1x1x128xf32> to vector<1x128xf32>
    %29 = vector.broadcast %28 : vector<1x128xf32> to vector<1024x128xf32>
    %30 = arith.addf %26, %29 : vector<1024x128xf32>
    %31 = math.absf %30 : vector<1024x128xf32>
    %cst_14 = arith.constant 1.000000e+00 : f32
    %32 = vector.broadcast %cst_14 : f32 to vector<1024x128xf32>
    %33 = arith.addf %31, %32 : vector<1024x128xf32>
    %34 = arith.mulf %33, %30 : vector<1024x128xf32>
    %35 = arith.mulf %34, %34 : vector<1024x128xf32>
    %cst_15 = arith.constant -2.812500e+03 : f32
    %36 = vector.broadcast %cst_15 : f32 to vector<1024x128xf32>
    %37 = arith.mulf %36, %35 : vector<1024x128xf32>
    %38 = math.exp %37 : vector<1024x128xf32>
    %39 = arith.truncf %38 : vector<1024x128xf32> to vector<1024x128xbf16>
    %c1_16 = arith.constant 1 : index
    %c0_17 = arith.constant 0 : index
    %c0_18 = arith.constant 0 : index
    %40 = vector.load %arg4[%c1_16, %c0_17, %c0_18] : memref<3x128x128xbf16, #tpu.memory_space<vmem>>, vector<1x128x128xbf16>
    %41 = vector.shape_cast %40 : vector<1x128x128xbf16> to vector<128x128xbf16>
    %cst_19 = arith.constant dense<0.000000e+00> : vector<1024x128xf32>
    %42 = tpu.matmul %39, %41, %cst_19 {dimension_numbers = #tpu.dot_dimension_numbers<[1], [0], [0], [1], [0, 0, 1, 1], [], []>} : vector<1024x128xbf16>, vector<128x128xbf16>, vector<1024x128xf32> -> vector<1024x128xf32>
    %c1_20 = arith.constant 1 : index
    %c0_21 = arith.constant 0 : index
    %c0_22 = arith.constant 0 : index
    %43 = vector.load %arg5[%c1_20, %c0_21, %c0_22] : memref<3x1x128xf32, #tpu.memory_space<vmem>>, vector<1x1x128xf32>
    %44 = vector.shape_cast %43 : vector<1x1x128xf32> to vector<1x128xf32>
    %45 = vector.broadcast %44 : vector<1x128xf32> to vector<1024x128xf32>
    %46 = arith.addf %42, %45 : vector<1024x128xf32>
    %47 = math.absf %46 : vector<1024x128xf32>
    %cst_23 = arith.constant 1.000000e+00 : f32
    %48 = vector.broadcast %cst_23 : f32 to vector<1024x128xf32>
    %49 = arith.addf %47, %48 : vector<1024x128xf32>
    %50 = arith.mulf %49, %46 : vector<1024x128xf32>
    %51 = arith.mulf %50, %50 : vector<1024x128xf32>
    %cst_24 = arith.constant -2.812500e+03 : f32
    %52 = vector.broadcast %cst_24 : f32 to vector<1024x128xf32>
    %53 = arith.mulf %52, %51 : vector<1024x128xf32>
    %54 = math.exp %53 : vector<1024x128xf32>
    %55 = arith.truncf %54 : vector<1024x128xf32> to vector<1024x128xbf16>
    %c2 = arith.constant 2 : index
    %c0_25 = arith.constant 0 : index
    %c0_26 = arith.constant 0 : index
    %56 = vector.load %arg4[%c2, %c0_25, %c0_26] : memref<3x128x128xbf16, #tpu.memory_space<vmem>>, vector<1x128x128xbf16>
    %57 = vector.shape_cast %56 : vector<1x128x128xbf16> to vector<128x128xbf16>
    %cst_27 = arith.constant dense<0.000000e+00> : vector<1024x128xf32>
    %58 = tpu.matmul %55, %57, %cst_27 {dimension_numbers = #tpu.dot_dimension_numbers<[1], [0], [0], [1], [0, 0, 1, 1], [], []>} : vector<1024x128xbf16>, vector<128x128xbf16>, vector<1024x128xf32> -> vector<1024x128xf32>
    %c2_28 = arith.constant 2 : index
    %c0_29 = arith.constant 0 : index
    %c0_30 = arith.constant 0 : index
    %59 = vector.load %arg5[%c2_28, %c0_29, %c0_30] : memref<3x1x128xf32, #tpu.memory_space<vmem>>, vector<1x1x128xf32>
    %60 = vector.shape_cast %59 : vector<1x1x128xf32> to vector<1x128xf32>
    %61 = vector.broadcast %60 : vector<1x128xf32> to vector<1024x128xf32>
    %62 = arith.addf %58, %61 : vector<1024x128xf32>
    %63 = math.absf %62 : vector<1024x128xf32>
    %cst_31 = arith.constant 1.000000e+00 : f32
    %64 = vector.broadcast %cst_31 : f32 to vector<1024x128xf32>
    %65 = arith.addf %63, %64 : vector<1024x128xf32>
    %66 = arith.mulf %65, %62 : vector<1024x128xf32>
    %67 = arith.mulf %66, %66 : vector<1024x128xf32>
    %cst_32 = arith.constant -2.812500e+03 : f32
    %68 = vector.broadcast %cst_32 : f32 to vector<1024x128xf32>
    %69 = arith.mulf %68, %67 : vector<1024x128xf32>
    %70 = math.exp %69 : vector<1024x128xf32>
    %71 = arith.truncf %70 : vector<1024x128xf32> to vector<1024x128xbf16>
    %c0_33 = arith.constant 0 : index
    %c0_34 = arith.constant 0 : index
    %72 = vector.load %arg6[%c0_33, %c0_34] : memref<128x128xbf16, #tpu.memory_space<vmem>>, vector<128x128xbf16>
    %cst_35 = arith.constant dense<0.000000e+00> : vector<1024x128xf32>
    %73 = tpu.matmul %71, %72, %cst_35 {dimension_numbers = #tpu.dot_dimension_numbers<[1], [0], [0], [1], [0, 0, 1, 1], [], []>} : vector<1024x128xbf16>, vector<128x128xbf16>, vector<1024x128xf32> -> vector<1024x128xf32>
    %c0_36 = arith.constant 0 : index
    %c0_37 = arith.constant 0 : index
    %74 = vector.load %arg7[%c0_36, %c0_37] : memref<1024x128xf32, #tpu.memory_space<vmem>>, vector<1024x128xf32>
    tpu.vector_store %arg7[%c0_36, %c0_37], %73 {strides = array<i32>} : memref<1024x128xf32, #tpu.memory_space<vmem>>, vector<1024x128xf32>,
    return
  }
  func.func @transform_0(%arg0: i32) -> (i32, i32) {
    %c0_i32 = arith.constant 0 : i32
    %c0_i32_0 = arith.constant 0 : i32
    return %arg0, %c0_i32 : i32, i32
  }
  func.func @transform_1(%arg0: i32) -> (i32, i32) {
    %c0_i32 = arith.constant 0 : i32
    %c0_i32_0 = arith.constant 0 : i32
    %c0_i32_1 = arith.constant 0 : i32
    return %c0_i32, %c0_i32_0 : i32, i32
  }
  func.func @transform_2(%arg0: i32) -> (i32, i32) {
    %c0_i32 = arith.constant 0 : i32
    %c0_i32_0 = arith.constant 0 : i32
    %c0_i32_1 = arith.constant 0 : i32
    return %c0_i32, %c0_i32_0 : i32, i32
  }
  func.func @transform_3(%arg0: i32) -> (i32, i32, i32) {
    %c0_i32 = arith.constant 0 : i32
    %c0_i32_0 = arith.constant 0 : i32
    %c0_i32_1 = arith.constant 0 : i32
    %c0_i32_2 = arith.constant 0 : i32
    return %c0_i32, %c0_i32_0, %c0_i32_1 : i32, i32, i32
  }
  func.func @transform_4(%arg0: i32) -> (i32, i32, i32) {
    %c0_i32 = arith.constant 0 : i32
    %c0_i32_0 = arith.constant 0 : i32
    %c0_i32_1 = arith.constant 0 : i32
    %c0_i32_2 = arith.constant 0 : i32
    return %c0_i32, %c0_i32_0, %c0_i32_1 : i32, i32, i32
  }
  func.func @transform_5(%arg0: i32) -> (i32, i32) {
    %c0_i32 = arith.constant 0 : i32
    %c0_i32_0 = arith.constant 0 : i32
    %c0_i32_1 = arith.constant 0 : i32
    return %c0_i32, %c0_i32_0 : i32, i32
  }
  func.func @transform_6(%arg0: i32) -> (i32, i32) {
    %c0_i32 = arith.constant 0 : i32
    %c0_i32_0 = arith.constant 0 : i32
    return %arg0, %c0_i32 : i32, i32
  }
}

</mosaic_0001>

<llo_original>
// kernel: tpu_custom_call.1
$region0: #{tpu_custom_call.1}
  #allocation0 [shape = 'u32[]', space=smem, size = 0x4, offset = 0x4, fixed_abs, tag = 'smem constant byte address 0x4 - core index']
  #allocation1 [shape = 'u32[144,128]{1,0:T(1,128)}', space=vmem, size = 0x12000, scoped, tag = 'internal scratch']
  %s0 = inlined_call_operand.vmem [shape: f32[2048,2], index: 0, kind: input, shape index: {}]
  %s1 = inlined_call_operand.vmem [shape: f32[2,128], index: 1, kind: input, shape index: {}]
  %s2 = inlined_call_operand.vmem [shape: f32[1,128], index: 2, kind: input, shape index: {}]
  %s3 = inlined_call_operand.vmem [shape: bf16[3,128,128], index: 3, kind: input, shape index: {}]
  %s4 = inlined_call_operand.vmem [shape: f32[3,1,128], index: 4, kind: input, shape index: {}]
  %s5 = inlined_call_operand.vmem [shape: bf16[128,128], index: 5, kind: input, shape index: {}]
  %s6 = inlined_call_operand.hbm [shape: f32[2048,128], index: 6, kind: output, shape index: {}]
  %s7 = sld [smem:[#allocation0]]
  $region57: #{tpu_custom_call.1} parent=0
    _
  %s9 = ssub.s32 1, %s7
  %s10 = scalar_select 0, %s9, %s7
  $region1: #{tpu_custom_call.1} parent=0
    #allocation2 [shape = 'u8[1048576]{0}', space=vmem, size = 0x100000, scoped, tag = 'output window, operand 0']
    #allocation3 [shape = 's32[2]{0}', space=sflag, size = 0x8, scoped, tag = 'scoped memory for tpu_custom_call.1']
    %11 = vsyncpa [#allocation3], 0
    %s12 = scalar_lea.sflag [#allocation3], 1
    %13 = vsyncpa %s12, 0
    loop: start=0, step=1, limit=4
    $region2: #{tpu_custom_call.1} parent=1 // loop_pre_header
      _
    $region3: #{tpu_custom_call.1} parent=1 // loop_header
      %s15 = sphi 0, %s19
      %p16 = scmp.ge.s32.totalorder %s15, 4
      %s25 = sphi 0, %s27
      %s28 = sphi 0, %s25
      %s29 = sphi 0, %s28
      %s45 = sphi 0, %s29
      %s49 = sphi 0, %s49
      %s51 = sphi 0, %s49
      %s52 = sphi 0, %s51
      %s66 = sphi 0, %s52
      %s70 = sphi 0, %s70
      %s72 = sphi 0, %s70
      %s73 = sphi 0, %s72
      %s87 = sphi 0, %s73
      %s91 = sphi 0, %s91
      %s93 = sphi 0, %s91
      %s94 = sphi 0, %s93
      %s108 = sphi 0, %s94
      %s112 = sphi 0, %s112
      %s114 = sphi 0, %s112
      %s115 = sphi 0, %s114
      %s129 = sphi 0, %s115
      %s133 = sphi 0, %s133
      %s135 = sphi 0, %s133
      %s136 = sphi 0, %s135
      %s150 = sphi 0, %s136
      %s156 = sphi 0, %s158
      %s159 = sphi 0, %s156
      %s160 = sphi 0, %s159
      %s176 = sphi 0, %s160
    $region4: #{tpu_custom_call.1} parent=1 // loop_header_branch
      %18 = sbr.rel (%p16) target = $region8
    $region5: #{tpu_custom_call.1} parent=1 // loop_body
      %s20 = ssub.s32 %s15, 1
      %s21 = ssub.s32 %s15, 2
      %s22 = sadd.s32 %s15, 1
      %s23 = ssub.s32 %s15, %s22
      %p24 = scmp.eq.s32.totalorder %s23, 0
      %s26 = sadd.s32 %s25, 1
      %s27 = scalar_select %p24, %s25, %s26
      %p30 = pneg %p24
      %p31 = scmp.eq.s32.totalorder %s15, 1
      %p32 = por %p30, %p31
      %p33 = scmp.ne.s32.totalorder %s25, %s28
      %p34 = scmp.eq.s32.totalorder %s15, 0
      %p35 = por %p33, %p34
      %p36 = scmp.ne.s32.totalorder %s25, %s28
      %p37 = scmp.eq.s32.totalorder %s20, 1
      %p38 = por %p36, %p37
      %p39 = scmp.ne.s32.totalorder %s28, %s29
      %p40 = scmp.eq.s32.totalorder %s20, 0
      %p41 = por %p39, %p40
      %p42 = scmp.ne.s32.totalorder %s28, %s29
      %p43 = scmp.eq.s32.totalorder %s21, 1
      %p44 = por %p42, %p43
      %p46 = scmp.ne.s32.totalorder %s29, %s45
      %p47 = scmp.eq.s32.totalorder %s21, 0
      %p48 = por %p46, %p47
      %s50 = sadd.s32 %s49, 1
      %p53 = scmp.eq.s32.totalorder %s15, 1
      %p54 = scmp.ne.s32.totalorder %s49, %s51
      %p55 = scmp.eq.s32.totalorder %s15, 0
      %p56 = por %p54, %p55
      %p57 = scmp.ne.s32.totalorder %s49, %s51
      %p58 = scmp.eq.s32.totalorder %s20, 1
      %p59 = por %p57, %p58
      %p60 = scmp.ne.s32.totalorder %s51, %s52
      %p61 = scmp.eq.s32.totalorder %s20, 0
      %p62 = por %p60, %p61
      %p63 = scmp.ne.s32.totalorder %s51, %s52
      %p64 = scmp.eq.s32.totalorder %s21, 1
      %p65 = por %p63, %p64
      %p67 = scmp.ne.s32.totalorder %s52, %s66
      %p68 = scmp.eq.s32.totalorder %s21, 0
      %p69 = por %p67, %p68
      %s71 = sadd.s32 %s70, 1
      %p74 = scmp.eq.s32.totalorder %s15, 1
      %p75 = scmp.ne.s32.totalorder %s70, %s72
      %p76 = scmp.eq.s32.totalorder %s15, 0
      %p77 = por %p75, %p76
      %p78 = scmp.ne.s32.totalorder %s70, %s72
      %p79 = scmp.eq.s32.totalorder %s20, 1
      %p80 = por %p78, %p79
      %p81 = scmp.ne.s32.totalorder %s72, %s73
      %p82 = scmp.eq.s32.totalorder %s20, 0
      %p83 = por %p81, %p82
      %p84 = scmp.ne.s32.totalorder %s72, %s73
      %p85 = scmp.eq.s32.totalorder %s21, 1
      %p86 = por %p84, %p85
      %p88 = scmp.ne.s32.totalorder %s73, %s87
      %p89 = scmp.eq.s32.totalorder %s21, 0
      %p90 = por %p88, %p89
      %s92 = sadd.s32 %s91, 1
      %p95 = scmp.eq.s32.totalorder %s15, 1
      %p96 = scmp.ne.s32.totalorder %s91, %s93
      %p97 = scmp.eq.s32.totalorder %s15, 0
      %p98 = por %p96, %p97
      %p99 = scmp.ne.s32.totalorder %s91, %s93
      %p100 = scmp.eq.s32.totalorder %s20, 1
      %p101 = por %p99, %p100
      %p102 = scmp.ne.s32.totalorder %s93, %s94
      %p103 = scmp.eq.s32.totalorder %s20, 0
      %p104 = por %p102, %p103
      %p105 = scmp.ne.s32.totalorder %s93, %s94
      %p106 = scmp.eq.s32.totalorder %s21, 1
      %p107 = por %p105, %p106
      %p109 = scmp.ne.s32.totalorder %s94, %s108
      %p110 = scmp.eq.s32.totalorder %s21, 0
      %p111 = por %p109, %p110
      %s113 = sadd.s32 %s112, 1
      %p116 = scmp.eq.s32.totalorder %s15, 1
      %p117 = scmp.ne.s32.totalorder %s112, %s114
      %p118 = scmp.eq.s32.totalorder %s15, 0
      %p119 = por %p117, %p118
      %p120 = scmp.ne.s32.totalorder %s112, %s114
      %p121 = scmp.eq.s32.totalorder %s20, 1
      %p122 = por %p120, %p121
      %p123 = scmp.ne.s32.totalorder %s114, %s115
      %p124 = scmp.eq.s32.totalorder %s20, 0
      %p125 = por %p123, %p124
      %p126 = scmp.ne.s32.totalorder %s114, %s115
      %p127 = scmp.eq.s32.totalorder %s21, 1
      %p128 = por %p126, %p127
      %p130 = scmp.ne.s32.totalorder %s115, %s129
      %p131 = scmp.eq.s32.totalorder %s21, 0
      %p132 = por %p130, %p131
      %s134 = sadd.s32 %s133, 1
      %p137 = scmp.eq.s32.totalorder %s15, 1
      %p138 = scmp.ne.s32.totalorder %s133, %s135
      %p139 = scmp.eq.s32.totalorder %s15, 0
      %p140 = por %p138, %p139
      %p141 = scmp.ne.s32.totalorder %s133, %s135
      %p142 = scmp.eq.s32.totalorder %s20, 1
      %p143 = por %p141, %p142
      %p144 = scmp.ne.s32.totalorder %s135, %s136
      %p145 = scmp.eq.s32.totalorder %s20, 0
      %p146 = por %p144, %p145
      %p147 = scmp.ne.s32.totalorder %s135, %s136
      %p148 = scmp.eq.s32.totalorder %s21, 1
      %p149 = por %p147, %p148
      %p151 = scmp.ne.s32.totalorder %s136, %s150
      %p152 = scmp.eq.s32.totalorder %s21, 0
      %p153 = por %p151, %p152
      %s154 = ssub.s32 %s15, %s22
      %p155 = scmp.eq.s32.totalorder %s154, 0
      %s157 = sadd.s32 %s156, 1
      %s158 = scalar_select %p155, %s156, %s157
      %p161 = pneg %p155
      %p162 = scmp.eq.s32.totalorder %s15, 1
      %p163 = por %p161, %p162
      %p164 = scmp.ne.s32.totalorder %s156, %s159
      %p165 = scmp.eq.s32.totalorder %s15, 0
      %p166 = por %p164, %p165
      %p167 = scmp.ne.s32.totalorder %s156, %s159
      %p168 = scmp.eq.s32.totalorder %s20, 1
      %p169 = por %p167, %p168
      %p170 = scmp.ne.s32.totalorder %s159, %s160
      %p171 = scmp.eq.s32.totalorder %s20, 0
      %p172 = por %p170, %p171
      %p173 = scmp.ne.s32.totalorder %s159, %s160
      %p174 = scmp.eq.s32.totalorder %s21, 1
      %p175 = por %p173, %p174
      %p177 = scmp.ne.s32.totalorder %s160, %s176
      %p178 = scmp.eq.s32.totalorder %s21, 0
      %p179 = por %p177, %p178
      %p180 = scmp.le.s32.totalorder 1, %s15
      %p181 = scmp.lt.s32.totalorder %s15, 3
      %p182 = pnand %p180, %p181
      %p183 = pneg %p182
      // Predicated region
      $region9: #{tpu_custom_call.1} parent=5 // pred_check
        _
      $region10: #{tpu_custom_call.1} parent=5 // pred_check_branch
        %185 = sbr.rel (%p182) target = $region12
      $region11: #{tpu_custom_call.1} parent=5 // pred_region
        %s186 = ssub.s32 %s15, 1
        // Predicated region
        $region13: #{tpu_custom_call.1} parent=11 // pred_check
          %p187 = pneg %p62
        $region14: #{tpu_custom_call.1} parent=11 // pred_check_branch
          %189 = sbr.rel (%p187) target = $region16
        $region15: #{tpu_custom_call.1} parent=11 // pred_region
          _
        $region16: #{tpu_custom_call.1} parent=11 // pred_fallthru
          _
        // Predicated region
        $region17: #{tpu_custom_call.1} parent=11 // pred_check
          %p190 = pneg %p83
        $region18: #{tpu_custom_call.1} parent=11 // pred_check_branch
          %192 = sbr.rel (%p190) target = $region20
        $region19: #{tpu_custom_call.1} parent=11 // pred_region
          _
        $region20: #{tpu_custom_call.1} parent=11 // pred_fallthru
          _
        // Predicated region
        $region21: #{tpu_custom_call.1} parent=11 // pred_check
          %p193 = pneg %p104
        $region22: #{tpu_custom_call.1} parent=11 // pred_check_branch
          %195 = sbr.rel (%p193) target = $region24
        $region23: #{tpu_custom_call.1} parent=11 // pred_region
          _
        $region24: #{tpu_custom_call.1} parent=11 // pred_fallthru
          _
        // Predicated region
        $region25: #{tpu_custom_call.1} parent=11 // pred_check
          %p196 = pneg %p125
        $region26: #{tpu_custom_call.1} parent=11 // pred_check_branch
          %198 = sbr.rel (%p196) target = $region28
        $region27: #{tpu_custom_call.1} parent=11 // pred_region
          _
        $region28: #{tpu_custom_call.1} parent=11 // pred_fallthru
          _
        // Predicated region
        $region29: #{tpu_custom_call.1} parent=11 // pred_check
          %p199 = pneg %p146
        $region30: #{tpu_custom_call.1} parent=11 // pred_check_branch
          %201 = sbr.rel (%p199) target = $region32
        $region31: #{tpu_custom_call.1} parent=11 // pred_region
          _
        $region32: #{tpu_custom_call.1} parent=11 // pred_fallthru
          _
      $region12: #{tpu_custom_call.1} parent=5 // pred_fallthru
        _
      %p202 = scmp.lt.s32.totalorder %s15, 2
      // Predicated region
      $region33: #{tpu_custom_call.1} parent=5 // pred_check
        %p203 = pneg %p202
      $region34: #{tpu_custom_call.1} parent=5 // pred_check_branch
        %205 = sbr.rel (%p203) target = $region36
      $region35: #{tpu_custom_call.1} parent=5 // pred_region
        // Predicated region
        $region37: #{tpu_custom_call.1} parent=35 // pred_check
          %p206 = pneg %p35
        $region38: #{tpu_custom_call.1} parent=35 // pred_check_branch
          %208 = sbr.rel (%p206) target = $region40
        $region39: #{tpu_custom_call.1} parent=35 // pred_region
          %s209 = smul.u32 128, %s15
          %p210 = scmp.lt.s32.totalorder %s209, 255
          %s211 = scalar_select %p210, %s209, 255
          %s212 = smul.addr %s211, 8
          %s213 = scalar_lea.vmem %s0, %s212
          %s214 = smul.u32 128, %s15
        $region40: #{tpu_custom_call.1} parent=35 // pred_fallthru
          _
      $region36: #{tpu_custom_call.1} parent=5 // pred_fallthru
        _
      %p215 = scmp.le.s32.totalorder 1, %s15
      %p216 = scmp.lt.s32.totalorder %s15, 3
      %p217 = pnand %p215, %p216
      %p218 = pneg %p217
      // Predicated region
      $region41: #{tpu_custom_call.1} parent=5 // pred_check
        _
      $region42: #{tpu_custom_call.1} parent=5 // pred_check_branch
        %220 = sbr.rel (%p217) target = $region44
      $region43: #{tpu_custom_call.1} parent=5 // pred_region
        %s221 = ssub.s32 %s15, 1
        %s222 = smul.u32 128, %s20
        %p223 = scmp.lt.s32.totalorder %s222, 255
        %s224 = scalar_select %p223, %s222, 255
        %s225 = smul.addr %s224, 8
        %s226 = scalar_lea.vmem %s0, %s225
        %p227 = pneg %p41
        %p228 = pneg %p38
        %p229 = pneg %p62
        %p230 = pneg %p59
        %p231 = pneg %p83
        %p232 = pneg %p80
        %p233 = pneg %p104
        %p234 = pneg %p101
        %p235 = pneg %p125
        %p236 = pneg %p122
        %p237 = pneg %p146
        %p238 = pneg %p143
        %p239 = pneg %p172
        %p240 = pneg %p169
        %s241 = sand.u32 %s159, 1
        %s242 = scalar_lea.sflag [#allocation3], %s241
        %s243 = sand.u32 %s159, 1
        %s244 = smul.addr %s243, 1024
        %s245 = scalar_lea.vmem [#allocation2], %s244
        %s246 = smul.u32 128, %s20
        %p247 = scmp.lt.s32.totalorder %s246, 255
        %s248 = scalar_select %p247, %s246, 255
        %s249 = smul.addr %s248, 8
        %s250 = scalar_lea.vmem %s0, %s249
        %s251 = smul.u32 128, %s20
        %s252 = smul.u32 128, %s20
        %v254 = vld [vmem:[%s250] sm:$0xff]
        %v255 = vld [vmem:[%s250 + $0x8] sm:$0xff]
        %v256 = vld [vmem:[%s250 + $0x10] sm:$0xff]
        %v257 = vld [vmem:[%s250 + $0x18] sm:$0xff]
        %v258 = vld [vmem:[%s250 + $0x20] sm:$0xff]
        %v259 = vld [vmem:[%s250 + $0x28] sm:$0xff]
        %v260 = vld [vmem:[%s250 + $0x30] sm:$0xff]
        %v261 = vld [vmem:[%s250 + $0x38] sm:$0xff]
        %v262 = vld [vmem:[%s250 + $0x40] sm:$0xff]
        %v263 = vld [vmem:[%s250 + $0x48] sm:$0xff]
        %v264 = vld [vmem:[%s250 + $0x50] sm:$0xff]
        %v265 = vld [vmem:[%s250 + $0x58] sm:$0xff]
        %v266 = vld [vmem:[%s250 + $0x60] sm:$0xff]
        %v267 = vld [vmem:[%s250 + $0x68] sm:$0xff]
        %v268 = vld [vmem:[%s250 + $0x70] sm:$0xff]
        %v269 = vld [vmem:[%s250 + $0x78] sm:$0xff]
        %v270 = vld [vmem:[%s250 + $0x80] sm:$0xff]
        %v271 = vld [vmem:[%s250 + $0x88] sm:$0xff]
        %v272 = vld [vmem:[%s250 + $0x90] sm:$0xff]
        %v273 = vld [vmem:[%s250 + $0x98] sm:$0xff]
        %v274 = vld [vmem:[%s250 + $0xa0] sm:$0xff]
        %v275 = vld [vmem:[%s250 + $0xa8] sm:$0xff]
        %v276 = vld [vmem:[%s250 + $0xb0] sm:$0xff]
        %v277 = vld [vmem:[%s250 + $0xb8] sm:$0xff]
        %v278 = vld [vmem:[%s250 + $0xc0] sm:$0xff]
        %v279 = vld [vmem:[%s250 + $0xc8] sm:$0xff]
        %v280 = vld [vmem:[%s250 + $0xd0] sm:$0xff]
        %v281 = vld [vmem:[%s250 + $0xd8] sm:$0xff]
        %v282 = vld [vmem:[%s250 + $0xe0] sm:$0xff]
        %v283 = vld [vmem:[%s250 + $0xe8] sm:$0xff]
        %v284 = vld [vmem:[%s250 + $0xf0] sm:$0xff]
        %v285 = vld [vmem:[%s250 + $0xf8] sm:$0xff]
        %v286 = vld [vmem:[%s250 + $0x100] sm:$0xff]
        %v287 = vld [vmem:[%s250 + $0x108] sm:$0xff]
        %v288 = vld [vmem:[%s250 + $0x110] sm:$0xff]
        %v289 = vld [vmem:[%s250 + $0x118] sm:$0xff]
        %v290 = vld [vmem:[%s250 + $0x120] sm:$0xff]
        %v291 = vld [vmem:[%s250 + $0x128] sm:$0xff]
        %v292 = vld [vmem:[%s250 + $0x130] sm:$0xff]
        %v293 = vld [vmem:[%s250 + $0x138] sm:$0xff]
        %v294 = vld [vmem:[%s250 + $0x140] sm:$0xff]
        %v295 = vld [vmem:[%s250 + $0x148] sm:$0xff]
        %v296 = vld [vmem:[%s250 + $0x150] sm:$0xff]
        %v297 = vld [vmem:[%s250 + $0x158] sm:$0xff]
        %v298 = vld [vmem:[%s250 + $0x160] sm:$0xff]
        %v299 = vld [vmem:[%s250 + $0x168] sm:$0xff]
        %v300 = vld [vmem:[%s250 + $0x170] sm:$0xff]
        %v301 = vld [vmem:[%s250 + $0x178] sm:$0xff]
        %v302 = vld [vmem:[%s250 + $0x180] sm:$0xff]
        %v303 = vld [vmem:[%s250 + $0x188] sm:$0xff]
        %v304 = vld [vmem:[%s250 + $0x190] sm:$0xff]
        %v305 = vld [vmem:[%s250 + $0x198] sm:$0xff]
        %v306 = vld [vmem:[%s250 + $0x1a0] sm:$0xff]
        %v307 = vld [vmem:[%s250 + $0x1a8] sm:$0xff]
        %v308 = vld [vmem:[%s250 + $0x1b0] sm:$0xff]
        %v309 = vld [vmem:[%s250 + $0x1b8] sm:$0xff]
        %v310 = vld [vmem:[%s250 + $0x1c0] sm:$0xff]
        %v311 = vld [vmem:[%s250 + $0x1c8] sm:$0xff]
        %v312 = vld [vmem:[%s250 + $0x1d0] sm:$0xff]
        %v313 = vld [vmem:[%s250 + $0x1d8] sm:$0xff]
        %v314 = vld [vmem:[%s250 + $0x1e0] sm:$0xff]
        %v315 = vld [vmem:[%s250 + $0x1e8] sm:$0xff]
        %v316 = vld [vmem:[%s250 + $0x1f0] sm:$0xff]
        %v317 = vld [vmem:[%s250 + $0x1f8] sm:$0xff]
        %v318 = vld [vmem:[%s250 + $0x200] sm:$0xff]
        %v319 = vld [vmem:[%s250 + $0x208] sm:$0xff]
        %v320 = vld [vmem:[%s250 + $0x210] sm:$0xff]
        %v321 = vld [vmem:[%s250 + $0x218] sm:$0xff]
        %v322 = vld [vmem:[%s250 + $0x220] sm:$0xff]
        %v323 = vld [vmem:[%s250 + $0x228] sm:$0xff]
        %v324 = vld [vmem:[%s250 + $0x230] sm:$0xff]
        %v325 = vld [vmem:[%s250 + $0x238] sm:$0xff]
        %v326 = vld [vmem:[%s250 + $0x240] sm:$0xff]
        %v327 = vld [vmem:[%s250 + $0x248] sm:$0xff]
        %v328 = vld [vmem:[%s250 + $0x250] sm:$0xff]
        %v329 = vld [vmem:[%s250 + $0x258] sm:$0xff]
        %v330 = vld [vmem:[%s250 + $0x260] sm:$0xff]
        %v331 = vld [vmem:[%s250 + $0x268] sm:$0xff]
        %v332 = vld [vmem:[%s250 + $0x270] sm:$0xff]
        %v333 = vld [vmem:[%s250 + $0x278] sm:$0xff]
        %v334 = vld [vmem:[%s250 + $0x280] sm:$0xff]
        %v335 = vld [vmem:[%s250 + $0x288] sm:$0xff]
        %v336 = vld [vmem:[%s250 + $0x290] sm:$0xff]
        %v337 = vld [vmem:[%s250 + $0x298] sm:$0xff]
        %v338 = vld [vmem:[%s250 + $0x2a0] sm:$0xff]
        %v339 = vld [vmem:[%s250 + $0x2a8] sm:$0xff]
        %v340 = vld [vmem:[%s250 + $0x2b0] sm:$0xff]
        %v341 = vld [vmem:[%s250 + $0x2b8] sm:$0xff]
        %v342 = vld [vmem:[%s250 + $0x2c0] sm:$0xff]
        %v343 = vld [vmem:[%s250 + $0x2c8] sm:$0xff]
        %v344 = vld [vmem:[%s250 + $0x2d0] sm:$0xff]
        %v345 = vld [vmem:[%s250 + $0x2d8] sm:$0xff]
        %v346 = vld [vmem:[%s250 + $0x2e0] sm:$0xff]
        %v347 = vld [vmem:[%s250 + $0x2e8] sm:$0xff]
        %v348 = vld [vmem:[%s250 + $0x2f0] sm:$0xff]
        %v349 = vld [vmem:[%s250 + $0x2f8] sm:$0xff]
        %v350 = vld [vmem:[%s250 + $0x300] sm:$0xff]
        %v351 = vld [vmem:[%s250 + $0x308] sm:$0xff]
        %v352 = vld [vmem:[%s250 + $0x310] sm:$0xff]
        %v353 = vld [vmem:[%s250 + $0x318] sm:$0xff]
        %v354 = vld [vmem:[%s250 + $0x320] sm:$0xff]
        %v355 = vld [vmem:[%s250 + $0x328] sm:$0xff]
        %v356 = vld [vmem:[%s250 + $0x330] sm:$0xff]
        %v357 = vld [vmem:[%s250 + $0x338] sm:$0xff]
        %v358 = vld [vmem:[%s250 + $0x340] sm:$0xff]
        %v359 = vld [vmem:[%s250 + $0x348] sm:$0xff]
        %v360 = vld [vmem:[%s250 + $0x350] sm:$0xff]
        %v361 = vld [vmem:[%s250 + $0x358] sm:$0xff]
        %v362 = vld [vmem:[%s250 + $0x360] sm:$0xff]
        %v363 = vld [vmem:[%s250 + $0x368] sm:$0xff]
        %v364 = vld [vmem:[%s250 + $0x370] sm:$0xff]
        %v365 = vld [vmem:[%s250 + $0x378] sm:$0xff]
        %v366 = vld [vmem:[%s250 + $0x380] sm:$0xff]
        %v367 = vld [vmem:[%s250 + $0x388] sm:$0xff]
        %v368 = vld [vmem:[%s250 + $0x390] sm:$0xff]
        %v369 = vld [vmem:[%s250 + $0x398] sm:$0xff]
        %v370 = vld [vmem:[%s250 + $0x3a0] sm:$0xff]
        %v371 = vld [vmem:[%s250 + $0x3a8] sm:$0xff]
        %v372 = vld [vmem:[%s250 + $0x3b0] sm:$0xff]
        %v373 = vld [vmem:[%s250 + $0x3b8] sm:$0xff]
        %v374 = vld [vmem:[%s250 + $0x3c0] sm:$0xff]
        %v375 = vld [vmem:[%s250 + $0x3c8] sm:$0xff]
        %v376 = vld [vmem:[%s250 + $0x3d0] sm:$0xff]
        %v377 = vld [vmem:[%s250 + $0x3d8] sm:$0xff]
        %v378 = vld [vmem:[%s250 + $0x3e0] sm:$0xff]
        %v379 = vld [vmem:[%s250 + $0x3e8] sm:$0xff]
        %v380 = vld [vmem:[%s250 + $0x3f0] sm:$0xff]
        %v381 = vld [vmem:[%s250 + $0x3f8] sm:$0xff]
        %v382 = vld [vmem:[%s1] sm:$0x1]
        %384 = vset.pattern.permute.xlu0 0
        %385 = vperm.xlu0 %384, %v254
        %v386 = vpop.permute.xlu0 %385
        %389 = vset.pattern.permute.xlu0 0
        %390 = vperm.xlu0 %389, %v255
        %v391 = vpop.permute.xlu0 %390
        %394 = vset.pattern.permute.xlu0 0
        %395 = vperm.xlu0 %394, %v256
        %v396 = vpop.permute.xlu0 %395
        %399 = vset.pattern.permute.xlu0 0
        %400 = vperm.xlu0 %399, %v257
        %v401 = vpop.permute.xlu0 %400
        %404 = vset.pattern.permute.xlu0 0
        %405 = vperm.xlu0 %404, %v258
        %v406 = vpop.permute.xlu0 %405
        %409 = vset.pattern.permute.xlu0 0
        %410 = vperm.xlu0 %409, %v259
        %v411 = vpop.permute.xlu0 %410
        %414 = vset.pattern.permute.xlu0 0
        %415 = vperm.xlu0 %414, %v260
        %v416 = vpop.permute.xlu0 %415
        %419 = vset.pattern.permute.xlu0 0
        %420 = vperm.xlu0 %419, %v261
        %v421 = vpop.permute.xlu0 %420
        %424 = vset.pattern.permute.xlu0 0
        %425 = vperm.xlu0 %424, %v262
        %v426 = vpop.permute.xlu0 %425
        %429 = vset.pattern.permute.xlu0 0
        %430 = vperm.xlu0 %429, %v263
        %v431 = vpop.permute.xlu0 %430
        %434 = vset.pattern.permute.xlu0 0
        %435 = vperm.xlu0 %434, %v264
        %v436 = vpop.permute.xlu0 %435
        %439 = vset.pattern.permute.xlu0 0
        %440 = vperm.xlu0 %439, %v265
        %v441 = vpop.permute.xlu0 %440
        %444 = vset.pattern.permute.xlu0 0
        %445 = vperm.xlu0 %444, %v266
        %v446 = vpop.permute.xlu0 %445
        %449 = vset.pattern.permute.xlu0 0
        %450 = vperm.xlu0 %449, %v267
        %v451 = vpop.permute.xlu0 %450
        %454 = vset.pattern.permute.xlu0 0
        %455 = vperm.xlu0 %454, %v268
        %v456 = vpop.permute.xlu0 %455
        %459 = vset.pattern.permute.xlu0 0
        %460 = vperm.xlu0 %459, %v269
        %v461 = vpop.permute.xlu0 %460
        %464 = vset.pattern.permute.xlu0 0
        %465 = vperm.xlu0 %464, %v270
        %v466 = vpop.permute.xlu0 %465
        %469 = vset.pattern.permute.xlu0 0
        %470 = vperm.xlu0 %469, %v271
        %v471 = vpop.permute.xlu0 %470
        %474 = vset.pattern.permute.xlu0 0
        %475 = vperm.xlu0 %474, %v272
        %v476 = vpop.permute.xlu0 %475
        %479 = vset.pattern.permute.xlu0 0
        %480 = vperm.xlu0 %479, %v273
        %v481 = vpop.permute.xlu0 %480
        %484 = vset.pattern.permute.xlu0 0
        %485 = vperm.xlu0 %484, %v274
        %v486 = vpop.permute.xlu0 %485
        %489 = vset.pattern.permute.xlu0 0
        %490 = vperm.xlu0 %489, %v275
        %v491 = vpop.permute.xlu0 %490
        %494 = vset.pattern.permute.xlu0 0
        %495 = vperm.xlu0 %494, %v276
        %v496 = vpop.permute.xlu0 %495
        %499 = vset.pattern.permute.xlu0 0
        %500 = vperm.xlu0 %499, %v277
        %v501 = vpop.permute.xlu0 %500
        %504 = vset.pattern.permute.xlu0 0
        %505 = vperm.xlu0 %504, %v278
        %v506 = vpop.permute.xlu0 %505
        %509 = vset.pattern.permute.xlu0 0
        %510 = vperm.xlu0 %509, %v279
        %v511 = vpop.permute.xlu0 %510
        %514 = vset.pattern.permute.xlu0 0
        %515 = vperm.xlu0 %514, %v280
        %v516 = vpop.permute.xlu0 %515
        %519 = vset.pattern.permute.xlu0 0
        %520 = vperm.xlu0 %519, %v281
        %v521 = vpop.permute.xlu0 %520
        %524 = vset.pattern.permute.xlu0 0
        %525 = vperm.xlu0 %524, %v282
        %v526 = vpop.permute.xlu0 %525
        %529 = vset.pattern.permute.xlu0 0
        %530 = vperm.xlu0 %529, %v283
        %v531 = vpop.permute.xlu0 %530
        %534 = vset.pattern.permute.xlu0 0
        %535 = vperm.xlu0 %534, %v284
        %v536 = vpop.permute.xlu0 %535
        %539 = vset.pattern.permute.xlu0 0
        %540 = vperm.xlu0 %539, %v285
        %v541 = vpop.permute.xlu0 %540
        %544 = vset.pattern.permute.xlu0 0
        %545 = vperm.xlu0 %544, %v286
        %v546 = vpop.permute.xlu0 %545
        %549 = vset.pattern.permute.xlu0 0
        %550 = vperm.xlu0 %549, %v287
        %v551 = vpop.permute.xlu0 %550
        %554 = vset.pattern.permute.xlu0 0
        %555 = vperm.xlu0 %554, %v288
        %v556 = vpop.permute.xlu0 %555
        %559 = vset.pattern.permute.xlu0 0
        %560 = vperm.xlu0 %559, %v289
        %v561 = vpop.permute.xlu0 %560
        %564 = vset.pattern.permute.xlu0 0
        %565 = vperm.xlu0 %564, %v290
        %v566 = vpop.permute.xlu0 %565
        %569 = vset.pattern.permute.xlu0 0
        %570 = vperm.xlu0 %569, %v291
        %v571 = vpop.permute.xlu0 %570
        %574 = vset.pattern.permute.xlu0 0
        %575 = vperm.xlu0 %574, %v292
        %v576 = vpop.permute.xlu0 %575
        %579 = vset.pattern.permute.xlu0 0
        %580 = vperm.xlu0 %579, %v293
        %v581 = vpop.permute.xlu0 %580
        %584 = vset.pattern.permute.xlu0 0
        %585 = vperm.xlu0 %584, %v294
        %v586 = vpop.permute.xlu0 %585
        %589 = vset.pattern.permute.xlu0 0
        %590 = vperm.xlu0 %589, %v295
        %v591 = vpop.permute.xlu0 %590
        %594 = vset.pattern.permute.xlu0 0
        %595 = vperm.xlu0 %594, %v296
        %v596 = vpop.permute.xlu0 %595
        %599 = vset.pattern.permute.xlu0 0
        %600 = vperm.xlu0 %599, %v297
        %v601 = vpop.permute.xlu0 %600
        %604 = vset.pattern.permute.xlu0 0
        %605 = vperm.xlu0 %604, %v298
        %v606 = vpop.permute.xlu0 %605
        %609 = vset.pattern.permute.xlu0 0
        %610 = vperm.xlu0 %609, %v299
        %v611 = vpop.permute.xlu0 %610
        %614 = vset.pattern.permute.xlu0 0
        %615 = vperm.xlu0 %614, %v300
        %v616 = vpop.permute.xlu0 %615
        %619 = vset.pattern.permute.xlu0 0
        %620 = vperm.xlu0 %619, %v301
        %v621 = vpop.permute.xlu0 %620
        %624 = vset.pattern.permute.xlu0 0
        %625 = vperm.xlu0 %624, %v302
        %v626 = vpop.permute.xlu0 %625
        %629 = vset.pattern.permute.xlu0 0
        %630 = vperm.xlu0 %629, %v303
        %v631 = vpop.permute.xlu0 %630
        %634 = vset.pattern.permute.xlu0 0
        %635 = vperm.xlu0 %634, %v304
        %v636 = vpop.permute.xlu0 %635
        %639 = vset.pattern.permute.xlu0 0
        %640 = vperm.xlu0 %639, %v305
        %v641 = vpop.permute.xlu0 %640
        %644 = vset.pattern.permute.xlu0 0
        %645 = vperm.xlu0 %644, %v306
        %v646 = vpop.permute.xlu0 %645
        %649 = vset.pattern.permute.xlu0 0
        %650 = vperm.xlu0 %649, %v307
        %v651 = vpop.permute.xlu0 %650
        %654 = vset.pattern.permute.xlu0 0
        %655 = vperm.xlu0 %654, %v308
        %v656 = vpop.permute.xlu0 %655
        %659 = vset.pattern.permute.xlu0 0
        %660 = vperm.xlu0 %659, %v309
        %v661 = vpop.permute.xlu0 %660
        %664 = vset.pattern.permute.xlu0 0
        %665 = vperm.xlu0 %664, %v310
        %v666 = vpop.permute.xlu0 %665
        %669 = vset.pattern.permute.xlu0 0
        %670 = vperm.xlu0 %669, %v311
        %v671 = vpop.permute.xlu0 %670
        %674 = vset.pattern.permute.xlu0 0
        %675 = vperm.xlu0 %674, %v312
        %v676 = vpop.permute.xlu0 %675
        %679 = vset.pattern.permute.xlu0 0
        %680 = vperm.xlu0 %679, %v313
        %v681 = vpop.permute.xlu0 %680
        %684 = vset.pattern.permute.xlu0 0
        %685 = vperm.xlu0 %684, %v314
        %v686 = vpop.permute.xlu0 %685
        %689 = vset.pattern.permute.xlu0 0
        %690 = vperm.xlu0 %689, %v315
        %v691 = vpop.permute.xlu0 %690
        %694 = vset.pattern.permute.xlu0 0
        %695 = vperm.xlu0 %694, %v316
        %v696 = vpop.permute.xlu0 %695
        %699 = vset.pattern.permute.xlu0 0
        %700 = vperm.xlu0 %699, %v317
        %v701 = vpop.permute.xlu0 %700
        %704 = vset.pattern.permute.xlu0 0
        %705 = vperm.xlu0 %704, %v318
        %v706 = vpop.permute.xlu0 %705
        %709 = vset.pattern.permute.xlu0 0
        %710 = vperm.xlu0 %709, %v319
        %v711 = vpop.permute.xlu0 %710
        %714 = vset.pattern.permute.xlu0 0
        %715 = vperm.xlu0 %714, %v320
        %v716 = vpop.permute.xlu0 %715
        %719 = vset.pattern.permute.xlu0 0
        %720 = vperm.xlu0 %719, %v321
        %v721 = vpop.permute.xlu0 %720
        %724 = vset.pattern.permute.xlu0 0
        %725 = vperm.xlu0 %724, %v322
        %v726 = vpop.permute.xlu0 %725
        %729 = vset.pattern.permute.xlu0 0
        %730 = vperm.xlu0 %729, %v323
        %v731 = vpop.permute.xlu0 %730
        %734 = vset.pattern.permute.xlu0 0
        %735 = vperm.xlu0 %734, %v324
        %v736 = vpop.permute.xlu0 %735
        %739 = vset.pattern.permute.xlu0 0
        %740 = vperm.xlu0 %739, %v325
        %v741 = vpop.permute.xlu0 %740
        %744 = vset.pattern.permute.xlu0 0
        %745 = vperm.xlu0 %744, %v326
        %v746 = vpop.permute.xlu0 %745
        %749 = vset.pattern.permute.xlu0 0
        %750 = vperm.xlu0 %749, %v327
        %v751 = vpop.permute.xlu0 %750
        %754 = vset.pattern.permute.xlu0 0
        %755 = vperm.xlu0 %754, %v328
        %v756 = vpop.permute.xlu0 %755
        %759 = vset.pattern.permute.xlu0 0
        %760 = vperm.xlu0 %759, %v329
        %v761 = vpop.permute.xlu0 %760
        %764 = vset.pattern.permute.xlu0 0
        %765 = vperm.xlu0 %764, %v330
        %v766 = vpop.permute.xlu0 %765
        %769 = vset.pattern.permute.xlu0 0
        %770 = vperm.xlu0 %769, %v331
        %v771 = vpop.permute.xlu0 %770
        %774 = vset.pattern.permute.xlu0 0
        %775 = vperm.xlu0 %774, %v332
        %v776 = vpop.permute.xlu0 %775
        %779 = vset.pattern.permute.xlu0 0
        %780 = vperm.xlu0 %779, %v333
        %v781 = vpop.permute.xlu0 %780
        %784 = vset.pattern.permute.xlu0 0
        %785 = vperm.xlu0 %784, %v334
        %v786 = vpop.permute.xlu0 %785
        %789 = vset.pattern.permute.xlu0 0
        %790 = vperm.xlu0 %789, %v335
        %v791 = vpop.permute.xlu0 %790
        %794 = vset.pattern.permute.xlu0 0
        %795 = vperm.xlu0 %794, %v336
        %v796 = vpop.permute.xlu0 %795
        %799 = vset.pattern.permute.xlu0 0
        %800 = vperm.xlu0 %799, %v337
        %v801 = vpop.permute.xlu0 %800
        %804 = vset.pattern.permute.xlu0 0
        %805 = vperm.xlu0 %804, %v338
        %v806 = vpop.permute.xlu0 %805
        %809 = vset.pattern.permute.xlu0 0
        %810 = vperm.xlu0 %809, %v339
        %v811 = vpop.permute.xlu0 %810
        %814 = vset.pattern.permute.xlu0 0
        %815 = vperm.xlu0 %814, %v340
        %v816 = vpop.permute.xlu0 %815
        %819 = vset.pattern.permute.xlu0 0
        %820 = vperm.xlu0 %819, %v341
        %v821 = vpop.permute.xlu0 %820
        %824 = vset.pattern.permute.xlu0 0
        %825 = vperm.xlu0 %824, %v342
        %v826 = vpop.permute.xlu0 %825
        %829 = vset.pattern.permute.xlu0 0
        %830 = vperm.xlu0 %829, %v343
        %v831 = vpop.permute.xlu0 %830
        %834 = vset.pattern.permute.xlu0 0
        %835 = vperm.xlu0 %834, %v344
        %v836 = vpop.permute.xlu0 %835
        %839 = vset.pattern.permute.xlu0 0
        %840 = vperm.xlu0 %839, %v345
        %v841 = vpop.permute.xlu0 %840
        %844 = vset.pattern.permute.xlu0 0
        %845 = vperm.xlu0 %844, %v346
        %v846 = vpop.permute.xlu0 %845
        %849 = vset.pattern.permute.xlu0 0
        %850 = vperm.xlu0 %849, %v347
        %v851 = vpop.permute.xlu0 %850
        %854 = vset.pattern.permute.xlu0 0
        %855 = vperm.xlu0 %854, %v348
        %v856 = vpop.permute.xlu0 %855
        %859 = vset.pattern.permute.xlu0 0
        %860 = vperm.xlu0 %859, %v349
        %v861 = vpop.permute.xlu0 %860
        %864 = vset.pattern.permute.xlu0 0
        %865 = vperm.xlu0 %864, %v350
        %v866 = vpop.permute.xlu0 %865
        %869 = vset.pattern.permute.xlu0 0
        %870 = vperm.xlu0 %869, %v351
        %v871 = vpop.permute.xlu0 %870
        %874 = vset.pattern.permute.xlu0 0
        %875 = vperm.xlu0 %874, %v352
        %v876 = vpop.permute.xlu0 %875
        %879 = vset.pattern.permute.xlu0 0
        %880 = vperm.xlu0 %879, %v353
        %v881 = vpop.permute.xlu0 %880
        %884 = vset.pattern.permute.xlu0 0
        %885 = vperm.xlu0 %884, %v354
        %v886 = vpop.permute.xlu0 %885
        %889 = vset.pattern.permute.xlu0 0
        %890 = vperm.xlu0 %889, %v355
        %v891 = vpop.permute.xlu0 %890
        %894 = vset.pattern.permute.xlu0 0
        %895 = vperm.xlu0 %894, %v356
        %v896 = vpop.permute.xlu0 %895
        %899 = vset.pattern.permute.xlu0 0
        %900 = vperm.xlu0 %899, %v357
        %v901 = vpop.permute.xlu0 %900
        %904 = vset.pattern.permute.xlu0 0
        %905 = vperm.xlu0 %904, %v358
        %v906 = vpop.permute.xlu0 %905
        %909 = vset.pattern.permute.xlu0 0
        %910 = vperm.xlu0 %909, %v359
        %v911 = vpop.permute.xlu0 %910
        %914 = vset.pattern.permute.xlu0 0
        %915 = vperm.xlu0 %914, %v360
        %v916 = vpop.permute.xlu0 %915
        %919 = vset.pattern.permute.xlu0 0
        %920 = vperm.xlu0 %919, %v361
        %v921 = vpop.permute.xlu0 %920
        %924 = vset.pattern.permute.xlu0 0
        %925 = vperm.xlu0 %924, %v362
        %v926 = vpop.permute.xlu0 %925
        %929 = vset.pattern.permute.xlu0 0
        %930 = vperm.xlu0 %929, %v363
        %v931 = vpop.permute.xlu0 %930
        %934 = vset.pattern.permute.xlu0 0
        %935 = vperm.xlu0 %934, %v364
        %v936 = vpop.permute.xlu0 %935
        %939 = vset.pattern.permute.xlu0 0
        %940 = vperm.xlu0 %939, %v365
        %v941 = vpop.permute.xlu0 %940
        %944 = vset.pattern.permute.xlu0 0
        %945 = vperm.xlu0 %944, %v366
        %v946 = vpop.permute.xlu0 %945
        %949 = vset.pattern.permute.xlu0 0
        %950 = vperm.xlu0 %949, %v367
        %v951 = vpop.permute.xlu0 %950
        %954 = vset.pattern.permute.xlu0 0
        %955 = vperm.xlu0 %954, %v368
        %v956 = vpop.permute.xlu0 %955
        %959 = vset.pattern.permute.xlu0 0
        %960 = vperm.xlu0 %959, %v369
        %v961 = vpop.permute.xlu0 %960
        %964 = vset.pattern.permute.xlu0 0
        %965 = vperm.xlu0 %964, %v370
        %v966 = vpop.permute.xlu0 %965
        %969 = vset.pattern.permute.xlu0 0
        %970 = vperm.xlu0 %969, %v371
        %v971 = vpop.permute.xlu0 %970
        %974 = vset.pattern.permute.xlu0 0
        %975 = vperm.xlu0 %974, %v372
        %v976 = vpop.permute.xlu0 %975
        %979 = vset.pattern.permute.xlu0 0
        %980 = vperm.xlu0 %979, %v373
        %v981 = vpop.permute.xlu0 %980
        %984 = vset.pattern.permute.xlu0 0
        %985 = vperm.xlu0 %984, %v374
        %v986 = vpop.permute.xlu0 %985
        %989 = vset.pattern.permute.xlu0 0
        %990 = vperm.xlu0 %989, %v375
        %v991 = vpop.permute.xlu0 %990
        %994 = vset.pattern.permute.xlu0 0
        %995 = vperm.xlu0 %994, %v376
        %v996 = vpop.permute.xlu0 %995
        %999 = vset.pattern.permute.xlu0 0
        %1000 = vperm.xlu0 %999, %v377
        %v1001 = vpop.permute.xlu0 %1000
        %1004 = vset.pattern.permute.xlu0 0
        %1005 = vperm.xlu0 %1004, %v378
        %v1006 = vpop.permute.xlu0 %1005
        %1009 = vset.pattern.permute.xlu0 0
        %1010 = vperm.xlu0 %1009, %v379
        %v1011 = vpop.permute.xlu0 %1010
        %1014 = vset.pattern.permute.xlu0 0
        %1015 = vperm.xlu0 %1014, %v380
        %v1016 = vpop.permute.xlu0 %1015
        %1019 = vset.pattern.permute.xlu0 0
        %1020 = vperm.xlu0 %1019, %v381
        %v1021 = vpop.permute.xlu0 %1020
        %v1023 = vlaneseq
        %v1024 = vshrl.u32 %v1023, 7
        %v1025 = vsub.s32 0, %v1024
        %v1026 = vrot.slane %v382, %v1025
        %v1027 = vmul.f32 %v386, %v1026
        %v1028 = vmul.f32 %v391, %v1026
        %v1029 = vmul.f32 %v396, %v1026
        %v1030 = vmul.f32 %v401, %v1026
        %v1031 = vmul.f32 %v406, %v1026
        %v1032 = vmul.f32 %v411, %v1026
        %v1033 = vmul.f32 %v416, %v1026
        %v1034 = vmul.f32 %v421, %v1026
        %v1035 = vmul.f32 %v426, %v1026
        %v1036 = vmul.f32 %v431, %v1026
        %v1037 = vmul.f32 %v436, %v1026
        %v1038 = vmul.f32 %v441, %v1026
        %v1039 = vmul.f32 %v446, %v1026
        %v1040 = vmul.f32 %v451, %v1026
        %v1041 = vmul.f32 %v456, %v1026
        %v1042 = vmul.f32 %v461, %v1026
        %v1043 = vmul.f32 %v466, %v1026
        %v1044 = vmul.f32 %v471, %v1026
        %v1045 = vmul.f32 %v476, %v1026
        %v1046 = vmul.f32 %v481, %v1026
        %v1047 = vmul.f32 %v486, %v1026
        %v1048 = vmul.f32 %v491, %v1026
        %v1049 = vmul.f32 %v496, %v1026
        %v1050 = vmul.f32 %v501, %v1026
        %v1051 = vmul.f32 %v506, %v1026
        %v1052 = vmul.f32 %v511, %v1026
        %v1053 = vmul.f32 %v516, %v1026
        %v1054 = vmul.f32 %v521, %v1026
        %v1055 = vmul.f32 %v526, %v1026
        %v1056 = vmul.f32 %v531, %v1026
        %v1057 = vmul.f32 %v536, %v1026
        %v1058 = vmul.f32 %v541, %v1026
        %v1059 = vmul.f32 %v546, %v1026
        %v1060 = vmul.f32 %v551, %v1026
        %v1061 = vmul.f32 %v556, %v1026
        %v1062 = vmul.f32 %v561, %v1026
        %v1063 = vmul.f32 %v566, %v1026
        %v1064 = vmul.f32 %v571, %v1026
        %v1065 = vmul.f32 %v576, %v1026
        %v1066 = vmul.f32 %v581, %v1026
        %v1067 = vmul.f32 %v586, %v1026
        %v1068 = vmul.f32 %v591, %v1026
        %v1069 = vmul.f32 %v596, %v1026
        %v1070 = vmul.f32 %v601, %v1026
        %v1071 = vmul.f32 %v606, %v1026
        %v1072 = vmul.f32 %v611, %v1026
        %v1073 = vmul.f32 %v616, %v1026
        %v1074 = vmul.f32 %v621, %v1026
        %v1075 = vmul.f32 %v626, %v1026
        %v1076 = vmul.f32 %v631, %v1026
        %v1077 = vmul.f32 %v636, %v1026
        %v1078 = vmul.f32 %v641, %v1026
        %v1079 = vmul.f32 %v646, %v1026
        %v1080 = vmul.f32 %v651, %v1026
        %v1081 = vmul.f32 %v656, %v1026
        %v1082 = vmul.f32 %v661, %v1026
        %v1083 = vmul.f32 %v666, %v1026
        %v1084 = vmul.f32 %v671, %v1026
        %v1085 = vmul.f32 %v676, %v1026
        %v1086 = vmul.f32 %v681, %v1026
        %v1087 = vmul.f32 %v686, %v1026
        %v1088 = vmul.f32 %v691, %v1026
        %v1089 = vmul.f32 %v696, %v1026
        %v1090 = vmul.f32 %v701, %v1026
        %v1091 = vmul.f32 %v706, %v1026
        %v1092 = vmul.f32 %v711, %v1026
        %v1093 = vmul.f32 %v716, %v1026
        %v1094 = vmul.f32 %v721, %v1026
        %v1095 = vmul.f32 %v726, %v1026
        %v1096 = vmul.f32 %v731, %v1026
        %v1097 = vmul.f32 %v736, %v1026
        %v1098 = vmul.f32 %v741, %v1026
        %v1099 = vmul.f32 %v746, %v1026
        %v1100 = vmul.f32 %v751, %v1026
        %v1101 = vmul.f32 %v756, %v1026
        %v1102 = vmul.f32 %v761, %v1026
        %v1103 = vmul.f32 %v766, %v1026
        %v1104 = vmul.f32 %v771, %v1026
        %v1105 = vmul.f32 %v776, %v1026
        %v1106 = vmul.f32 %v781, %v1026
        %v1107 = vmul.f32 %v786, %v1026
        %v1108 = vmul.f32 %v791, %v1026
        %v1109 = vmul.f32 %v796, %v1026
        %v1110 = vmul.f32 %v801, %v1026
        %v1111 = vmul.f32 %v806, %v1026
        %v1112 = vmul.f32 %v811, %v1026
        %v1113 = vmul.f32 %v816, %v1026
        %v1114 = vmul.f32 %v821, %v1026
        %v1115 = vmul.f32 %v826, %v1026
        %v1116 = vmul.f32 %v831, %v1026
        %v1117 = vmul.f32 %v836, %v1026
        %v1118 = vmul.f32 %v841, %v1026
        %v1119 = vmul.f32 %v846, %v1026
        %v1120 = vmul.f32 %v851, %v1026
        %v1121 = vmul.f32 %v856, %v1026
        %v1122 = vmul.f32 %v861, %v1026
        %v1123 = vmul.f32 %v866, %v1026
        %v1124 = vmul.f32 %v871, %v1026
        %v1125 = vmul.f32 %v876, %v1026
        %v1126 = vmul.f32 %v881, %v1026
        %v1127 = vmul.f32 %v886, %v1026
        %v1128 = vmul.f32 %v891, %v1026
        %v1129 = vmul.f32 %v896, %v1026
        %v1130 = vmul.f32 %v901, %v1026
        %v1131 = vmul.f32 %v906, %v1026
        %v1132 = vmul.f32 %v911, %v1026
        %v1133 = vmul.f32 %v916, %v1026
        %v1134 = vmul.f32 %v921, %v1026
        %v1135 = vmul.f32 %v926, %v1026
        %v1136 = vmul.f32 %v931, %v1026
        %v1137 = vmul.f32 %v936, %v1026
        %v1138 = vmul.f32 %v941, %v1026
        %v1139 = vmul.f32 %v946, %v1026
        %v1140 = vmul.f32 %v951, %v1026
        %v1141 = vmul.f32 %v956, %v1026
        %v1142 = vmul.f32 %v961, %v1026
        %v1143 = vmul.f32 %v966, %v1026
        %v1144 = vmul.f32 %v971, %v1026
        %v1145 = vmul.f32 %v976, %v1026
        %v1146 = vmul.f32 %v981, %v1026
        %v1147 = vmul.f32 %v986, %v1026
        %v1148 = vmul.f32 %v991, %v1026
        %v1149 = vmul.f32 %v996, %v1026
        %v1150 = vmul.f32 %v1001, %v1026
        %v1151 = vmul.f32 %v1006, %v1026
        %v1152 = vmul.f32 %v1011, %v1026
        %v1153 = vmul.f32 %v1016, %v1026
        %v1154 = vmul.f32 %v1021, %v1026
        %v1155 = vld [vmem:[%s1 + $0x1] sm:$0x1]
        %1156 = vset.pattern.permute.xlu0 1
        %1157 = vperm.xlu0 %1156, %v254
        %v1158 = vpop.permute.xlu0 %1157
        %1160 = vset.pattern.permute.xlu0 1
        %1161 = vperm.xlu0 %1160, %v255
        %v1162 = vpop.permute.xlu0 %1161
        %1164 = vset.pattern.permute.xlu0 1
        %1165 = vperm.xlu0 %1164, %v256
        %v1166 = vpop.permute.xlu0 %1165
        %1168 = vset.pattern.permute.xlu0 1
        %1169 = vperm.xlu0 %1168, %v257
        %v1170 = vpop.permute.xlu0 %1169
        %1172 = vset.pattern.permute.xlu0 1
        %1173 = vperm.xlu0 %1172, %v258
        %v1174 = vpop.permute.xlu0 %1173
        %1176 = vset.pattern.permute.xlu0 1
        %1177 = vperm.xlu0 %1176, %v259
        %v1178 = vpop.permute.xlu0 %1177
        %1180 = vset.pattern.permute.xlu0 1
        %1181 = vperm.xlu0 %1180, %v260
        %v1182 = vpop.permute.xlu0 %1181
        %1184 = vset.pattern.permute.xlu0 1
        %1185 = vperm.xlu0 %1184, %v261
        %v1186 = vpop.permute.xlu0 %1185
        %1188 = vset.pattern.permute.xlu0 1
        %1189 = vperm.xlu0 %1188, %v262
        %v1190 = vpop.permute.xlu0 %1189
        %1192 = vset.pattern.permute.xlu0 1
        %1193 = vperm.xlu0 %1192, %v263
        %v1194 = vpop.permute.xlu0 %1193
        %1196 = vset.pattern.permute.xlu0 1
        %1197 = vperm.xlu0 %1196, %v264
        %v1198 = vpop.permute.xlu0 %1197
        %1200 = vset.pattern.permute.xlu0 1
        %1201 = vperm.xlu0 %1200, %v265
        %v1202 = vpop.permute.xlu0 %1201
        %1204 = vset.pattern.permute.xlu0 1
        %1205 = vperm.xlu0 %1204, %v266
        %v1206 = vpop.permute.xlu0 %1205
        %1208 = vset.pattern.permute.xlu0 1
        %1209 = vperm.xlu0 %1208, %v267
        %v1210 = vpop.permute.xlu0 %1209
        %1212 = vset.pattern.permute.xlu0 1
        %1213 = vperm.xlu0 %1212, %v268
        %v1214 = vpop.permute.xlu0 %1213
        %1216 = vset.pattern.permute.xlu0 1
        %1217 = vperm.xlu0 %1216, %v269
        %v1218 = vpop.permute.xlu0 %1217
        %1220 = vset.pattern.permute.xlu0 1
        %1221 = vperm.xlu0 %1220, %v270
        %v1222 = vpop.permute.xlu0 %1221
        %1224 = vset.pattern.permute.xlu0 1
        %1225 = vperm.xlu0 %1224, %v271
        %v1226 = vpop.permute.xlu0 %1225
        %1228 = vset.pattern.permute.xlu0 1
        %1229 = vperm.xlu0 %1228, %v272
        %v1230 = vpop.permute.xlu0 %1229
        %1232 = vset.pattern.permute.xlu0 1
        %1233 = vperm.xlu0 %1232, %v273
        %v1234 = vpop.permute.xlu0 %1233
        %1236 = vset.pattern.permute.xlu0 1
        %1237 = vperm.xlu0 %1236, %v274
        %v1238 = vpop.permute.xlu0 %1237
        %1240 = vset.pattern.permute.xlu0 1
        %1241 = vperm.xlu0 %1240, %v275
        %v1242 = vpop.permute.xlu0 %1241
        %1244 = vset.pattern.permute.xlu0 1
        %1245 = vperm.xlu0 %1244, %v276
        %v1246 = vpop.permute.xlu0 %1245
        %1248 = vset.pattern.permute.xlu0 1
        %1249 = vperm.xlu0 %1248, %v277
        %v1250 = vpop.permute.xlu0 %1249
        %1252 = vset.pattern.permute.xlu0 1
        %1253 = vperm.xlu0 %1252, %v278
        %v1254 = vpop.permute.xlu0 %1253
        %1256 = vset.pattern.permute.xlu0 1
        %1257 = vperm.xlu0 %1256, %v279
        %v1258 = vpop.permute.xlu0 %1257
        %1260 = vset.pattern.permute.xlu0 1
        %1261 = vperm.xlu0 %1260, %v280
        %v1262 = vpop.permute.xlu0 %1261
        %1264 = vset.pattern.permute.xlu0 1
        %1265 = vperm.xlu0 %1264, %v281
        %v1266 = vpop.permute.xlu0 %1265
        %1268 = vset.pattern.permute.xlu0 1
        %1269 = vperm.xlu0 %1268, %v282
        %v1270 = vpop.permute.xlu0 %1269
        %1272 = vset.pattern.permute.xlu0 1
        %1273 = vperm.xlu0 %1272, %v283
        %v1274 = vpop.permute.xlu0 %1273
        %1276 = vset.pattern.permute.xlu0 1
        %1277 = vperm.xlu0 %1276, %v284
        %v1278 = vpop.permute.xlu0 %1277
        %1280 = vset.pattern.permute.xlu0 1
        %1281 = vperm.xlu0 %1280, %v285
        %v1282 = vpop.permute.xlu0 %1281
        %1284 = vset.pattern.permute.xlu0 1
        %1285 = vperm.xlu0 %1284, %v286
        %v1286 = vpop.permute.xlu0 %1285
        %1288 = vset.pattern.permute.xlu0 1
        %1289 = vperm.xlu0 %1288, %v287
        %v1290 = vpop.permute.xlu0 %1289
        %1292 = vset.pattern.permute.xlu0 1
        %1293 = vperm.xlu0 %1292, %v288
        %v1294 = vpop.permute.xlu0 %1293
        %1296 = vset.pattern.permute.xlu0 1
        %1297 = vperm.xlu0 %1296, %v289
        %v1298 = vpop.permute.xlu0 %1297
        %1300 = vset.pattern.permute.xlu0 1
        %1301 = vperm.xlu0 %1300, %v290
        %v1302 = vpop.permute.xlu0 %1301
        %1304 = vset.pattern.permute.xlu0 1
        %1305 = vperm.xlu0 %1304, %v291
        %v1306 = vpop.permute.xlu0 %1305
        %1308 = vset.pattern.permute.xlu0 1
        %1309 = vperm.xlu0 %1308, %v292
        %v1310 = vpop.permute.xlu0 %1309
        %1312 = vset.pattern.permute.xlu0 1
        %1313 = vperm.xlu0 %1312, %v293
        %v1314 = vpop.permute.xlu0 %1313
        %1316 = vset.pattern.permute.xlu0 1
        %1317 = vperm.xlu0 %1316, %v294
        %v1318 = vpop.permute.xlu0 %1317
        %1320 = vset.pattern.permute.xlu0 1
        %1321 = vperm.xlu0 %1320, %v295
        %v1322 = vpop.permute.xlu0 %1321
        %1324 = vset.pattern.permute.xlu0 1
        %1325 = vperm.xlu0 %1324, %v296
        %v1326 = vpop.permute.xlu0 %1325
        %1328 = vset.pattern.permute.xlu0 1
        %1329 = vperm.xlu0 %1328, %v297
        %v1330 = vpop.permute.xlu0 %1329
        %1332 = vset.pattern.permute.xlu0 1
        %1333 = vperm.xlu0 %1332, %v298
        %v1334 = vpop.permute.xlu0 %1333
        %1336 = vset.pattern.permute.xlu0 1
        %1337 = vperm.xlu0 %1336, %v299
        %v1338 = vpop.permute.xlu0 %1337
        %1340 = vset.pattern.permute.xlu0 1
        %1341 = vperm.xlu0 %1340, %v300
        %v1342 = vpop.permute.xlu0 %1341
        %1344 = vset.pattern.permute.xlu0 1
        %1345 = vperm.xlu0 %1344, %v301
        %v1346 = vpop.permute.xlu0 %1345
        %1348 = vset.pattern.permute.xlu0 1
        %1349 = vperm.xlu0 %1348, %v302
        %v1350 = vpop.permute.xlu0 %1349
        %1352 = vset.pattern.permute.xlu0 1
        %1353 = vperm.xlu0 %1352, %v303
        %v1354 = vpop.permute.xlu0 %1353
        %1356 = vset.pattern.permute.xlu0 1
        %1357 = vperm.xlu0 %1356, %v304
        %v1358 = vpop.permute.xlu0 %1357
        %1360 = vset.pattern.permute.xlu0 1
        %1361 = vperm.xlu0 %1360, %v305
        %v1362 = vpop.permute.xlu0 %1361
        %1364 = vset.pattern.permute.xlu0 1
        %1365 = vperm.xlu0 %1364, %v306
        %v1366 = vpop.permute.xlu0 %1365
        %1368 = vset.pattern.permute.xlu0 1
        %1369 = vperm.xlu0 %1368, %v307
        %v1370 = vpop.permute.xlu0 %1369
        %1372 = vset.pattern.permute.xlu0 1
        %1373 = vperm.xlu0 %1372, %v308
        %v1374 = vpop.permute.xlu0 %1373
        %1376 = vset.pattern.permute.xlu0 1
        %1377 = vperm.xlu0 %1376, %v309
        %v1378 = vpop.permute.xlu0 %1377
        %1380 = vset.pattern.permute.xlu0 1
        %1381 = vperm.xlu0 %1380, %v310
        %v1382 = vpop.permute.xlu0 %1381
        %1384 = vset.pattern.permute.xlu0 1
        %1385 = vperm.xlu0 %1384, %v311
        %v1386 = vpop.permute.xlu0 %1385
        %1388 = vset.pattern.permute.xlu0 1
        %1389 = vperm.xlu0 %1388, %v312
        %v1390 = vpop.permute.xlu0 %1389
        %1392 = vset.pattern.permute.xlu0 1
        %1393 = vperm.xlu0 %1392, %v313
        %v1394 = vpop.permute.xlu0 %1393
        %1396 = vset.pattern.permute.xlu0 1
        %1397 = vperm.xlu0 %1396, %v314
        %v1398 = vpop.permute.xlu0 %1397
        %1400 = vset.pattern.permute.xlu0 1
        %1401 = vperm.xlu0 %1400, %v315
        %v1402 = vpop.permute.xlu0 %1401
        %1404 = vset.pattern.permute.xlu0 1
        %1405 = vperm.xlu0 %1404, %v316
        %v1406 = vpop.permute.xlu0 %1405
        %1408 = vset.pattern.permute.xlu0 1
        %1409 = vperm.xlu0 %1408, %v317
        %v1410 = vpop.permute.xlu0 %1409
        %1412 = vset.pattern.permute.xlu0 1
        %1413 = vperm.xlu0 %1412, %v318
        %v1414 = vpop.permute.xlu0 %1413
        %1416 = vset.pattern.permute.xlu0 1
        %1417 = vperm.xlu0 %1416, %v319
        %v1418 = vpop.permute.xlu0 %1417
        %1420 = vset.pattern.permute.xlu0 1
        %1421 = vperm.xlu0 %1420, %v320
        %v1422 = vpop.permute.xlu0 %1421
        %1424 = vset.pattern.permute.xlu0 1
        %1425 = vperm.xlu0 %1424, %v321
        %v1426 = vpop.permute.xlu0 %1425
        %1428 = vset.pattern.permute.xlu0 1
        %1429 = vperm.xlu0 %1428, %v322
        %v1430 = vpop.permute.xlu0 %1429
        %1432 = vset.pattern.permute.xlu0 1
        %1433 = vperm.xlu0 %1432, %v323
        %v1434 = vpop.permute.xlu0 %1433
        %1436 = vset.pattern.permute.xlu0 1
        %1437 = vperm.xlu0 %1436, %v324
        %v1438 = vpop.permute.xlu0 %1437
        %1440 = vset.pattern.permute.xlu0 1
        %1441 = vperm.xlu0 %1440, %v325
        %v1442 = vpop.permute.xlu0 %1441
        %1444 = vset.pattern.permute.xlu0 1
        %1445 = vperm.xlu0 %1444, %v326
        %v1446 = vpop.permute.xlu0 %1445
        %1448 = vset.pattern.permute.xlu0 1
        %1449 = vperm.xlu0 %1448, %v327
        %v1450 = vpop.permute.xlu0 %1449
        %1452 = vset.pattern.permute.xlu0 1
        %1453 = vperm.xlu0 %1452, %v328
        %v1454 = vpop.permute.xlu0 %1453
        %1456 = vset.pattern.permute.xlu0 1
        %1457 = vperm.xlu0 %1456, %v329
        %v1458 = vpop.permute.xlu0 %1457
        %1460 = vset.pattern.permute.xlu0 1
        %1461 = vperm.xlu0 %1460, %v330
        %v1462 = vpop.permute.xlu0 %1461
        %1464 = vset.pattern.permute.xlu0 1
        %1465 = vperm.xlu0 %1464, %v331
        %v1466 = vpop.permute.xlu0 %1465
        %1468 = vset.pattern.permute.xlu0 1
        %1469 = vperm.xlu0 %1468, %v332
        %v1470 = vpop.permute.xlu0 %1469
        %1472 = vset.pattern.permute.xlu0 1
        %1473 = vperm.xlu0 %1472, %v333
        %v1474 = vpop.permute.xlu0 %1473
        %1476 = vset.pattern.permute.xlu0 1
        %1477 = vperm.xlu0 %1476, %v334
        %v1478 = vpop.permute.xlu0 %1477
        %1480 = vset.pattern.permute.xlu0 1
        %1481 = vperm.xlu0 %1480, %v335
        %v1482 = vpop.permute.xlu0 %1481
        %1484 = vset.pattern.permute.xlu0 1
        %1485 = vperm.xlu0 %1484, %v336
        %v1486 = vpop.permute.xlu0 %1485
        %1488 = vset.pattern.permute.xlu0 1
        %1489 = vperm.xlu0 %1488, %v337
        %v1490 = vpop.permute.xlu0 %1489
        %1492 = vset.pattern.permute.xlu0 1
        %1493 = vperm.xlu0 %1492, %v338
        %v1494 = vpop.permute.xlu0 %1493
        %1496 = vset.pattern.permute.xlu0 1
        %1497 = vperm.xlu0 %1496, %v339
        %v1498 = vpop.permute.xlu0 %1497
        %1500 = vset.pattern.permute.xlu0 1
        %1501 = vperm.xlu0 %1500, %v340
        %v1502 = vpop.permute.xlu0 %1501
        %1504 = vset.pattern.permute.xlu0 1
        %1505 = vperm.xlu0 %1504, %v341
        %v1506 = vpop.permute.xlu0 %1505
        %1508 = vset.pattern.permute.xlu0 1
        %1509 = vperm.xlu0 %1508, %v342
        %v1510 = vpop.permute.xlu0 %1509
        %1512 = vset.pattern.permute.xlu0 1
        %1513 = vperm.xlu0 %1512, %v343
        %v1514 = vpop.permute.xlu0 %1513
        %1516 = vset.pattern.permute.xlu0 1
        %1517 = vperm.xlu0 %1516, %v344
        %v1518 = vpop.permute.xlu0 %1517
        %1520 = vset.pattern.permute.xlu0 1
        %1521 = vperm.xlu0 %1520, %v345
        %v1522 = vpop.permute.xlu0 %1521
        %1524 = vset.pattern.permute.xlu0 1
        %1525 = vperm.xlu0 %1524, %v346
        %v1526 = vpop.permute.xlu0 %1525
        %1528 = vset.pattern.permute.xlu0 1
        %1529 = vperm.xlu0 %1528, %v347
        %v1530 = vpop.permute.xlu0 %1529
        %1532 = vset.pattern.permute.xlu0 1
        %1533 = vperm.xlu0 %1532, %v348
        %v1534 = vpop.permute.xlu0 %1533
        %1536 = vset.pattern.permute.xlu0 1
        %1537 = vperm.xlu0 %1536, %v349
        %v1538 = vpop.permute.xlu0 %1537
        %1540 = vset.pattern.permute.xlu0 1
        %1541 = vperm.xlu0 %1540, %v350
        %v1542 = vpop.permute.xlu0 %1541
        %1544 = vset.pattern.permute.xlu0 1
        %1545 = vperm.xlu0 %1544, %v351
        %v1546 = vpop.permute.xlu0 %1545
        %1548 = vset.pattern.permute.xlu0 1
        %1549 = vperm.xlu0 %1548, %v352
        %v1550 = vpop.permute.xlu0 %1549
        %1552 = vset.pattern.permute.xlu0 1
        %1553 = vperm.xlu0 %1552, %v353
        %v1554 = vpop.permute.xlu0 %1553
        %1556 = vset.pattern.permute.xlu0 1
        %1557 = vperm.xlu0 %1556, %v354
        %v1558 = vpop.permute.xlu0 %1557
        %1560 = vset.pattern.permute.xlu0 1
        %1561 = vperm.xlu0 %1560, %v355
        %v1562 = vpop.permute.xlu0 %1561
        %1564 = vset.pattern.permute.xlu0 1
        %1565 = vperm.xlu0 %1564, %v356
        %v1566 = vpop.permute.xlu0 %1565
        %1568 = vset.pattern.permute.xlu0 1
        %1569 = vperm.xlu0 %1568, %v357
        %v1570 = vpop.permute.xlu0 %1569
        %1572 = vset.pattern.permute.xlu0 1
        %1573 = vperm.xlu0 %1572, %v358
        %v1574 = vpop.permute.xlu0 %1573
        %1576 = vset.pattern.permute.xlu0 1
        %1577 = vperm.xlu0 %1576, %v359
        %v1578 = vpop.permute.xlu0 %1577
        %1580 = vset.pattern.permute.xlu0 1
        %1581 = vperm.xlu0 %1580, %v360
        %v1582 = vpop.permute.xlu0 %1581
        %1584 = vset.pattern.permute.xlu0 1
        %1585 = vperm.xlu0 %1584, %v361
        %v1586 = vpop.permute.xlu0 %1585
        %1588 = vset.pattern.permute.xlu0 1
        %1589 = vperm.xlu0 %1588, %v362
        %v1590 = vpop.permute.xlu0 %1589
        %1592 = vset.pattern.permute.xlu0 1
        %1593 = vperm.xlu0 %1592, %v363
        %v1594 = vpop.permute.xlu0 %1593
        %1596 = vset.pattern.permute.xlu0 1
        %1597 = vperm.xlu0 %1596, %v364
        %v1598 = vpop.permute.xlu0 %1597
        %1600 = vset.pattern.permute.xlu0 1
        %1601 = vperm.xlu0 %1600, %v365
        %v1602 = vpop.permute.xlu0 %1601
        %1604 = vset.pattern.permute.xlu0 1
        %1605 = vperm.xlu0 %1604, %v366
        %v1606 = vpop.permute.xlu0 %1605
        %1608 = vset.pattern.permute.xlu0 1
        %1609 = vperm.xlu0 %1608, %v367
        %v1610 = vpop.permute.xlu0 %1609
        %1612 = vset.pattern.permute.xlu0 1
        %1613 = vperm.xlu0 %1612, %v368
        %v1614 = vpop.permute.xlu0 %1613
        %1616 = vset.pattern.permute.xlu0 1
        %1617 = vperm.xlu0 %1616, %v369
        %v1618 = vpop.permute.xlu0 %1617
        %1620 = vset.pattern.permute.xlu0 1
        %1621 = vperm.xlu0 %1620, %v370
        %v1622 = vpop.permute.xlu0 %1621
        %1624 = vset.pattern.permute.xlu0 1
        %1625 = vperm.xlu0 %1624, %v371
        %v1626 = vpop.permute.xlu0 %1625
        %1628 = vset.pattern.permute.xlu0 1
        %1629 = vperm.xlu0 %1628, %v372
        %v1630 = vpop.permute.xlu0 %1629
        %1632 = vset.pattern.permute.xlu0 1
        %1633 = vperm.xlu0 %1632, %v373
        %v1634 = vpop.permute.xlu0 %1633
        %1636 = vset.pattern.permute.xlu0 1
        %1637 = vperm.xlu0 %1636, %v374
        %v1638 = vpop.permute.xlu0 %1637
        %1640 = vset.pattern.permute.xlu0 1
        %1641 = vperm.xlu0 %1640, %v375
        %v1642 = vpop.permute.xlu0 %1641
        %1644 = vset.pattern.permute.xlu0 1
        %1645 = vperm.xlu0 %1644, %v376
        %v1646 = vpop.permute.xlu0 %1645
        %1648 = vset.pattern.permute.xlu0 1
        %1649 = vperm.xlu0 %1648, %v377
        %v1650 = vpop.permute.xlu0 %1649
        %1652 = vset.pattern.permute.xlu0 1
        %1653 = vperm.xlu0 %1652, %v378
        %v1654 = vpop.permute.xlu0 %1653
        %1656 = vset.pattern.permute.xlu0 1
        %1657 = vperm.xlu0 %1656, %v379
        %v1658 = vpop.permute.xlu0 %1657
        %1660 = vset.pattern.permute.xlu0 1
        %1661 = vperm.xlu0 %1660, %v380
        %v1662 = vpop.permute.xlu0 %1661
        %1664 = vset.pattern.permute.xlu0 1
        %1665 = vperm.xlu0 %1664, %v381
        %v1666 = vpop.permute.xlu0 %1665
        %v1668 = vlaneseq
        %v1669 = vshrl.u32 %v1668, 7
        %v1670 = vsub.s32 0, %v1669
        %v1671 = vrot.slane %v1155, %v1670
        %v1672 = vmul.f32 %v1158, %v1671
        %v1673 = vmul.f32 %v1162, %v1671
        %v1674 = vmul.f32 %v1166, %v1671
        %v1675 = vmul.f32 %v1170, %v1671
        %v1676 = vmul.f32 %v1174, %v1671
        %v1677 = vmul.f32 %v1178, %v1671
        %v1678 = vmul.f32 %v1182, %v1671
        %v1679 = vmul.f32 %v1186, %v1671
        %v1680 = vmul.f32 %v1190, %v1671
        %v1681 = vmul.f32 %v1194, %v1671
        %v1682 = vmul.f32 %v1198, %v1671
        %v1683 = vmul.f32 %v1202, %v1671
        %v1684 = vmul.f32 %v1206, %v1671
        %v1685 = vmul.f32 %v1210, %v1671
        %v1686 = vmul.f32 %v1214, %v1671
        %v1687 = vmul.f32 %v1218, %v1671
        %v1688 = vmul.f32 %v1222, %v1671
        %v1689 = vmul.f32 %v1226, %v1671
        %v1690 = vmul.f32 %v1230, %v1671
        %v1691 = vmul.f32 %v1234, %v1671
        %v1692 = vmul.f32 %v1238, %v1671
        %v1693 = vmul.f32 %v1242, %v1671
        %v1694 = vmul.f32 %v1246, %v1671
        %v1695 = vmul.f32 %v1250, %v1671
        %v1696 = vmul.f32 %v1254, %v1671
        %v1697 = vmul.f32 %v1258, %v1671
        %v1698 = vmul.f32 %v1262, %v1671
        %v1699 = vmul.f32 %v1266, %v1671
        %v1700 = vmul.f32 %v1270, %v1671
        %v1701 = vmul.f32 %v1274, %v1671
        %v1702 = vmul.f32 %v1278, %v1671
        %v1703 = vmul.f32 %v1282, %v1671
        %v1704 = vmul.f32 %v1286, %v1671
        %v1705 = vmul.f32 %v1290, %v1671
        %v1706 = vmul.f32 %v1294, %v1671
        %v1707 = vmul.f32 %v1298, %v1671
        %v1708 = vmul.f32 %v1302, %v1671
        %v1709 = vmul.f32 %v1306, %v1671
        %v1710 = vmul.f32 %v1310, %v1671
        %v1711 = vmul.f32 %v1314, %v1671
        %v1712 = vmul.f32 %v1318, %v1671
        %v1713 = vmul.f32 %v1322, %v1671
        %v1714 = vmul.f32 %v1326, %v1671
        %v1715 = vmul.f32 %v1330, %v1671
        %v1716 = vmul.f32 %v1334, %v1671
        %v1717 = vmul.f32 %v1338, %v1671
        %v1718 = vmul.f32 %v1342, %v1671
        %v1719 = vmul.f32 %v1346, %v1671
        %v1720 = vmul.f32 %v1350, %v1671
        %v1721 = vmul.f32 %v1354, %v1671
        %v1722 = vmul.f32 %v1358, %v1671
        %v1723 = vmul.f32 %v1362, %v1671
        %v1724 = vmul.f32 %v1366, %v1671
        %v1725 = vmul.f32 %v1370, %v1671
        %v1726 = vmul.f32 %v1374, %v1671
        %v1727 = vmul.f32 %v1378, %v1671
        %v1728 = vmul.f32 %v1382, %v1671
        %v1729 = vmul.f32 %v1386, %v1671
        %v1730 = vmul.f32 %v1390, %v1671
        %v1731 = vmul.f32 %v1394, %v1671
        %v1732 = vmul.f32 %v1398, %v1671
        %v1733 = vmul.f32 %v1402, %v1671
        %v1734 = vmul.f32 %v1406, %v1671
        %v1735 = vmul.f32 %v1410, %v1671
        %v1736 = vmul.f32 %v1414, %v1671
        %v1737 = vmul.f32 %v1418, %v1671
        %v1738 = vmul.f32 %v1422, %v1671
        %v1739 = vmul.f32 %v1426, %v1671
        %v1740 = vmul.f32 %v1430, %v1671
        %v1741 = vmul.f32 %v1434, %v1671
        %v1742 = vmul.f32 %v1438, %v1671
        %v1743 = vmul.f32 %v1442, %v1671
        %v1744 = vmul.f32 %v1446, %v1671
        %v1745 = vmul.f32 %v1450, %v1671
        %v1746 = vmul.f32 %v1454, %v1671
        %v1747 = vmul.f32 %v1458, %v1671
        %v1748 = vmul.f32 %v1462, %v1671
        %v1749 = vmul.f32 %v1466, %v1671
        %v1750 = vmul.f32 %v1470, %v1671
        %v1751 = vmul.f32 %v1474, %v1671
        %v1752 = vmul.f32 %v1478, %v1671
        %v1753 = vmul.f32 %v1482, %v1671
        %v1754 = vmul.f32 %v1486, %v1671
        %v1755 = vmul.f32 %v1490, %v1671
        %v1756 = vmul.f32 %v1494, %v1671
        %v1757 = vmul.f32 %v1498, %v1671
        %v1758 = vmul.f32 %v1502, %v1671
        %v1759 = vmul.f32 %v1506, %v1671
        %v1760 = vmul.f32 %v1510, %v1671
        %v1761 = vmul.f32 %v1514, %v1671
        %v1762 = vmul.f32 %v1518, %v1671
        %v1763 = vmul.f32 %v1522, %v1671
        %v1764 = vmul.f32 %v1526, %v1671
        %v1765 = vmul.f32 %v1530, %v1671
        %v1766 = vmul.f32 %v1534, %v1671
        %v1767 = vmul.f32 %v1538, %v1671
        %v1768 = vmul.f32 %v1542, %v1671
        %v1769 = vmul.f32 %v1546, %v1671
        %v1770 = vmul.f32 %v1550, %v1671
        %v1771 = vmul.f32 %v1554, %v1671
        %v1772 = vmul.f32 %v1558, %v1671
        %v1773 = vmul.f32 %v1562, %v1671
        %v1774 = vmul.f32 %v1566, %v1671
        %v1775 = vmul.f32 %v1570, %v1671
        %v1776 = vmul.f32 %v1574, %v1671
        %v1777 = vmul.f32 %v1578, %v1671
        %v1778 = vmul.f32 %v1582, %v1671
        %v1779 = vmul.f32 %v1586, %v1671
        %v1780 = vmul.f32 %v1590, %v1671
        %v1781 = vmul.f32 %v1594, %v1671
        %v1782 = vmul.f32 %v1598, %v1671
        %v1783 = vmul.f32 %v1602, %v1671
        %v1784 = vmul.f32 %v1606, %v1671
        %v1785 = vmul.f32 %v1610, %v1671
        %v1786 = vmul.f32 %v1614, %v1671
        %v1787 = vmul.f32 %v1618, %v1671
        %v1788 = vmul.f32 %v1622, %v1671
        %v1789 = vmul.f32 %v1626, %v1671
        %v1790 = vmul.f32 %v1630, %v1671
        %v1791 = vmul.f32 %v1634, %v1671
        %v1792 = vmul.f32 %v1638, %v1671
        %v1793 = vmul.f32 %v1642, %v1671
        %v1794 = vmul.f32 %v1646, %v1671
        %v1795 = vmul.f32 %v1650, %v1671
        %v1796 = vmul.f32 %v1654, %v1671
        %v1797 = vmul.f32 %v1658, %v1671
        %v1798 = vmul.f32 %v1662, %v1671
        %v1799 = vmul.f32 %v1666, %v1671
        %v1800 = vadd.f32 %v1027, %v1672
        %v1801 = vadd.f32 %v1028, %v1673
        %v1802 = vadd.f32 %v1029, %v1674
        %v1803 = vadd.f32 %v1030, %v1675
        %v1804 = vadd.f32 %v1031, %v1676
        %v1805 = vadd.f32 %v1032, %v1677
        %v1806 = vadd.f32 %v1033, %v1678
        %v1807 = vadd.f32 %v1034, %v1679
        %v1808 = vadd.f32 %v1035, %v1680
        %v1809 = vadd.f32 %v1036, %v1681
        %v1810 = vadd.f32 %v1037, %v1682
        %v1811 = vadd.f32 %v1038, %v1683
        %v1812 = vadd.f32 %v1039, %v1684
        %v1813 = vadd.f32 %v1040, %v1685
        %v1814 = vadd.f32 %v1041, %v1686
        %v1815 = vadd.f32 %v1042, %v1687
        %v1816 = vadd.f32 %v1043, %v1688
        %v1817 = vadd.f32 %v1044, %v1689
        %v1818 = vadd.f32 %v1045, %v1690
        %v1819 = vadd.f32 %v1046, %v1691
        %v1820 = vadd.f32 %v1047, %v1692
        %v1821 = vadd.f32 %v1048, %v1693
        %v1822 = vadd.f32 %v1049, %v1694
        %v1823 = vadd.f32 %v1050, %v1695
        %v1824 = vadd.f32 %v1051, %v1696
        %v1825 = vadd.f32 %v1052, %v1697
        %v1826 = vadd.f32 %v1053, %v1698
        %v1827 = vadd.f32 %v1054, %v1699
        %v1828 = vadd.f32 %v1055, %v1700
        %v1829 = vadd.f32 %v1056, %v1701
        %v1830 = vadd.f32 %v1057, %v1702
        %v1831 = vadd.f32 %v1058, %v1703
        %v1832 = vadd.f32 %v1059, %v1704
        %v1833 = vadd.f32 %v1060, %v1705
        %v1834 = vadd.f32 %v1061, %v1706
        %v1835 = vadd.f32 %v1062, %v1707
        %v1836 = vadd.f32 %v1063, %v1708
        %v1837 = vadd.f32 %v1064, %v1709
        %v1838 = vadd.f32 %v1065, %v1710
        %v1839 = vadd.f32 %v1066, %v1711
        %v1840 = vadd.f32 %v1067, %v1712
        %v1841 = vadd.f32 %v1068, %v1713
        %v1842 = vadd.f32 %v1069, %v1714
        %v1843 = vadd.f32 %v1070, %v1715
        %v1844 = vadd.f32 %v1071, %v1716
        %v1845 = vadd.f32 %v1072, %v1717
        %v1846 = vadd.f32 %v1073, %v1718
        %v1847 = vadd.f32 %v1074, %v1719
        %v1848 = vadd.f32 %v1075, %v1720
        %v1849 = vadd.f32 %v1076, %v1721
        %v1850 = vadd.f32 %v1077, %v1722
        %v1851 = vadd.f32 %v1078, %v1723
        %v1852 = vadd.f32 %v1079, %v1724
        %v1853 = vadd.f32 %v1080, %v1725
        %v1854 = vadd.f32 %v1081, %v1726
        %v1855 = vadd.f32 %v1082, %v1727
        %v1856 = vadd.f32 %v1083, %v1728
        %v1857 = vadd.f32 %v1084, %v1729
        %v1858 = vadd.f32 %v1085, %v1730
        %v1859 = vadd.f32 %v1086, %v1731
        %v1860 = vadd.f32 %v1087, %v1732
        %v1861 = vadd.f32 %v1088, %v1733
        %v1862 = vadd.f32 %v1089, %v1734
        %v1863 = vadd.f32 %v1090, %v1735
        %v1864 = vadd.f32 %v1091, %v1736
        %v1865 = vadd.f32 %v1092, %v1737
        %v1866 = vadd.f32 %v1093, %v1738
        %v1867 = vadd.f32 %v1094, %v1739
        %v1868 = vadd.f32 %v1095, %v1740
        %v1869 = vadd.f32 %v1096, %v1741
        %v1870 = vadd.f32 %v1097, %v1742
        %v1871 = vadd.f32 %v1098, %v1743
        %v1872 = vadd.f32 %v1099, %v1744
        %v1873 = vadd.f32 %v1100, %v1745
        %v1874 = vadd.f32 %v1101, %v1746
        %v1875 = vadd.f32 %v1102, %v1747
        %v1876 = vadd.f32 %v1103, %v1748
        %v1877 = vadd.f32 %v1104, %v1749
        %v1878 = vadd.f32 %v1105, %v1750
        %v1879 = vadd.f32 %v1106, %v1751
        %v1880 = vadd.f32 %v1107, %v1752
        %v1881 = vadd.f32 %v1108, %v1753
        %v1882 = vadd.f32 %v1109, %v1754
        %v1883 = vadd.f32 %v1110, %v1755
        %v1884 = vadd.f32 %v1111, %v1756
        %v1885 = vadd.f32 %v1112, %v1757
        %v1886 = vadd.f32 %v1113, %v1758
        %v1887 = vadd.f32 %v1114, %v1759
        %v1888 = vadd.f32 %v1115, %v1760
        %v1889 = vadd.f32 %v1116, %v1761
        %v1890 = vadd.f32 %v1117, %v1762
        %v1891 = vadd.f32 %v1118, %v1763
        %v1892 = vadd.f32 %v1119, %v1764
        %v1893 = vadd.f32 %v1120, %v1765
        %v1894 = vadd.f32 %v1121, %v1766
        %v1895 = vadd.f32 %v1122, %v1767
        %v1896 = vadd.f32 %v1123, %v1768
        %v1897 = vadd.f32 %v1124, %v1769
        %v1898 = vadd.f32 %v1125, %v1770
        %v1899 = vadd.f32 %v1126, %v1771
        %v1900 = vadd.f32 %v1127, %v1772
        %v1901 = vadd.f32 %v1128, %v1773
        %v1902 = vadd.f32 %v1129, %v1774
        %v1903 = vadd.f32 %v1130, %v1775
        %v1904 = vadd.f32 %v1131, %v1776
        %v1905 = vadd.f32 %v1132, %v1777
        %v1906 = vadd.f32 %v1133, %v1778
        %v1907 = vadd.f32 %v1134, %v1779
        %v1908 = vadd.f32 %v1135, %v1780
        %v1909 = vadd.f32 %v1136, %v1781
        %v1910 = vadd.f32 %v1137, %v1782
        %v1911 = vadd.f32 %v1138, %v1783
        %v1912 = vadd.f32 %v1139, %v1784
        %v1913 = vadd.f32 %v1140, %v1785
        %v1914 = vadd.f32 %v1141, %v1786
        %v1915 = vadd.f32 %v1142, %v1787
        %v1916 = vadd.f32 %v1143, %v1788
        %v1917 = vadd.f32 %v1144, %v1789
        %v1918 = vadd.f32 %v1145, %v1790
        %v1919 = vadd.f32 %v1146, %v1791
        %v1920 = vadd.f32 %v1147, %v1792
        %v1921 = vadd.f32 %v1148, %v1793
        %v1922 = vadd.f32 %v1149, %v1794
        %v1923 = vadd.f32 %v1150, %v1795
        %v1924 = vadd.f32 %v1151, %v1796
        %v1925 = vadd.f32 %v1152, %v1797
        %v1926 = vadd.f32 %v1153, %v1798
        %v1927 = vadd.f32 %v1154, %v1799
        %v1928 = vld [vmem:[%s2] sm:$0x1]
        %v1930 = vlaneseq
        %v1931 = vshrl.u32 %v1930, 7
        %v1932 = vsub.s32 0, %v1931
        %v1933 = vrot.slane %v1928, %v1932
        %v1935 = vadd.f32 %v1800, %v1933
        %v1936 = vadd.f32 %v1801, %v1933
        %v1937 = vadd.f32 %v1802, %v1933
        %v1938 = vadd.f32 %v1803, %v1933
        %v1939 = vadd.f32 %v1804, %v1933
        %v1940 = vadd.f32 %v1805, %v1933
        %v1941 = vadd.f32 %v1806, %v1933
        %v1942 = vadd.f32 %v1807, %v1933
        %v1943 = vadd.f32 %v1808, %v1933
        %v1944 = vadd.f32 %v1809, %v1933
        %v1945 = vadd.f32 %v1810, %v1933
        %v1946 = vadd.f32 %v1811, %v1933
        %v1947 = vadd.f32 %v1812, %v1933
        %v1948 = vadd.f32 %v1813, %v1933
        %v1949 = vadd.f32 %v1814, %v1933
        %v1950 = vadd.f32 %v1815, %v1933
        %v1951 = vadd.f32 %v1816, %v1933
        %v1952 = vadd.f32 %v1817, %v1933
        %v1953 = vadd.f32 %v1818, %v1933
        %v1954 = vadd.f32 %v1819, %v1933
        %v1955 = vadd.f32 %v1820, %v1933
        %v1956 = vadd.f32 %v1821, %v1933
        %v1957 = vadd.f32 %v1822, %v1933
        %v1958 = vadd.f32 %v1823, %v1933
        %v1959 = vadd.f32 %v1824, %v1933
        %v1960 = vadd.f32 %v1825, %v1933
        %v1961 = vadd.f32 %v1826, %v1933
        %v1962 = vadd.f32 %v1827, %v1933
        %v1963 = vadd.f32 %v1828, %v1933
        %v1964 = vadd.f32 %v1829, %v1933
        %v1965 = vadd.f32 %v1830, %v1933
        %v1966 = vadd.f32 %v1831, %v1933
        %v1967 = vadd.f32 %v1832, %v1933
        %v1968 = vadd.f32 %v1833, %v1933
        %v1969 = vadd.f32 %v1834, %v1933
        %v1970 = vadd.f32 %v1835, %v1933
        %v1971 = vadd.f32 %v1836, %v1933
        %v1972 = vadd.f32 %v1837, %v1933
        %v1973 = vadd.f32 %v1838, %v1933
        %v1974 = vadd.f32 %v1839, %v1933
        %v1975 = vadd.f32 %v1840, %v1933
        %v1976 = vadd.f32 %v1841, %v1933
        %v1977 = vadd.f32 %v1842, %v1933
        %v1978 = vadd.f32 %v1843, %v1933
        %v1979 = vadd.f32 %v1844, %v1933
        %v1980 = vadd.f32 %v1845, %v1933
        %v1981 = vadd.f32 %v1846, %v1933
        %v1982 = vadd.f32 %v1847, %v1933
        %v1983 = vadd.f32 %v1848, %v1933
        %v1984 = vadd.f32 %v1849, %v1933
        %v1985 = vadd.f32 %v1850, %v1933
        %v1986 = vadd.f32 %v1851, %v1933
        %v1987 = vadd.f32 %v1852, %v1933
        %v1988 = vadd.f32 %v1853, %v1933
        %v1989 = vadd.f32 %v1854, %v1933
        %v1990 = vadd.f32 %v1855, %v1933
        %v1991 = vadd.f32 %v1856, %v1933
        %v1992 = vadd.f32 %v1857, %v1933
        %v1993 = vadd.f32 %v1858, %v1933
        %v1994 = vadd.f32 %v1859, %v1933
        %v1995 = vadd.f32 %v1860, %v1933
        %v1996 = vadd.f32 %v1861, %v1933
        %v1997 = vadd.f32 %v1862, %v1933
        %v1998 = vadd.f32 %v1863, %v1933
        %v1999 = vadd.f32 %v1864, %v1933
        %v2000 = vadd.f32 %v1865, %v1933
        %v2001 = vadd.f32 %v1866, %v1933
        %v2002 = vadd.f32 %v1867, %v1933
        %v2003 = vadd.f32 %v1868, %v1933
        %v2004 = vadd.f32 %v1869, %v1933
        %v2005 = vadd.f32 %v1870, %v1933
        %v2006 = vadd.f32 %v1871, %v1933
        %v2007 = vadd.f32 %v1872, %v1933
        %v2008 = vadd.f32 %v1873, %v1933
        %v2009 = vadd.f32 %v1874, %v1933
        %v2010 = vadd.f32 %v1875, %v1933
        %v2011 = vadd.f32 %v1876, %v1933
        %v2012 = vadd.f32 %v1877, %v1933
        %v2013 = vadd.f32 %v1878, %v1933
        %v2014 = vadd.f32 %v1879, %v1933
        %v2015 = vadd.f32 %v1880, %v1933
        %v2016 = vadd.f32 %v1881, %v1933
        %v2017 = vadd.f32 %v1882, %v1933
        %v2018 = vadd.f32 %v1883, %v1933
        %v2019 = vadd.f32 %v1884, %v1933
        %v2020 = vadd.f32 %v1885, %v1933
        %v2021 = vadd.f32 %v1886, %v1933
        %v2022 = vadd.f32 %v1887, %v1933
        %v2023 = vadd.f32 %v1888, %v1933
        %v2024 = vadd.f32 %v1889, %v1933
        %v2025 = vadd.f32 %v1890, %v1933
        %v2026 = vadd.f32 %v1891, %v1933
        %v2027 = vadd.f32 %v1892, %v1933
        %v2028 = vadd.f32 %v1893, %v1933
        %v2029 = vadd.f32 %v1894, %v1933
        %v2030 = vadd.f32 %v1895, %v1933
        %v2031 = vadd.f32 %v1896, %v1933
        %v2032 = vadd.f32 %v1897, %v1933
        %v2033 = vadd.f32 %v1898, %v1933
        %v2034 = vadd.f32 %v1899, %v1933
        %v2035 = vadd.f32 %v1900, %v1933
        %v2036 = vadd.f32 %v1901, %v1933
        %v2037 = vadd.f32 %v1902, %v1933
        %v2038 = vadd.f32 %v1903, %v1933
        %v2039 = vadd.f32 %v1904, %v1933
        %v2040 = vadd.f32 %v1905, %v1933
        %v2041 = vadd.f32 %v1906, %v1933
        %v2042 = vadd.f32 %v1907, %v1933
        %v2043 = vadd.f32 %v1908, %v1933
        %v2044 = vadd.f32 %v1909, %v1933
        %v2045 = vadd.f32 %v1910, %v1933
        %v2046 = vadd.f32 %v1911, %v1933
        %v2047 = vadd.f32 %v1912, %v1933
        %v2048 = vadd.f32 %v1913, %v1933
        %v2049 = vadd.f32 %v1914, %v1933
        %v2050 = vadd.f32 %v1915, %v1933
        %v2051 = vadd.f32 %v1916, %v1933
        %v2052 = vadd.f32 %v1917, %v1933
        %v2053 = vadd.f32 %v1918, %v1933
        %v2054 = vadd.f32 %v1919, %v1933
        %v2055 = vadd.f32 %v1920, %v1933
        %v2056 = vadd.f32 %v1921, %v1933
        %v2057 = vadd.f32 %v1922, %v1933
        %v2058 = vadd.f32 %v1923, %v1933
        %v2059 = vadd.f32 %v1924, %v1933
        %v2060 = vadd.f32 %v1925, %v1933
        %v2061 = vadd.f32 %v1926, %v1933
        %v2062 = vadd.f32 %v1927, %v1933
        %v2063 = vand.u32 2147483647, %v1935
        %v2064 = vand.u32 2147483647, %v1936
        %v2065 = vand.u32 2147483647, %v1937
        %v2066 = vand.u32 2147483647, %v1938
        %v2067 = vand.u32 2147483647, %v1939
        %v2068 = vand.u32 2147483647, %v1940
        %v2069 = vand.u32 2147483647, %v1941
        %v2070 = vand.u32 2147483647, %v1942
        %v2071 = vand.u32 2147483647, %v1943
        %v2072 = vand.u32 2147483647, %v1944
        %v2073 = vand.u32 2147483647, %v1945
        %v2074 = vand.u32 2147483647, %v1946
        %v2075 = vand.u32 2147483647, %v1947
        %v2076 = vand.u32 2147483647, %v1948
        %v2077 = vand.u32 2147483647, %v1949
        %v2078 = vand.u32 2147483647, %v1950
        %v2079 = vand.u32 2147483647, %v1951
        %v2080 = vand.u32 2147483647, %v1952
        %v2081 = vand.u32 2147483647, %v1953
        %v2082 = vand.u32 2147483647, %v1954
        %v2083 = vand.u32 2147483647, %v1955
        %v2084 = vand.u32 2147483647, %v1956
        %v2085 = vand.u32 2147483647, %v1957
        %v2086 = vand.u32 2147483647, %v1958
        %v2087 = vand.u32 2147483647, %v1959
        %v2088 = vand.u32 2147483647, %v1960
        %v2089 = vand.u32 2147483647, %v1961
        %v2090 = vand.u32 2147483647, %v1962
        %v2091 = vand.u32 2147483647, %v1963
        %v2092 = vand.u32 2147483647, %v1964
        %v2093 = vand.u32 2147483647, %v1965
        %v2094 = vand.u32 2147483647, %v1966
        %v2095 = vand.u32 2147483647, %v1967
        %v2096 = vand.u32 2147483647, %v1968
        %v2097 = vand.u32 2147483647, %v1969
        %v2098 = vand.u32 2147483647, %v1970
        %v2099 = vand.u32 2147483647, %v1971
        %v2100 = vand.u32 2147483647, %v1972
        %v2101 = vand.u32 2147483647, %v1973
        %v2102 = vand.u32 2147483647, %v1974
        %v2103 = vand.u32 2147483647, %v1975
        %v2104 = vand.u32 2147483647, %v1976
        %v2105 = vand.u32 2147483647, %v1977
        %v2106 = vand.u32 2147483647, %v1978
        %v2107 = vand.u32 2147483647, %v1979
        %v2108 = vand.u32 2147483647, %v1980
        %v2109 = vand.u32 2147483647, %v1981
        %v2110 = vand.u32 2147483647, %v1982
        %v2111 = vand.u32 2147483647, %v1983
        %v2112 = vand.u32 2147483647, %v1984
        %v2113 = vand.u32 2147483647, %v1985
        %v2114 = vand.u32 2147483647, %v1986
        %v2115 = vand.u32 2147483647, %v1987
        %v2116 = vand.u32 2147483647, %v1988
        %v2117 = vand.u32 2147483647, %v1989
        %v2118 = vand.u32 2147483647, %v1990
        %v2119 = vand.u32 2147483647, %v1991
        %v2120 = vand.u32 2147483647, %v1992
        %v2121 = vand.u32 2147483647, %v1993
        %v2122 = vand.u32 2147483647, %v1994
        %v2123 = vand.u32 2147483647, %v1995
        %v2124 = vand.u32 2147483647, %v1996
        %v2125 = vand.u32 2147483647, %v1997
        %v2126 = vand.u32 2147483647, %v1998
        %v2127 = vand.u32 2147483647, %v1999
        %v2128 = vand.u32 2147483647, %v2000
        %v2129 = vand.u32 2147483647, %v2001
        %v2130 = vand.u32 2147483647, %v2002
        %v2131 = vand.u32 2147483647, %v2003
        %v2132 = vand.u32 2147483647, %v2004
        %v2133 = vand.u32 2147483647, %v2005
        %v2134 = vand.u32 2147483647, %v2006
        %v2135 = vand.u32 2147483647, %v2007
        %v2136 = vand.u32 2147483647, %v2008
        %v2137 = vand.u32 2147483647, %v2009
        %v2138 = vand.u32 2147483647, %v2010
        %v2139 = vand.u32 2147483647, %v2011
        %v2140 = vand.u32 2147483647, %v2012
        %v2141 = vand.u32 2147483647, %v2013
        %v2142 = vand.u32 2147483647, %v2014
        %v2143 = vand.u32 2147483647, %v2015
        %v2144 = vand.u32 2147483647, %v2016
        %v2145 = vand.u32 2147483647, %v2017
        %v2146 = vand.u32 2147483647, %v2018
        %v2147 = vand.u32 2147483647, %v2019
        %v2148 = vand.u32 2147483647, %v2020
        %v2149 = vand.u32 2147483647, %v2021
        %v2150 = vand.u32 2147483647, %v2022
        %v2151 = vand.u32 2147483647, %v2023
        %v2152 = vand.u32 2147483647, %v2024
        %v2153 = vand.u32 2147483647, %v2025
        %v2154 = vand.u32 2147483647, %v2026
        %v2155 = vand.u32 2147483647, %v2027
        %v2156 = vand.u32 2147483647, %v2028
        %v2157 = vand.u32 2147483647, %v2029
        %v2158 = vand.u32 2147483647, %v2030
        %v2159 = vand.u32 2147483647, %v2031
        %v2160 = vand.u32 2147483647, %v2032
        %v2161 = vand.u32 2147483647, %v2033
        %v2162 = vand.u32 2147483647, %v2034
        %v2163 = vand.u32 2147483647, %v2035
        %v2164 = vand.u32 2147483647, %v2036
        %v2165 = vand.u32 2147483647, %v2037
        %v2166 = vand.u32 2147483647, %v2038
        %v2167 = vand.u32 2147483647, %v2039
        %v2168 = vand.u32 2147483647, %v2040
        %v2169 = vand.u32 2147483647, %v2041
        %v2170 = vand.u32 2147483647, %v2042
        %v2171 = vand.u32 2147483647, %v2043
        %v2172 = vand.u32 2147483647, %v2044
        %v2173 = vand.u32 2147483647, %v2045
        %v2174 = vand.u32 2147483647, %v2046
        %v2175 = vand.u32 2147483647, %v2047
        %v2176 = vand.u32 2147483647, %v2048
        %v2177 = vand.u32 2147483647, %v2049
        %v2178 = vand.u32 2147483647, %v2050
        %v2179 = vand.u32 2147483647, %v2051
        %v2180 = vand.u32 2147483647, %v2052
        %v2181 = vand.u32 2147483647, %v2053
        %v2182 = vand.u32 2147483647, %v2054
        %v2183 = vand.u32 2147483647, %v2055
        %v2184 = vand.u32 2147483647, %v2056
        %v2185 = vand.u32 2147483647, %v2057
        %v2186 = vand.u32 2147483647, %v2058
        %v2187 = vand.u32 2147483647, %v2059
        %v2188 = vand.u32 2147483647, %v2060
        %v2189 = vand.u32 2147483647, %v2061
        %v2190 = vand.u32 2147483647, %v2062
        %v2191 = vadd.f32 %v2063, 1.0
        %v2192 = vadd.f32 %v2064, 1.0
        %v2193 = vadd.f32 %v2065, 1.0
        %v2194 = vadd.f32 %v2066, 1.0
        %v2195 = vadd.f32 %v2067, 1.0
        %v2196 = vadd.f32 %v2068, 1.0
        %v2197 = vadd.f32 %v2069, 1.0
        %v2198 = vadd.f32 %v2070, 1.0
        %v2199 = vadd.f32 %v2071, 1.0
        %v2200 = vadd.f32 %v2072, 1.0
        %v2201 = vadd.f32 %v2073, 1.0
        %v2202 = vadd.f32 %v2074, 1.0
        %v2203 = vadd.f32 %v2075, 1.0
        %v2204 = vadd.f32 %v2076, 1.0
        %v2205 = vadd.f32 %v2077, 1.0
        %v2206 = vadd.f32 %v2078, 1.0
        %v2207 = vadd.f32 %v2079, 1.0
        %v2208 = vadd.f32 %v2080, 1.0
        %v2209 = vadd.f32 %v2081, 1.0
        %v2210 = vadd.f32 %v2082, 1.0
        %v2211 = vadd.f32 %v2083, 1.0
        %v2212 = vadd.f32 %v2084, 1.0
        %v2213 = vadd.f32 %v2085, 1.0
        %v2214 = vadd.f32 %v2086, 1.0
        %v2215 = vadd.f32 %v2087, 1.0
        %v2216 = vadd.f32 %v2088, 1.0
        %v2217 = vadd.f32 %v2089, 1.0
        %v2218 = vadd.f32 %v2090, 1.0
        %v2219 = vadd.f32 %v2091, 1.0
        %v2220 = vadd.f32 %v2092, 1.0
        %v2221 = vadd.f32 %v2093, 1.0
        %v2222 = vadd.f32 %v2094, 1.0
        %v2223 = vadd.f32 %v2095, 1.0
        %v2224 = vadd.f32 %v2096, 1.0
        %v2225 = vadd.f32 %v2097, 1.0
        %v2226 = vadd.f32 %v2098, 1.0
        %v2227 = vadd.f32 %v2099, 1.0
        %v2228 = vadd.f32 %v2100, 1.0
        %v2229 = vadd.f32 %v2101, 1.0
        %v2230 = vadd.f32 %v2102, 1.0
        %v2231 = vadd.f32 %v2103, 1.0
        %v2232 = vadd.f32 %v2104, 1.0
        %v2233 = vadd.f32 %v2105, 1.0
        %v2234 = vadd.f32 %v2106, 1.0
        %v2235 = vadd.f32 %v2107, 1.0
        %v2236 = vadd.f32 %v2108, 1.0
        %v2237 = vadd.f32 %v2109, 1.0
        %v2238 = vadd.f32 %v2110, 1.0
        %v2239 = vadd.f32 %v2111, 1.0
        %v2240 = vadd.f32 %v2112, 1.0
        %v2241 = vadd.f32 %v2113, 1.0
        %v2242 = vadd.f32 %v2114, 1.0
        %v2243 = vadd.f32 %v2115, 1.0
        %v2244 = vadd.f32 %v2116, 1.0
        %v2245 = vadd.f32 %v2117, 1.0
        %v2246 = vadd.f32 %v2118, 1.0
        %v2247 = vadd.f32 %v2119, 1.0
        %v2248 = vadd.f32 %v2120, 1.0
        %v2249 = vadd.f32 %v2121, 1.0
        %v2250 = vadd.f32 %v2122, 1.0
        %v2251 = vadd.f32 %v2123, 1.0
        %v2252 = vadd.f32 %v2124, 1.0
        %v2253 = vadd.f32 %v2125, 1.0
        %v2254 = vadd.f32 %v2126, 1.0
        %v2255 = vadd.f32 %v2127, 1.0
        %v2256 = vadd.f32 %v2128, 1.0
        %v2257 = vadd.f32 %v2129, 1.0
        %v2258 = vadd.f32 %v2130, 1.0
        %v2259 = vadd.f32 %v2131, 1.0
        %v2260 = vadd.f32 %v2132, 1.0
        %v2261 = vadd.f32 %v2133, 1.0
        %v2262 = vadd.f32 %v2134, 1.0
        %v2263 = vadd.f32 %v2135, 1.0
        %v2264 = vadd.f32 %v2136, 1.0
        %v2265 = vadd.f32 %v2137, 1.0
        %v2266 = vadd.f32 %v2138, 1.0
        %v2267 = vadd.f32 %v2139, 1.0
        %v2268 = vadd.f32 %v2140, 1.0
        %v2269 = vadd.f32 %v2141, 1.0
        %v2270 = vadd.f32 %v2142, 1.0
        %v2271 = vadd.f32 %v2143, 1.0
        %v2272 = vadd.f32 %v2144, 1.0
        %v2273 = vadd.f32 %v2145, 1.0
        %v2274 = vadd.f32 %v2146, 1.0
        %v2275 = vadd.f32 %v2147, 1.0
        %v2276 = vadd.f32 %v2148, 1.0
        %v2277 = vadd.f32 %v2149, 1.0
        %v2278 = vadd.f32 %v2150, 1.0
        %v2279 = vadd.f32 %v2151, 1.0
        %v2280 = vadd.f32 %v2152, 1.0
        %v2281 = vadd.f32 %v2153, 1.0
        %v2282 = vadd.f32 %v2154, 1.0
        %v2283 = vadd.f32 %v2155, 1.0
        %v2284 = vadd.f32 %v2156, 1.0
        %v2285 = vadd.f32 %v2157, 1.0
        %v2286 = vadd.f32 %v2158, 1.0
        %v2287 = vadd.f32 %v2159, 1.0
        %v2288 = vadd.f32 %v2160, 1.0
        %v2289 = vadd.f32 %v2161, 1.0
        %v2290 = vadd.f32 %v2162, 1.0
        %v2291 = vadd.f32 %v2163, 1.0
        %v2292 = vadd.f32 %v2164, 1.0
        %v2293 = vadd.f32 %v2165, 1.0
        %v2294 = vadd.f32 %v2166, 1.0
        %v2295 = vadd.f32 %v2167, 1.0
        %v2296 = vadd.f32 %v2168, 1.0
        %v2297 = vadd.f32 %v2169, 1.0
        %v2298 = vadd.f32 %v2170, 1.0
        %v2299 = vadd.f32 %v2171, 1.0
        %v2300 = vadd.f32 %v2172, 1.0
        %v2301 = vadd.f32 %v2173, 1.0
        %v2302 = vadd.f32 %v2174, 1.0
        %v2303 = vadd.f32 %v2175, 1.0
        %v2304 = vadd.f32 %v2176, 1.0
        %v2305 = vadd.f32 %v2177, 1.0
        %v2306 = vadd.f32 %v2178, 1.0
        %v2307 = vadd.f32 %v2179, 1.0
        %v2308 = vadd.f32 %v2180, 1.0
        %v2309 = vadd.f32 %v2181, 1.0
        %v2310 = vadd.f32 %v2182, 1.0
        %v2311 = vadd.f32 %v2183, 1.0
        %v2312 = vadd.f32 %v2184, 1.0
        %v2313 = vadd.f32 %v2185, 1.0
        %v2314 = vadd.f32 %v2186, 1.0
        %v2315 = vadd.f32 %v2187, 1.0
        %v2316 = vadd.f32 %v2188, 1.0
        %v2317 = vadd.f32 %v2189, 1.0
        %v2318 = vadd.f32 %v2190, 1.0
        %v2319 = vmul.f32 %v2191, %v1935
        %v2320 = vmul.f32 %v2192, %v1936
        %v2321 = vmul.f32 %v2193, %v1937
        %v2322 = vmul.f32 %v2194, %v1938
        %v2323 = vmul.f32 %v2195, %v1939
        %v2324 = vmul.f32 %v2196, %v1940
        %v2325 = vmul.f32 %v2197, %v1941
        %v2326 = vmul.f32 %v2198, %v1942
        %v2327 = vmul.f32 %v2199, %v1943
        %v2328 = vmul.f32 %v2200, %v1944
        %v2329 = vmul.f32 %v2201, %v1945
        %v2330 = vmul.f32 %v2202, %v1946
        %v2331 = vmul.f32 %v2203, %v1947
        %v2332 = vmul.f32 %v2204, %v1948
        %v2333 = vmul.f32 %v2205, %v1949
        %v2334 = vmul.f32 %v2206, %v1950
        %v2335 = vmul.f32 %v2207, %v1951
        %v2336 = vmul.f32 %v2208, %v1952
        %v2337 = vmul.f32 %v2209, %v1953
        %v2338 = vmul.f32 %v2210, %v1954
        %v2339 = vmul.f32 %v2211, %v1955
        %v2340 = vmul.f32 %v2212, %v1956
        %v2341 = vmul.f32 %v2213, %v1957
        %v2342 = vmul.f32 %v2214, %v1958
        %v2343 = vmul.f32 %v2215, %v1959
        %v2344 = vmul.f32 %v2216, %v1960
        %v2345 = vmul.f32 %v2217, %v1961
        %v2346 = vmul.f32 %v2218, %v1962
        %v2347 = vmul.f32 %v2219, %v1963
        %v2348 = vmul.f32 %v2220, %v1964
        %v2349 = vmul.f32 %v2221, %v1965
        %v2350 = vmul.f32 %v2222, %v1966
        %v2351 = vmul.f32 %v2223, %v1967
        %v2352 = vmul.f32 %v2224, %v1968
        %v2353 = vmul.f32 %v2225, %v1969
        %v2354 = vmul.f32 %v2226, %v1970
        %v2355 = vmul.f32 %v2227, %v1971
        %v2356 = vmul.f32 %v2228, %v1972
        %v2357 = vmul.f32 %v2229, %v1973
        %v2358 = vmul.f32 %v2230, %v1974
        %v2359 = vmul.f32 %v2231, %v1975
        %v2360 = vmul.f32 %v2232, %v1976
        %v2361 = vmul.f32 %v2233, %v1977
        %v2362 = vmul.f32 %v2234, %v1978
        %v2363 = vmul.f32 %v2235, %v1979
        %v2364 = vmul.f32 %v2236, %v1980
        %v2365 = vmul.f32 %v2237, %v1981
        %v2366 = vmul.f32 %v2238, %v1982
        %v2367 = vmul.f32 %v2239, %v1983
        %v2368 = vmul.f32 %v2240, %v1984
        %v2369 = vmul.f32 %v2241, %v1985
        %v2370 = vmul.f32 %v2242, %v1986
        %v2371 = vmul.f32 %v2243, %v1987
        %v2372 = vmul.f32 %v2244, %v1988
        %v2373 = vmul.f32 %v2245, %v1989
        %v2374 = vmul.f32 %v2246, %v1990
        %v2375 = vmul.f32 %v2247, %v1991
        %v2376 = vmul.f32 %v2248, %v1992
        %v2377 = vmul.f32 %v2249, %v1993
        %v2378 = vmul.f32 %v2250, %v1994
        %v2379 = vmul.f32 %v2251, %v1995
        %v2380 = vmul.f32 %v2252, %v1996
        %v2381 = vmul.f32 %v2253, %v1997
        %v2382 = vmul.f32 %v2254, %v1998
        %v2383 = vmul.f32 %v2255, %v1999
        %v2384 = vmul.f32 %v2256, %v2000
        %v2385 = vmul.f32 %v2257, %v2001
        %v2386 = vmul.f32 %v2258, %v2002
        %v2387 = vmul.f32 %v2259, %v2003
        %v2388 = vmul.f32 %v2260, %v2004
        %v2389 = vmul.f32 %v2261, %v2005
        %v2390 = vmul.f32 %v2262, %v2006
        %v2391 = vmul.f32 %v2263, %v2007
        %v2392 = vmul.f32 %v2264, %v2008
        %v2393 = vmul.f32 %v2265, %v2009
        %v2394 = vmul.f32 %v2266, %v2010
        %v2395 = vmul.f32 %v2267, %v2011
        %v2396 = vmul.f32 %v2268, %v2012
        %v2397 = vmul.f32 %v2269, %v2013
        %v2398 = vmul.f32 %v2270, %v2014
        %v2399 = vmul.f32 %v2271, %v2015
        %v2400 = vmul.f32 %v2272, %v2016
        %v2401 = vmul.f32 %v2273, %v2017
        %v2402 = vmul.f32 %v2274, %v2018
        %v2403 = vmul.f32 %v2275, %v2019
        %v2404 = vmul.f32 %v2276, %v2020
        %v2405 = vmul.f32 %v2277, %v2021
        %v2406 = vmul.f32 %v2278, %v2022
        %v2407 = vmul.f32 %v2279, %v2023
        %v2408 = vmul.f32 %v2280, %v2024
        %v2409 = vmul.f32 %v2281, %v2025
        %v2410 = vmul.f32 %v2282, %v2026
        %v2411 = vmul.f32 %v2283, %v2027
        %v2412 = vmul.f32 %v2284, %v2028
        %v2413 = vmul.f32 %v2285, %v2029
        %v2414 = vmul.f32 %v2286, %v2030
        %v2415 = vmul.f32 %v2287, %v2031
        %v2416 = vmul.f32 %v2288, %v2032
        %v2417 = vmul.f32 %v2289, %v2033
        %v2418 = vmul.f32 %v2290, %v2034
        %v2419 = vmul.f32 %v2291, %v2035
        %v2420 = vmul.f32 %v2292, %v2036
        %v2421 = vmul.f32 %v2293, %v2037
        %v2422 = vmul.f32 %v2294, %v2038
        %v2423 = vmul.f32 %v2295, %v2039
        %v2424 = vmul.f32 %v2296, %v2040
        %v2425 = vmul.f32 %v2297, %v2041
        %v2426 = vmul.f32 %v2298, %v2042
        %v2427 = vmul.f32 %v2299, %v2043
        %v2428 = vmul.f32 %v2300, %v2044
        %v2429 = vmul.f32 %v2301, %v2045
        %v2430 = vmul.f32 %v2302, %v2046
        %v2431 = vmul.f32 %v2303, %v2047
        %v2432 = vmul.f32 %v2304, %v2048
        %v2433 = vmul.f32 %v2305, %v2049
        %v2434 = vmul.f32 %v2306, %v2050
        %v2435 = vmul.f32 %v2307, %v2051
        %v2436 = vmul.f32 %v2308, %v2052
        %v2437 = vmul.f32 %v2309, %v2053
        %v2438 = vmul.f32 %v2310, %v2054
        %v2439 = vmul.f32 %v2311, %v2055
        %v2440 = vmul.f32 %v2312, %v2056
        %v2441 = vmul.f32 %v2313, %v2057
        %v2442 = vmul.f32 %v2314, %v2058
        %v2443 = vmul.f32 %v2315, %v2059
        %v2444 = vmul.f32 %v2316, %v2060
        %v2445 = vmul.f32 %v2317, %v2061
        %v2446 = vmul.f32 %v2318, %v2062
        %v2447 = vmul.f32 %v2319, %v2319
        %v2448 = vmul.f32 %v2320, %v2320
        %v2449 = vmul.f32 %v2321, %v2321
        %v2450 = vmul.f32 %v2322, %v2322
        %v2451 = vmul.f32 %v2323, %v2323
        %v2452 = vmul.f32 %v2324, %v2324
        %v2453 = vmul.f32 %v2325, %v2325
        %v2454 = vmul.f32 %v2326, %v2326
        %v2455 = vmul.f32 %v2327, %v2327
        %v2456 = vmul.f32 %v2328, %v2328
        %v2457 = vmul.f32 %v2329, %v2329
        %v2458 = vmul.f32 %v2330, %v2330
        %v2459 = vmul.f32 %v2331, %v2331
        %v2460 = vmul.f32 %v2332, %v2332
        %v2461 = vmul.f32 %v2333, %v2333
        %v2462 = vmul.f32 %v2334, %v2334
        %v2463 = vmul.f32 %v2335, %v2335
        %v2464 = vmul.f32 %v2336, %v2336
        %v2465 = vmul.f32 %v2337, %v2337
        %v2466 = vmul.f32 %v2338, %v2338
        %v2467 = vmul.f32 %v2339, %v2339
        %v2468 = vmul.f32 %v2340, %v2340
        %v2469 = vmul.f32 %v2341, %v2341
        %v2470 = vmul.f32 %v2342, %v2342
        %v2471 = vmul.f32 %v2343, %v2343
        %v2472 = vmul.f32 %v2344, %v2344
        %v2473 = vmul.f32 %v2345, %v2345
        %v2474 = vmul.f32 %v2346, %v2346
        %v2475 = vmul.f32 %v2347, %v2347
        %v2476 = vmul.f32 %v2348, %v2348
        %v2477 = vmul.f32 %v2349, %v2349
        %v2478 = vmul.f32 %v2350, %v2350
        %v2479 = vmul.f32 %v2351, %v2351
        %v2480 = vmul.f32 %v2352, %v2352
        %v2481 = vmul.f32 %v2353, %v2353
        %v2482 = vmul.f32 %v2354, %v2354
        %v2483 = vmul.f32 %v2355, %v2355
        %v2484 = vmul.f32 %v2356, %v2356
        %v2485 = vmul.f32 %v2357, %v2357
        %v2486 = vmul.f32 %v2358, %v2358
        %v2487 = vmul.f32 %v2359, %v2359
        %v2488 = vmul.f32 %v2360, %v2360
        %v2489 = vmul.f32 %v2361, %v2361
        %v2490 = vmul.f32 %v2362, %v2362
        %v2491 = vmul.f32 %v2363, %v2363
        %v2492 = vmul.f32 %v2364, %v2364
        %v2493 = vmul.f32 %v2365, %v2365
        %v2494 = vmul.f32 %v2366, %v2366
        %v2495 = vmul.f32 %v2367, %v2367
        %v2496 = vmul.f32 %v2368, %v2368
        %v2497 = vmul.f32 %v2369, %v2369
        %v2498 = vmul.f32 %v2370, %v2370
        %v2499 = vmul.f32 %v2371, %v2371
        %v2500 = vmul.f32 %v2372, %v2372
        %v2501 = vmul.f32 %v2373, %v2373
        %v2502 = vmul.f32 %v2374, %v2374
        %v2503 = vmul.f32 %v2375, %v2375
        %v2504 = vmul.f32 %v2376, %v2376
        %v2505 = vmul.f32 %v2377, %v2377
        %v2506 = vmul.f32 %v2378, %v2378
        %v2507 = vmul.f32 %v2379, %v2379
        %v2508 = vmul.f32 %v2380, %v2380
        %v2509 = vmul.f32 %v2381, %v2381
        %v2510 = vmul.f32 %v2382, %v2382
        %v2511 = vmul.f32 %v2383, %v2383
        %v2512 = vmul.f32 %v2384, %v2384
        %v2513 = vmul.f32 %v2385, %v2385
        %v2514 = vmul.f32 %v2386, %v2386
        %v2515 = vmul.f32 %v2387, %v2387
        %v2516 = vmul.f32 %v2388, %v2388
        %v2517 = vmul.f32 %v2389, %v2389
        %v2518 = vmul.f32 %v2390, %v2390
        %v2519 = vmul.f32 %v2391, %v2391
        %v2520 = vmul.f32 %v2392, %v2392
        %v2521 = vmul.f32 %v2393, %v2393
        %v2522 = vmul.f32 %v2394, %v2394
        %v2523 = vmul.f32 %v2395, %v2395
        %v2524 = vmul.f32 %v2396, %v2396
        %v2525 = vmul.f32 %v2397, %v2397
        %v2526 = vmul.f32 %v2398, %v2398
        %v2527 = vmul.f32 %v2399, %v2399
        %v2528 = vmul.f32 %v2400, %v2400
        %v2529 = vmul.f32 %v2401, %v2401
        %v2530 = vmul.f32 %v2402, %v2402
        %v2531 = vmul.f32 %v2403, %v2403
        %v2532 = vmul.f32 %v2404, %v2404
        %v2533 = vmul.f32 %v2405, %v2405
        %v2534 = vmul.f32 %v2406, %v2406
        %v2535 = vmul.f32 %v2407, %v2407
        %v2536 = vmul.f32 %v2408, %v2408
        %v2537 = vmul.f32 %v2409, %v2409
        %v2538 = vmul.f32 %v2410, %v2410
        %v2539 = vmul.f32 %v2411, %v2411
        %v2540 = vmul.f32 %v2412, %v2412
        %v2541 = vmul.f32 %v2413, %v2413
        %v2542 = vmul.f32 %v2414, %v2414
        %v2543 = vmul.f32 %v2415, %v2415
        %v2544 = vmul.f32 %v2416, %v2416
        %v2545 = vmul.f32 %v2417, %v2417
        %v2546 = vmul.f32 %v2418, %v2418
        %v2547 = vmul.f32 %v2419, %v2419
        %v2548 = vmul.f32 %v2420, %v2420
        %v2549 = vmul.f32 %v2421, %v2421
        %v2550 = vmul.f32 %v2422, %v2422
        %v2551 = vmul.f32 %v2423, %v2423
        %v2552 = vmul.f32 %v2424, %v2424
        %v2553 = vmul.f32 %v2425, %v2425
        %v2554 = vmul.f32 %v2426, %v2426
        %v2555 = vmul.f32 %v2427, %v2427
        %v2556 = vmul.f32 %v2428, %v2428
        %v2557 = vmul.f32 %v2429, %v2429
        %v2558 = vmul.f32 %v2430, %v2430
        %v2559 = vmul.f32 %v2431, %v2431
        %v2560 = vmul.f32 %v2432, %v2432
        %v2561 = vmul.f32 %v2433, %v2433
        %v2562 = vmul.f32 %v2434, %v2434
        %v2563 = vmul.f32 %v2435, %v2435
        %v2564 = vmul.f32 %v2436, %v2436
        %v2565 = vmul.f32 %v2437, %v2437
        %v2566 = vmul.f32 %v2438, %v2438
        %v2567 = vmul.f32 %v2439, %v2439
        %v2568 = vmul.f32 %v2440, %v2440
        %v2569 = vmul.f32 %v2441, %v2441
        %v2570 = vmul.f32 %v2442, %v2442
        %v2571 = vmul.f32 %v2443, %v2443
        %v2572 = vmul.f32 %v2444, %v2444
        %v2573 = vmul.f32 %v2445, %v2445
        %v2574 = vmul.f32 %v2446, %v2446
        %v2575 = vmul.f32 %v2447, -2812.5
        %v2576 = vmul.f32 %v2448, -2812.5
        %v2577 = vmul.f32 %v2449, -2812.5
        %v2578 = vmul.f32 %v2450, -2812.5
        %v2579 = vmul.f32 %v2451, -2812.5
        %v2580 = vmul.f32 %v2452, -2812.5
        %v2581 = vmul.f32 %v2453, -2812.5
        %v2582 = vmul.f32 %v2454, -2812.5
        %v2583 = vmul.f32 %v2455, -2812.5
        %v2584 = vmul.f32 %v2456, -2812.5
        %v2585 = vmul.f32 %v2457, -2812.5
        %v2586 = vmul.f32 %v2458, -2812.5
        %v2587 = vmul.f32 %v2459, -2812.5
        %v2588 = vmul.f32 %v2460, -2812.5
        %v2589 = vmul.f32 %v2461, -2812.5
        %v2590 = vmul.f32 %v2462, -2812.5
        %v2591 = vmul.f32 %v2463, -2812.5
        %v2592 = vmul.f32 %v2464, -2812.5
        %v2593 = vmul.f32 %v2465, -2812.5
        %v2594 = vmul.f32 %v2466, -2812.5
        %v2595 = vmul.f32 %v2467, -2812.5
        %v2596 = vmul.f32 %v2468, -2812.5
        %v2597 = vmul.f32 %v2469, -2812.5
        %v2598 = vmul.f32 %v2470, -2812.5
        %v2599 = vmul.f32 %v2471, -2812.5
        %v2600 = vmul.f32 %v2472, -2812.5
        %v2601 = vmul.f32 %v2473, -2812.5
        %v2602 = vmul.f32 %v2474, -2812.5
        %v2603 = vmul.f32 %v2475, -2812.5
        %v2604 = vmul.f32 %v2476, -2812.5
        %v2605 = vmul.f32 %v2477, -2812.5
        %v2606 = vmul.f32 %v2478, -2812.5
        %v2607 = vmul.f32 %v2479, -2812.5
        %v2608 = vmul.f32 %v2480, -2812.5
        %v2609 = vmul.f32 %v2481, -2812.5
        %v2610 = vmul.f32 %v2482, -2812.5
        %v2611 = vmul.f32 %v2483, -2812.5
        %v2612 = vmul.f32 %v2484, -2812.5
        %v2613 = vmul.f32 %v2485, -2812.5
        %v2614 = vmul.f32 %v2486, -2812.5
        %v2615 = vmul.f32 %v2487, -2812.5
        %v2616 = vmul.f32 %v2488, -2812.5
        %v2617 = vmul.f32 %v2489, -2812.5
        %v2618 = vmul.f32 %v2490, -2812.5
        %v2619 = vmul.f32 %v2491, -2812.5
        %v2620 = vmul.f32 %v2492, -2812.5
        %v2621 = vmul.f32 %v2493, -2812.5
        %v2622 = vmul.f32 %v2494, -2812.5
        %v2623 = vmul.f32 %v2495, -2812.5
        %v2624 = vmul.f32 %v2496, -2812.5
        %v2625 = vmul.f32 %v2497, -2812.5
        %v2626 = vmul.f32 %v2498, -2812.5
        %v2627 = vmul.f32 %v2499, -2812.5
        %v2628 = vmul.f32 %v2500, -2812.5
        %v2629 = vmul.f32 %v2501, -2812.5
        %v2630 = vmul.f32 %v2502, -2812.5
        %v2631 = vmul.f32 %v2503, -2812.5
        %v2632 = vmul.f32 %v2504, -2812.5
        %v2633 = vmul.f32 %v2505, -2812.5
        %v2634 = vmul.f32 %v2506, -2812.5
        %v2635 = vmul.f32 %v2507, -2812.5
        %v2636 = vmul.f32 %v2508, -2812.5
        %v2637 = vmul.f32 %v2509, -2812.5
        %v2638 = vmul.f32 %v2510, -2812.5
        %v2639 = vmul.f32 %v2511, -2812.5
        %v2640 = vmul.f32 %v2512, -2812.5
        %v2641 = vmul.f32 %v2513, -2812.5
        %v2642 = vmul.f32 %v2514, -2812.5
        %v2643 = vmul.f32 %v2515, -2812.5
        %v2644 = vmul.f32 %v2516, -2812.5
        %v2645 = vmul.f32 %v2517, -2812.5
        %v2646 = vmul.f32 %v2518, -2812.5
        %v2647 = vmul.f32 %v2519, -2812.5
        %v2648 = vmul.f32 %v2520, -2812.5
        %v2649 = vmul.f32 %v2521, -2812.5
        %v2650 = vmul.f32 %v2522, -2812.5
        %v2651 = vmul.f32 %v2523, -2812.5
        %v2652 = vmul.f32 %v2524, -2812.5
        %v2653 = vmul.f32 %v2525, -2812.5
        %v2654 = vmul.f32 %v2526, -2812.5
        %v2655 = vmul.f32 %v2527, -2812.5
        %v2656 = vmul.f32 %v2528, -2812.5
        %v2657 = vmul.f32 %v2529, -2812.5
        %v2658 = vmul.f32 %v2530, -2812.5
        %v2659 = vmul.f32 %v2531, -2812.5
        %v2660 = vmul.f32 %v2532, -2812.5
        %v2661 = vmul.f32 %v2533, -2812.5
        %v2662 = vmul.f32 %v2534, -2812.5
        %v2663 = vmul.f32 %v2535, -2812.5
        %v2664 = vmul.f32 %v2536, -2812.5
        %v2665 = vmul.f32 %v2537, -2812.5
        %v2666 = vmul.f32 %v2538, -2812.5
        %v2667 = vmul.f32 %v2539, -2812.5
        %v2668 = vmul.f32 %v2540, -2812.5
        %v2669 = vmul.f32 %v2541, -2812.5
        %v2670 = vmul.f32 %v2542, -2812.5
        %v2671 = vmul.f32 %v2543, -2812.5
        %v2672 = vmul.f32 %v2544, -2812.5
        %v2673 = vmul.f32 %v2545, -2812.5
        %v2674 = vmul.f32 %v2546, -2812.5
        %v2675 = vmul.f32 %v2547, -2812.5
        %v2676 = vmul.f32 %v2548, -2812.5
        %v2677 = vmul.f32 %v2549, -2812.5
        %v2678 = vmul.f32 %v2550, -2812.5
        %v2679 = vmul.f32 %v2551, -2812.5
        %v2680 = vmul.f32 %v2552, -2812.5
        %v2681 = vmul.f32 %v2553, -2812.5
        %v2682 = vmul.f32 %v2554, -2812.5
        %v2683 = vmul.f32 %v2555, -2812.5
        %v2684 = vmul.f32 %v2556, -2812.5
        %v2685 = vmul.f32 %v2557, -2812.5
        %v2686 = vmul.f32 %v2558, -2812.5
        %v2687 = vmul.f32 %v2559, -2812.5
        %v2688 = vmul.f32 %v2560, -2812.5
        %v2689 = vmul.f32 %v2561, -2812.5
        %v2690 = vmul.f32 %v2562, -2812.5
        %v2691 = vmul.f32 %v2563, -2812.5
        %v2692 = vmul.f32 %v2564, -2812.5
        %v2693 = vmul.f32 %v2565, -2812.5
        %v2694 = vmul.f32 %v2566, -2812.5
        %v2695 = vmul.f32 %v2567, -2812.5
        %v2696 = vmul.f32 %v2568, -2812.5
        %v2697 = vmul.f32 %v2569, -2812.5
        %v2698 = vmul.f32 %v2570, -2812.5
        %v2699 = vmul.f32 %v2571, -2812.5
        %v2700 = vmul.f32 %v2572, -2812.5
        %v2701 = vmul.f32 %v2573, -2812.5
        %v2702 = vmul.f32 %v2574, -2812.5
        %v2703 = vmul.f32 %v2575, 1.442695
        %v2704 = vpow.pop %v2703
        %v2705 = vmul.f32 %v2576, 1.442695
        %v2706 = vpow.pop %v2705
        %v2707 = vmul.f32 %v2577, 1.442695
        %v2708 = vpow.pop %v2707
        %v2709 = vmul.f32 %v2578, 1.442695
        %v2710 = vpow.pop %v2709
        %v2711 = vmul.f32 %v2579, 1.442695
        %v2712 = vpow.pop %v2711
        %v2713 = vmul.f32 %v2580, 1.442695
        %v2714 = vpow.pop %v2713
        %v2715 = vmul.f32 %v2581, 1.442695
        %v2716 = vpow.pop %v2715
        %v2717 = vmul.f32 %v2582, 1.442695
        %v2718 = vpow.pop %v2717
        %v2719 = vmul.f32 %v2583, 1.442695
        %v2720 = vpow.pop %v2719
        %v2721 = vmul.f32 %v2584, 1.442695
        %v2722 = vpow.pop %v2721
        %v2723 = vmul.f32 %v2585, 1.442695
        %v2724 = vpow.pop %v2723
        %v2725 = vmul.f32 %v2586, 1.442695
        %v2726 = vpow.pop %v2725
        %v2727 = vmul.f32 %v2587, 1.442695
        %v2728 = vpow.pop %v2727
        %v2729 = vmul.f32 %v2588, 1.442695
        %v2730 = vpow.pop %v2729
        %v2731 = vmul.f32 %v2589, 1.442695
        %v2732 = vpow.pop %v2731
        %v2733 = vmul.f32 %v2590, 1.442695
        %v2734 = vpow.pop %v2733
        %v2735 = vmul.f32 %v2591, 1.442695
        %v2736 = vpow.pop %v2735
        %v2737 = vmul.f32 %v2592, 1.442695
        %v2738 = vpow.pop %v2737
        %v2739 = vmul.f32 %v2593, 1.442695
        %v2740 = vpow.pop %v2739
        %v2741 = vmul.f32 %v2594, 1.442695
        %v2742 = vpow.pop %v2741
        %v2743 = vmul.f32 %v2595, 1.442695
        %v2744 = vpow.pop %v2743
        %v2745 = vmul.f32 %v2596, 1.442695
        %v2746 = vpow.pop %v2745
        %v2747 = vmul.f32 %v2597, 1.442695
        %v2748 = vpow.pop %v2747
        %v2749 = vmul.f32 %v2598, 1.442695
        %v2750 = vpow.pop %v2749
        %v2751 = vmul.f32 %v2599, 1.442695
        %v2752 = vpow.pop %v2751
        %v2753 = vmul.f32 %v2600, 1.442695
        %v2754 = vpow.pop %v2753
        %v2755 = vmul.f32 %v2601, 1.442695
        %v2756 = vpow.pop %v2755
        %v2757 = vmul.f32 %v2602, 1.442695
        %v2758 = vpow.pop %v2757
        %v2759 = vmul.f32 %v2603, 1.442695
        %v2760 = vpow.pop %v2759
        %v2761 = vmul.f32 %v2604, 1.442695
        %v2762 = vpow.pop %v2761
        %v2763 = vmul.f32 %v2605, 1.442695
        %v2764 = vpow.pop %v2763
        %v2765 = vmul.f32 %v2606, 1.442695
        %v2766 = vpow.pop %v2765
        %v2767 = vmul.f32 %v2607, 1.442695
        %v2768 = vpow.pop %v2767
        %v2769 = vmul.f32 %v2608, 1.442695
        %v2770 = vpow.pop %v2769
        %v2771 = vmul.f32 %v2609, 1.442695
        %v2772 = vpow.pop %v2771
        %v2773 = vmul.f32 %v2610, 1.442695
        %v2774 = vpow.pop %v2773
        %v2775 = vmul.f32 %v2611, 1.442695
        %v2776 = vpow.pop %v2775
        %v2777 = vmul.f32 %v2612, 1.442695
        %v2778 = vpow.pop %v2777
        %v2779 = vmul.f32 %v2613, 1.442695
        %v2780 = vpow.pop %v2779
        %v2781 = vmul.f32 %v2614, 1.442695
        %v2782 = vpow.pop %v2781
        %v2783 = vmul.f32 %v2615, 1.442695
        %v2784 = vpow.pop %v2783
        %v2785 = vmul.f32 %v2616, 1.442695
        %v2786 = vpow.pop %v2785
        %v2787 = vmul.f32 %v2617, 1.442695
        %v2788 = vpow.pop %v2787
        %v2789 = vmul.f32 %v2618, 1.442695
        %v2790 = vpow.pop %v2789
        %v2791 = vmul.f32 %v2619, 1.442695
        %v2792 = vpow.pop %v2791
        %v2793 = vmul.f32 %v2620, 1.442695
        %v2794 = vpow.pop %v2793
        %v2795 = vmul.f32 %v2621, 1.442695
        %v2796 = vpow.pop %v2795
        %v2797 = vmul.f32 %v2622, 1.442695
        %v2798 = vpow.pop %v2797
        %v2799 = vmul.f32 %v2623, 1.442695
        %v2800 = vpow.pop %v2799
        %v2801 = vmul.f32 %v2624, 1.442695
        %v2802 = vpow.pop %v2801
        %v2803 = vmul.f32 %v2625, 1.442695
        %v2804 = vpow.pop %v2803
        %v2805 = vmul.f32 %v2626, 1.442695
        %v2806 = vpow.pop %v2805
        %v2807 = vmul.f32 %v2627, 1.442695
        %v2808 = vpow.pop %v2807
        %v2809 = vmul.f32 %v2628, 1.442695
        %v2810 = vpow.pop %v2809
        %v2811 = vmul.f32 %v2629, 1.442695
        %v2812 = vpow.pop %v2811
        %v2813 = vmul.f32 %v2630, 1.442695
        %v2814 = vpow.pop %v2813
        %v2815 = vmul.f32 %v2631, 1.442695
        %v2816 = vpow.pop %v2815
        %v2817 = vmul.f32 %v2632, 1.442695
        %v2818 = vpow.pop %v2817
        %v2819 = vmul.f32 %v2633, 1.442695
        %v2820 = vpow.pop %v2819
        %v2821 = vmul.f32 %v2634, 1.442695
        %v2822 = vpow.pop %v2821
        %v2823 = vmul.f32 %v2635, 1.442695
        %v2824 = vpow.pop %v2823
        %v2825 = vmul.f32 %v2636, 1.442695
        %v2826 = vpow.pop %v2825
        %v2827 = vmul.f32 %v2637, 1.442695
        %v2828 = vpow.pop %v2827
        %v2829 = vmul.f32 %v2638, 1.442695
        %v2830 = vpow.pop %v2829
        %v2831 = vmul.f32 %v2639, 1.442695
        %v2832 = vpow.pop %v2831
        %v2833 = vmul.f32 %v2640, 1.442695
        %v2834 = vpow.pop %v2833
        %v2835 = vmul.f32 %v2641, 1.442695
        %v2836 = vpow.pop %v2835
        %v2837 = vmul.f32 %v2642, 1.442695
        %v2838 = vpow.pop %v2837
        %v2839 = vmul.f32 %v2643, 1.442695
        %v2840 = vpow.pop %v2839
        %v2841 = vmul.f32 %v2644, 1.442695
        %v2842 = vpow.pop %v2841
        %v2843 = vmul.f32 %v2645, 1.442695
        %v2844 = vpow.pop %v2843
        %v2845 = vmul.f32 %v2646, 1.442695
        %v2846 = vpow.pop %v2845
        %v2847 = vmul.f32 %v2647, 1.442695
        %v2848 = vpow.pop %v2847
        %v2849 = vmul.f32 %v2648, 1.442695
        %v2850 = vpow.pop %v2849
        %v2851 = vmul.f32 %v2649, 1.442695
        %v2852 = vpow.pop %v2851
        %v2853 = vmul.f32 %v2650, 1.442695
        %v2854 = vpow.pop %v2853
        %v2855 = vmul.f32 %v2651, 1.442695
        %v2856 = vpow.pop %v2855
        %v2857 = vmul.f32 %v2652, 1.442695
        %v2858 = vpow.pop %v2857
        %v2859 = vmul.f32 %v2653, 1.442695
        %v2860 = vpow.pop %v2859
        %v2861 = vmul.f32 %v2654, 1.442695
        %v2862 = vpow.pop %v2861
        %v2863 = vmul.f32 %v2655, 1.442695
        %v2864 = vpow.pop %v2863
        %v2865 = vmul.f32 %v2656, 1.442695
        %v2866 = vpow.pop %v2865
        %v2867 = vmul.f32 %v2657, 1.442695
        %v2868 = vpow.pop %v2867
        %v2869 = vmul.f32 %v2658, 1.442695
        %v2870 = vpow.pop %v2869
        %v2871 = vmul.f32 %v2659, 1.442695
        %v2872 = vpow.pop %v2871
        %v2873 = vmul.f32 %v2660, 1.442695
        %v2874 = vpow.pop %v2873
        %v2875 = vmul.f32 %v2661, 1.442695
        %v2876 = vpow.pop %v2875
        %v2877 = vmul.f32 %v2662, 1.442695
        %v2878 = vpow.pop %v2877
        %v2879 = vmul.f32 %v2663, 1.442695
        %v2880 = vpow.pop %v2879
        %v2881 = vmul.f32 %v2664, 1.442695
        %v2882 = vpow.pop %v2881
        %v2883 = vmul.f32 %v2665, 1.442695
        %v2884 = vpow.pop %v2883
        %v2885 = vmul.f32 %v2666, 1.442695
        %v2886 = vpow.pop %v2885
        %v2887 = vmul.f32 %v2667, 1.442695
        %v2888 = vpow.pop %v2887
        %v2889 = vmul.f32 %v2668, 1.442695
        %v2890 = vpow.pop %v2889
        %v2891 = vmul.f32 %v2669, 1.442695
        %v2892 = vpow.pop %v2891
        %v2893 = vmul.f32 %v2670, 1.442695
        %v2894 = vpow.pop %v2893
        %v2895 = vmul.f32 %v2671, 1.442695
        %v2896 = vpow.pop %v2895
        %v2897 = vmul.f32 %v2672, 1.442695
        %v2898 = vpow.pop %v2897
        %v2899 = vmul.f32 %v2673, 1.442695
        %v2900 = vpow.pop %v2899
        %v2901 = vmul.f32 %v2674, 1.442695
        %v2902 = vpow.pop %v2901
        %v2903 = vmul.f32 %v2675, 1.442695
        %v2904 = vpow.pop %v2903
        %v2905 = vmul.f32 %v2676, 1.442695
        %v2906 = vpow.pop %v2905
        %v2907 = vmul.f32 %v2677, 1.442695
        %v2908 = vpow.pop %v2907
        %v2909 = vmul.f32 %v2678, 1.442695
        %v2910 = vpow.pop %v2909
        %v2911 = vmul.f32 %v2679, 1.442695
        %v2912 = vpow.pop %v2911
        %v2913 = vmul.f32 %v2680, 1.442695
        %v2914 = vpow.pop %v2913
        %v2915 = vmul.f32 %v2681, 1.442695
        %v2916 = vpow.pop %v2915
        %v2917 = vmul.f32 %v2682, 1.442695
        %v2918 = vpow.pop %v2917
        %v2919 = vmul.f32 %v2683, 1.442695
        %v2920 = vpow.pop %v2919
        %v2921 = vmul.f32 %v2684, 1.442695
        %v2922 = vpow.pop %v2921
        %v2923 = vmul.f32 %v2685, 1.442695
        %v2924 = vpow.pop %v2923
        %v2925 = vmul.f32 %v2686, 1.442695
        %v2926 = vpow.pop %v2925
        %v2927 = vmul.f32 %v2687, 1.442695
        %v2928 = vpow.pop %v2927
        %v2929 = vmul.f32 %v2688, 1.442695
        %v2930 = vpow.pop %v2929
        %v2931 = vmul.f32 %v2689, 1.442695
        %v2932 = vpow.pop %v2931
        %v2933 = vmul.f32 %v2690, 1.442695
        %v2934 = vpow.pop %v2933
        %v2935 = vmul.f32 %v2691, 1.442695
        %v2936 = vpow.pop %v2935
        %v2937 = vmul.f32 %v2692, 1.442695
        %v2938 = vpow.pop %v2937
        %v2939 = vmul.f32 %v2693, 1.442695
        %v2940 = vpow.pop %v2939
        %v2941 = vmul.f32 %v2694, 1.442695
        %v2942 = vpow.pop %v2941
        %v2943 = vmul.f32 %v2695, 1.442695
        %v2944 = vpow.pop %v2943
        %v2945 = vmul.f32 %v2696, 1.442695
        %v2946 = vpow.pop %v2945
        %v2947 = vmul.f32 %v2697, 1.442695
        %v2948 = vpow.pop %v2947
        %v2949 = vmul.f32 %v2698, 1.442695
        %v2950 = vpow.pop %v2949
        %v2951 = vmul.f32 %v2699, 1.442695
        %v2952 = vpow.pop %v2951
        %v2953 = vmul.f32 %v2700, 1.442695
        %v2954 = vpow.pop %v2953
        %v2955 = vmul.f32 %v2701, 1.442695
        %v2956 = vpow.pop %v2955
        %v2957 = vmul.f32 %v2702, 1.442695
        %v2958 = vpow.pop %v2957
        %v2959 = vpack.c.bf16 %v2706, %v2704
        %v2960 = vpack.c.bf16 %v2710, %v2708
        %v2961 = vpack.c.bf16 %v2714, %v2712
        %v2962 = vpack.c.bf16 %v2718, %v2716
        %v2963 = vpack.c.bf16 %v2722, %v2720
        %v2964 = vpack.c.bf16 %v2726, %v2724
        %v2965 = vpack.c.bf16 %v2730, %v2728
        %v2966 = vpack.c.bf16 %v2734, %v2732
        %v2967 = vpack.c.bf16 %v2738, %v2736
        %v2968 = vpack.c.bf16 %v2742, %v2740
        %v2969 = vpack.c.bf16 %v2746, %v2744
        %v2970 = vpack.c.bf16 %v2750, %v2748
        %v2971 = vpack.c.bf16 %v2754, %v2752
        %v2972 = vpack.c.bf16 %v2758, %v2756
        %v2973 = vpack.c.bf16 %v2762, %v2760
        %v2974 = vpack.c.bf16 %v2766, %v2764
        %v2975 = vpack.c.bf16 %v2770, %v2768
        %v2976 = vpack.c.bf16 %v2774, %v2772
        %v2977 = vpack.c.bf16 %v2778, %v2776
        %v2978 = vpack.c.bf16 %v2782, %v2780
        %v2979 = vpack.c.bf16 %v2786, %v2784
        %v2980 = vpack.c.bf16 %v2790, %v2788
        %v2981 = vpack.c.bf16 %v2794, %v2792
        %v2982 = vpack.c.bf16 %v2798, %v2796
        %v2983 = vpack.c.bf16 %v2802, %v2800
        %v2984 = vpack.c.bf16 %v2806, %v2804
        %v2985 = vpack.c.bf16 %v2810, %v2808
        %v2986 = vpack.c.bf16 %v2814, %v2812
        %v2987 = vpack.c.bf16 %v2818, %v2816
        %v2988 = vpack.c.bf16 %v2822, %v2820
        %v2989 = vpack.c.bf16 %v2826, %v2824
        %v2990 = vpack.c.bf16 %v2830, %v2828
        %v2991 = vpack.c.bf16 %v2834, %v2832
        %v2992 = vpack.c.bf16 %v2838, %v2836
        %v2993 = vpack.c.bf16 %v2842, %v2840
        %v2994 = vpack.c.bf16 %v2846, %v2844
        %v2995 = vpack.c.bf16 %v2850, %v2848
        %v2996 = vpack.c.bf16 %v2854, %v2852
        %v2997 = vpack.c.bf16 %v2858, %v2856
        %v2998 = vpack.c.bf16 %v2862, %v2860
        %v2999 = vpack.c.bf16 %v2866, %v2864
        %v3000 = vpack.c.bf16 %v2870, %v2868
        %v3001 = vpack.c.bf16 %v2874, %v2872
        %v3002 = vpack.c.bf16 %v2878, %v2876
        %v3003 = vpack.c.bf16 %v2882, %v2880
        %v3004 = vpack.c.bf16 %v2886, %v2884
        %v3005 = vpack.c.bf16 %v2890, %v2888
        %v3006 = vpack.c.bf16 %v2894, %v2892
        %v3007 = vpack.c.bf16 %v2898, %v2896
        %v3008 = vpack.c.bf16 %v2902, %v2900
        %v3009 = vpack.c.bf16 %v2906, %v2904
        %v3010 = vpack.c.bf16 %v2910, %v2908
        %v3011 = vpack.c.bf16 %v2914, %v2912
        %v3012 = vpack.c.bf16 %v2918, %v2916
        %v3013 = vpack.c.bf16 %v2922, %v2920
        %v3014 = vpack.c.bf16 %v2926, %v2924
        %v3015 = vpack.c.bf16 %v2930, %v2928
        %v3016 = vpack.c.bf16 %v2934, %v2932
        %v3017 = vpack.c.bf16 %v2938, %v2936
        %v3018 = vpack.c.bf16 %v2942, %v2940
        %v3019 = vpack.c.bf16 %v2946, %v2944
        %v3020 = vpack.c.bf16 %v2950, %v2948
        %v3021 = vpack.c.bf16 %v2954, %v2952
        %v3022 = vpack.c.bf16 %v2958, %v2956
        %v3023 = vld [vmem:[%s3] sm:$0xf]
        %v3024 = vld [vmem:[%s3 + $0x4] sm:$0xf]
        %v3025 = vld [vmem:[%s3 + $0x8] sm:$0xf]
        %v3026 = vld [vmem:[%s3 + $0xc] sm:$0xf]
        %v3027 = vld [vmem:[%s3 + $0x10] sm:$0xf]
        %v3028 = vld [vmem:[%s3 + $0x14] sm:$0xf]
        %v3029 = vld [vmem:[%s3 + $0x18] sm:$0xf]
        %v3030 = vld [vmem:[%s3 + $0x1c] sm:$0xf]
        %v3031 = vld [vmem:[%s3 + $0x20] sm:$0xf]
        %v3032 = vld [vmem:[%s3 + $0x24] sm:$0xf]
        %v3033 = vld [vmem:[%s3 + $0x28] sm:$0xf]
        %v3034 = vld [vmem:[%s3 + $0x2c] sm:$0xf]
        %v3035 = vld [vmem:[%s3 + $0x30] sm:$0xf]
        %v3036 = vld [vmem:[%s3 + $0x34] sm:$0xf]
        %v3037 = vld [vmem:[%s3 + $0x38] sm:$0xf]
        %v3038 = vld [vmem:[%s3 + $0x3c] sm:$0xf]
        %v3039 = vld [vmem:[%s4] sm:$0x1]
        %v3041 = vlaneseq
        %v3042 = vshrl.u32 %v3041, 7
        %v3043 = vsub.s32 0, %v3042
        %v3044 = vrot.slane %v3039, %v3043
        %v3062 = vunpack.c.l.b16 %v3023
        %v3063 = vunpack.c.l.b16 %v3024
        %v3064 = vunpack.c.l.b16 %v3025
        %v3065 = vunpack.c.l.b16 %v3026
        %v3066 = vunpack.c.l.b16 %v3027
        %v3067 = vunpack.c.l.b16 %v3028
        %v3068 = vunpack.c.l.b16 %v3029
        %v3069 = vunpack.c.l.b16 %v3030
        %v3070 = vunpack.c.l.b16 %v3031
        %v3071 = vunpack.c.l.b16 %v3032
        %v3072 = vunpack.c.l.b16 %v3033
        %v3073 = vunpack.c.l.b16 %v3034
        %v3074 = vunpack.c.l.b16 %v3035
        %v3075 = vunpack.c.l.b16 %v3036
        %v3076 = vunpack.c.l.b16 %v3037
        %v3077 = vunpack.c.l.b16 %v3038
        %v3078 = vpack.c.b16 %v3063, %v3062
        %v3079 = vpack.c.b16 %v3065, %v3064
        %v3080 = vpack.c.b16 %v3067, %v3066
        %v3081 = vpack.c.b16 %v3069, %v3068
        %v3082 = vpack.c.b16 %v3071, %v3070
        %v3083 = vpack.c.b16 %v3073, %v3072
        %v3084 = vpack.c.b16 %v3075, %v3074
        %v3085 = vpack.c.b16 %v3077, %v3076
        %3094 = vmatprep.subr.bf16.mxu0 0
        %3095 = vmatpush1.bf16.msra.mxu0 %v3078
        %3096 = vmatprep.subr.bf16.mxu0 0
        %3097 = vmatpush1.bf16.msra.mxu0 %v3079
        %3098 = vmatprep.subr.bf16.mxu0 0
        %3099 = vmatpush1.bf16.msra.mxu0 %v3080
        %3100 = vmatprep.subr.bf16.mxu0 0
        %3101 = vmatpush1.bf16.msra.mxu0 %v3081
        %3102 = vmatprep.subr.bf16.mxu0 0
        %3103 = vmatpush1.bf16.msra.mxu0 %v3082
        %3104 = vmatprep.subr.bf16.mxu0 0
        %3105 = vmatpush1.bf16.msra.mxu0 %v3083
        %3106 = vmatprep.subr.bf16.mxu0 0
        %3107 = vmatpush1.bf16.msra.mxu0 %v3084
        %3108 = vmatprep.subr.bf16.mxu0 0
        %3109 = vmatpush1.bf16.msra.mxu0 %v3085
        %3110 = vmatprep.subr.bf16.mxu0 0
        %3111 = vmatpush1.bf16.msra.mxu0 0
        %3112 = vmatprep.subr.bf16.mxu0 0
        %3113 = vmatpush1.bf16.msra.mxu0 0
        %3114 = vmatprep.subr.bf16.mxu0 0
        %3115 = vmatpush1.bf16.msra.mxu0 0
        %3116 = vmatprep.subr.bf16.mxu0 0
        %3117 = vmatpush1.bf16.msra.mxu0 0
        %3118 = vmatprep.subr.bf16.mxu0 0
        %3119 = vmatpush1.bf16.msra.mxu0 0
        %3120 = vmatprep.subr.bf16.mxu0 0
        %3121 = vmatpush1.bf16.msra.mxu0 0
        %3122 = vmatprep.subr.bf16.mxu0 0
        %3123 = vmatpush1.bf16.msra.mxu0 0
        %3124 = vmatprep.subr.bf16.mxu0 0
        %3125 = vmatpush1.bf16.msra.mxu0 0
        %3126 = vmatprep.mubr.bf16.mxu0 0
        %3127 = vmatmul.mubr.bf16.gmra.mrb[0].mxu0 %v2959
        %v3128 = vpop.f32.mrb[0].mxu0
        %v3129 = vadd.f32 %v3044, %v3128
        %v3130 = vpop.f32.mrb[0].mxu0
        %v3131 = vpop.f32.mrb[0].mxu0
        %v3132 = vadd.f32 %v3044, %v3131
        %v3133 = vpop.f32.mrb[0].mxu0
        %3134 = vmatprep.mubr.bf16.mxu0 0
        %3135 = vmatmul.mubr.bf16.gmra.mrb[0].mxu0 %v2960
        %v3136 = vpop.f32.mrb[0].mxu0
        %v3137 = vadd.f32 %v3044, %v3136
        %v3138 = vpop.f32.mrb[0].mxu0
        %v3139 = vpop.f32.mrb[0].mxu0
        %v3140 = vadd.f32 %v3044, %v3139
        %v3141 = vpop.f32.mrb[0].mxu0
        %3142 = vmatprep.mubr.bf16.mxu0 0
        %3143 = vmatmul.mubr.bf16.gmra.mrb[0].mxu0 %v2961
        %v3144 = vpop.f32.mrb[0].mxu0
        %v3145 = vadd.f32 %v3044, %v3144
        %v3146 = vpop.f32.mrb[0].mxu0
        %v3147 = vpop.f32.mrb[0].mxu0
        %v3148 = vadd.f32 %v3044, %v3147
        %v3149 = vpop.f32.mrb[0].mxu0
        %3150 = vmatprep.mubr.bf16.mxu0 0
        %3151 = vmatmul.mubr.bf16.gmra.mrb[0].mxu0 %v2962
        %v3152 = vpop.f32.mrb[0].mxu0
        %v3153 = vadd.f32 %v3044, %v3152
        %v3154 = vpop.f32.mrb[0].mxu0
        %v3155 = vpop.f32.mrb[0].mxu0
        %v3156 = vadd.f32 %v3044, %v3155
        %v3157 = vpop.f32.mrb[0].mxu0
        %3158 = vmatprep.mubr.bf16.mxu0 0
        %3159 = vmatmul.mubr.bf16.gmra.mrb[0].mxu0 %v2963
        %v3160 = vpop.f32.mrb[0].mxu0
        %v3161 = vadd.f32 %v3044, %v3160
        %v3162 = vpop.f32.mrb[0].mxu0
        %v3163 = vpop.f32.mrb[0].mxu0
        %v3164 = vadd.f32 %v3044, %v3163
        %v3165 = vpop.f32.mrb[0].mxu0
        %3166 = vmatprep.mubr.bf16.mxu0 0
        %3167 = vmatmul.mubr.bf16.gmra.mrb[0].mxu0 %v2964
        %v3168 = vpop.f32.mrb[0].mxu0
        %v3169 = vadd.f32 %v3044, %v3168
        %v3170 = vpop.f32.mrb[0].mxu0
        %v3171 = vpop.f32.mrb[0].mxu0
        %v3172 = vadd.f32 %v3044, %v3171
        %v3173 = vpop.f32.mrb[0].mxu0
        %3174 = vmatprep.mubr.bf16.mxu0 0
        %3175 = vmatmul.mubr.bf16.gmra.mrb[0].mxu0 %v2965
        %v3176 = vpop.f32.mrb[0].mxu0
        %v3177 = vadd.f32 %v3044, %v3176
        %v3178 = vpop.f32.mrb[0].mxu0
        %v3179 = vpop.f32.mrb[0].mxu0
        %v3180 = vadd.f32 %v3044, %v3179
        %v3181 = vpop.f32.mrb[0].mxu0
        %3182 = vmatprep.mubr.bf16.mxu0 0
        %3183 = vmatmul.mubr.bf16.gmra.mrb[0].mxu0 %v2966
        %v3184 = vpop.f32.mrb[0].mxu0
        %v3185 = vadd.f32 %v3044, %v3184
        %v3186 = vpop.f32.mrb[0].mxu0
        %v3187 = vpop.f32.mrb[0].mxu0
        %v3188 = vadd.f32 %v3044, %v3187
        %v3189 = vpop.f32.mrb[0].mxu0
        %3190 = vmatprep.mubr.bf16.mxu0 0
        %3191 = vmatmul.mubr.bf16.gmra.mrb[0].mxu0 %v2967
        %v3192 = vpop.f32.mrb[0].mxu0
        %v3193 = vadd.f32 %v3044, %v3192
        %v3194 = vpop.f32.mrb[0].mxu0
        %v3195 = vpop.f32.mrb[0].mxu0
        %v3196 = vadd.f32 %v3044, %v3195
        %v3197 = vpop.f32.mrb[0].mxu0
        %3198 = vmatprep.mubr.bf16.mxu0 0
        %3199 = vmatmul.mubr.bf16.gmra.mrb[0].mxu0 %v2968
        %v3200 = vpop.f32.mrb[0].mxu0
        %v3201 = vadd.f32 %v3044, %v3200
        %v3202 = vpop.f32.mrb[0].mxu0
        %v3203 = vpop.f32.mrb[0].mxu0
        %v3204 = vadd.f32 %v3044, %v3203
        %v3205 = vpop.f32.mrb[0].mxu0
        %3206 = vmatprep.mubr.bf16.mxu0 0
        %3207 = vmatmul.mubr.bf16.gmra.mrb[0].mxu0 %v2969
        %v3208 = vpop.f32.mrb[0].mxu0
        %v3209 = vadd.f32 %v3044, %v3208
        %v3210 = vpop.f32.mrb[0].mxu0
        %v3211 = vpop.f32.mrb[0].mxu0
        %v3212 = vadd.f32 %v3044, %v3211
        %v3213 = vpop.f32.mrb[0].mxu0
        %3214 = vmatprep.mubr.bf16.mxu0 0
        %3215 = vmatmul.mubr.bf16.gmra.mrb[0].mxu0 %v2970
        %v3216 = vpop.f32.mrb[0].mxu0
        %v3217 = vadd.f32 %v3044, %v3216
        %v3218 = vpop.f32.mrb[0].mxu0
        %v3219 = vpop.f32.mrb[0].mxu0
        %v3220 = vadd.f32 %v3044, %v3219
        %v3221 = vpop.f32.mrb[0].mxu0
        %3222 = vmatprep.mubr.bf16.mxu0 0
        %3223 = vmatmul.mubr.bf16.gmra.mrb[0].mxu0 %v2971
        %v3224 = vpop.f32.mrb[0].mxu0
        %v3225 = vadd.f32 %v3044, %v3224
        %v3226 = vpop.f32.mrb[0].mxu0
        %v3227 = vpop.f32.mrb[0].mxu0
        %v3228 = vadd.f32 %v3044, %v3227
        %v3229 = vpop.f32.mrb[0].mxu0
        %3230 = vmatprep.mubr.bf16.mxu0 0
        %3231 = vmatmul.mubr.bf16.gmra.mrb[0].mxu0 %v2972
        %v3232 = vpop.f32.mrb[0].mxu0
        %v3233 = vadd.f32 %v3044, %v3232
        %v3234 = vpop.f32.mrb[0].mxu0
        %v3235 = vpop.f32.mrb[0].mxu0
        %v3236 = vadd.f32 %v3044, %v3235
        %v3237 = vpop.f32.mrb[0].mxu0
        %3238 = vmatprep.mubr.bf16.mxu0 0
        %3239 = vmatmul.mubr.bf16.gmra.mrb[0].mxu0 %v2973
        %v3240 = vpop.f32.mrb[0].mxu0
        %v3241 = vadd.f32 %v3044, %v3240
        %v3242 = vpop.f32.mrb[0].mxu0
        %v3243 = vpop.f32.mrb[0].mxu0
        %v3244 = vadd.f32 %v3044, %v3243
        %v3245 = vpop.f32.mrb[0].mxu0
        %3246 = vmatprep.mubr.bf16.mxu0 0
        %3247 = vmatmul.mubr.bf16.gmra.mrb[0].mxu0 %v2974
        %v3248 = vpop.f32.mrb[0].mxu0
        %v3249 = vadd.f32 %v3044, %v3248
        %v3250 = vpop.f32.mrb[0].mxu0
        %v3251 = vpop.f32.mrb[0].mxu0
        %v3252 = vadd.f32 %v3044, %v3251
        %v3253 = vpop.f32.mrb[0].mxu0
        %3254 = vmatprep.mubr.bf16.mxu0 0
        %3255 = vmatmul.mubr.bf16.gmra.mrb[0].mxu0 %v2975
        %v3256 = vpop.f32.mrb[0].mxu0
        %v3257 = vadd.f32 %v3044, %v3256
        %v3258 = vpop.f32.mrb[0].mxu0
        %v3259 = vpop.f32.mrb[0].mxu0
        %v3260 = vadd.f32 %v3044, %v3259
        %v3261 = vpop.f32.mrb[0].mxu0
        %3262 = vmatprep.mubr.bf16.mxu0 0
        %3263 = vmatmul.mubr.bf16.gmra.mrb[0].mxu0 %v2976
        %v3264 = vpop.f32.mrb[0].mxu0
        %v3265 = vadd.f32 %v3044, %v3264
        %v3266 = vpop.f32.mrb[0].mxu0
        %v3267 = vpop.f32.mrb[0].mxu0
        %v3268 = vadd.f32 %v3044, %v3267
        %v3269 = vpop.f32.mrb[0].mxu0
        %3270 = vmatprep.mubr.bf16.mxu0 0
        %3271 = vmatmul.mubr.bf16.gmra.mrb[0].mxu0 %v2977
        %v3272 = vpop.f32.mrb[0].mxu0
        %v3273 = vadd.f32 %v3044, %v3272
        %v3274 = vpop.f32.mrb[0].mxu0
        %v3275 = vpop.f32.mrb[0].mxu0
        %v3276 = vadd.f32 %v3044, %v3275
        %v3277 = vpop.f32.mrb[0].mxu0
        %3278 = vmatprep.mubr.bf16.mxu0 0
        %3279 = vmatmul.mubr.bf16.gmra.mrb[0].mxu0 %v2978
        %v3280 = vpop.f32.mrb[0].mxu0
        %v3281 = vadd.f32 %v3044, %v3280
        %v3282 = vpop.f32.mrb[0].mxu0
        %v3283 = vpop.f32.mrb[0].mxu0
        %v3284 = vadd.f32 %v3044, %v3283
        %v3285 = vpop.f32.mrb[0].mxu0
        %3286 = vmatprep.mubr.bf16.mxu0 0
        %3287 = vmatmul.mubr.bf16.gmra.mrb[0].mxu0 %v2979
        %v3288 = vpop.f32.mrb[0].mxu0
        %v3289 = vadd.f32 %v3044, %v3288
        %v3290 = vpop.f32.mrb[0].mxu0
        %v3291 = vpop.f32.mrb[0].mxu0
        %v3292 = vadd.f32 %v3044, %v3291
        %v3293 = vpop.f32.mrb[0].mxu0
        %3294 = vmatprep.mubr.bf16.mxu0 0
        %3295 = vmatmul.mubr.bf16.gmra.mrb[0].mxu0 %v2980
        %v3296 = vpop.f32.mrb[0].mxu0
        %v3297 = vadd.f32 %v3044, %v3296
        %v3298 = vpop.f32.mrb[0].mxu0
        %v3299 = vpop.f32.mrb[0].mxu0
        %v3300 = vadd.f32 %v3044, %v3299
        %v3301 = vpop.f32.mrb[0].mxu0
        %3302 = vmatprep.mubr.bf16.mxu0 0
        %3303 = vmatmul.mubr.bf16.gmra.mrb[0].mxu0 %v2981
        %v3304 = vpop.f32.mrb[0].mxu0
        %v3305 = vadd.f32 %v3044, %v3304
        %v3306 = vpop.f32.mrb[0].mxu0
        %v3307 = vpop.f32.mrb[0].mxu0
        %v3308 = vadd.f32 %v3044, %v3307
        %v3309 = vpop.f32.mrb[0].mxu0
        %3310 = vmatprep.mubr.bf16.mxu0 0
        %3311 = vmatmul.mubr.bf16.gmra.mrb[0].mxu0 %v2982
        %v3312 = vpop.f32.mrb[0].mxu0
        %v3313 = vadd.f32 %v3044, %v3312
        %v3314 = vpop.f32.mrb[0].mxu0
        %v3315 = vpop.f32.mrb[0].mxu0
        %v3316 = vadd.f32 %v3044, %v3315
        %v3317 = vpop.f32.mrb[0].mxu0
        %3318 = vmatprep.mubr.bf16.mxu0 0
        %3319 = vmatmul.mubr.bf16.gmra.mrb[0].mxu0 %v2983
        %v3320 = vpop.f32.mrb[0].mxu0
        %v3321 = vadd.f32 %v3044, %v3320
        %v3322 = vpop.f32.mrb[0].mxu0
        %v3323 = vpop.f32.mrb[0].mxu0
        %v3324 = vadd.f32 %v3044, %v3323
        %v3325 = vpop.f32.mrb[0].mxu0
        %3326 = vmatprep.mubr.bf16.mxu0 0
        %3327 = vmatmul.mubr.bf16.gmra.mrb[0].mxu0 %v2984
        %v3328 = vpop.f32.mrb[0].mxu0
        %v3329 = vadd.f32 %v3044, %v3328
        %v3330 = vpop.f32.mrb[0].mxu0
        %v3331 = vpop.f32.mrb[0].mxu0
        %v3332 = vadd.f32 %v3044, %v3331
        %v3333 = vpop.f32.mrb[0].mxu0
        %3334 = vmatprep.mubr.bf16.mxu0 0
        %3335 = vmatmul.mubr.bf16.gmra.mrb[0].mxu0 %v2985
        %v3336 = vpop.f32.mrb[0].mxu0
        %v3337 = vadd.f32 %v3044, %v3336
        %v3338 = vpop.f32.mrb[0].mxu0
        %v3339 = vpop.f32.mrb[0].mxu0
        %v3340 = vadd.f32 %v3044, %v3339
        %v3341 = vpop.f32.mrb[0].mxu0
        %3342 = vmatprep.mubr.bf16.mxu0 0
        %3343 = vmatmul.mubr.bf16.gmra.mrb[0].mxu0 %v2986
        %v3344 = vpop.f32.mrb[0].mxu0
        %v3345 = vadd.f32 %v3044, %v3344
        %v3346 = vpop.f32.mrb[0].mxu0
        %v3347 = vpop.f32.mrb[0].mxu0
        %v3348 = vadd.f32 %v3044, %v3347
        %v3349 = vpop.f32.mrb[0].mxu0
        %3350 = vmatprep.mubr.bf16.mxu0 0
        %3351 = vmatmul.mubr.bf16.gmra.mrb[0].mxu0 %v2987
        %v3352 = vpop.f32.mrb[0].mxu0
        %v3353 = vadd.f32 %v3044, %v3352
        %v3354 = vpop.f32.mrb[0].mxu0
        %v3355 = vpop.f32.mrb[0].mxu0
        %v3356 = vadd.f32 %v3044, %v3355
        %v3357 = vpop.f32.mrb[0].mxu0
        %3358 = vmatprep.mubr.bf16.mxu0 0
        %3359 = vmatmul.mubr.bf16.gmra.mrb[0].mxu0 %v2988
        %v3360 = vpop.f32.mrb[0].mxu0
        %v3361 = vadd.f32 %v3044, %v3360
        %v3362 = vpop.f32.mrb[0].mxu0
        %v3363 = vpop.f32.mrb[0].mxu0
        %v3364 = vadd.f32 %v3044, %v3363
        %v3365 = vpop.f32.mrb[0].mxu0
        %3366 = vmatprep.mubr.bf16.mxu0 0
        %3367 = vmatmul.mubr.bf16.gmra.mrb[0].mxu0 %v2989
        %v3368 = vpop.f32.mrb[0].mxu0
        %v3369 = vadd.f32 %v3044, %v3368
        %v3370 = vpop.f32.mrb[0].mxu0
        %v3371 = vpop.f32.mrb[0].mxu0
        %v3372 = vadd.f32 %v3044, %v3371
        %v3373 = vpop.f32.mrb[0].mxu0
        %3374 = vmatprep.mubr.bf16.mxu0 0
        %3375 = vmatmul.mubr.bf16.gmra.mrb[0].mxu0 %v2990
        %v3376 = vpop.f32.mrb[0].mxu0
        %v3377 = vadd.f32 %v3044, %v3376
        %v3378 = vpop.f32.mrb[0].mxu0
        %v3379 = vpop.f32.mrb[0].mxu0
        %v3380 = vadd.f32 %v3044, %v3379
        %v3381 = vpop.f32.mrb[0].mxu0
        %3382 = vmatprep.mubr.bf16.mxu0 0
        %3383 = vmatmul.mubr.bf16.gmra.mrb[0].mxu0 %v2991
        %v3384 = vpop.f32.mrb[0].mxu0
        %v3385 = vadd.f32 %v3044, %v3384
        %v3386 = vpop.f32.mrb[0].mxu0
        %v3387 = vpop.f32.mrb[0].mxu0
        %v3388 = vadd.f32 %v3044, %v3387
        %v3389 = vpop.f32.mrb[0].mxu0
        %3390 = vmatprep.mubr.bf16.mxu0 0
        %3391 = vmatmul.mubr.bf16.gmra.mrb[0].mxu0 %v2992
        %v3392 = vpop.f32.mrb[0].mxu0
        %v3393 = vadd.f32 %v3044, %v3392
        %v3394 = vpop.f32.mrb[0].mxu0
        %v3395 = vpop.f32.mrb[0].mxu0
        %v3396 = vadd.f32 %v3044, %v3395
        %v3397 = vpop.f32.mrb[0].mxu0
        %3398 = vmatprep.mubr.bf16.mxu0 0
        %3399 = vmatmul.mubr.bf16.gmra.mrb[0].mxu0 %v2993
        %v3400 = vpop.f32.mrb[0].mxu0
        %v3401 = vadd.f32 %v3044, %v3400
        %v3402 = vpop.f32.mrb[0].mxu0
        %v3403 = vpop.f32.mrb[0].mxu0
        %v3404 = vadd.f32 %v3044, %v3403
        %v3405 = vpop.f32.mrb[0].mxu0
        %3406 = vmatprep.mubr.bf16.mxu0 0
        %3407 = vmatmul.mubr.bf16.gmra.mrb[0].mxu0 %v2994
        %v3408 = vpop.f32.mrb[0].mxu0
        %v3409 = vadd.f32 %v3044, %v3408
        %v3410 = vpop.f32.mrb[0].mxu0
        %v3411 = vpop.f32.mrb[0].mxu0
        %v3412 = vadd.f32 %v3044, %v3411
        %v3413 = vpop.f32.mrb[0].mxu0
        %3414 = vmatprep.mubr.bf16.mxu0 0
        %3415 = vmatmul.mubr.bf16.gmra.mrb[0].mxu0 %v2995
        %v3416 = vpop.f32.mrb[0].mxu0
        %v3417 = vadd.f32 %v3044, %v3416
        %v3418 = vpop.f32.mrb[0].mxu0
        %v3419 = vpop.f32.mrb[0].mxu0
        %v3420 = vadd.f32 %v3044, %v3419
        %v3421 = vpop.f32.mrb[0].mxu0
        %3422 = vmatprep.mubr.bf16.mxu0 0
        %3423 = vmatmul.mubr.bf16.gmra.mrb[0].mxu0 %v2996
        %v3424 = vpop.f32.mrb[0].mxu0
        %v3425 = vadd.f32 %v3044, %v3424
        %v3426 = vpop.f32.mrb[0].mxu0
        %v3427 = vpop.f32.mrb[0].mxu0
        %v3428 = vadd.f32 %v3044, %v3427
        %v3429 = vpop.f32.mrb[0].mxu0
        %3430 = vmatprep.mubr.bf16.mxu0 0
        %3431 = vmatmul.mubr.bf16.gmra.mrb[0].mxu0 %v2997
        %v3432 = vpop.f32.mrb[0].mxu0
        %v3433 = vadd.f32 %v3044, %v3432
        %v3434 = vpop.f32.mrb[0].mxu0
        %v3435 = vpop.f32.mrb[0].mxu0
        %v3436 = vadd.f32 %v3044, %v3435
        %v3437 = vpop.f32.mrb[0].mxu0
        %3438 = vmatprep.mubr.bf16.mxu0 0
        %3439 = vmatmul.mubr.bf16.gmra.mrb[0].mxu0 %v2998
        %v3440 = vpop.f32.mrb[0].mxu0
        %v3441 = vadd.f32 %v3044, %v3440
        %v3442 = vpop.f32.mrb[0].mxu0
        %v3443 = vpop.f32.mrb[0].mxu0
        %v3444 = vadd.f32 %v3044, %v3443
        %v3445 = vpop.f32.mrb[0].mxu0
        %3446 = vmatprep.mubr.bf16.mxu0 0
        %3447 = vmatmul.mubr.bf16.gmra.mrb[0].mxu0 %v2999
        %v3448 = vpop.f32.mrb[0].mxu0
        %v3449 = vadd.f32 %v3044, %v3448
        %v3450 = vpop.f32.mrb[0].mxu0
        %v3451 = vpop.f32.mrb[0].mxu0
        %v3452 = vadd.f32 %v3044, %v3451
        %v3453 = vpop.f32.mrb[0].mxu0
        %3454 = vmatprep.mubr.bf16.mxu0 0
        %3455 = vmatmul.mubr.bf16.gmra.mrb[0].mxu0 %v3000
        %v3456 = vpop.f32.mrb[0].mxu0
        %v3457 = vadd.f32 %v3044, %v3456
        %v3458 = vpop.f32.mrb[0].mxu0
        %v3459 = vpop.f32.mrb[0].mxu0
        %v3460 = vadd.f32 %v3044, %v3459
        %v3461 = vpop.f32.mrb[0].mxu0
        %3462 = vmatprep.mubr.bf16.mxu0 0
        %3463 = vmatmul.mubr.bf16.gmra.mrb[0].mxu0 %v3001
        %v3464 = vpop.f32.mrb[0].mxu0
        %v3465 = vadd.f32 %v3044, %v3464
        %v3466 = vpop.f32.mrb[0].mxu0
        %v3467 = vpop.f32.mrb[0].mxu0
        %v3468 = vadd.f32 %v3044, %v3467
        %v3469 = vpop.f32.mrb[0].mxu0
        %3470 = vmatprep.mubr.bf16.mxu0 0
        %3471 = vmatmul.mubr.bf16.gmra.mrb[0].mxu0 %v3002
        %v3472 = vpop.f32.mrb[0].mxu0
        %v3473 = vadd.f32 %v3044, %v3472
        %v3474 = vpop.f32.mrb[0].mxu0
        %v3475 = vpop.f32.mrb[0].mxu0
        %v3476 = vadd.f32 %v3044, %v3475
        %v3477 = vpop.f32.mrb[0].mxu0
        %3478 = vmatprep.mubr.bf16.mxu0 0
        %3479 = vmatmul.mubr.bf16.gmra.mrb[0].mxu0 %v3003
        %v3480 = vpop.f32.mrb[0].mxu0
        %v3481 = vadd.f32 %v3044, %v3480
        %v3482 = vpop.f32.mrb[0].mxu0
        %v3483 = vpop.f32.mrb[0].mxu0
        %v3484 = vadd.f32 %v3044, %v3483
        %v3485 = vpop.f32.mrb[0].mxu0
        %3486 = vmatprep.mubr.bf16.mxu0 0
        %3487 = vmatmul.mubr.bf16.gmra.mrb[0].mxu0 %v3004
        %v3488 = vpop.f32.mrb[0].mxu0
        %v3489 = vadd.f32 %v3044, %v3488
        %v3490 = vpop.f32.mrb[0].mxu0
        %v3491 = vpop.f32.mrb[0].mxu0
        %v3492 = vadd.f32 %v3044, %v3491
        %v3493 = vpop.f32.mrb[0].mxu0
        %3494 = vmatprep.mubr.bf16.mxu0 0
        %3495 = vmatmul.mubr.bf16.gmra.mrb[0].mxu0 %v3005
        %v3496 = vpop.f32.mrb[0].mxu0
        %v3497 = vadd.f32 %v3044, %v3496
        %v3498 = vpop.f32.mrb[0].mxu0
        %v3499 = vpop.f32.mrb[0].mxu0
        %v3500 = vadd.f32 %v3044, %v3499
        %v3501 = vpop.f32.mrb[0].mxu0
        %3502 = vmatprep.mubr.bf16.mxu0 0
        %3503 = vmatmul.mubr.bf16.gmra.mrb[0].mxu0 %v3006
        %v3504 = vpop.f32.mrb[0].mxu0
        %v3505 = vadd.f32 %v3044, %v3504
        %v3506 = vpop.f32.mrb[0].mxu0
        %v3507 = vpop.f32.mrb[0].mxu0
        %v3508 = vadd.f32 %v3044, %v3507
        %v3509 = vpop.f32.mrb[0].mxu0
        %3510 = vmatprep.mubr.bf16.mxu0 0
        %3511 = vmatmul.mubr.bf16.gmra.mrb[0].mxu0 %v3007
        %v3512 = vpop.f32.mrb[0].mxu0
        %v3513 = vadd.f32 %v3044, %v3512
        %v3514 = vpop.f32.mrb[0].mxu0
        %v3515 = vpop.f32.mrb[0].mxu0
        %v3516 = vadd.f32 %v3044, %v3515
        %v3517 = vpop.f32.mrb[0].mxu0
        %3518 = vmatprep.mubr.bf16.mxu0 0
        %3519 = vmatmul.mubr.bf16.gmra.mrb[0].mxu0 %v3008
        %v3520 = vpop.f32.mrb[0].mxu0
        %v3521 = vadd.f32 %v3044, %v3520
        %v3522 = vpop.f32.mrb[0].mxu0
        %v3523 = vpop.f32.mrb[0].mxu0
        %v3524 = vadd.f32 %v3044, %v3523
        %v3525 = vpop.f32.mrb[0].mxu0
        %3526 = vmatprep.mubr.bf16.mxu0 0
        %3527 = vmatmul.mubr.bf16.gmra.mrb[0].mxu0 %v3009
        %v3528 = vpop.f32.mrb[0].mxu0
        %v3529 = vadd.f32 %v3044, %v3528
        %v3530 = vpop.f32.mrb[0].mxu0
        %v3531 = vpop.f32.mrb[0].mxu0
        %v3532 = vadd.f32 %v3044, %v3531
        %v3533 = vpop.f32.mrb[0].mxu0
        %3534 = vmatprep.mubr.bf16.mxu0 0
        %3535 = vmatmul.mubr.bf16.gmra.mrb[0].mxu0 %v3010
        %v3536 = vpop.f32.mrb[0].mxu0
        %v3537 = vadd.f32 %v3044, %v3536
        %v3538 = vpop.f32.mrb[0].mxu0
        %v3539 = vpop.f32.mrb[0].mxu0
        %v3540 = vadd.f32 %v3044, %v3539
        %v3541 = vpop.f32.mrb[0].mxu0
        %3542 = vmatprep.mubr.bf16.mxu0 0
        %3543 = vmatmul.mubr.bf16.gmra.mrb[0].mxu0 %v3011
        %v3544 = vpop.f32.mrb[0].mxu0
        %v3545 = vadd.f32 %v3044, %v3544
        %v3546 = vpop.f32.mrb[0].mxu0
        %v3547 = vpop.f32.mrb[0].mxu0
        %v3548 = vadd.f32 %v3044, %v3547
        %v3549 = vpop.f32.mrb[0].mxu0
        %3550 = vmatprep.mubr.bf16.mxu0 0
        %3551 = vmatmul.mubr.bf16.gmra.mrb[0].mxu0 %v3012
        %v3552 = vpop.f32.mrb[0].mxu0
        %v3553 = vadd.f32 %v3044, %v3552
        %v3554 = vpop.f32.mrb[0].mxu0
        %v3555 = vpop.f32.mrb[0].mxu0
        %v3556 = vadd.f32 %v3044, %v3555
        %v3557 = vpop.f32.mrb[0].mxu0
        %3558 = vmatprep.mubr.bf16.mxu0 0
        %3559 = vmatmul.mubr.bf16.gmra.mrb[0].mxu0 %v3013
        %v3560 = vpop.f32.mrb[0].mxu0
        %v3561 = vadd.f32 %v3044, %v3560
        %v3562 = vpop.f32.mrb[0].mxu0
        %v3563 = vpop.f32.mrb[0].mxu0
        %v3564 = vadd.f32 %v3044, %v3563
        %v3565 = vpop.f32.mrb[0].mxu0
        %3566 = vmatprep.mubr.bf16.mxu0 0
        %3567 = vmatmul.mubr.bf16.gmra.mrb[0].mxu0 %v3014
        %v3568 = vpop.f32.mrb[0].mxu0
        %v3569 = vadd.f32 %v3044, %v3568
        %v3570 = vpop.f32.mrb[0].mxu0
        %v3571 = vpop.f32.mrb[0].mxu0
        %v3572 = vadd.f32 %v3044, %v3571
        %v3573 = vpop.f32.mrb[0].mxu0
        %3574 = vmatprep.mubr.bf16.mxu0 0
        %3575 = vmatmul.mubr.bf16.gmra.mrb[0].mxu0 %v3015
        %v3576 = vpop.f32.mrb[0].mxu0
        %v3577 = vadd.f32 %v3044, %v3576
        %v3578 = vpop.f32.mrb[0].mxu0
        %v3579 = vpop.f32.mrb[0].mxu0
        %v3580 = vadd.f32 %v3044, %v3579
        %v3581 = vpop.f32.mrb[0].mxu0
        %3582 = vmatprep.mubr.bf16.mxu0 0
        %3583 = vmatmul.mubr.bf16.gmra.mrb[0].mxu0 %v3016
        %v3584 = vpop.f32.mrb[0].mxu0
        %v3585 = vadd.f32 %v3044, %v3584
        %v3586 = vpop.f32.mrb[0].mxu0
        %v3587 = vpop.f32.mrb[0].mxu0
        %v3588 = vadd.f32 %v3044, %v3587
        %v3589 = vpop.f32.mrb[0].mxu0
        %3590 = vmatprep.mubr.bf16.mxu0 0
        %3591 = vmatmul.mubr.bf16.gmra.mrb[0].mxu0 %v3017
        %v3592 = vpop.f32.mrb[0].mxu0
        %v3593 = vadd.f32 %v3044, %v3592
        %v3594 = vpop.f32.mrb[0].mxu0
        %v3595 = vpop.f32.mrb[0].mxu0
        %v3596 = vadd.f32 %v3044, %v3595
        %v3597 = vpop.f32.mrb[0].mxu0
        %3598 = vmatprep.mubr.bf16.mxu0 0
        %3599 = vmatmul.mubr.bf16.gmra.mrb[0].mxu0 %v3018
        %v3600 = vpop.f32.mrb[0].mxu0
        %v3601 = vadd.f32 %v3044, %v3600
        %v3602 = vpop.f32.mrb[0].mxu0
        %v3603 = vpop.f32.mrb[0].mxu0
        %v3604 = vadd.f32 %v3044, %v3603
        %v3605 = vpop.f32.mrb[0].mxu0
        %3606 = vmatprep.mubr.bf16.mxu0 0
        %3607 = vmatmul.mubr.bf16.gmra.mrb[0].mxu0 %v3019
        %v3608 = vpop.f32.mrb[0].mxu0
        %v3609 = vadd.f32 %v3044, %v3608
        %v3610 = vpop.f32.mrb[0].mxu0
        %v3611 = vpop.f32.mrb[0].mxu0
        %v3612 = vadd.f32 %v3044, %v3611
        %v3613 = vpop.f32.mrb[0].mxu0
        %3614 = vmatprep.mubr.bf16.mxu0 0
        %3615 = vmatmul.mubr.bf16.gmra.mrb[0].mxu0 %v3020
        %v3616 = vpop.f32.mrb[0].mxu0
        %v3617 = vadd.f32 %v3044, %v3616
        %v3618 = vpop.f32.mrb[0].mxu0
        %v3619 = vpop.f32.mrb[0].mxu0
        %v3620 = vadd.f32 %v3044, %v3619
        %v3621 = vpop.f32.mrb[0].mxu0
        %3622 = vmatprep.mubr.bf16.mxu0 0
        %3623 = vmatmul.mubr.bf16.gmra.mrb[0].mxu0 %v3021
        %v3624 = vpop.f32.mrb[0].mxu0
        %v3625 = vadd.f32 %v3044, %v3624
        %v3626 = vpop.f32.mrb[0].mxu0
        %v3627 = vpop.f32.mrb[0].mxu0
        %v3628 = vadd.f32 %v3044, %v3627
        %v3629 = vpop.f32.mrb[0].mxu0
        %3630 = vmatprep.mubr.bf16.mxu0 0
        %3631 = vmatmul.mubr.bf16.gmra.mrb[0].mxu0 %v3022
        %v3632 = vpop.f32.mrb[0].mxu0
        %v3633 = vadd.f32 %v3044, %v3632
        %v3634 = vpop.f32.mrb[0].mxu0
        %v3635 = vpop.f32.mrb[0].mxu0
        %v3636 = vadd.f32 %v3044, %v3635
        %v3637 = vpop.f32.mrb[0].mxu0
        %3638 = vdwg.mxu0
        %v3639 = vand.u32 2147483647, %v3129
        %v3640 = vand.u32 2147483647, %v3132
        %v3641 = vand.u32 2147483647, %v3137
        %v3642 = vand.u32 2147483647, %v3140
        %v3643 = vand.u32 2147483647, %v3145
        %v3644 = vand.u32 2147483647, %v3148
        %v3645 = vand.u32 2147483647, %v3153
        %v3646 = vand.u32 2147483647, %v3156
        %v3647 = vand.u32 2147483647, %v3161
        %v3648 = vand.u32 2147483647, %v3164
        %v3649 = vand.u32 2147483647, %v3169
        %v3650 = vand.u32 2147483647, %v3172
        %v3651 = vand.u32 2147483647, %v3177
        %v3652 = vand.u32 2147483647, %v3180
        %v3653 = vand.u32 2147483647, %v3185
        %v3654 = vand.u32 2147483647, %v3188
        %v3655 = vand.u32 2147483647, %v3193
        %v3656 = vand.u32 2147483647, %v3196
        %v3657 = vand.u32 2147483647, %v3201
        %v3658 = vand.u32 2147483647, %v3204
        %v3659 = vand.u32 2147483647, %v3209
        %v3660 = vand.u32 2147483647, %v3212
        %v3661 = vand.u32 2147483647, %v3217
        %v3662 = vand.u32 2147483647, %v3220
        %v3663 = vand.u32 2147483647, %v3225
        %v3664 = vand.u32 2147483647, %v3228
        %v3665 = vand.u32 2147483647, %v3233
        %v3666 = vand.u32 2147483647, %v3236
        %v3667 = vand.u32 2147483647, %v3241
        %v3668 = vand.u32 2147483647, %v3244
        %v3669 = vand.u32 2147483647, %v3249
        %v3670 = vand.u32 2147483647, %v3252
        %v3671 = vand.u32 2147483647, %v3257
        %v3672 = vand.u32 2147483647, %v3260
        %v3673 = vand.u32 2147483647, %v3265
        %v3674 = vand.u32 2147483647, %v3268
        %v3675 = vand.u32 2147483647, %v3273
        %v3676 = vand.u32 2147483647, %v3276
        %v3677 = vand.u32 2147483647, %v3281
        %v3678 = vand.u32 2147483647, %v3284
        %v3679 = vand.u32 2147483647, %v3289
        %v3680 = vand.u32 2147483647, %v3292
        %v3681 = vand.u32 2147483647, %v3297
        %v3682 = vand.u32 2147483647, %v3300
        %v3683 = vand.u32 2147483647, %v3305
        %v3684 = vand.u32 2147483647, %v3308
        %v3685 = vand.u32 2147483647, %v3313
        %v3686 = vand.u32 2147483647, %v3316
        %v3687 = vand.u32 2147483647, %v3321
        %v3688 = vand.u32 2147483647, %v3324
        %v3689 = vand.u32 2147483647, %v3329
        %v3690 = vand.u32 2147483647, %v3332
        %v3691 = vand.u32 2147483647, %v3337
        %v3692 = vand.u32 2147483647, %v3340
        %v3693 = vand.u32 2147483647, %v3345
        %v3694 = vand.u32 2147483647, %v3348
        %v3695 = vand.u32 2147483647, %v3353
        %v3696 = vand.u32 2147483647, %v3356
        %v3697 = vand.u32 2147483647, %v3361
        %v3698 = vand.u32 2147483647, %v3364
        %v3699 = vand.u32 2147483647, %v3369
        %v3700 = vand.u32 2147483647, %v3372
        %v3701 = vand.u32 2147483647, %v3377
        %v3702 = vand.u32 2147483647, %v3380
        %v3703 = vand.u32 2147483647, %v3385
        %v3704 = vand.u32 2147483647, %v3388
        %v3705 = vand.u32 2147483647, %v3393
        %v3706 = vand.u32 2147483647, %v3396
        %v3707 = vand.u32 2147483647, %v3401
        %v3708 = vand.u32 2147483647, %v3404
        %v3709 = vand.u32 2147483647, %v3409
        %v3710 = vand.u32 2147483647, %v3412
        %v3711 = vand.u32 2147483647, %v3417
        %v3712 = vand.u32 2147483647, %v3420
        %v3713 = vand.u32 2147483647, %v3425
        %v3714 = vand.u32 2147483647, %v3428
        %v3715 = vand.u32 2147483647, %v3433
        %v3716 = vand.u32 2147483647, %v3436
        %v3717 = vand.u32 2147483647, %v3441
        %v3718 = vand.u32 2147483647, %v3444
        %v3719 = vand.u32 2147483647, %v3449
        %v3720 = vand.u32 2147483647, %v3452
        %v3721 = vand.u32 2147483647, %v3457
        %v3722 = vand.u32 2147483647, %v3460
        %v3723 = vand.u32 2147483647, %v3465
        %v3724 = vand.u32 2147483647, %v3468
        %v3725 = vand.u32 2147483647, %v3473
        %v3726 = vand.u32 2147483647, %v3476
        %v3727 = vand.u32 2147483647, %v3481
        %v3728 = vand.u32 2147483647, %v3484
        %v3729 = vand.u32 2147483647, %v3489
        %v3730 = vand.u32 2147483647, %v3492
        %v3731 = vand.u32 2147483647, %v3497
        %v3732 = vand.u32 2147483647, %v3500
        %v3733 = vand.u32 2147483647, %v3505
        %v3734 = vand.u32 2147483647, %v3508
        %v3735 = vand.u32 2147483647, %v3513
        %v3736 = vand.u32 2147483647, %v3516
        %v3737 = vand.u32 2147483647, %v3521
        %v3738 = vand.u32 2147483647, %v3524
        %v3739 = vand.u32 2147483647, %v3529
        %v3740 = vand.u32 2147483647, %v3532
        %v3741 = vand.u32 2147483647, %v3537
        %v3742 = vand.u32 2147483647, %v3540
        %v3743 = vand.u32 2147483647, %v3545
        %v3744 = vand.u32 2147483647, %v3548
        %v3745 = vand.u32 2147483647, %v3553
        %v3746 = vand.u32 2147483647, %v3556
        %v3747 = vand.u32 2147483647, %v3561
        %v3748 = vand.u32 2147483647, %v3564
        %v3749 = vand.u32 2147483647, %v3569
        %v3750 = vand.u32 2147483647, %v3572
        %v3751 = vand.u32 2147483647, %v3577
        %v3752 = vand.u32 2147483647, %v3580
        %v3753 = vand.u32 2147483647, %v3585
        %v3754 = vand.u32 2147483647, %v3588
        %v3755 = vand.u32 2147483647, %v3593
        %v3756 = vand.u32 2147483647, %v3596
        %v3757 = vand.u32 2147483647, %v3601
        %v3758 = vand.u32 2147483647, %v3604
        %v3759 = vand.u32 2147483647, %v3609
        %v3760 = vand.u32 2147483647, %v3612
        %v3761 = vand.u32 2147483647, %v3617
        %v3762 = vand.u32 2147483647, %v3620
        %v3763 = vand.u32 2147483647, %v3625
        %v3764 = vand.u32 2147483647, %v3628
        %v3765 = vand.u32 2147483647, %v3633
        %v3766 = vand.u32 2147483647, %v3636
        %v3767 = vadd.f32 %v3639, 1.0
        %v3768 = vadd.f32 %v3640, 1.0
        %v3769 = vadd.f32 %v3641, 1.0
        %v3770 = vadd.f32 %v3642, 1.0
        %v3771 = vadd.f32 %v3643, 1.0
        %v3772 = vadd.f32 %v3644, 1.0
        %v3773 = vadd.f32 %v3645, 1.0
        %v3774 = vadd.f32 %v3646, 1.0
        %v3775 = vadd.f32 %v3647, 1.0
        %v3776 = vadd.f32 %v3648, 1.0
        %v3777 = vadd.f32 %v3649, 1.0
        %v3778 = vadd.f32 %v3650, 1.0
        %v3779 = vadd.f32 %v3651, 1.0
        %v3780 = vadd.f32 %v3652, 1.0
        %v3781 = vadd.f32 %v3653, 1.0
        %v3782 = vadd.f32 %v3654, 1.0
        %v3783 = vadd.f32 %v3655, 1.0
        %v3784 = vadd.f32 %v3656, 1.0
        %v3785 = vadd.f32 %v3657, 1.0
        %v3786 = vadd.f32 %v3658, 1.0
        %v3787 = vadd.f32 %v3659, 1.0
        %v3788 = vadd.f32 %v3660, 1.0
        %v3789 = vadd.f32 %v3661, 1.0
        %v3790 = vadd.f32 %v3662, 1.0
        %v3791 = vadd.f32 %v3663, 1.0
        %v3792 = vadd.f32 %v3664, 1.0
        %v3793 = vadd.f32 %v3665, 1.0
        %v3794 = vadd.f32 %v3666, 1.0
        %v3795 = vadd.f32 %v3667, 1.0
        %v3796 = vadd.f32 %v3668, 1.0
        %v3797 = vadd.f32 %v3669, 1.0
        %v3798 = vadd.f32 %v3670, 1.0
        %v3799 = vadd.f32 %v3671, 1.0
        %v3800 = vadd.f32 %v3672, 1.0
        %v3801 = vadd.f32 %v3673, 1.0
        %v3802 = vadd.f32 %v3674, 1.0
        %v3803 = vadd.f32 %v3675, 1.0
        %v3804 = vadd.f32 %v3676, 1.0
        %v3805 = vadd.f32 %v3677, 1.0
        %v3806 = vadd.f32 %v3678, 1.0
        %v3807 = vadd.f32 %v3679, 1.0
        %v3808 = vadd.f32 %v3680, 1.0
        %v3809 = vadd.f32 %v3681, 1.0
        %v3810 = vadd.f32 %v3682, 1.0
        %v3811 = vadd.f32 %v3683, 1.0
        %v3812 = vadd.f32 %v3684, 1.0
        %v3813 = vadd.f32 %v3685, 1.0
        %v3814 = vadd.f32 %v3686, 1.0
        %v3815 = vadd.f32 %v3687, 1.0
        %v3816 = vadd.f32 %v3688, 1.0
        %v3817 = vadd.f32 %v3689, 1.0
        %v3818 = vadd.f32 %v3690, 1.0
        %v3819 = vadd.f32 %v3691, 1.0
        %v3820 = vadd.f32 %v3692, 1.0
        %v3821 = vadd.f32 %v3693, 1.0
        %v3822 = vadd.f32 %v3694, 1.0
        %v3823 = vadd.f32 %v3695, 1.0
        %v3824 = vadd.f32 %v3696, 1.0
        %v3825 = vadd.f32 %v3697, 1.0
        %v3826 = vadd.f32 %v3698, 1.0
        %v3827 = vadd.f32 %v3699, 1.0
        %v3828 = vadd.f32 %v3700, 1.0
        %v3829 = vadd.f32 %v3701, 1.0
        %v3830 = vadd.f32 %v3702, 1.0
        %v3831 = vadd.f32 %v3703, 1.0
        %v3832 = vadd.f32 %v3704, 1.0
        %v3833 = vadd.f32 %v3705, 1.0
        %v3834 = vadd.f32 %v3706, 1.0
        %v3835 = vadd.f32 %v3707, 1.0
        %v3836 = vadd.f32 %v3708, 1.0
        %v3837 = vadd.f32 %v3709, 1.0
        %v3838 = vadd.f32 %v3710, 1.0
        %v3839 = vadd.f32 %v3711, 1.0
        %v3840 = vadd.f32 %v3712, 1.0
        %v3841 = vadd.f32 %v3713, 1.0
        %v3842 = vadd.f32 %v3714, 1.0
        %v3843 = vadd.f32 %v3715, 1.0
        %v3844 = vadd.f32 %v3716, 1.0
        %v3845 = vadd.f32 %v3717, 1.0
        %v3846 = vadd.f32 %v3718, 1.0
        %v3847 = vadd.f32 %v3719, 1.0
        %v3848 = vadd.f32 %v3720, 1.0
        %v3849 = vadd.f32 %v3721, 1.0
        %v3850 = vadd.f32 %v3722, 1.0
        %v3851 = vadd.f32 %v3723, 1.0
        %v3852 = vadd.f32 %v3724, 1.0
        %v3853 = vadd.f32 %v3725, 1.0
        %v3854 = vadd.f32 %v3726, 1.0
        %v3855 = vadd.f32 %v3727, 1.0
        %v3856 = vadd.f32 %v3728, 1.0
        %v3857 = vadd.f32 %v3729, 1.0
        %v3858 = vadd.f32 %v3730, 1.0
        %v3859 = vadd.f32 %v3731, 1.0
        %v3860 = vadd.f32 %v3732, 1.0
        %v3861 = vadd.f32 %v3733, 1.0
        %v3862 = vadd.f32 %v3734, 1.0
        %v3863 = vadd.f32 %v3735, 1.0
        %v3864 = vadd.f32 %v3736, 1.0
        %v3865 = vadd.f32 %v3737, 1.0
        %v3866 = vadd.f32 %v3738, 1.0
        %v3867 = vadd.f32 %v3739, 1.0
        %v3868 = vadd.f32 %v3740, 1.0
        %v3869 = vadd.f32 %v3741, 1.0
        %v3870 = vadd.f32 %v3742, 1.0
        %v3871 = vadd.f32 %v3743, 1.0
        %v3872 = vadd.f32 %v3744, 1.0
        %v3873 = vadd.f32 %v3745, 1.0
        %v3874 = vadd.f32 %v3746, 1.0
        %v3875 = vadd.f32 %v3747, 1.0
        %v3876 = vadd.f32 %v3748, 1.0
        %v3877 = vadd.f32 %v3749, 1.0
        %v3878 = vadd.f32 %v3750, 1.0
        %v3879 = vadd.f32 %v3751, 1.0
        %v3880 = vadd.f32 %v3752, 1.0
        %v3881 = vadd.f32 %v3753, 1.0
        %v3882 = vadd.f32 %v3754, 1.0
        %v3883 = vadd.f32 %v3755, 1.0
        %v3884 = vadd.f32 %v3756, 1.0
        %v3885 = vadd.f32 %v3757, 1.0
        %v3886 = vadd.f32 %v3758, 1.0
        %v3887 = vadd.f32 %v3759, 1.0
        %v3888 = vadd.f32 %v3760, 1.0
        %v3889 = vadd.f32 %v3761, 1.0
        %v3890 = vadd.f32 %v3762, 1.0
        %v3891 = vadd.f32 %v3763, 1.0
        %v3892 = vadd.f32 %v3764, 1.0
        %v3893 = vadd.f32 %v3765, 1.0
        %v3894 = vadd.f32 %v3766, 1.0
        %v3895 = vmul.f32 %v3767, %v3129
        %v3896 = vmul.f32 %v3768, %v3132
        %v3897 = vmul.f32 %v3769, %v3137
        %v3898 = vmul.f32 %v3770, %v3140
        %v3899 = vmul.f32 %v3771, %v3145
        %v3900 = vmul.f32 %v3772, %v3148
        %v3901 = vmul.f32 %v3773, %v3153
        %v3902 = vmul.f32 %v3774, %v3156
        %v3903 = vmul.f32 %v3775, %v3161
        %v3904 = vmul.f32 %v3776, %v3164
        %v3905 = vmul.f32 %v3777, %v3169
        %v3906 = vmul.f32 %v3778, %v3172
        %v3907 = vmul.f32 %v3779, %v3177
        %v3908 = vmul.f32 %v3780, %v3180
        %v3909 = vmul.f32 %v3781, %v3185
        %v3910 = vmul.f32 %v3782, %v3188
        %v3911 = vmul.f32 %v3783, %v3193
        %v3912 = vmul.f32 %v3784, %v3196
        %v3913 = vmul.f32 %v3785, %v3201
        %v3914 = vmul.f32 %v3786, %v3204
        %v3915 = vmul.f32 %v3787, %v3209
        %v3916 = vmul.f32 %v3788, %v3212
        %v3917 = vmul.f32 %v3789, %v3217
        %v3918 = vmul.f32 %v3790, %v3220
        %v3919 = vmul.f32 %v3791, %v3225
        %v3920 = vmul.f32 %v3792, %v3228
        %v3921 = vmul.f32 %v3793, %v3233
        %v3922 = vmul.f32 %v3794, %v3236
        %v3923 = vmul.f32 %v3795, %v3241
        %v3924 = vmul.f32 %v3796, %v3244
        %v3925 = vmul.f32 %v3797, %v3249
        %v3926 = vmul.f32 %v3798, %v3252
        %v3927 = vmul.f32 %v3799, %v3257
        %v3928 = vmul.f32 %v3800, %v3260
        %v3929 = vmul.f32 %v3801, %v3265
        %v3930 = vmul.f32 %v3802, %v3268
        %v3931 = vmul.f32 %v3803, %v3273
        %v3932 = vmul.f32 %v3804, %v3276
        %v3933 = vmul.f32 %v3805, %v3281
        %v3934 = vmul.f32 %v3806, %v3284
        %v3935 = vmul.f32 %v3807, %v3289
        %v3936 = vmul.f32 %v3808, %v3292
        %v3937 = vmul.f32 %v3809, %v3297
        %v3938 = vmul.f32 %v3810, %v3300
        %v3939 = vmul.f32 %v3811, %v3305
        %v3940 = vmul.f32 %v3812, %v3308
        %v3941 = vmul.f32 %v3813, %v3313
        %v3942 = vmul.f32 %v3814, %v3316
        %v3943 = vmul.f32 %v3815, %v3321
        %v3944 = vmul.f32 %v3816, %v3324
        %v3945 = vmul.f32 %v3817, %v3329
        %v3946 = vmul.f32 %v3818, %v3332
        %v3947 = vmul.f32 %v3819, %v3337
        %v3948 = vmul.f32 %v3820, %v3340
        %v3949 = vmul.f32 %v3821, %v3345
        %v3950 = vmul.f32 %v3822, %v3348
        %v3951 = vmul.f32 %v3823, %v3353
        %v3952 = vmul.f32 %v3824, %v3356
        %v3953 = vmul.f32 %v3825, %v3361
        %v3954 = vmul.f32 %v3826, %v3364
        %v3955 = vmul.f32 %v3827, %v3369
        %v3956 = vmul.f32 %v3828, %v3372
        %v3957 = vmul.f32 %v3829, %v3377
        %v3958 = vmul.f32 %v3830, %v3380
        %v3959 = vmul.f32 %v3831, %v3385
        %v3960 = vmul.f32 %v3832, %v3388
        %v3961 = vmul.f32 %v3833, %v3393
        %v3962 = vmul.f32 %v3834, %v3396
        %v3963 = vmul.f32 %v3835, %v3401
        %v3964 = vmul.f32 %v3836, %v3404
        %v3965 = vmul.f32 %v3837, %v3409
        %v3966 = vmul.f32 %v3838, %v3412
        %v3967 = vmul.f32 %v3839, %v3417
        %v3968 = vmul.f32 %v3840, %v3420
        %v3969 = vmul.f32 %v3841, %v3425
        %v3970 = vmul.f32 %v3842, %v3428
        %v3971 = vmul.f32 %v3843, %v3433
        %v3972 = vmul.f32 %v3844, %v3436
        %v3973 = vmul.f32 %v3845, %v3441
        %v3974 = vmul.f32 %v3846, %v3444
        %v3975 = vmul.f32 %v3847, %v3449
        %v3976 = vmul.f32 %v3848, %v3452
        %v3977 = vmul.f32 %v3849, %v3457
        %v3978 = vmul.f32 %v3850, %v3460
        %v3979 = vmul.f32 %v3851, %v3465
        %v3980 = vmul.f32 %v3852, %v3468
        %v3981 = vmul.f32 %v3853, %v3473
        %v3982 = vmul.f32 %v3854, %v3476
        %v3983 = vmul.f32 %v3855, %v3481
        %v3984 = vmul.f32 %v3856, %v3484
        %v3985 = vmul.f32 %v3857, %v3489
        %v3986 = vmul.f32 %v3858, %v3492
        %v3987 = vmul.f32 %v3859, %v3497
        %v3988 = vmul.f32 %v3860, %v3500
        %v3989 = vmul.f32 %v3861, %v3505
        %v3990 = vmul.f32 %v3862, %v3508
        %v3991 = vmul.f32 %v3863, %v3513
        %v3992 = vmul.f32 %v3864, %v3516
        %v3993 = vmul.f32 %v3865, %v3521
        %v3994 = vmul.f32 %v3866, %v3524
        %v3995 = vmul.f32 %v3867, %v3529
        %v3996 = vmul.f32 %v3868, %v3532
        %v3997 = vmul.f32 %v3869, %v3537
        %v3998 = vmul.f32 %v3870, %v3540
        %v3999 = vmul.f32 %v3871, %v3545
        %v4000 = vmul.f32 %v3872, %v3548
        %v4001 = vmul.f32 %v3873, %v3553
        %v4002 = vmul.f32 %v3874, %v3556
        %v4003 = vmul.f32 %v3875, %v3561
        %v4004 = vmul.f32 %v3876, %v3564
        %v4005 = vmul.f32 %v3877, %v3569
        %v4006 = vmul.f32 %v3878, %v3572
        %v4007 = vmul.f32 %v3879, %v3577
        %v4008 = vmul.f32 %v3880, %v3580
        %v4009 = vmul.f32 %v3881, %v3585
        %v4010 = vmul.f32 %v3882, %v3588
        %v4011 = vmul.f32 %v3883, %v3593
        %v4012 = vmul.f32 %v3884, %v3596
        %v4013 = vmul.f32 %v3885, %v3601
        %v4014 = vmul.f32 %v3886, %v3604
        %v4015 = vmul.f32 %v3887, %v3609
        %v4016 = vmul.f32 %v3888, %v3612
        %v4017 = vmul.f32 %v3889, %v3617
        %v4018 = vmul.f32 %v3890, %v3620
        %v4019 = vmul.f32 %v3891, %v3625
        %v4020 = vmul.f32 %v3892, %v3628
        %v4021 = vmul.f32 %v3893, %v3633
        %v4022 = vmul.f32 %v3894, %v3636
        %v4023 = vmul.f32 %v3895, %v3895
        %v4024 = vmul.f32 %v3896, %v3896
        %v4025 = vmul.f32 %v3897, %v3897
        %v4026 = vmul.f32 %v3898, %v3898
        %v4027 = vmul.f32 %v3899, %v3899
        %v4028 = vmul.f32 %v3900, %v3900
        %v4029 = vmul.f32 %v3901, %v3901
        %v4030 = vmul.f32 %v3902, %v3902
        %v4031 = vmul.f32 %v3903, %v3903
        %v4032 = vmul.f32 %v3904, %v3904
        %v4033 = vmul.f32 %v3905, %v3905
        %v4034 = vmul.f32 %v3906, %v3906
        %v4035 = vmul.f32 %v3907, %v3907
        %v4036 = vmul.f32 %v3908, %v3908
        %v4037 = vmul.f32 %v3909, %v3909
        %v4038 = vmul.f32 %v3910, %v3910
        %v4039 = vmul.f32 %v3911, %v3911
        %v4040 = vmul.f32 %v3912, %v3912
        %v4041 = vmul.f32 %v3913, %v3913
        %v4042 = vmul.f32 %v3914, %v3914
        %v4043 = vmul.f32 %v3915, %v3915
        %v4044 = vmul.f32 %v3916, %v3916
        %v4045 = vmul.f32 %v3917, %v3917
        %v4046 = vmul.f32 %v3918, %v3918
        %v4047 = vmul.f32 %v3919, %v3919
        %v4048 = vmul.f32 %v3920, %v3920
        %v4049 = vmul.f32 %v3921, %v3921
        %v4050 = vmul.f32 %v3922, %v3922
        %v4051 = vmul.f32 %v3923, %v3923
        %v4052 = vmul.f32 %v3924, %v3924
        %v4053 = vmul.f32 %v3925, %v3925
        %v4054 = vmul.f32 %v3926, %v3926
        %v4055 = vmul.f32 %v3927, %v3927
        %v4056 = vmul.f32 %v3928, %v3928
        %v4057 = vmul.f32 %v3929, %v3929
        %v4058 = vmul.f32 %v3930, %v3930
        %v4059 = vmul.f32 %v3931, %v3931
        %v4060 = vmul.f32 %v3932, %v3932
        %v4061 = vmul.f32 %v3933, %v3933
        %v4062 = vmul.f32 %v3934, %v3934
        %v4063 = vmul.f32 %v3935, %v3935
        %v4064 = vmul.f32 %v3936, %v3936
        %v4065 = vmul.f32 %v3937, %v3937
        %v4066 = vmul.f32 %v3938, %v3938
        %v4067 = vmul.f32 %v3939, %v3939
        %v4068 = vmul.f32 %v3940, %v3940
        %v4069 = vmul.f32 %v3941, %v3941
        %v4070 = vmul.f32 %v3942, %v3942
        %v4071 = vmul.f32 %v3943, %v3943
        %v4072 = vmul.f32 %v3944, %v3944
        %v4073 = vmul.f32 %v3945, %v3945
        %v4074 = vmul.f32 %v3946, %v3946
        %v4075 = vmul.f32 %v3947, %v3947
        %v4076 = vmul.f32 %v3948, %v3948
        %v4077 = vmul.f32 %v3949, %v3949
        %v4078 = vmul.f32 %v3950, %v3950
        %v4079 = vmul.f32 %v3951, %v3951
        %v4080 = vmul.f32 %v3952, %v3952
        %v4081 = vmul.f32 %v3953, %v3953
        %v4082 = vmul.f32 %v3954, %v3954
        %v4083 = vmul.f32 %v3955, %v3955
        %v4084 = vmul.f32 %v3956, %v3956
        %v4085 = vmul.f32 %v3957, %v3957
        %v4086 = vmul.f32 %v3958, %v3958
        %v4087 = vmul.f32 %v3959, %v3959
        %v4088 = vmul.f32 %v3960, %v3960
        %v4089 = vmul.f32 %v3961, %v3961
        %v4090 = vmul.f32 %v3962, %v3962
        %v4091 = vmul.f32 %v3963, %v3963
        %v4092 = vmul.f32 %v3964, %v3964
        %v4093 = vmul.f32 %v3965, %v3965
        %v4094 = vmul.f32 %v3966, %v3966
        %v4095 = vmul.f32 %v3967, %v3967
        %v4096 = vmul.f32 %v3968, %v3968
        %v4097 = vmul.f32 %v3969, %v3969
        %v4098 = vmul.f32 %v3970, %v3970
        %v4099 = vmul.f32 %v3971, %v3971
        %v4100 = vmul.f32 %v3972, %v3972
        %v4101 = vmul.f32 %v3973, %v3973
        %v4102 = vmul.f32 %v3974, %v3974
        %v4103 = vmul.f32 %v3975, %v3975
        %v4104 = vmul.f32 %v3976, %v3976
        %v4105 = vmul.f32 %v3977, %v3977
        %v4106 = vmul.f32 %v3978, %v3978
        %v4107 = vmul.f32 %v3979, %v3979
        %v4108 = vmul.f32 %v3980, %v3980
        %v4109 = vmul.f32 %v3981, %v3981
        %v4110 = vmul.f32 %v3982, %v3982
        %v4111 = vmul.f32 %v3983, %v3983
        %v4112 = vmul.f32 %v3984, %v3984
        %v4113 = vmul.f32 %v3985, %v3985
        %v4114 = vmul.f32 %v3986, %v3986
        %v4115 = vmul.f32 %v3987, %v3987
        %v4116 = vmul.f32 %v3988, %v3988
        %v4117 = vmul.f32 %v3989, %v3989
        %v4118 = vmul.f32 %v3990, %v3990
        %v4119 = vmul.f32 %v3991, %v3991
        %v4120 = vmul.f32 %v3992, %v3992
        %v4121 = vmul.f32 %v3993, %v3993
        %v4122 = vmul.f32 %v3994, %v3994
        %v4123 = vmul.f32 %v3995, %v3995
        %v4124 = vmul.f32 %v3996, %v3996
        %v4125 = vmul.f32 %v3997, %v3997
        %v4126 = vmul.f32 %v3998, %v3998
        %v4127 = vmul.f32 %v3999, %v3999
        %v4128 = vmul.f32 %v4000, %v4000
        %v4129 = vmul.f32 %v4001, %v4001
        %v4130 = vmul.f32 %v4002, %v4002
        %v4131 = vmul.f32 %v4003, %v4003
        %v4132 = vmul.f32 %v4004, %v4004
        %v4133 = vmul.f32 %v4005, %v4005
        %v4134 = vmul.f32 %v4006, %v4006
        %v4135 = vmul.f32 %v4007, %v4007
        %v4136 = vmul.f32 %v4008, %v4008
        %v4137 = vmul.f32 %v4009, %v4009
        %v4138 = vmul.f32 %v4010, %v4010
        %v4139 = vmul.f32 %v4011, %v4011
        %v4140 = vmul.f32 %v4012, %v4012
        %v4141 = vmul.f32 %v4013, %v4013
        %v4142 = vmul.f32 %v4014, %v4014
        %v4143 = vmul.f32 %v4015, %v4015
        %v4144 = vmul.f32 %v4016, %v4016
        %v4145 = vmul.f32 %v4017, %v4017
        %v4146 = vmul.f32 %v4018, %v4018
        %v4147 = vmul.f32 %v4019, %v4019
        %v4148 = vmul.f32 %v4020, %v4020
        %v4149 = vmul.f32 %v4021, %v4021
        %v4150 = vmul.f32 %v4022, %v4022
        %v4151 = vmul.f32 %v4023, -2812.5
        %v4152 = vmul.f32 %v4024, -2812.5
        %v4153 = vmul.f32 %v4025, -2812.5
        %v4154 = vmul.f32 %v4026, -2812.5
        %v4155 = vmul.f32 %v4027, -2812.5
        %v4156 = vmul.f32 %v4028, -2812.5
        %v4157 = vmul.f32 %v4029, -2812.5
        %v4158 = vmul.f32 %v4030, -2812.5
        %v4159 = vmul.f32 %v4031, -2812.5
        %v4160 = vmul.f32 %v4032, -2812.5
        %v4161 = vmul.f32 %v4033, -2812.5
        %v4162 = vmul.f32 %v4034, -2812.5
        %v4163 = vmul.f32 %v4035, -2812.5
        %v4164 = vmul.f32 %v4036, -2812.5
        %v4165 = vmul.f32 %v4037, -2812.5
        %v4166 = vmul.f32 %v4038, -2812.5
        %v4167 = vmul.f32 %v4039, -2812.5
        %v4168 = vmul.f32 %v4040, -2812.5
        %v4169 = vmul.f32 %v4041, -2812.5
        %v4170 = vmul.f32 %v4042, -2812.5
        %v4171 = vmul.f32 %v4043, -2812.5
        %v4172 = vmul.f32 %v4044, -2812.5
        %v4173 = vmul.f32 %v4045, -2812.5
        %v4174 = vmul.f32 %v4046, -2812.5
        %v4175 = vmul.f32 %v4047, -2812.5
        %v4176 = vmul.f32 %v4048, -2812.5
        %v4177 = vmul.f32 %v4049, -2812.5
        %v4178 = vmul.f32 %v4050, -2812.5
        %v4179 = vmul.f32 %v4051, -2812.5
        %v4180 = vmul.f32 %v4052, -2812.5
        %v4181 = vmul.f32 %v4053, -2812.5
        %v4182 = vmul.f32 %v4054, -2812.5
        %v4183 = vmul.f32 %v4055, -2812.5
        %v4184 = vmul.f32 %v4056, -2812.5
        %v4185 = vmul.f32 %v4057, -2812.5
        %v4186 = vmul.f32 %v4058, -2812.5
        %v4187 = vmul.f32 %v4059, -2812.5
        %v4188 = vmul.f32 %v4060, -2812.5
        %v4189 = vmul.f32 %v4061, -2812.5
        %v4190 = vmul.f32 %v4062, -2812.5
        %v4191 = vmul.f32 %v4063, -2812.5
        %v4192 = vmul.f32 %v4064, -2812.5
        %v4193 = vmul.f32 %v4065, -2812.5
        %v4194 = vmul.f32 %v4066, -2812.5
        %v4195 = vmul.f32 %v4067, -2812.5
        %v4196 = vmul.f32 %v4068, -2812.5
        %v4197 = vmul.f32 %v4069, -2812.5
        %v4198 = vmul.f32 %v4070, -2812.5
        %v4199 = vmul.f32 %v4071, -2812.5
        %v4200 = vmul.f32 %v4072, -2812.5
        %v4201 = vmul.f32 %v4073, -2812.5
        %v4202 = vmul.f32 %v4074, -2812.5
        %v4203 = vmul.f32 %v4075, -2812.5
        %v4204 = vmul.f32 %v4076, -2812.5
        %v4205 = vmul.f32 %v4077, -2812.5
        %v4206 = vmul.f32 %v4078, -2812.5
        %v4207 = vmul.f32 %v4079, -2812.5
        %v4208 = vmul.f32 %v4080, -2812.5
        %v4209 = vmul.f32 %v4081, -2812.5
        %v4210 = vmul.f32 %v4082, -2812.5
        %v4211 = vmul.f32 %v4083, -2812.5
        %v4212 = vmul.f32 %v4084, -2812.5
        %v4213 = vmul.f32 %v4085, -2812.5
        %v4214 = vmul.f32 %v4086, -2812.5
        %v4215 = vmul.f32 %v4087, -2812.5
        %v4216 = vmul.f32 %v4088, -2812.5
        %v4217 = vmul.f32 %v4089, -2812.5
        %v4218 = vmul.f32 %v4090, -2812.5
        %v4219 = vmul.f32 %v4091, -2812.5
        %v4220 = vmul.f32 %v4092, -2812.5
        %v4221 = vmul.f32 %v4093, -2812.5
        %v4222 = vmul.f32 %v4094, -2812.5
        %v4223 = vmul.f32 %v4095, -2812.5
        %v4224 = vmul.f32 %v4096, -2812.5
        %v4225 = vmul.f32 %v4097, -2812.5
        %v4226 = vmul.f32 %v4098, -2812.5
        %v4227 = vmul.f32 %v4099, -2812.5
        %v4228 = vmul.f32 %v4100, -2812.5
        %v4229 = vmul.f32 %v4101, -2812.5
        %v4230 = vmul.f32 %v4102, -2812.5
        %v4231 = vmul.f32 %v4103, -2812.5
        %v4232 = vmul.f32 %v4104, -2812.5
        %v4233 = vmul.f32 %v4105, -2812.5
        %v4234 = vmul.f32 %v4106, -2812.5
        %v4235 = vmul.f32 %v4107, -2812.5
        %v4236 = vmul.f32 %v4108, -2812.5
        %v4237 = vmul.f32 %v4109, -2812.5
        %v4238 = vmul.f32 %v4110, -2812.5
        %v4239 = vmul.f32 %v4111, -2812.5
        %v4240 = vmul.f32 %v4112, -2812.5
        %v4241 = vmul.f32 %v4113, -2812.5
        %v4242 = vmul.f32 %v4114, -2812.5
        %v4243 = vmul.f32 %v4115, -2812.5
        %v4244 = vmul.f32 %v4116, -2812.5
        %v4245 = vmul.f32 %v4117, -2812.5
        %v4246 = vmul.f32 %v4118, -2812.5
        %v4247 = vmul.f32 %v4119, -2812.5
        %v4248 = vmul.f32 %v4120, -2812.5
        %v4249 = vmul.f32 %v4121, -2812.5
        %v4250 = vmul.f32 %v4122, -2812.5
        %v4251 = vmul.f32 %v4123, -2812.5
        %v4252 = vmul.f32 %v4124, -2812.5
        %v4253 = vmul.f32 %v4125, -2812.5
        %v4254 = vmul.f32 %v4126, -2812.5
        %v4255 = vmul.f32 %v4127, -2812.5
        %v4256 = vmul.f32 %v4128, -2812.5
        %v4257 = vmul.f32 %v4129, -2812.5
        %v4258 = vmul.f32 %v4130, -2812.5
        %v4259 = vmul.f32 %v4131, -2812.5
        %v4260 = vmul.f32 %v4132, -2812.5
        %v4261 = vmul.f32 %v4133, -2812.5
        %v4262 = vmul.f32 %v4134, -2812.5
        %v4263 = vmul.f32 %v4135, -2812.5
        %v4264 = vmul.f32 %v4136, -2812.5
        %v4265 = vmul.f32 %v4137, -2812.5
        %v4266 = vmul.f32 %v4138, -2812.5
        %v4267 = vmul.f32 %v4139, -2812.5
        %v4268 = vmul.f32 %v4140, -2812.5
        %v4269 = vmul.f32 %v4141, -2812.5
        %v4270 = vmul.f32 %v4142, -2812.5
        %v4271 = vmul.f32 %v4143, -2812.5
        %v4272 = vmul.f32 %v4144, -2812.5
        %v4273 = vmul.f32 %v4145, -2812.5
        %v4274 = vmul.f32 %v4146, -2812.5
        %v4275 = vmul.f32 %v4147, -2812.5
        %v4276 = vmul.f32 %v4148, -2812.5
        %v4277 = vmul.f32 %v4149, -2812.5
        %v4278 = vmul.f32 %v4150, -2812.5
        %v4279 = vmul.f32 %v4151, 1.442695
        %v4280 = vpow.pop %v4279
        %v4281 = vmul.f32 %v4152, 1.442695
        %v4282 = vpow.pop %v4281
        %v4283 = vmul.f32 %v4153, 1.442695
        %v4284 = vpow.pop %v4283
        %v4285 = vmul.f32 %v4154, 1.442695
        %v4286 = vpow.pop %v4285
        %v4287 = vmul.f32 %v4155, 1.442695
        %v4288 = vpow.pop %v4287
        %v4289 = vmul.f32 %v4156, 1.442695
        %v4290 = vpow.pop %v4289
        %v4291 = vmul.f32 %v4157, 1.442695
        %v4292 = vpow.pop %v4291
        %v4293 = vmul.f32 %v4158, 1.442695
        %v4294 = vpow.pop %v4293
        %v4295 = vmul.f32 %v4159, 1.442695
        %v4296 = vpow.pop %v4295
        %v4297 = vmul.f32 %v4160, 1.442695
        %v4298 = vpow.pop %v4297
        %v4299 = vmul.f32 %v4161, 1.442695
        %v4300 = vpow.pop %v4299
        %v4301 = vmul.f32 %v4162, 1.442695
        %v4302 = vpow.pop %v4301
        %v4303 = vmul.f32 %v4163, 1.442695
        %v4304 = vpow.pop %v4303
        %v4305 = vmul.f32 %v4164, 1.442695
        %v4306 = vpow.pop %v4305
        %v4307 = vmul.f32 %v4165, 1.442695
        %v4308 = vpow.pop %v4307
        %v4309 = vmul.f32 %v4166, 1.442695
        %v4310 = vpow.pop %v4309
        %v4311 = vmul.f32 %v4167, 1.442695
        %v4312 = vpow.pop %v4311
        %v4313 = vmul.f32 %v4168, 1.442695
        %v4314 = vpow.pop %v4313
        %v4315 = vmul.f32 %v4169, 1.442695
        %v4316 = vpow.pop %v4315
        %v4317 = vmul.f32 %v4170, 1.442695
        %v4318 = vpow.pop %v4317
        %v4319 = vmul.f32 %v4171, 1.442695
        %v4320 = vpow.pop %v4319
        %v4321 = vmul.f32 %v4172, 1.442695
        %v4322 = vpow.pop %v4321
        %v4323 = vmul.f32 %v4173, 1.442695
        %v4324 = vpow.pop %v4323
        %v4325 = vmul.f32 %v4174, 1.442695
        %v4326 = vpow.pop %v4325
        %v4327 = vmul.f32 %v4175, 1.442695
        %v4328 = vpow.pop %v4327
        %v4329 = vmul.f32 %v4176, 1.442695
        %v4330 = vpow.pop %v4329
        %v4331 = vmul.f32 %v4177, 1.442695
        %v4332 = vpow.pop %v4331
        %v4333 = vmul.f32 %v4178, 1.442695
        %v4334 = vpow.pop %v4333
        %v4335 = vmul.f32 %v4179, 1.442695
        %v4336 = vpow.pop %v4335
        %v4337 = vmul.f32 %v4180, 1.442695
        %v4338 = vpow.pop %v4337
        %v4339 = vmul.f32 %v4181, 1.442695
        %v4340 = vpow.pop %v4339
        %v4341 = vmul.f32 %v4182, 1.442695
        %v4342 = vpow.pop %v4341
        %v4343 = vmul.f32 %v4183, 1.442695
        %v4344 = vpow.pop %v4343
        %v4345 = vmul.f32 %v4184, 1.442695
        %v4346 = vpow.pop %v4345
        %v4347 = vmul.f32 %v4185, 1.442695
        %v4348 = vpow.pop %v4347
        %v4349 = vmul.f32 %v4186, 1.442695
        %v4350 = vpow.pop %v4349
        %v4351 = vmul.f32 %v4187, 1.442695
        %v4352 = vpow.pop %v4351
        %v4353 = vmul.f32 %v4188, 1.442695
        %v4354 = vpow.pop %v4353
        %v4355 = vmul.f32 %v4189, 1.442695
        %v4356 = vpow.pop %v4355
        %v4357 = vmul.f32 %v4190, 1.442695
        %v4358 = vpow.pop %v4357
        %v4359 = vmul.f32 %v4191, 1.442695
        %v4360 = vpow.pop %v4359
        %v4361 = vmul.f32 %v4192, 1.442695
        %v4362 = vpow.pop %v4361
        %v4363 = vmul.f32 %v4193, 1.442695
        %v4364 = vpow.pop %v4363
        %v4365 = vmul.f32 %v4194, 1.442695
        %v4366 = vpow.pop %v4365
        %v4367 = vmul.f32 %v4195, 1.442695
        %v4368 = vpow.pop %v4367
        %v4369 = vmul.f32 %v4196, 1.442695
        %v4370 = vpow.pop %v4369
        %v4371 = vmul.f32 %v4197, 1.442695
        %v4372 = vpow.pop %v4371
        %v4373 = vmul.f32 %v4198, 1.442695
        %v4374 = vpow.pop %v4373
        %v4375 = vmul.f32 %v4199, 1.442695
        %v4376 = vpow.pop %v4375
        %v4377 = vmul.f32 %v4200, 1.442695
        %v4378 = vpow.pop %v4377
        %v4379 = vmul.f32 %v4201, 1.442695
        %v4380 = vpow.pop %v4379
        %v4381 = vmul.f32 %v4202, 1.442695
        %v4382 = vpow.pop %v4381
        %v4383 = vmul.f32 %v4203, 1.442695
        %v4384 = vpow.pop %v4383
        %v4385 = vmul.f32 %v4204, 1.442695
        %v4386 = vpow.pop %v4385
        %v4387 = vmul.f32 %v4205, 1.442695
        %v4388 = vpow.pop %v4387
        %v4389 = vmul.f32 %v4206, 1.442695
        %v4390 = vpow.pop %v4389
        %v4391 = vmul.f32 %v4207, 1.442695
        %v4392 = vpow.pop %v4391
        %v4393 = vmul.f32 %v4208, 1.442695
        %v4394 = vpow.pop %v4393
        %v4395 = vmul.f32 %v4209, 1.442695
        %v4396 = vpow.pop %v4395
        %v4397 = vmul.f32 %v4210, 1.442695
        %v4398 = vpow.pop %v4397
        %v4399 = vmul.f32 %v4211, 1.442695
        %v4400 = vpow.pop %v4399
        %v4401 = vmul.f32 %v4212, 1.442695
        %v4402 = vpow.pop %v4401
        %v4403 = vmul.f32 %v4213, 1.442695
        %v4404 = vpow.pop %v4403
        %v4405 = vmul.f32 %v4214, 1.442695
        %v4406 = vpow.pop %v4405
        %v4407 = vmul.f32 %v4215, 1.442695
        %v4408 = vpow.pop %v4407
        %v4409 = vmul.f32 %v4216, 1.442695
        %v4410 = vpow.pop %v4409
        %v4411 = vmul.f32 %v4217, 1.442695
        %v4412 = vpow.pop %v4411
        %v4413 = vmul.f32 %v4218, 1.442695
        %v4414 = vpow.pop %v4413
        %v4415 = vmul.f32 %v4219, 1.442695
        %v4416 = vpow.pop %v4415
        %v4417 = vmul.f32 %v4220, 1.442695
        %v4418 = vpow.pop %v4417
        %v4419 = vmul.f32 %v4221, 1.442695
        %v4420 = vpow.pop %v4419
        %v4421 = vmul.f32 %v4222, 1.442695
        %v4422 = vpow.pop %v4421
        %v4423 = vmul.f32 %v4223, 1.442695
        %v4424 = vpow.pop %v4423
        %v4425 = vmul.f32 %v4224, 1.442695
        %v4426 = vpow.pop %v4425
        %v4427 = vmul.f32 %v4225, 1.442695
        %v4428 = vpow.pop %v4427
        %v4429 = vmul.f32 %v4226, 1.442695
        %v4430 = vpow.pop %v4429
        %v4431 = vmul.f32 %v4227, 1.442695
        %v4432 = vpow.pop %v4431
        %v4433 = vmul.f32 %v4228, 1.442695
        %v4434 = vpow.pop %v4433
        %v4435 = vmul.f32 %v4229, 1.442695
        %v4436 = vpow.pop %v4435
        %v4437 = vmul.f32 %v4230, 1.442695
        %v4438 = vpow.pop %v4437
        %v4439 = vmul.f32 %v4231, 1.442695
        %v4440 = vpow.pop %v4439
        %v4441 = vmul.f32 %v4232, 1.442695
        %v4442 = vpow.pop %v4441
        %v4443 = vmul.f32 %v4233, 1.442695
        %v4444 = vpow.pop %v4443
        %v4445 = vmul.f32 %v4234, 1.442695
        %v4446 = vpow.pop %v4445
        %v4447 = vmul.f32 %v4235, 1.442695
        %v4448 = vpow.pop %v4447
        %v4449 = vmul.f32 %v4236, 1.442695
        %v4450 = vpow.pop %v4449
        %v4451 = vmul.f32 %v4237, 1.442695
        %v4452 = vpow.pop %v4451
        %v4453 = vmul.f32 %v4238, 1.442695
        %v4454 = vpow.pop %v4453
        %v4455 = vmul.f32 %v4239, 1.442695
        %v4456 = vpow.pop %v4455
        %v4457 = vmul.f32 %v4240, 1.442695
        %v4458 = vpow.pop %v4457
        %v4459 = vmul.f32 %v4241, 1.442695
        %v4460 = vpow.pop %v4459
        %v4461 = vmul.f32 %v4242, 1.442695
        %v4462 = vpow.pop %v4461
        %v4463 = vmul.f32 %v4243, 1.442695
        %v4464 = vpow.pop %v4463
        %v4465 = vmul.f32 %v4244, 1.442695
        %v4466 = vpow.pop %v4465
        %v4467 = vmul.f32 %v4245, 1.442695
        %v4468 = vpow.pop %v4467
        %v4469 = vmul.f32 %v4246, 1.442695
        %v4470 = vpow.pop %v4469
        %v4471 = vmul.f32 %v4247, 1.442695
        %v4472 = vpow.pop %v4471
        %v4473 = vmul.f32 %v4248, 1.442695
        %v4474 = vpow.pop %v4473
        %v4475 = vmul.f32 %v4249, 1.442695
        %v4476 = vpow.pop %v4475
        %v4477 = vmul.f32 %v4250, 1.442695
        %v4478 = vpow.pop %v4477
        %v4479 = vmul.f32 %v4251, 1.442695
        %v4480 = vpow.pop %v4479
        %v4481 = vmul.f32 %v4252, 1.442695
        %v4482 = vpow.pop %v4481
        %v4483 = vmul.f32 %v4253, 1.442695
        %v4484 = vpow.pop %v4483
        %v4485 = vmul.f32 %v4254, 1.442695
        %v4486 = vpow.pop %v4485
        %v4487 = vmul.f32 %v4255, 1.442695
        %v4488 = vpow.pop %v4487
        %v4489 = vmul.f32 %v4256, 1.442695
        %v4490 = vpow.pop %v4489
        %v4491 = vmul.f32 %v4257, 1.442695
        %v4492 = vpow.pop %v4491
        %v4493 = vmul.f32 %v4258, 1.442695
        %v4494 = vpow.pop %v4493
        %v4495 = vmul.f32 %v4259, 1.442695
        %v4496 = vpow.pop %v4495
        %v4497 = vmul.f32 %v4260, 1.442695
        %v4498 = vpow.pop %v4497
        %v4499 = vmul.f32 %v4261, 1.442695
        %v4500 = vpow.pop %v4499
        %v4501 = vmul.f32 %v4262, 1.442695
        %v4502 = vpow.pop %v4501
        %v4503 = vmul.f32 %v4263, 1.442695
        %v4504 = vpow.pop %v4503
        %v4505 = vmul.f32 %v4264, 1.442695
        %v4506 = vpow.pop %v4505
        %v4507 = vmul.f32 %v4265, 1.442695
        %v4508 = vpow.pop %v4507
        %v4509 = vmul.f32 %v4266, 1.442695
        %v4510 = vpow.pop %v4509
        %v4511 = vmul.f32 %v4267, 1.442695
        %v4512 = vpow.pop %v4511
        %v4513 = vmul.f32 %v4268, 1.442695
        %v4514 = vpow.pop %v4513
        %v4515 = vmul.f32 %v4269, 1.442695
        %v4516 = vpow.pop %v4515
        %v4517 = vmul.f32 %v4270, 1.442695
        %v4518 = vpow.pop %v4517
        %v4519 = vmul.f32 %v4271, 1.442695
        %v4520 = vpow.pop %v4519
        %v4521 = vmul.f32 %v4272, 1.442695
        %v4522 = vpow.pop %v4521
        %v4523 = vmul.f32 %v4273, 1.442695
        %v4524 = vpow.pop %v4523
        %v4525 = vmul.f32 %v4274, 1.442695
        %v4526 = vpow.pop %v4525
        %v4527 = vmul.f32 %v4275, 1.442695
        %v4528 = vpow.pop %v4527
        %v4529 = vmul.f32 %v4276, 1.442695
        %v4530 = vpow.pop %v4529
        %v4531 = vmul.f32 %v4277, 1.442695
        %v4532 = vpow.pop %v4531
        %v4533 = vmul.f32 %v4278, 1.442695
        %v4534 = vpow.pop %v4533
        %v4535 = vpack.c.bf16 %v4282, %v4280
        %v4536 = vpack.c.bf16 %v4286, %v4284
        %v4537 = vpack.c.bf16 %v4290, %v4288
        %v4538 = vpack.c.bf16 %v4294, %v4292
        %v4539 = vpack.c.bf16 %v4298, %v4296
        %v4540 = vpack.c.bf16 %v4302, %v4300
        %v4541 = vpack.c.bf16 %v4306, %v4304
        %v4542 = vpack.c.bf16 %v4310, %v4308
        %v4543 = vpack.c.bf16 %v4314, %v4312
        %v4544 = vpack.c.bf16 %v4318, %v4316
        %v4545 = vpack.c.bf16 %v4322, %v4320
        %v4546 = vpack.c.bf16 %v4326, %v4324
        %v4547 = vpack.c.bf16 %v4330, %v4328
        %v4548 = vpack.c.bf16 %v4334, %v4332
        %v4549 = vpack.c.bf16 %v4338, %v4336
        %v4550 = vpack.c.bf16 %v4342, %v4340
        %v4551 = vpack.c.bf16 %v4346, %v4344
        %v4552 = vpack.c.bf16 %v4350, %v4348
        %v4553 = vpack.c.bf16 %v4354, %v4352
        %v4554 = vpack.c.bf16 %v4358, %v4356
        %v4555 = vpack.c.bf16 %v4362, %v4360
        %v4556 = vpack.c.bf16 %v4366, %v4364
        %v4557 = vpack.c.bf16 %v4370, %v4368
        %v4558 = vpack.c.bf16 %v4374, %v4372
        %v4559 = vpack.c.bf16 %v4378, %v4376
        %v4560 = vpack.c.bf16 %v4382, %v4380
        %v4561 = vpack.c.bf16 %v4386, %v4384
        %v4562 = vpack.c.bf16 %v4390, %v4388
        %v4563 = vpack.c.bf16 %v4394, %v4392
        %v4564 = vpack.c.bf16 %v4398, %v4396
        %v4565 = vpack.c.bf16 %v4402, %v4400
        %v4566 = vpack.c.bf16 %v4406, %v4404
        %v4567 = vpack.c.bf16 %v4410, %v4408
        %v4568 = vpack.c.bf16 %v4414, %v4412
        %v4569 = vpack.c.bf16 %v4418, %v4416
        %v4570 = vpack.c.bf16 %v4422, %v4420
        %v4571 = vpack.c.bf16 %v4426, %v4424
        %v4572 = vpack.c.bf16 %v4430, %v4428
        %v4573 = vpack.c.bf16 %v4434, %v4432
        %v4574 = vpack.c.bf16 %v4438, %v4436
        %v4575 = vpack.c.bf16 %v4442, %v4440
        %v4576 = vpack.c.bf16 %v4446, %v4444
        %v4577 = vpack.c.bf16 %v4450, %v4448
        %v4578 = vpack.c.bf16 %v4454, %v4452
        %v4579 = vpack.c.bf16 %v4458, %v4456
        %v4580 = vpack.c.bf16 %v4462, %v4460
        %v4581 = vpack.c.bf16 %v4466, %v4464
        %v4582 = vpack.c.bf16 %v4470, %v4468
        %v4583 = vpack.c.bf16 %v4474, %v4472
        %v4584 = vpack.c.bf16 %v4478, %v4476
        %v4585 = vpack.c.bf16 %v4482, %v4480
        %v4586 = vpack.c.bf16 %v4486, %v4484
        %v4587 = vpack.c.bf16 %v4490, %v4488
        %v4588 = vpack.c.bf16 %v4494, %v4492
        %v4589 = vpack.c.bf16 %v4498, %v4496
        %v4590 = vpack.c.bf16 %v4502, %v4500
        %v4591 = vpack.c.bf16 %v4506, %v4504
        %v4592 = vpack.c.bf16 %v4510, %v4508
        %v4593 = vpack.c.bf16 %v4514, %v4512
        %v4594 = vpack.c.bf16 %v4518, %v4516
        %v4595 = vpack.c.bf16 %v4522, %v4520
        %v4596 = vpack.c.bf16 %v4526, %v4524
        %v4597 = vpack.c.bf16 %v4530, %v4528
        %v4598 = vpack.c.bf16 %v4534, %v4532
        %s4599 = scalar_lea.vmem %s3, 64
        %v4600 = vld [vmem:[%s4599] sm:$0xf]
        %v4601 = vld [vmem:[%s4599 + $0x4] sm:$0xf]
        %v4602 = vld [vmem:[%s4599 + $0x8] sm:$0xf]
        %v4603 = vld [vmem:[%s4599 + $0xc] sm:$0xf]
        %v4604 = vld [vmem:[%s4599 + $0x10] sm:$0xf]
        %v4605 = vld [vmem:[%s4599 + $0x14] sm:$0xf]
        %v4606 = vld [vmem:[%s4599 + $0x18] sm:$0xf]
        %v4607 = vld [vmem:[%s4599 + $0x1c] sm:$0xf]
        %v4608 = vld [vmem:[%s4599 + $0x20] sm:$0xf]
        %v4609 = vld [vmem:[%s4599 + $0x24] sm:$0xf]
        %v4610 = vld [vmem:[%s4599 + $0x28] sm:$0xf]
        %v4611 = vld [vmem:[%s4599 + $0x2c] sm:$0xf]
        %v4612 = vld [vmem:[%s4599 + $0x30] sm:$0xf]
        %v4613 = vld [vmem:[%s4599 + $0x34] sm:$0xf]
        %v4614 = vld [vmem:[%s4599 + $0x38] sm:$0xf]
        %v4615 = vld [vmem:[%s4599 + $0x3c] sm:$0xf]
        %s4616 = scalar_lea.vmem %s4, 1
        %v4617 = vld [vmem:[%s4616] sm:$0x1]
        %v4619 = vlaneseq
        %v4620 = vshrl.u32 %v4619, 7
        %v4621 = vsub.s32 0, %v4620
        %v4622 = vrot.slane %v4617, %v4621
        %v4640 = vunpack.c.l.b16 %v4600
        %v4641 = vunpack.c.l.b16 %v4601
        %v4642 = vunpack.c.l.b16 %v4602
        %v4643 = vunpack.c.l.b16 %v4603
        %v4644 = vunpack.c.l.b16 %v4604
        %v4645 = vunpack.c.l.b16 %v4605
        %v4646 = vunpack.c.l.b16 %v4606
        %v4647 = vunpack.c.l.b16 %v4607
        %v4648 = vunpack.c.l.b16 %v4608
        %v4649 = vunpack.c.l.b16 %v4609
        %v4650 = vunpack.c.l.b16 %v4610
        %v4651 = vunpack.c.l.b16 %v4611
        %v4652 = vunpack.c.l.b16 %v4612
        %v4653 = vunpack.c.l.b16 %v4613
        %v4654 = vunpack.c.l.b16 %v4614
        %v4655 = vunpack.c.l.b16 %v4615
        %v4656 = vpack.c.b16 %v4641, %v4640
        %v4657 = vpack.c.b16 %v4643, %v4642
        %v4658 = vpack.c.b16 %v4645, %v4644
        %v4659 = vpack.c.b16 %v4647, %v4646
        %v4660 = vpack.c.b16 %v4649, %v4648
        %v4661 = vpack.c.b16 %v4651, %v4650
        %v4662 = vpack.c.b16 %v4653, %v4652
        %v4663 = vpack.c.b16 %v4655, %v4654
        %4672 = vmatprep.subr.bf16.mxu0 0
        %4673 = vmatpush1.bf16.msra.mxu0 %v4656
        %4674 = vmatprep.subr.bf16.mxu0 0
        %4675 = vmatpush1.bf16.msra.mxu0 %v4657
        %4676 = vmatprep.subr.bf16.mxu0 0
        %4677 = vmatpush1.bf16.msra.mxu0 %v4658
        %4678 = vmatprep.subr.bf16.mxu0 0
        %4679 = vmatpush1.bf16.msra.mxu0 %v4659
        %4680 = vmatprep.subr.bf16.mxu0 0
        %4681 = vmatpush1.bf16.msra.mxu0 %v4660
        %4682 = vmatprep.subr.bf16.mxu0 0
        %4683 = vmatpush1.bf16.msra.mxu0 %v4661
        %4684 = vmatprep.subr.bf16.mxu0 0
        %4685 = vmatpush1.bf16.msra.mxu0 %v4662
        %4686 = vmatprep.subr.bf16.mxu0 0
        %4687 = vmatpush1.bf16.msra.mxu0 %v4663
        %4688 = vmatprep.subr.bf16.mxu0 0
        %4689 = vmatpush1.bf16.msra.mxu0 0
        %4690 = vmatprep.subr.bf16.mxu0 0
        %4691 = vmatpush1.bf16.msra.mxu0 0
        %4692 = vmatprep.subr.bf16.mxu0 0
        %4693 = vmatpush1.bf16.msra.mxu0 0
        %4694 = vmatprep.subr.bf16.mxu0 0
        %4695 = vmatpush1.bf16.msra.mxu0 0
        %4696 = vmatprep.subr.bf16.mxu0 0
        %4697 = vmatpush1.bf16.msra.mxu0 0
        %4698 = vmatprep.subr.bf16.mxu0 0
        %4699 = vmatpush1.bf16.msra.mxu0 0
        %4700 = vmatprep.subr.bf16.mxu0 0
        %4701 = vmatpush1.bf16.msra.mxu0 0
        %4702 = vmatprep.subr.bf16.mxu0 0
        %4703 = vmatpush1.bf16.msra.mxu0 0
        %4704 = vmatprep.mubr.bf16.mxu0 0
        %4705 = vmatmul.mubr.bf16.gmra.mrb[0].mxu0 %v4535
        %v4706 = vpop.f32.mrb[0].mxu0
        %v4707 = vadd.f32 %v4622, %v4706
        %v4708 = vpop.f32.mrb[0].mxu0
        %v4709 = vpop.f32.mrb[0].mxu0
        %v4710 = vadd.f32 %v4622, %v4709
        %v4711 = vpop.f32.mrb[0].mxu0
        %4712 = vmatprep.mubr.bf16.mxu0 0
        %4713 = vmatmul.mubr.bf16.gmra.mrb[0].mxu0 %v4536
        %v4714 = vpop.f32.mrb[0].mxu0
        %v4715 = vadd.f32 %v4622, %v4714
        %v4716 = vpop.f32.mrb[0].mxu0
        %v4717 = vpop.f32.mrb[0].mxu0
        %v4718 = vadd.f32 %v4622, %v4717
        %v4719 = vpop.f32.mrb[0].mxu0
        %4720 = vmatprep.mubr.bf16.mxu0 0
        %4721 = vmatmul.mubr.bf16.gmra.mrb[0].mxu0 %v4537
        %v4722 = vpop.f32.mrb[0].mxu0
        %v4723 = vadd.f32 %v4622, %v4722
        %v4724 = vpop.f32.mrb[0].mxu0
        %v4725 = vpop.f32.mrb[0].mxu0
        %v4726 = vadd.f32 %v4622, %v4725
        %v4727 = vpop.f32.mrb[0].mxu0
        %4728 = vmatprep.mubr.bf16.mxu0 0
        %4729 = vmatmul.mubr.bf16.gmra.mrb[0].mxu0 %v4538
        %v4730 = vpop.f32.mrb[0].mxu0
        %v4731 = vadd.f32 %v4622, %v4730
        %v4732 = vpop.f32.mrb[0].mxu0
        %v4733 = vpop.f32.mrb[0].mxu0
        %v4734 = vadd.f32 %v4622, %v4733
        %v4735 = vpop.f32.mrb[0].mxu0
        %4736 = vmatprep.mubr.bf16.mxu0 0
        %4737 = vmatmul.mubr.bf16.gmra.mrb[0].mxu0 %v4539
        %v4738 = vpop.f32.mrb[0].mxu0
        %v4739 = vadd.f32 %v4622, %v4738
        %v4740 = vpop.f32.mrb[0].mxu0
        %v4741 = vpop.f32.mrb[0].mxu0
        %v4742 = vadd.f32 %v4622, %v4741
        %v4743 = vpop.f32.mrb[0].mxu0
        %4744 = vmatprep.mubr.bf16.mxu0 0
        %4745 = vmatmul.mubr.bf16.gmra.mrb[0].mxu0 %v4540
        %v4746 = vpop.f32.mrb[0].mxu0
        %v4747 = vadd.f32 %v4622, %v4746
        %v4748 = vpop.f32.mrb[0].mxu0
        %v4749 = vpop.f32.mrb[0].mxu0
        %v4750 = vadd.f32 %v4622, %v4749
        %v4751 = vpop.f32.mrb[0].mxu0
        %4752 = vmatprep.mubr.bf16.mxu0 0
        %4753 = vmatmul.mubr.bf16.gmra.mrb[0].mxu0 %v4541
        %v4754 = vpop.f32.mrb[0].mxu0
        %v4755 = vadd.f32 %v4622, %v4754
        %v4756 = vpop.f32.mrb[0].mxu0
        %v4757 = vpop.f32.mrb[0].mxu0
        %v4758 = vadd.f32 %v4622, %v4757
        %v4759 = vpop.f32.mrb[0].mxu0
        %4760 = vmatprep.mubr.bf16.mxu0 0
        %4761 = vmatmul.mubr.bf16.gmra.mrb[0].mxu0 %v4542
        %v4762 = vpop.f32.mrb[0].mxu0
        %v4763 = vadd.f32 %v4622, %v4762
        %v4764 = vpop.f32.mrb[0].mxu0
        %v4765 = vpop.f32.mrb[0].mxu0
        %v4766 = vadd.f32 %v4622, %v4765
        %v4767 = vpop.f32.mrb[0].mxu0
        %4768 = vmatprep.mubr.bf16.mxu0 0
        %4769 = vmatmul.mubr.bf16.gmra.mrb[0].mxu0 %v4543
        %v4770 = vpop.f32.mrb[0].mxu0
        %v4771 = vadd.f32 %v4622, %v4770
        %v4772 = vpop.f32.mrb[0].mxu0
        %v4773 = vpop.f32.mrb[0].mxu0
        %v4774 = vadd.f32 %v4622, %v4773
        %v4775 = vpop.f32.mrb[0].mxu0
        %4776 = vmatprep.mubr.bf16.mxu0 0
        %4777 = vmatmul.mubr.bf16.gmra.mrb[0].mxu0 %v4544
        %v4778 = vpop.f32.mrb[0].mxu0
        %v4779 = vadd.f32 %v4622, %v4778
        %v4780 = vpop.f32.mrb[0].mxu0
        %v4781 = vpop.f32.mrb[0].mxu0
        %v4782 = vadd.f32 %v4622, %v4781
        %v4783 = vpop.f32.mrb[0].mxu0
        %4784 = vmatprep.mubr.bf16.mxu0 0
        %4785 = vmatmul.mubr.bf16.gmra.mrb[0].mxu0 %v4545
        %v4786 = vpop.f32.mrb[0].mxu0
        %v4787 = vadd.f32 %v4622, %v4786
        %v4788 = vpop.f32.mrb[0].mxu0
        %v4789 = vpop.f32.mrb[0].mxu0
        %v4790 = vadd.f32 %v4622, %v4789
        %v4791 = vpop.f32.mrb[0].mxu0
        %4792 = vmatprep.mubr.bf16.mxu0 0
        %4793 = vmatmul.mubr.bf16.gmra.mrb[0].mxu0 %v4546
        %v4794 = vpop.f32.mrb[0].mxu0
        %v4795 = vadd.f32 %v4622, %v4794
        %v4796 = vpop.f32.mrb[0].mxu0
        %v4797 = vpop.f32.mrb[0].mxu0
        %v4798 = vadd.f32 %v4622, %v4797
        %v4799 = vpop.f32.mrb[0].mxu0
        %4800 = vmatprep.mubr.bf16.mxu0 0
        %4801 = vmatmul.mubr.bf16.gmra.mrb[0].mxu0 %v4547
        %v4802 = vpop.f32.mrb[0].mxu0
        %v4803 = vadd.f32 %v4622, %v4802
        %v4804 = vpop.f32.mrb[0].mxu0
        %v4805 = vpop.f32.mrb[0].mxu0
        %v4806 = vadd.f32 %v4622, %v4805
        %v4807 = vpop.f32.mrb[0].mxu0
        %4808 = vmatprep.mubr.bf16.mxu0 0
        %4809 = vmatmul.mubr.bf16.gmra.mrb[0].mxu0 %v4548
        %v4810 = vpop.f32.mrb[0].mxu0
        %v4811 = vadd.f32 %v4622, %v4810
        %v4812 = vpop.f32.mrb[0].mxu0
        %v4813 = vpop.f32.mrb[0].mxu0
        %v4814 = vadd.f32 %v4622, %v4813
        %v4815 = vpop.f32.mrb[0].mxu0
        %4816 = vmatprep.mubr.bf16.mxu0 0
        %4817 = vmatmul.mubr.bf16.gmra.mrb[0].mxu0 %v4549
        %v4818 = vpop.f32.mrb[0].mxu0
        %v4819 = vadd.f32 %v4622, %v4818
        %v4820 = vpop.f32.mrb[0].mxu0
        %v4821 = vpop.f32.mrb[0].mxu0
        %v4822 = vadd.f32 %v4622, %v4821
        %v4823 = vpop.f32.mrb[0].mxu0
        %4824 = vmatprep.mubr.bf16.mxu0 0
        %4825 = vmatmul.mubr.bf16.gmra.mrb[0].mxu0 %v4550
        %v4826 = vpop.f32.mrb[0].mxu0
        %v4827 = vadd.f32 %v4622, %v4826
        %v4828 = vpop.f32.mrb[0].mxu0
        %v4829 = vpop.f32.mrb[0].mxu0
        %v4830 = vadd.f32 %v4622, %v4829
        %v4831 = vpop.f32.mrb[0].mxu0
        %4832 = vmatprep.mubr.bf16.mxu0 0
        %4833 = vmatmul.mubr.bf16.gmra.mrb[0].mxu0 %v4551
        %v4834 = vpop.f32.mrb[0].mxu0
        %v4835 = vadd.f32 %v4622, %v4834
        %v4836 = vpop.f32.mrb[0].mxu0
        %v4837 = vpop.f32.mrb[0].mxu0
        %v4838 = vadd.f32 %v4622, %v4837
        %v4839 = vpop.f32.mrb[0].mxu0
        %4840 = vmatprep.mubr.bf16.mxu0 0
        %4841 = vmatmul.mubr.bf16.gmra.mrb[0].mxu0 %v4552
        %v4842 = vpop.f32.mrb[0].mxu0
        %v4843 = vadd.f32 %v4622, %v4842
        %v4844 = vpop.f32.mrb[0].mxu0
        %v4845 = vpop.f32.mrb[0].mxu0
        %v4846 = vadd.f32 %v4622, %v4845
        %v4847 = vpop.f32.mrb[0].mxu0
        %4848 = vmatprep.mubr.bf16.mxu0 0
        %4849 = vmatmul.mubr.bf16.gmra.mrb[0].mxu0 %v4553
        %v4850 = vpop.f32.mrb[0].mxu0
        %v4851 = vadd.f32 %v4622, %v4850
        %v4852 = vpop.f32.mrb[0].mxu0
        %v4853 = vpop.f32.mrb[0].mxu0
        %v4854 = vadd.f32 %v4622, %v4853
        %v4855 = vpop.f32.mrb[0].mxu0
        %4856 = vmatprep.mubr.bf16.mxu0 0
        %4857 = vmatmul.mubr.bf16.gmra.mrb[0].mxu0 %v4554
        %v4858 = vpop.f32.mrb[0].mxu0
        %v4859 = vadd.f32 %v4622, %v4858
        %v4860 = vpop.f32.mrb[0].mxu0
        %v4861 = vpop.f32.mrb[0].mxu0
        %v4862 = vadd.f32 %v4622, %v4861
        %v4863 = vpop.f32.mrb[0].mxu0
        %4864 = vmatprep.mubr.bf16.mxu0 0
        %4865 = vmatmul.mubr.bf16.gmra.mrb[0].mxu0 %v4555
        %v4866 = vpop.f32.mrb[0].mxu0
        %v4867 = vadd.f32 %v4622, %v4866
        %v4868 = vpop.f32.mrb[0].mxu0
        %v4869 = vpop.f32.mrb[0].mxu0
        %v4870 = vadd.f32 %v4622, %v4869
        %v4871 = vpop.f32.mrb[0].mxu0
        %4872 = vmatprep.mubr.bf16.mxu0 0
        %4873 = vmatmul.mubr.bf16.gmra.mrb[0].mxu0 %v4556
        %v4874 = vpop.f32.mrb[0].mxu0
        %v4875 = vadd.f32 %v4622, %v4874
        %v4876 = vpop.f32.mrb[0].mxu0
        %v4877 = vpop.f32.mrb[0].mxu0
        %v4878 = vadd.f32 %v4622, %v4877
        %v4879 = vpop.f32.mrb[0].mxu0
        %4880 = vmatprep.mubr.bf16.mxu0 0
        %4881 = vmatmul.mubr.bf16.gmra.mrb[0].mxu0 %v4557
        %v4882 = vpop.f32.mrb[0].mxu0
        %v4883 = vadd.f32 %v4622, %v4882
        %v4884 = vpop.f32.mrb[0].mxu0
        %v4885 = vpop.f32.mrb[0].mxu0
        %v4886 = vadd.f32 %v4622, %v4885
        %v4887 = vpop.f32.mrb[0].mxu0
        %4888 = vmatprep.mubr.bf16.mxu0 0
        %4889 = vmatmul.mubr.bf16.gmra.mrb[0].mxu0 %v4558
        %v4890 = vpop.f32.mrb[0].mxu0
        %v4891 = vadd.f32 %v4622, %v4890
        %v4892 = vpop.f32.mrb[0].mxu0
        %v4893 = vpop.f32.mrb[0].mxu0
        %v4894 = vadd.f32 %v4622, %v4893
        %v4895 = vpop.f32.mrb[0].mxu0
        %4896 = vmatprep.mubr.bf16.mxu0 0
        %4897 = vmatmul.mubr.bf16.gmra.mrb[0].mxu0 %v4559
        %v4898 = vpop.f32.mrb[0].mxu0
        %v4899 = vadd.f32 %v4622, %v4898
        %v4900 = vpop.f32.mrb[0].mxu0
        %v4901 = vpop.f32.mrb[0].mxu0
        %v4902 = vadd.f32 %v4622, %v4901
        %v4903 = vpop.f32.mrb[0].mxu0
        %4904 = vmatprep.mubr.bf16.mxu0 0
        %4905 = vmatmul.mubr.bf16.gmra.mrb[0].mxu0 %v4560
        %v4906 = vpop.f32.mrb[0].mxu0
        %v4907 = vadd.f32 %v4622, %v4906
        %v4908 = vpop.f32.mrb[0].mxu0
        %v4909 = vpop.f32.mrb[0].mxu0
        %v4910 = vadd.f32 %v4622, %v4909
        %v4911 = vpop.f32.mrb[0].mxu0
        %4912 = vmatprep.mubr.bf16.mxu0 0
        %4913 = vmatmul.mubr.bf16.gmra.mrb[0].mxu0 %v4561
        %v4914 = vpop.f32.mrb[0].mxu0
        %v4915 = vadd.f32 %v4622, %v4914
        %v4916 = vpop.f32.mrb[0].mxu0
        %v4917 = vpop.f32.mrb[0].mxu0
        %v4918 = vadd.f32 %v4622, %v4917
        %v4919 = vpop.f32.mrb[0].mxu0
        %4920 = vmatprep.mubr.bf16.mxu0 0
        %4921 = vmatmul.mubr.bf16.gmra.mrb[0].mxu0 %v4562
        %v4922 = vpop.f32.mrb[0].mxu0
        %v4923 = vadd.f32 %v4622, %v4922
        %v4924 = vpop.f32.mrb[0].mxu0
        %v4925 = vpop.f32.mrb[0].mxu0
        %v4926 = vadd.f32 %v4622, %v4925
        %v4927 = vpop.f32.mrb[0].mxu0
        %4928 = vmatprep.mubr.bf16.mxu0 0
        %4929 = vmatmul.mubr.bf16.gmra.mrb[0].mxu0 %v4563
        %v4930 = vpop.f32.mrb[0].mxu0
        %v4931 = vadd.f32 %v4622, %v4930
        %v4932 = vpop.f32.mrb[0].mxu0
        %v4933 = vpop.f32.mrb[0].mxu0
        %v4934 = vadd.f32 %v4622, %v4933
        %v4935 = vpop.f32.mrb[0].mxu0
        %4936 = vmatprep.mubr.bf16.mxu0 0
        %4937 = vmatmul.mubr.bf16.gmra.mrb[0].mxu0 %v4564
        %v4938 = vpop.f32.mrb[0].mxu0
        %v4939 = vadd.f32 %v4622, %v4938
        %v4940 = vpop.f32.mrb[0].mxu0
        %v4941 = vpop.f32.mrb[0].mxu0
        %v4942 = vadd.f32 %v4622, %v4941
        %v4943 = vpop.f32.mrb[0].mxu0
        %4944 = vmatprep.mubr.bf16.mxu0 0
        %4945 = vmatmul.mubr.bf16.gmra.mrb[0].mxu0 %v4565
        %v4946 = vpop.f32.mrb[0].mxu0
        %v4947 = vadd.f32 %v4622, %v4946
        %v4948 = vpop.f32.mrb[0].mxu0
        %v4949 = vpop.f32.mrb[0].mxu0
        %v4950 = vadd.f32 %v4622, %v4949
        %v4951 = vpop.f32.mrb[0].mxu0
        %4952 = vmatprep.mubr.bf16.mxu0 0
        %4953 = vmatmul.mubr.bf16.gmra.mrb[0].mxu0 %v4566
        %v4954 = vpop.f32.mrb[0].mxu0
        %v4955 = vadd.f32 %v4622, %v4954
        %v4956 = vpop.f32.mrb[0].mxu0
        %v4957 = vpop.f32.mrb[0].mxu0
        %v4958 = vadd.f32 %v4622, %v4957
        %v4959 = vpop.f32.mrb[0].mxu0
        %4960 = vmatprep.mubr.bf16.mxu0 0
        %4961 = vmatmul.mubr.bf16.gmra.mrb[0].mxu0 %v4567
        %v4962 = vpop.f32.mrb[0].mxu0
        %v4963 = vadd.f32 %v4622, %v4962
        %v4964 = vpop.f32.mrb[0].mxu0
        %v4965 = vpop.f32.mrb[0].mxu0
        %v4966 = vadd.f32 %v4622, %v4965
        %v4967 = vpop.f32.mrb[0].mxu0
        %4968 = vmatprep.mubr.bf16.mxu0 0
        %4969 = vmatmul.mubr.bf16.gmra.mrb[0].mxu0 %v4568
        %v4970 = vpop.f32.mrb[0].mxu0
        %v4971 = vadd.f32 %v4622, %v4970
        %v4972 = vpop.f32.mrb[0].mxu0
        %v4973 = vpop.f32.mrb[0].mxu0
        %v4974 = vadd.f32 %v4622, %v4973
        %v4975 = vpop.f32.mrb[0].mxu0
        %4976 = vmatprep.mubr.bf16.mxu0 0
        %4977 = vmatmul.mubr.bf16.gmra.mrb[0].mxu0 %v4569
        %v4978 = vpop.f32.mrb[0].mxu0
        %v4979 = vadd.f32 %v4622, %v4978
        %v4980 = vpop.f32.mrb[0].mxu0
        %v4981 = vpop.f32.mrb[0].mxu0
        %v4982 = vadd.f32 %v4622, %v4981
        %v4983 = vpop.f32.mrb[0].mxu0
        %4984 = vmatprep.mubr.bf16.mxu0 0
        %4985 = vmatmul.mubr.bf16.gmra.mrb[0].mxu0 %v4570
        %v4986 = vpop.f32.mrb[0].mxu0
        %v4987 = vadd.f32 %v4622, %v4986
        %v4988 = vpop.f32.mrb[0].mxu0
        %v4989 = vpop.f32.mrb[0].mxu0
        %v4990 = vadd.f32 %v4622, %v4989
        %v4991 = vpop.f32.mrb[0].mxu0
        %4992 = vmatprep.mubr.bf16.mxu0 0
        %4993 = vmatmul.mubr.bf16.gmra.mrb[0].mxu0 %v4571
        %v4994 = vpop.f32.mrb[0].mxu0
        %v4995 = vadd.f32 %v4622, %v4994
        %v4996 = vpop.f32.mrb[0].mxu0
        %v4997 = vpop.f32.mrb[0].mxu0
        %v4998 = vadd.f32 %v4622, %v4997
        %v4999 = vpop.f32.mrb[0].mxu0
        %5000 = vmatprep.mubr.bf16.mxu0 0
        %5001 = vmatmul.mubr.bf16.gmra.mrb[0].mxu0 %v4572
        %v5002 = vpop.f32.mrb[0].mxu0
        %v5003 = vadd.f32 %v4622, %v5002
        %v5004 = vpop.f32.mrb[0].mxu0
        %v5005 = vpop.f32.mrb[0].mxu0
        %v5006 = vadd.f32 %v4622, %v5005
        %v5007 = vpop.f32.mrb[0].mxu0
        %5008 = vmatprep.mubr.bf16.mxu0 0
        %5009 = vmatmul.mubr.bf16.gmra.mrb[0].mxu0 %v4573
        %v5010 = vpop.f32.mrb[0].mxu0
        %v5011 = vadd.f32 %v4622, %v5010
        %v5012 = vpop.f32.mrb[0].mxu0
        %v5013 = vpop.f32.mrb[0].mxu0
        %v5014 = vadd.f32 %v4622, %v5013
        %v5015 = vpop.f32.mrb[0].mxu0
        %5016 = vmatprep.mubr.bf16.mxu0 0
        %5017 = vmatmul.mubr.bf16.gmra.mrb[0].mxu0 %v4574
        %v5018 = vpop.f32.mrb[0].mxu0
        %v5019 = vadd.f32 %v4622, %v5018
        %v5020 = vpop.f32.mrb[0].mxu0
        %v5021 = vpop.f32.mrb[0].mxu0
        %v5022 = vadd.f32 %v4622, %v5021
        %v5023 = vpop.f32.mrb[0].mxu0
        %5024 = vmatprep.mubr.bf16.mxu0 0
        %5025 = vmatmul.mubr.bf16.gmra.mrb[0].mxu0 %v4575
        %v5026 = vpop.f32.mrb[0].mxu0
        %v5027 = vadd.f32 %v4622, %v5026
        %v5028 = vpop.f32.mrb[0].mxu0
        %v5029 = vpop.f32.mrb[0].mxu0
        %v5030 = vadd.f32 %v4622, %v5029
        %v5031 = vpop.f32.mrb[0].mxu0
        %5032 = vmatprep.mubr.bf16.mxu0 0
        %5033 = vmatmul.mubr.bf16.gmra.mrb[0].mxu0 %v4576
        %v5034 = vpop.f32.mrb[0].mxu0
        %v5035 = vadd.f32 %v4622, %v5034
        %v5036 = vpop.f32.mrb[0].mxu0
        %v5037 = vpop.f32.mrb[0].mxu0
        %v5038 = vadd.f32 %v4622, %v5037
        %v5039 = vpop.f32.mrb[0].mxu0
        %5040 = vmatprep.mubr.bf16.mxu0 0
        %5041 = vmatmul.mubr.bf16.gmra.mrb[0].mxu0 %v4577
        %v5042 = vpop.f32.mrb[0].mxu0
        %v5043 = vadd.f32 %v4622, %v5042
        %v5044 = vpop.f32.mrb[0].mxu0
        %v5045 = vpop.f32.mrb[0].mxu0
        %v5046 = vadd.f32 %v4622, %v5045
        %v5047 = vpop.f32.mrb[0].mxu0
        %5048 = vmatprep.mubr.bf16.mxu0 0
        %5049 = vmatmul.mubr.bf16.gmra.mrb[0].mxu0 %v4578
        %v5050 = vpop.f32.mrb[0].mxu0
        %v5051 = vadd.f32 %v4622, %v5050
        %v5052 = vpop.f32.mrb[0].mxu0
        %v5053 = vpop.f32.mrb[0].mxu0
        %v5054 = vadd.f32 %v4622, %v5053
        %v5055 = vpop.f32.mrb[0].mxu0
        %5056 = vmatprep.mubr.bf16.mxu0 0
        %5057 = vmatmul.mubr.bf16.gmra.mrb[0].mxu0 %v4579
        %v5058 = vpop.f32.mrb[0].mxu0
        %v5059 = vadd.f32 %v4622, %v5058
        %v5060 = vpop.f32.mrb[0].mxu0
        %v5061 = vpop.f32.mrb[0].mxu0
        %v5062 = vadd.f32 %v4622, %v5061
        %v5063 = vpop.f32.mrb[0].mxu0
        %5064 = vmatprep.mubr.bf16.mxu0 0
        %5065 = vmatmul.mubr.bf16.gmra.mrb[0].mxu0 %v4580
        %v5066 = vpop.f32.mrb[0].mxu0
        %v5067 = vadd.f32 %v4622, %v5066
        %v5068 = vpop.f32.mrb[0].mxu0
        %v5069 = vpop.f32.mrb[0].mxu0
        %v5070 = vadd.f32 %v4622, %v5069
        %v5071 = vpop.f32.mrb[0].mxu0
        %5072 = vmatprep.mubr.bf16.mxu0 0
        %5073 = vmatmul.mubr.bf16.gmra.mrb[0].mxu0 %v4581
        %v5074 = vpop.f32.mrb[0].mxu0
        %v5075 = vadd.f32 %v4622, %v5074
        %v5076 = vpop.f32.mrb[0].mxu0
        %v5077 = vpop.f32.mrb[0].mxu0
        %v5078 = vadd.f32 %v4622, %v5077
        %v5079 = vpop.f32.mrb[0].mxu0
        %5080 = vmatprep.mubr.bf16.mxu0 0
        %5081 = vmatmul.mubr.bf16.gmra.mrb[0].mxu0 %v4582
        %v5082 = vpop.f32.mrb[0].mxu0
        %v5083 = vadd.f32 %v4622, %v5082
        %v5084 = vpop.f32.mrb[0].mxu0
        %v5085 = vpop.f32.mrb[0].mxu0
        %v5086 = vadd.f32 %v4622, %v5085
        %v5087 = vpop.f32.mrb[0].mxu0
        %5088 = vmatprep.mubr.bf16.mxu0 0
        %5089 = vmatmul.mubr.bf16.gmra.mrb[0].mxu0 %v4583
        %v5090 = vpop.f32.mrb[0].mxu0
        %v5091 = vadd.f32 %v4622, %v5090
        %v5092 = vpop.f32.mrb[0].mxu0
        %v5093 = vpop.f32.mrb[0].mxu0
        %v5094 = vadd.f32 %v4622, %v5093
        %v5095 = vpop.f32.mrb[0].mxu0
        %5096 = vmatprep.mubr.bf16.mxu0 0
        %5097 = vmatmul.mubr.bf16.gmra.mrb[0].mxu0 %v4584
        %v5098 = vpop.f32.mrb[0].mxu0
        %v5099 = vadd.f32 %v4622, %v5098
        %v5100 = vpop.f32.mrb[0].mxu0
        %v5101 = vpop.f32.mrb[0].mxu0
        %v5102 = vadd.f32 %v4622, %v5101
        %v5103 = vpop.f32.mrb[0].mxu0
        %5104 = vmatprep.mubr.bf16.mxu0 0
        %5105 = vmatmul.mubr.bf16.gmra.mrb[0].mxu0 %v4585
        %v5106 = vpop.f32.mrb[0].mxu0
        %v5107 = vadd.f32 %v4622, %v5106
        %v5108 = vpop.f32.mrb[0].mxu0
        %v5109 = vpop.f32.mrb[0].mxu0
        %v5110 = vadd.f32 %v4622, %v5109
        %v5111 = vpop.f32.mrb[0].mxu0
        %5112 = vmatprep.mubr.bf16.mxu0 0
        %5113 = vmatmul.mubr.bf16.gmra.mrb[0].mxu0 %v4586
        %v5114 = vpop.f32.mrb[0].mxu0
        %v5115 = vadd.f32 %v4622, %v5114
        %v5116 = vpop.f32.mrb[0].mxu0
        %v5117 = vpop.f32.mrb[0].mxu0
        %v5118 = vadd.f32 %v4622, %v5117
        %v5119 = vpop.f32.mrb[0].mxu0
        %5120 = vmatprep.mubr.bf16.mxu0 0
        %5121 = vmatmul.mubr.bf16.gmra.mrb[0].mxu0 %v4587
        %v5122 = vpop.f32.mrb[0].mxu0
        %v5123 = vadd.f32 %v4622, %v5122
        %v5124 = vpop.f32.mrb[0].mxu0
        %v5125 = vpop.f32.mrb[0].mxu0
        %v5126 = vadd.f32 %v4622, %v5125
        %v5127 = vpop.f32.mrb[0].mxu0
        %5128 = vmatprep.mubr.bf16.mxu0 0
        %5129 = vmatmul.mubr.bf16.gmra.mrb[0].mxu0 %v4588
        %v5130 = vpop.f32.mrb[0].mxu0
        %v5131 = vadd.f32 %v4622, %v5130
        %v5132 = vpop.f32.mrb[0].mxu0
        %v5133 = vpop.f32.mrb[0].mxu0
        %v5134 = vadd.f32 %v4622, %v5133
        %v5135 = vpop.f32.mrb[0].mxu0
        %5136 = vmatprep.mubr.bf16.mxu0 0
        %5137 = vmatmul.mubr.bf16.gmra.mrb[0].mxu0 %v4589
        %v5138 = vpop.f32.mrb[0].mxu0
        %v5139 = vadd.f32 %v4622, %v5138
        %v5140 = vpop.f32.mrb[0].mxu0
        %v5141 = vpop.f32.mrb[0].mxu0
        %v5142 = vadd.f32 %v4622, %v5141
        %v5143 = vpop.f32.mrb[0].mxu0
        %5144 = vmatprep.mubr.bf16.mxu0 0
        %5145 = vmatmul.mubr.bf16.gmra.mrb[0].mxu0 %v4590
        %v5146 = vpop.f32.mrb[0].mxu0
        %v5147 = vadd.f32 %v4622, %v5146
        %v5148 = vpop.f32.mrb[0].mxu0
        %v5149 = vpop.f32.mrb[0].mxu0
        %v5150 = vadd.f32 %v4622, %v5149
        %v5151 = vpop.f32.mrb[0].mxu0
        %5152 = vmatprep.mubr.bf16.mxu0 0
        %5153 = vmatmul.mubr.bf16.gmra.mrb[0].mxu0 %v4591
        %v5154 = vpop.f32.mrb[0].mxu0
        %v5155 = vadd.f32 %v4622, %v5154
        %v5156 = vpop.f32.mrb[0].mxu0
        %v5157 = vpop.f32.mrb[0].mxu0
        %v5158 = vadd.f32 %v4622, %v5157
        %v5159 = vpop.f32.mrb[0].mxu0
        %5160 = vmatprep.mubr.bf16.mxu0 0
        %5161 = vmatmul.mubr.bf16.gmra.mrb[0].mxu0 %v4592
        %v5162 = vpop.f32.mrb[0].mxu0
        %v5163 = vadd.f32 %v4622, %v5162
        %v5164 = vpop.f32.mrb[0].mxu0
        %v5165 = vpop.f32.mrb[0].mxu0
        %v5166 = vadd.f32 %v4622, %v5165
        %v5167 = vpop.f32.mrb[0].mxu0
        %5168 = vmatprep.mubr.bf16.mxu0 0
        %5169 = vmatmul.mubr.bf16.gmra.mrb[0].mxu0 %v4593
        %v5170 = vpop.f32.mrb[0].mxu0
        %v5171 = vadd.f32 %v4622, %v5170
        %v5172 = vpop.f32.mrb[0].mxu0
        %v5173 = vpop.f32.mrb[0].mxu0
        %v5174 = vadd.f32 %v4622, %v5173
        %v5175 = vpop.f32.mrb[0].mxu0
        %5176 = vmatprep.mubr.bf16.mxu0 0
        %5177 = vmatmul.mubr.bf16.gmra.mrb[0].mxu0 %v4594
        %v5178 = vpop.f32.mrb[0].mxu0
        %v5179 = vadd.f32 %v4622, %v5178
        %v5180 = vpop.f32.mrb[0].mxu0
        %v5181 = vpop.f32.mrb[0].mxu0
        %v5182 = vadd.f32 %v4622, %v5181
        %v5183 = vpop.f32.mrb[0].mxu0
        %5184 = vmatprep.mubr.bf16.mxu0 0
        %5185 = vmatmul.mubr.bf16.gmra.mrb[0].mxu0 %v4595
        %v5186 = vpop.f32.mrb[0].mxu0
        %v5187 = vadd.f32 %v4622, %v5186
        %v5188 = vpop.f32.mrb[0].mxu0
        %v5189 = vpop.f32.mrb[0].mxu0
        %v5190 = vadd.f32 %v4622, %v5189
        %v5191 = vpop.f32.mrb[0].mxu0
        %5192 = vmatprep.mubr.bf16.mxu0 0
        %5193 = vmatmul.mubr.bf16.gmra.mrb[0].mxu0 %v4596
        %v5194 = vpop.f32.mrb[0].mxu0
        %v5195 = vadd.f32 %v4622, %v5194
        %v5196 = vpop.f32.mrb[0].mxu0
        %v5197 = vpop.f32.mrb[0].mxu0
        %v5198 = vadd.f32 %v4622, %v5197
        %v5199 = vpop.f32.mrb[0].mxu0
        %5200 = vmatprep.mubr.bf16.mxu0 0
        %5201 = vmatmul.mubr.bf16.gmra.mrb[0].mxu0 %v4597
        %v5202 = vpop.f32.mrb[0].mxu0
        %v5203 = vadd.f32 %v4622, %v5202
        %v5204 = vpop.f32.mrb[0].mxu0
        %v5205 = vpop.f32.mrb[0].mxu0
        %v5206 = vadd.f32 %v4622, %v5205
        %v5207 = vpop.f32.mrb[0].mxu0
        %5208 = vmatprep.mubr.bf16.mxu0 0
        %5209 = vmatmul.mubr.bf16.gmra.mrb[0].mxu0 %v4598
        %v5210 = vpop.f32.mrb[0].mxu0
        %v5211 = vadd.f32 %v4622, %v5210
        %v5212 = vpop.f32.mrb[0].mxu0
        %v5213 = vpop.f32.mrb[0].mxu0
        %v5214 = vadd.f32 %v4622, %v5213
        %v5215 = vpop.f32.mrb[0].mxu0
        %5216 = vdwg.mxu0
        %v5217 = vand.u32 2147483647, %v4707
        %v5218 = vand.u32 2147483647, %v4710
        %v5219 = vand.u32 2147483647, %v4715
        %v5220 = vand.u32 2147483647, %v4718
        %v5221 = vand.u32 2147483647, %v4723
        %v5222 = vand.u32 2147483647, %v4726
        %v5223 = vand.u32 2147483647, %v4731
        %v5224 = vand.u32 2147483647, %v4734
        %v5225 = vand.u32 2147483647, %v4739
        %v5226 = vand.u32 2147483647, %v4742
        %v5227 = vand.u32 2147483647, %v4747
        %v5228 = vand.u32 2147483647, %v4750
        %v5229 = vand.u32 2147483647, %v4755
        %v5230 = vand.u32 2147483647, %v4758
        %v5231 = vand.u32 2147483647, %v4763
        %v5232 = vand.u32 2147483647, %v4766
        %v5233 = vand.u32 2147483647, %v4771
        %v5234 = vand.u32 2147483647, %v4774
        %v5235 = vand.u32 2147483647, %v4779
        %v5236 = vand.u32 2147483647, %v4782
        %v5237 = vand.u32 2147483647, %v4787
        %v5238 = vand.u32 2147483647, %v4790
        %v5239 = vand.u32 2147483647, %v4795
        %v5240 = vand.u32 2147483647, %v4798
        %v5241 = vand.u32 2147483647, %v4803
        %v5242 = vand.u32 2147483647, %v4806
        %v5243 = vand.u32 2147483647, %v4811
        %v5244 = vand.u32 2147483647, %v4814
        %v5245 = vand.u32 2147483647, %v4819
        %v5246 = vand.u32 2147483647, %v4822
        %v5247 = vand.u32 2147483647, %v4827
        %v5248 = vand.u32 2147483647, %v4830
        %v5249 = vand.u32 2147483647, %v4835
        %v5250 = vand.u32 2147483647, %v4838
        %v5251 = vand.u32 2147483647, %v4843
        %v5252 = vand.u32 2147483647, %v4846
        %v5253 = vand.u32 2147483647, %v4851
        %v5254 = vand.u32 2147483647, %v4854
        %v5255 = vand.u32 2147483647, %v4859
        %v5256 = vand.u32 2147483647, %v4862
        %v5257 = vand.u32 2147483647, %v4867
        %v5258 = vand.u32 2147483647, %v4870
        %v5259 = vand.u32 2147483647, %v4875
        %v5260 = vand.u32 2147483647, %v4878
        %v5261 = vand.u32 2147483647, %v4883
        %v5262 = vand.u32 2147483647, %v4886
        %v5263 = vand.u32 2147483647, %v4891
        %v5264 = vand.u32 2147483647, %v4894
        %v5265 = vand.u32 2147483647, %v4899
        %v5266 = vand.u32 2147483647, %v4902
        %v5267 = vand.u32 2147483647, %v4907
        %v5268 = vand.u32 2147483647, %v4910
        %v5269 = vand.u32 2147483647, %v4915
        %v5270 = vand.u32 2147483647, %v4918
        %v5271 = vand.u32 2147483647, %v4923
        %v5272 = vand.u32 2147483647, %v4926
        %v5273 = vand.u32 2147483647, %v4931
        %v5274 = vand.u32 2147483647, %v4934
        %v5275 = vand.u32 2147483647, %v4939
        %v5276 = vand.u32 2147483647, %v4942
        %v5277 = vand.u32 2147483647, %v4947
        %v5278 = vand.u32 2147483647, %v4950
        %v5279 = vand.u32 2147483647, %v4955
        %v5280 = vand.u32 2147483647, %v4958
        %v5281 = vand.u32 2147483647, %v4963
        %v5282 = vand.u32 2147483647, %v4966
        %v5283 = vand.u32 2147483647, %v4971
        %v5284 = vand.u32 2147483647, %v4974
        %v5285 = vand.u32 2147483647, %v4979
        %v5286 = vand.u32 2147483647, %v4982
        %v5287 = vand.u32 2147483647, %v4987
        %v5288 = vand.u32 2147483647, %v4990
        %v5289 = vand.u32 2147483647, %v4995
        %v5290 = vand.u32 2147483647, %v4998
        %v5291 = vand.u32 2147483647, %v5003
        %v5292 = vand.u32 2147483647, %v5006
        %v5293 = vand.u32 2147483647, %v5011
        %v5294 = vand.u32 2147483647, %v5014
        %v5295 = vand.u32 2147483647, %v5019
        %v5296 = vand.u32 2147483647, %v5022
        %v5297 = vand.u32 2147483647, %v5027
        %v5298 = vand.u32 2147483647, %v5030
        %v5299 = vand.u32 2147483647, %v5035
        %v5300 = vand.u32 2147483647, %v5038
        %v5301 = vand.u32 2147483647, %v5043
        %v5302 = vand.u32 2147483647, %v5046
        %v5303 = vand.u32 2147483647, %v5051
        %v5304 = vand.u32 2147483647, %v5054
        %v5305 = vand.u32 2147483647, %v5059
        %v5306 = vand.u32 2147483647, %v5062
        %v5307 = vand.u32 2147483647, %v5067
        %v5308 = vand.u32 2147483647, %v5070
        %v5309 = vand.u32 2147483647, %v5075
        %v5310 = vand.u32 2147483647, %v5078
        %v5311 = vand.u32 2147483647, %v5083
        %v5312 = vand.u32 2147483647, %v5086
        %v5313 = vand.u32 2147483647, %v5091
        %v5314 = vand.u32 2147483647, %v5094
        %v5315 = vand.u32 2147483647, %v5099
        %v5316 = vand.u32 2147483647, %v5102
        %v5317 = vand.u32 2147483647, %v5107
        %v5318 = vand.u32 2147483647, %v5110
        %v5319 = vand.u32 2147483647, %v5115
        %v5320 = vand.u32 2147483647, %v5118
        %v5321 = vand.u32 2147483647, %v5123
        %v5322 = vand.u32 2147483647, %v5126
        %v5323 = vand.u32 2147483647, %v5131
        %v5324 = vand.u32 2147483647, %v5134
        %v5325 = vand.u32 2147483647, %v5139
        %v5326 = vand.u32 2147483647, %v5142
        %v5327 = vand.u32 2147483647, %v5147
        %v5328 = vand.u32 2147483647, %v5150
        %v5329 = vand.u32 2147483647, %v5155
        %v5330 = vand.u32 2147483647, %v5158
        %v5331 = vand.u32 2147483647, %v5163
        %v5332 = vand.u32 2147483647, %v5166
        %v5333 = vand.u32 2147483647, %v5171
        %v5334 = vand.u32 2147483647, %v5174
        %v5335 = vand.u32 2147483647, %v5179
        %v5336 = vand.u32 2147483647, %v5182
        %v5337 = vand.u32 2147483647, %v5187
        %v5338 = vand.u32 2147483647, %v5190
        %v5339 = vand.u32 2147483647, %v5195
        %v5340 = vand.u32 2147483647, %v5198
        %v5341 = vand.u32 2147483647, %v5203
        %v5342 = vand.u32 2147483647, %v5206
        %v5343 = vand.u32 2147483647, %v5211
        %v5344 = vand.u32 2147483647, %v5214
        %v5345 = vadd.f32 %v5217, 1.0
        %v5346 = vadd.f32 %v5218, 1.0
        %v5347 = vadd.f32 %v5219, 1.0
        %v5348 = vadd.f32 %v5220, 1.0
        %v5349 = vadd.f32 %v5221, 1.0
        %v5350 = vadd.f32 %v5222, 1.0
        %v5351 = vadd.f32 %v5223, 1.0
        %v5352 = vadd.f32 %v5224, 1.0
        %v5353 = vadd.f32 %v5225, 1.0
        %v5354 = vadd.f32 %v5226, 1.0
        %v5355 = vadd.f32 %v5227, 1.0
        %v5356 = vadd.f32 %v5228, 1.0
        %v5357 = vadd.f32 %v5229, 1.0
        %v5358 = vadd.f32 %v5230, 1.0
        %v5359 = vadd.f32 %v5231, 1.0
        %v5360 = vadd.f32 %v5232, 1.0
        %v5361 = vadd.f32 %v5233, 1.0
        %v5362 = vadd.f32 %v5234, 1.0
        %v5363 = vadd.f32 %v5235, 1.0
        %v5364 = vadd.f32 %v5236, 1.0
        %v5365 = vadd.f32 %v5237, 1.0
        %v5366 = vadd.f32 %v5238, 1.0
        %v5367 = vadd.f32 %v5239, 1.0
        %v5368 = vadd.f32 %v5240, 1.0
        %v5369 = vadd.f32 %v5241, 1.0
        %v5370 = vadd.f32 %v5242, 1.0
        %v5371 = vadd.f32 %v5243, 1.0
        %v5372 = vadd.f32 %v5244, 1.0
        %v5373 = vadd.f32 %v5245, 1.0
        %v5374 = vadd.f32 %v5246, 1.0
        %v5375 = vadd.f32 %v5247, 1.0
        %v5376 = vadd.f32 %v5248, 1.0
        %v5377 = vadd.f32 %v5249, 1.0
        %v5378 = vadd.f32 %v5250, 1.0
        %v5379 = vadd.f32 %v5251, 1.0
        %v5380 = vadd.f32 %v5252, 1.0
        %v5381 = vadd.f32 %v5253, 1.0
        %v5382 = vadd.f32 %v5254, 1.0
        %v5383 = vadd.f32 %v5255, 1.0
        %v5384 = vadd.f32 %v5256, 1.0
        %v5385 = vadd.f32 %v5257, 1.0
        %v5386 = vadd.f32 %v5258, 1.0
        %v5387 = vadd.f32 %v5259, 1.0
        %v5388 = vadd.f32 %v5260, 1.0
        %v5389 = vadd.f32 %v5261, 1.0
        %v5390 = vadd.f32 %v5262, 1.0
        %v5391 = vadd.f32 %v5263, 1.0
        %v5392 = vadd.f32 %v5264, 1.0
        %v5393 = vadd.f32 %v5265, 1.0
        %v5394 = vadd.f32 %v5266, 1.0
        %v5395 = vadd.f32 %v5267, 1.0
        %v5396 = vadd.f32 %v5268, 1.0
        %v5397 = vadd.f32 %v5269, 1.0
        %v5398 = vadd.f32 %v5270, 1.0
        %v5399 = vadd.f32 %v5271, 1.0
        %v5400 = vadd.f32 %v5272, 1.0
        %v5401 = vadd.f32 %v5273, 1.0
        %v5402 = vadd.f32 %v5274, 1.0
        %v5403 = vadd.f32 %v5275, 1.0
        %v5404 = vadd.f32 %v5276, 1.0
        %v5405 = vadd.f32 %v5277, 1.0
        %v5406 = vadd.f32 %v5278, 1.0
        %v5407 = vadd.f32 %v5279, 1.0
        %v5408 = vadd.f32 %v5280, 1.0
        %v5409 = vadd.f32 %v5281, 1.0
        %v5410 = vadd.f32 %v5282, 1.0
        %v5411 = vadd.f32 %v5283, 1.0
        %v5412 = vadd.f32 %v5284, 1.0
        %v5413 = vadd.f32 %v5285, 1.0
        %v5414 = vadd.f32 %v5286, 1.0
        %v5415 = vadd.f32 %v5287, 1.0
        %v5416 = vadd.f32 %v5288, 1.0
        %v5417 = vadd.f32 %v5289, 1.0
        %v5418 = vadd.f32 %v5290, 1.0
        %v5419 = vadd.f32 %v5291, 1.0
        %v5420 = vadd.f32 %v5292, 1.0
        %v5421 = vadd.f32 %v5293, 1.0
        %v5422 = vadd.f32 %v5294, 1.0
        %v5423 = vadd.f32 %v5295, 1.0
        %v5424 = vadd.f32 %v5296, 1.0
        %v5425 = vadd.f32 %v5297, 1.0
        %v5426 = vadd.f32 %v5298, 1.0
        %v5427 = vadd.f32 %v5299, 1.0
        %v5428 = vadd.f32 %v5300, 1.0
        %v5429 = vadd.f32 %v5301, 1.0
        %v5430 = vadd.f32 %v5302, 1.0
        %v5431 = vadd.f32 %v5303, 1.0
        %v5432 = vadd.f32 %v5304, 1.0
        %v5433 = vadd.f32 %v5305, 1.0
        %v5434 = vadd.f32 %v5306, 1.0
        %v5435 = vadd.f32 %v5307, 1.0
        %v5436 = vadd.f32 %v5308, 1.0
        %v5437 = vadd.f32 %v5309, 1.0
        %v5438 = vadd.f32 %v5310, 1.0
        %v5439 = vadd.f32 %v5311, 1.0
        %v5440 = vadd.f32 %v5312, 1.0
        %v5441 = vadd.f32 %v5313, 1.0
        %v5442 = vadd.f32 %v5314, 1.0
        %v5443 = vadd.f32 %v5315, 1.0
        %v5444 = vadd.f32 %v5316, 1.0
        %v5445 = vadd.f32 %v5317, 1.0
        %v5446 = vadd.f32 %v5318, 1.0
        %v5447 = vadd.f32 %v5319, 1.0
        %v5448 = vadd.f32 %v5320, 1.0
        %v5449 = vadd.f32 %v5321, 1.0
        %v5450 = vadd.f32 %v5322, 1.0
        %v5451 = vadd.f32 %v5323, 1.0
        %v5452 = vadd.f32 %v5324, 1.0
        %v5453 = vadd.f32 %v5325, 1.0
        %v5454 = vadd.f32 %v5326, 1.0
        %v5455 = vadd.f32 %v5327, 1.0
        %v5456 = vadd.f32 %v5328, 1.0
        %v5457 = vadd.f32 %v5329, 1.0
        %v5458 = vadd.f32 %v5330, 1.0
        %v5459 = vadd.f32 %v5331, 1.0
        %v5460 = vadd.f32 %v5332, 1.0
        %v5461 = vadd.f32 %v5333, 1.0
        %v5462 = vadd.f32 %v5334, 1.0
        %v5463 = vadd.f32 %v5335, 1.0
        %v5464 = vadd.f32 %v5336, 1.0
        %v5465 = vadd.f32 %v5337, 1.0
        %v5466 = vadd.f32 %v5338, 1.0
        %v5467 = vadd.f32 %v5339, 1.0
        %v5468 = vadd.f32 %v5340, 1.0
        %v5469 = vadd.f32 %v5341, 1.0
        %v5470 = vadd.f32 %v5342, 1.0
        %v5471 = vadd.f32 %v5343, 1.0
        %v5472 = vadd.f32 %v5344, 1.0
        %v5473 = vmul.f32 %v5345, %v4707
        %v5474 = vmul.f32 %v5346, %v4710
        %v5475 = vmul.f32 %v5347, %v4715
        %v5476 = vmul.f32 %v5348, %v4718
        %v5477 = vmul.f32 %v5349, %v4723
        %v5478 = vmul.f32 %v5350, %v4726
        %v5479 = vmul.f32 %v5351, %v4731
        %v5480 = vmul.f32 %v5352, %v4734
        %v5481 = vmul.f32 %v5353, %v4739
        %v5482 = vmul.f32 %v5354, %v4742
        %v5483 = vmul.f32 %v5355, %v4747
        %v5484 = vmul.f32 %v5356, %v4750
        %v5485 = vmul.f32 %v5357, %v4755
        %v5486 = vmul.f32 %v5358, %v4758
        %v5487 = vmul.f32 %v5359, %v4763
        %v5488 = vmul.f32 %v5360, %v4766
        %v5489 = vmul.f32 %v5361, %v4771
        %v5490 = vmul.f32 %v5362, %v4774
        %v5491 = vmul.f32 %v5363, %v4779
        %v5492 = vmul.f32 %v5364, %v4782
        %v5493 = vmul.f32 %v5365, %v4787
        %v5494 = vmul.f32 %v5366, %v4790
        %v5495 = vmul.f32 %v5367, %v4795
        %v5496 = vmul.f32 %v5368, %v4798
        %v5497 = vmul.f32 %v5369, %v4803
        %v5498 = vmul.f32 %v5370, %v4806
        %v5499 = vmul.f32 %v5371, %v4811
        %v5500 = vmul.f32 %v5372, %v4814
        %v5501 = vmul.f32 %v5373, %v4819
        %v5502 = vmul.f32 %v5374, %v4822
        %v5503 = vmul.f32 %v5375, %v4827
        %v5504 = vmul.f32 %v5376, %v4830
        %v5505 = vmul.f32 %v5377, %v4835
        %v5506 = vmul.f32 %v5378, %v4838
        %v5507 = vmul.f32 %v5379, %v4843
        %v5508 = vmul.f32 %v5380, %v4846
        %v5509 = vmul.f32 %v5381, %v4851
        %v5510 = vmul.f32 %v5382, %v4854
        %v5511 = vmul.f32 %v5383, %v4859
        %v5512 = vmul.f32 %v5384, %v4862
        %v5513 = vmul.f32 %v5385, %v4867
        %v5514 = vmul.f32 %v5386, %v4870
        %v5515 = vmul.f32 %v5387, %v4875
        %v5516 = vmul.f32 %v5388, %v4878
        %v5517 = vmul.f32 %v5389, %v4883
        %v5518 = vmul.f32 %v5390, %v4886
        %v5519 = vmul.f32 %v5391, %v4891
        %v5520 = vmul.f32 %v5392, %v4894
        %v5521 = vmul.f32 %v5393, %v4899
        %v5522 = vmul.f32 %v5394, %v4902
        %v5523 = vmul.f32 %v5395, %v4907
        %v5524 = vmul.f32 %v5396, %v4910
        %v5525 = vmul.f32 %v5397, %v4915
        %v5526 = vmul.f32 %v5398, %v4918
        %v5527 = vmul.f32 %v5399, %v4923
        %v5528 = vmul.f32 %v5400, %v4926
        %v5529 = vmul.f32 %v5401, %v4931
        %v5530 = vmul.f32 %v5402, %v4934
        %v5531 = vmul.f32 %v5403, %v4939
        %v5532 = vmul.f32 %v5404, %v4942
        %v5533 = vmul.f32 %v5405, %v4947
        %v5534 = vmul.f32 %v5406, %v4950
        %v5535 = vmul.f32 %v5407, %v4955
        %v5536 = vmul.f32 %v5408, %v4958
        %v5537 = vmul.f32 %v5409, %v4963
        %v5538 = vmul.f32 %v5410, %v4966
        %v5539 = vmul.f32 %v5411, %v4971
        %v5540 = vmul.f32 %v5412, %v4974
        %v5541 = vmul.f32 %v5413, %v4979
        %v5542 = vmul.f32 %v5414, %v4982
        %v5543 = vmul.f32 %v5415, %v4987
        %v5544 = vmul.f32 %v5416, %v4990
        %v5545 = vmul.f32 %v5417, %v4995
        %v5546 = vmul.f32 %v5418, %v4998
        %v5547 = vmul.f32 %v5419, %v5003
        %v5548 = vmul.f32 %v5420, %v5006
        %v5549 = vmul.f32 %v5421, %v5011
        %v5550 = vmul.f32 %v5422, %v5014
        %v5551 = vmul.f32 %v5423, %v5019
        %v5552 = vmul.f32 %v5424, %v5022
        %v5553 = vmul.f32 %v5425, %v5027
        %v5554 = vmul.f32 %v5426, %v5030
        %v5555 = vmul.f32 %v5427, %v5035
        %v5556 = vmul.f32 %v5428, %v5038
        %v5557 = vmul.f32 %v5429, %v5043
        %v5558 = vmul.f32 %v5430, %v5046
        %v5559 = vmul.f32 %v5431, %v5051
        %v5560 = vmul.f32 %v5432, %v5054
        %v5561 = vmul.f32 %v5433, %v5059
        %v5562 = vmul.f32 %v5434, %v5062
        %v5563 = vmul.f32 %v5435, %v5067
        %v5564 = vmul.f32 %v5436, %v5070
        %v5565 = vmul.f32 %v5437, %v5075
        %v5566 = vmul.f32 %v5438, %v5078
        %v5567 = vmul.f32 %v5439, %v5083
        %v5568 = vmul.f32 %v5440, %v5086
        %v5569 = vmul.f32 %v5441, %v5091
        %v5570 = vmul.f32 %v5442, %v5094
        %v5571 = vmul.f32 %v5443, %v5099
        %v5572 = vmul.f32 %v5444, %v5102
        %v5573 = vmul.f32 %v5445, %v5107
        %v5574 = vmul.f32 %v5446, %v5110
        %v5575 = vmul.f32 %v5447, %v5115
        %v5576 = vmul.f32 %v5448, %v5118
        %v5577 = vmul.f32 %v5449, %v5123
        %v5578 = vmul.f32 %v5450, %v5126
        %v5579 = vmul.f32 %v5451, %v5131
        %v5580 = vmul.f32 %v5452, %v5134
        %v5581 = vmul.f32 %v5453, %v5139
        %v5582 = vmul.f32 %v5454, %v5142
        %v5583 = vmul.f32 %v5455, %v5147
        %v5584 = vmul.f32 %v5456, %v5150
        %v5585 = vmul.f32 %v5457, %v5155
        %v5586 = vmul.f32 %v5458, %v5158
        %v5587 = vmul.f32 %v5459, %v5163
        %v5588 = vmul.f32 %v5460, %v5166
        %v5589 = vmul.f32 %v5461, %v5171
        %v5590 = vmul.f32 %v5462, %v5174
        %v5591 = vmul.f32 %v5463, %v5179
        %v5592 = vmul.f32 %v5464, %v5182
        %v5593 = vmul.f32 %v5465, %v5187
        %v5594 = vmul.f32 %v5466, %v5190
        %v5595 = vmul.f32 %v5467, %v5195
        %v5596 = vmul.f32 %v5468, %v5198
        %v5597 = vmul.f32 %v5469, %v5203
        %v5598 = vmul.f32 %v5470, %v5206
        %v5599 = vmul.f32 %v5471, %v5211
        %v5600 = vmul.f32 %v5472, %v5214
        %v5601 = vmul.f32 %v5473, %v5473
        %v5602 = vmul.f32 %v5474, %v5474
        %v5603 = vmul.f32 %v5475, %v5475
        %v5604 = vmul.f32 %v5476, %v5476
        %v5605 = vmul.f32 %v5477, %v5477
        %v5606 = vmul.f32 %v5478, %v5478
        %v5607 = vmul.f32 %v5479, %v5479
        %v5608 = vmul.f32 %v5480, %v5480
        %v5609 = vmul.f32 %v5481, %v5481
        %v5610 = vmul.f32 %v5482, %v5482
        %v5611 = vmul.f32 %v5483, %v5483
        %v5612 = vmul.f32 %v5484, %v5484
        %v5613 = vmul.f32 %v5485, %v5485
        %v5614 = vmul.f32 %v5486, %v5486
        %v5615 = vmul.f32 %v5487, %v5487
        %v5616 = vmul.f32 %v5488, %v5488
        %v5617 = vmul.f32 %v5489, %v5489
        %v5618 = vmul.f32 %v5490, %v5490
        %v5619 = vmul.f32 %v5491, %v5491
        %v5620 = vmul.f32 %v5492, %v5492
        %v5621 = vmul.f32 %v5493, %v5493
        %v5622 = vmul.f32 %v5494, %v5494
        %v5623 = vmul.f32 %v5495, %v5495
        %v5624 = vmul.f32 %v5496, %v5496
        %v5625 = vmul.f32 %v5497, %v5497
        %v5626 = vmul.f32 %v5498, %v5498
        %v5627 = vmul.f32 %v5499, %v5499
        %v5628 = vmul.f32 %v5500, %v5500
        %v5629 = vmul.f32 %v5501, %v5501
        %v5630 = vmul.f32 %v5502, %v5502
        %v5631 = vmul.f32 %v5503, %v5503
        %v5632 = vmul.f32 %v5504, %v5504
        %v5633 = vmul.f32 %v5505, %v5505
        %v5634 = vmul.f32 %v5506, %v5506
        %v5635 = vmul.f32 %v5507, %v5507
        %v5636 = vmul.f32 %v5508, %v5508
        %v5637 = vmul.f32 %v5509, %v5509
        %v5638 = vmul.f32 %v5510, %v5510
        %v5639 = vmul.f32 %v5511, %v5511
        %v5640 = vmul.f32 %v5512, %v5512
        %v5641 = vmul.f32 %v5513, %v5513
        %v5642 = vmul.f32 %v5514, %v5514
        %v5643 = vmul.f32 %v5515, %v5515
        %v5644 = vmul.f32 %v5516, %v5516
        %v5645 = vmul.f32 %v5517, %v5517
        %v5646 = vmul.f32 %v5518, %v5518
        %v5647 = vmul.f32 %v5519, %v5519
        %v5648 = vmul.f32 %v5520, %v5520
        %v5649 = vmul.f32 %v5521, %v5521
        %v5650 = vmul.f32 %v5522, %v5522
        %v5651 = vmul.f32 %v5523, %v5523
        %v5652 = vmul.f32 %v5524, %v5524
        %v5653 = vmul.f32 %v5525, %v5525
        %v5654 = vmul.f32 %v5526, %v5526
        %v5655 = vmul.f32 %v5527, %v5527
        %v5656 = vmul.f32 %v5528, %v5528
        %v5657 = vmul.f32 %v5529, %v5529
        %v5658 = vmul.f32 %v5530, %v5530
        %v5659 = vmul.f32 %v5531, %v5531
        %v5660 = vmul.f32 %v5532, %v5532
        %v5661 = vmul.f32 %v5533, %v5533
        %v5662 = vmul.f32 %v5534, %v5534
        %v5663 = vmul.f32 %v5535, %v5535
        %v5664 = vmul.f32 %v5536, %v5536
        %v5665 = vmul.f32 %v5537, %v5537
        %v5666 = vmul.f32 %v5538, %v5538
        %v5667 = vmul.f32 %v5539, %v5539
        %v5668 = vmul.f32 %v5540, %v5540
        %v5669 = vmul.f32 %v5541, %v5541
        %v5670 = vmul.f32 %v5542, %v5542
        %v5671 = vmul.f32 %v5543, %v5543
        %v5672 = vmul.f32 %v5544, %v5544
        %v5673 = vmul.f32 %v5545, %v5545
        %v5674 = vmul.f32 %v5546, %v5546
        %v5675 = vmul.f32 %v5547, %v5547
        %v5676 = vmul.f32 %v5548, %v5548
        %v5677 = vmul.f32 %v5549, %v5549
        %v5678 = vmul.f32 %v5550, %v5550
        %v5679 = vmul.f32 %v5551, %v5551
        %v5680 = vmul.f32 %v5552, %v5552
        %v5681 = vmul.f32 %v5553, %v5553
        %v5682 = vmul.f32 %v5554, %v5554
        %v5683 = vmul.f32 %v5555, %v5555
        %v5684 = vmul.f32 %v5556, %v5556
        %v5685 = vmul.f32 %v5557, %v5557
        %v5686 = vmul.f32 %v5558, %v5558
        %v5687 = vmul.f32 %v5559, %v5559
        %v5688 = vmul.f32 %v5560, %v5560
        %v5689 = vmul.f32 %v5561, %v5561
        %v5690 = vmul.f32 %v5562, %v5562
        %v5691 = vmul.f32 %v5563, %v5563
        %v5692 = vmul.f32 %v5564, %v5564
        %v5693 = vmul.f32 %v5565, %v5565
        %v5694 = vmul.f32 %v5566, %v5566
        %v5695 = vmul.f32 %v5567, %v5567
        %v5696 = vmul.f32 %v5568, %v5568
        %v5697 = vmul.f32 %v5569, %v5569
        %v5698 = vmul.f32 %v5570, %v5570
        %v5699 = vmul.f32 %v5571, %v5571
        %v5700 = vmul.f32 %v5572, %v5572
        %v5701 = vmul.f32 %v5573, %v5573
        %v5702 = vmul.f32 %v5574, %v5574
        %v5703 = vmul.f32 %v5575, %v5575
        %v5704 = vmul.f32 %v5576, %v5576
        %v5705 = vmul.f32 %v5577, %v5577
        %v5706 = vmul.f32 %v5578, %v5578
        %v5707 = vmul.f32 %v5579, %v5579
        %v5708 = vmul.f32 %v5580, %v5580
        %v5709 = vmul.f32 %v5581, %v5581
        %v5710 = vmul.f32 %v5582, %v5582
        %v5711 = vmul.f32 %v5583, %v5583
        %v5712 = vmul.f32 %v5584, %v5584
        %v5713 = vmul.f32 %v5585, %v5585
        %v5714 = vmul.f32 %v5586, %v5586
        %v5715 = vmul.f32 %v5587, %v5587
        %v5716 = vmul.f32 %v5588, %v5588
        %v5717 = vmul.f32 %v5589, %v5589
        %v5718 = vmul.f32 %v5590, %v5590
        %v5719 = vmul.f32 %v5591, %v5591
        %v5720 = vmul.f32 %v5592, %v5592
        %v5721 = vmul.f32 %v5593, %v5593
        %v5722 = vmul.f32 %v5594, %v5594
        %v5723 = vmul.f32 %v5595, %v5595
        %v5724 = vmul.f32 %v5596, %v5596
        %v5725 = vmul.f32 %v5597, %v5597
        %v5726 = vmul.f32 %v5598, %v5598
        %v5727 = vmul.f32 %v5599, %v5599
        %v5728 = vmul.f32 %v5600, %v5600
        %v5729 = vmul.f32 %v5601, -2812.5
        %v5730 = vmul.f32 %v5602, -2812.5
        %v5731 = vmul.f32 %v5603, -2812.5
        %v5732 = vmul.f32 %v5604, -2812.5
        %v5733 = vmul.f32 %v5605, -2812.5
        %v5734 = vmul.f32 %v5606, -2812.5
        %v5735 = vmul.f32 %v5607, -2812.5
        %v5736 = vmul.f32 %v5608, -2812.5
        %v5737 = vmul.f32 %v5609, -2812.5
        %v5738 = vmul.f32 %v5610, -2812.5
        %v5739 = vmul.f32 %v5611, -2812.5
        %v5740 = vmul.f32 %v5612, -2812.5
        %v5741 = vmul.f32 %v5613, -2812.5
        %v5742 = vmul.f32 %v5614, -2812.5
        %v5743 = vmul.f32 %v5615, -2812.5
        %v5744 = vmul.f32 %v5616, -2812.5
        %v5745 = vmul.f32 %v5617, -2812.5
        %v5746 = vmul.f32 %v5618, -2812.5
        %v5747 = vmul.f32 %v5619, -2812.5
        %v5748 = vmul.f32 %v5620, -2812.5
        %v5749 = vmul.f32 %v5621, -2812.5
        %v5750 = vmul.f32 %v5622, -2812.5
        %v5751 = vmul.f32 %v5623, -2812.5
        %v5752 = vmul.f32 %v5624, -2812.5
        %v5753 = vmul.f32 %v5625, -2812.5
        %v5754 = vmul.f32 %v5626, -2812.5
        %v5755 = vmul.f32 %v5627, -2812.5
        %v5756 = vmul.f32 %v5628, -2812.5
        %v5757 = vmul.f32 %v5629, -2812.5
        %v5758 = vmul.f32 %v5630, -2812.5
        %v5759 = vmul.f32 %v5631, -2812.5
        %v5760 = vmul.f32 %v5632, -2812.5
        %v5761 = vmul.f32 %v5633, -2812.5
        %v5762 = vmul.f32 %v5634, -2812.5
        %v5763 = vmul.f32 %v5635, -2812.5
        %v5764 = vmul.f32 %v5636, -2812.5
        %v5765 = vmul.f32 %v5637, -2812.5
        %v5766 = vmul.f32 %v5638, -2812.5
        %v5767 = vmul.f32 %v5639, -2812.5
        %v5768 = vmul.f32 %v5640, -2812.5
        %v5769 = vmul.f32 %v5641, -2812.5
        %v5770 = vmul.f32 %v5642, -2812.5
        %v5771 = vmul.f32 %v5643, -2812.5
        %v5772 = vmul.f32 %v5644, -2812.5
        %v5773 = vmul.f32 %v5645, -2812.5
        %v5774 = vmul.f32 %v5646, -2812.5
        %v5775 = vmul.f32 %v5647, -2812.5
        %v5776 = vmul.f32 %v5648, -2812.5
        %v5777 = vmul.f32 %v5649, -2812.5
        %v5778 = vmul.f32 %v5650, -2812.5
        %v5779 = vmul.f32 %v5651, -2812.5
        %v5780 = vmul.f32 %v5652, -2812.5
        %v5781 = vmul.f32 %v5653, -2812.5
        %v5782 = vmul.f32 %v5654, -2812.5
        %v5783 = vmul.f32 %v5655, -2812.5
        %v5784 = vmul.f32 %v5656, -2812.5
        %v5785 = vmul.f32 %v5657, -2812.5
        %v5786 = vmul.f32 %v5658, -2812.5
        %v5787 = vmul.f32 %v5659, -2812.5
        %v5788 = vmul.f32 %v5660, -2812.5
        %v5789 = vmul.f32 %v5661, -2812.5
        %v5790 = vmul.f32 %v5662, -2812.5
        %v5791 = vmul.f32 %v5663, -2812.5
        %v5792 = vmul.f32 %v5664, -2812.5
        %v5793 = vmul.f32 %v5665, -2812.5
        %v5794 = vmul.f32 %v5666, -2812.5
        %v5795 = vmul.f32 %v5667, -2812.5
        %v5796 = vmul.f32 %v5668, -2812.5
        %v5797 = vmul.f32 %v5669, -2812.5
        %v5798 = vmul.f32 %v5670, -2812.5
        %v5799 = vmul.f32 %v5671, -2812.5
        %v5800 = vmul.f32 %v5672, -2812.5
        %v5801 = vmul.f32 %v5673, -2812.5
        %v5802 = vmul.f32 %v5674, -2812.5
        %v5803 = vmul.f32 %v5675, -2812.5
        %v5804 = vmul.f32 %v5676, -2812.5
        %v5805 = vmul.f32 %v5677, -2812.5
        %v5806 = vmul.f32 %v5678, -2812.5
        %v5807 = vmul.f32 %v5679, -2812.5
        %v5808 = vmul.f32 %v5680, -2812.5
        %v5809 = vmul.f32 %v5681, -2812.5
        %v5810 = vmul.f32 %v5682, -2812.5
        %v5811 = vmul.f32 %v5683, -2812.5
        %v5812 = vmul.f32 %v5684, -2812.5
        %v5813 = vmul.f32 %v5685, -2812.5
        %v5814 = vmul.f32 %v5686, -2812.5
        %v5815 = vmul.f32 %v5687, -2812.5
        %v5816 = vmul.f32 %v5688, -2812.5
        %v5817 = vmul.f32 %v5689, -2812.5
        %v5818 = vmul.f32 %v5690, -2812.5
        %v5819 = vmul.f32 %v5691, -2812.5
        %v5820 = vmul.f32 %v5692, -2812.5
        %v5821 = vmul.f32 %v5693, -2812.5
        %v5822 = vmul.f32 %v5694, -2812.5
        %v5823 = vmul.f32 %v5695, -2812.5
        %v5824 = vmul.f32 %v5696, -2812.5
        %v5825 = vmul.f32 %v5697, -2812.5
        %v5826 = vmul.f32 %v5698, -2812.5
        %v5827 = vmul.f32 %v5699, -2812.5
        %v5828 = vmul.f32 %v5700, -2812.5
        %v5829 = vmul.f32 %v5701, -2812.5
        %v5830 = vmul.f32 %v5702, -2812.5
        %v5831 = vmul.f32 %v5703, -2812.5
        %v5832 = vmul.f32 %v5704, -2812.5
        %v5833 = vmul.f32 %v5705, -2812.5
        %v5834 = vmul.f32 %v5706, -2812.5
        %v5835 = vmul.f32 %v5707, -2812.5
        %v5836 = vmul.f32 %v5708, -2812.5
        %v5837 = vmul.f32 %v5709, -2812.5
        %v5838 = vmul.f32 %v5710, -2812.5
        %v5839 = vmul.f32 %v5711, -2812.5
        %v5840 = vmul.f32 %v5712, -2812.5
        %v5841 = vmul.f32 %v5713, -2812.5
        %v5842 = vmul.f32 %v5714, -2812.5
        %v5843 = vmul.f32 %v5715, -2812.5
        %v5844 = vmul.f32 %v5716, -2812.5
        %v5845 = vmul.f32 %v5717, -2812.5
        %v5846 = vmul.f32 %v5718, -2812.5
        %v5847 = vmul.f32 %v5719, -2812.5
        %v5848 = vmul.f32 %v5720, -2812.5
        %v5849 = vmul.f32 %v5721, -2812.5
        %v5850 = vmul.f32 %v5722, -2812.5
        %v5851 = vmul.f32 %v5723, -2812.5
        %v5852 = vmul.f32 %v5724, -2812.5
        %v5853 = vmul.f32 %v5725, -2812.5
        %v5854 = vmul.f32 %v5726, -2812.5
        %v5855 = vmul.f32 %v5727, -2812.5
        %v5856 = vmul.f32 %v5728, -2812.5
        %v5857 = vmul.f32 %v5729, 1.442695
        %v5858 = vpow.pop %v5857
        %v5859 = vmul.f32 %v5730, 1.442695
        %v5860 = vpow.pop %v5859
        %v5861 = vmul.f32 %v5731, 1.442695
        %v5862 = vpow.pop %v5861
        %v5863 = vmul.f32 %v5732, 1.442695
        %v5864 = vpow.pop %v5863
        %v5865 = vmul.f32 %v5733, 1.442695
        %v5866 = vpow.pop %v5865
        %v5867 = vmul.f32 %v5734, 1.442695
        %v5868 = vpow.pop %v5867
        %v5869 = vmul.f32 %v5735, 1.442695
        %v5870 = vpow.pop %v5869
        %v5871 = vmul.f32 %v5736, 1.442695
        %v5872 = vpow.pop %v5871
        %v5873 = vmul.f32 %v5737, 1.442695
        %v5874 = vpow.pop %v5873
        %v5875 = vmul.f32 %v5738, 1.442695
        %v5876 = vpow.pop %v5875
        %v5877 = vmul.f32 %v5739, 1.442695
        %v5878 = vpow.pop %v5877
        %v5879 = vmul.f32 %v5740, 1.442695
        %v5880 = vpow.pop %v5879
        %v5881 = vmul.f32 %v5741, 1.442695
        %v5882 = vpow.pop %v5881
        %v5883 = vmul.f32 %v5742, 1.442695
        %v5884 = vpow.pop %v5883
        %v5885 = vmul.f32 %v5743, 1.442695
        %v5886 = vpow.pop %v5885
        %v5887 = vmul.f32 %v5744, 1.442695
        %v5888 = vpow.pop %v5887
        %v5889 = vmul.f32 %v5745, 1.442695
        %v5890 = vpow.pop %v5889
        %v5891 = vmul.f32 %v5746, 1.442695
        %v5892 = vpow.pop %v5891
        %v5893 = vmul.f32 %v5747, 1.442695
        %v5894 = vpow.pop %v5893
        %v5895 = vmul.f32 %v5748, 1.442695
        %v5896 = vpow.pop %v5895
        %v5897 = vmul.f32 %v5749, 1.442695
        %v5898 = vpow.pop %v5897
        %v5899 = vmul.f32 %v5750, 1.442695
        %v5900 = vpow.pop %v5899
        %v5901 = vmul.f32 %v5751, 1.442695
        %v5902 = vpow.pop %v5901
        %v5903 = vmul.f32 %v5752, 1.442695
        %v5904 = vpow.pop %v5903
        %v5905 = vmul.f32 %v5753, 1.442695
        %v5906 = vpow.pop %v5905
        %v5907 = vmul.f32 %v5754, 1.442695
        %v5908 = vpow.pop %v5907
        %v5909 = vmul.f32 %v5755, 1.442695
        %v5910 = vpow.pop %v5909
        %v5911 = vmul.f32 %v5756, 1.442695
        %v5912 = vpow.pop %v5911
        %v5913 = vmul.f32 %v5757, 1.442695
        %v5914 = vpow.pop %v5913
        %v5915 = vmul.f32 %v5758, 1.442695
        %v5916 = vpow.pop %v5915
        %v5917 = vmul.f32 %v5759, 1.442695
        %v5918 = vpow.pop %v5917
        %v5919 = vmul.f32 %v5760, 1.442695
        %v5920 = vpow.pop %v5919
        %v5921 = vmul.f32 %v5761, 1.442695
        %v5922 = vpow.pop %v5921
        %v5923 = vmul.f32 %v5762, 1.442695
        %v5924 = vpow.pop %v5923
        %v5925 = vmul.f32 %v5763, 1.442695
        %v5926 = vpow.pop %v5925
        %v5927 = vmul.f32 %v5764, 1.442695
        %v5928 = vpow.pop %v5927
        %v5929 = vmul.f32 %v5765, 1.442695
        %v5930 = vpow.pop %v5929
        %v5931 = vmul.f32 %v5766, 1.442695
        %v5932 = vpow.pop %v5931
        %v5933 = vmul.f32 %v5767, 1.442695
        %v5934 = vpow.pop %v5933
        %v5935 = vmul.f32 %v5768, 1.442695
        %v5936 = vpow.pop %v5935
        %v5937 = vmul.f32 %v5769, 1.442695
        %v5938 = vpow.pop %v5937
        %v5939 = vmul.f32 %v5770, 1.442695
        %v5940 = vpow.pop %v5939
        %v5941 = vmul.f32 %v5771, 1.442695
        %v5942 = vpow.pop %v5941
        %v5943 = vmul.f32 %v5772, 1.442695
        %v5944 = vpow.pop %v5943
        %v5945 = vmul.f32 %v5773, 1.442695
        %v5946 = vpow.pop %v5945
        %v5947 = vmul.f32 %v5774, 1.442695
        %v5948 = vpow.pop %v5947
        %v5949 = vmul.f32 %v5775, 1.442695
        %v5950 = vpow.pop %v5949
        %v5951 = vmul.f32 %v5776, 1.442695
        %v5952 = vpow.pop %v5951
        %v5953 = vmul.f32 %v5777, 1.442695
        %v5954 = vpow.pop %v5953
        %v5955 = vmul.f32 %v5778, 1.442695
        %v5956 = vpow.pop %v5955
        %v5957 = vmul.f32 %v5779, 1.442695
        %v5958 = vpow.pop %v5957
        %v5959 = vmul.f32 %v5780, 1.442695
        %v5960 = vpow.pop %v5959
        %v5961 = vmul.f32 %v5781, 1.442695
        %v5962 = vpow.pop %v5961
        %v5963 = vmul.f32 %v5782, 1.442695
        %v5964 = vpow.pop %v5963
        %v5965 = vmul.f32 %v5783, 1.442695
        %v5966 = vpow.pop %v5965
        %v5967 = vmul.f32 %v5784, 1.442695
        %v5968 = vpow.pop %v5967
        %v5969 = vmul.f32 %v5785, 1.442695
        %v5970 = vpow.pop %v5969
        %v5971 = vmul.f32 %v5786, 1.442695
        %v5972 = vpow.pop %v5971
        %v5973 = vmul.f32 %v5787, 1.442695
        %v5974 = vpow.pop %v5973
        %v5975 = vmul.f32 %v5788, 1.442695
        %v5976 = vpow.pop %v5975
        %v5977 = vmul.f32 %v5789, 1.442695
        %v5978 = vpow.pop %v5977
        %v5979 = vmul.f32 %v5790, 1.442695
        %v5980 = vpow.pop %v5979
        %v5981 = vmul.f32 %v5791, 1.442695
        %v5982 = vpow.pop %v5981
        %v5983 = vmul.f32 %v5792, 1.442695
        %v5984 = vpow.pop %v5983
        %v5985 = vmul.f32 %v5793, 1.442695
        %v5986 = vpow.pop %v5985
        %v5987 = vmul.f32 %v5794, 1.442695
        %v5988 = vpow.pop %v5987
        %v5989 = vmul.f32 %v5795, 1.442695
        %v5990 = vpow.pop %v5989
        %v5991 = vmul.f32 %v5796, 1.442695
        %v5992 = vpow.pop %v5991
        %v5993 = vmul.f32 %v5797, 1.442695
        %v5994 = vpow.pop %v5993
        %v5995 = vmul.f32 %v5798, 1.442695
        %v5996 = vpow.pop %v5995
        %v5997 = vmul.f32 %v5799, 1.442695
        %v5998 = vpow.pop %v5997
        %v5999 = vmul.f32 %v5800, 1.442695
        %v6000 = vpow.pop %v5999
        %v6001 = vmul.f32 %v5801, 1.442695
        %v6002 = vpow.pop %v6001
        %v6003 = vmul.f32 %v5802, 1.442695
        %v6004 = vpow.pop %v6003
        %v6005 = vmul.f32 %v5803, 1.442695
        %v6006 = vpow.pop %v6005
        %v6007 = vmul.f32 %v5804, 1.442695
        %v6008 = vpow.pop %v6007
        %v6009 = vmul.f32 %v5805, 1.442695
        %v6010 = vpow.pop %v6009
        %v6011 = vmul.f32 %v5806, 1.442695
        %v6012 = vpow.pop %v6011
        %v6013 = vmul.f32 %v5807, 1.442695
        %v6014 = vpow.pop %v6013
        %v6015 = vmul.f32 %v5808, 1.442695
        %v6016 = vpow.pop %v6015
        %v6017 = vmul.f32 %v5809, 1.442695
        %v6018 = vpow.pop %v6017
        %v6019 = vmul.f32 %v5810, 1.442695
        %v6020 = vpow.pop %v6019
        %v6021 = vmul.f32 %v5811, 1.442695
        %v6022 = vpow.pop %v6021
        %v6023 = vmul.f32 %v5812, 1.442695
        %v6024 = vpow.pop %v6023
        %v6025 = vmul.f32 %v5813, 1.442695
        %v6026 = vpow.pop %v6025
        %v6027 = vmul.f32 %v5814, 1.442695
        %v6028 = vpow.pop %v6027
        %v6029 = vmul.f32 %v5815, 1.442695
        %v6030 = vpow.pop %v6029
        %v6031 = vmul.f32 %v5816, 1.442695
        %v6032 = vpow.pop %v6031
        %v6033 = vmul.f32 %v5817, 1.442695
        %v6034 = vpow.pop %v6033
        %v6035 = vmul.f32 %v5818, 1.442695
        %v6036 = vpow.pop %v6035
        %v6037 = vmul.f32 %v5819, 1.442695
        %v6038 = vpow.pop %v6037
        %v6039 = vmul.f32 %v5820, 1.442695
        %v6040 = vpow.pop %v6039
        %v6041 = vmul.f32 %v5821, 1.442695
        %v6042 = vpow.pop %v6041
        %v6043 = vmul.f32 %v5822, 1.442695
        %v6044 = vpow.pop %v6043
        %v6045 = vmul.f32 %v5823, 1.442695
        %v6046 = vpow.pop %v6045
        %v6047 = vmul.f32 %v5824, 1.442695
        %v6048 = vpow.pop %v6047
        %v6049 = vmul.f32 %v5825, 1.442695
        %v6050 = vpow.pop %v6049
        %v6051 = vmul.f32 %v5826, 1.442695
        %v6052 = vpow.pop %v6051
        %v6053 = vmul.f32 %v5827, 1.442695
        %v6054 = vpow.pop %v6053
        %v6055 = vmul.f32 %v5828, 1.442695
        %v6056 = vpow.pop %v6055
        %v6057 = vmul.f32 %v5829, 1.442695
        %v6058 = vpow.pop %v6057
        %v6059 = vmul.f32 %v5830, 1.442695
        %v6060 = vpow.pop %v6059
        %v6061 = vmul.f32 %v5831, 1.442695
        %v6062 = vpow.pop %v6061
        %v6063 = vmul.f32 %v5832, 1.442695
        %v6064 = vpow.pop %v6063
        %v6065 = vmul.f32 %v5833, 1.442695
        %v6066 = vpow.pop %v6065
        %v6067 = vmul.f32 %v5834, 1.442695
        %v6068 = vpow.pop %v6067
        %v6069 = vmul.f32 %v5835, 1.442695
        %v6070 = vpow.pop %v6069
        %v6071 = vmul.f32 %v5836, 1.442695
        %v6072 = vpow.pop %v6071
        %v6073 = vmul.f32 %v5837, 1.442695
        %v6074 = vpow.pop %v6073
        %v6075 = vmul.f32 %v5838, 1.442695
        %v6076 = vpow.pop %v6075
        %v6077 = vmul.f32 %v5839, 1.442695
        %v6078 = vpow.pop %v6077
        %v6079 = vmul.f32 %v5840, 1.442695
        %v6080 = vpow.pop %v6079
        %v6081 = vmul.f32 %v5841, 1.442695
        %v6082 = vpow.pop %v6081
        %v6083 = vmul.f32 %v5842, 1.442695
        %v6084 = vpow.pop %v6083
        %v6085 = vmul.f32 %v5843, 1.442695
        %v6086 = vpow.pop %v6085
        %v6087 = vmul.f32 %v5844, 1.442695
        %v6088 = vpow.pop %v6087
        %v6089 = vmul.f32 %v5845, 1.442695
        %v6090 = vpow.pop %v6089
        %v6091 = vmul.f32 %v5846, 1.442695
        %v6092 = vpow.pop %v6091
        %v6093 = vmul.f32 %v5847, 1.442695
        %v6094 = vpow.pop %v6093
        %v6095 = vmul.f32 %v5848, 1.442695
        %v6096 = vpow.pop %v6095
        %v6097 = vmul.f32 %v5849, 1.442695
        %v6098 = vpow.pop %v6097
        %v6099 = vmul.f32 %v5850, 1.442695
        %v6100 = vpow.pop %v6099
        %v6101 = vmul.f32 %v5851, 1.442695
        %v6102 = vpow.pop %v6101
        %v6103 = vmul.f32 %v5852, 1.442695
        %v6104 = vpow.pop %v6103
        %v6105 = vmul.f32 %v5853, 1.442695
        %v6106 = vpow.pop %v6105
        %v6107 = vmul.f32 %v5854, 1.442695
        %v6108 = vpow.pop %v6107
        %v6109 = vmul.f32 %v5855, 1.442695
        %v6110 = vpow.pop %v6109
        %v6111 = vmul.f32 %v5856, 1.442695
        %v6112 = vpow.pop %v6111
        %v6113 = vpack.c.bf16 %v5860, %v5858
        %v6114 = vpack.c.bf16 %v5864, %v5862
        %v6115 = vpack.c.bf16 %v5868, %v5866
        %v6116 = vpack.c.bf16 %v5872, %v5870
        %v6117 = vpack.c.bf16 %v5876, %v5874
        %v6118 = vpack.c.bf16 %v5880, %v5878
        %v6119 = vpack.c.bf16 %v5884, %v5882
        %v6120 = vpack.c.bf16 %v5888, %v5886
        %v6121 = vpack.c.bf16 %v5892, %v5890
        %v6122 = vpack.c.bf16 %v5896, %v5894
        %v6123 = vpack.c.bf16 %v5900, %v5898
        %v6124 = vpack.c.bf16 %v5904, %v5902
        %v6125 = vpack.c.bf16 %v5908, %v5906
        %v6126 = vpack.c.bf16 %v5912, %v5910
        %v6127 = vpack.c.bf16 %v5916, %v5914
        %v6128 = vpack.c.bf16 %v5920, %v5918
        %v6129 = vpack.c.bf16 %v5924, %v5922
        %v6130 = vpack.c.bf16 %v5928, %v5926
        %v6131 = vpack.c.bf16 %v5932, %v5930
        %v6132 = vpack.c.bf16 %v5936, %v5934
        %v6133 = vpack.c.bf16 %v5940, %v5938
        %v6134 = vpack.c.bf16 %v5944, %v5942
        %v6135 = vpack.c.bf16 %v5948, %v5946
        %v6136 = vpack.c.bf16 %v5952, %v5950
        %v6137 = vpack.c.bf16 %v5956, %v5954
        %v6138 = vpack.c.bf16 %v5960, %v5958
        %v6139 = vpack.c.bf16 %v5964, %v5962
        %v6140 = vpack.c.bf16 %v5968, %v5966
        %v6141 = vpack.c.bf16 %v5972, %v5970
        %v6142 = vpack.c.bf16 %v5976, %v5974
        %v6143 = vpack.c.bf16 %v5980, %v5978
        %v6144 = vpack.c.bf16 %v5984, %v5982
        %v6145 = vpack.c.bf16 %v5988, %v5986
        %v6146 = vpack.c.bf16 %v5992, %v5990
        %v6147 = vpack.c.bf16 %v5996, %v5994
        %v6148 = vpack.c.bf16 %v6000, %v5998
        %v6149 = vpack.c.bf16 %v6004, %v6002
        %v6150 = vpack.c.bf16 %v6008, %v6006
        %v6151 = vpack.c.bf16 %v6012, %v6010
        %v6152 = vpack.c.bf16 %v6016, %v6014
        %v6153 = vpack.c.bf16 %v6020, %v6018
        %v6154 = vpack.c.bf16 %v6024, %v6022
        %v6155 = vpack.c.bf16 %v6028, %v6026
        %v6156 = vpack.c.bf16 %v6032, %v6030
        %v6157 = vpack.c.bf16 %v6036, %v6034
        %v6158 = vpack.c.bf16 %v6040, %v6038
        %v6159 = vpack.c.bf16 %v6044, %v6042
        %v6160 = vpack.c.bf16 %v6048, %v6046
        %v6161 = vpack.c.bf16 %v6052, %v6050
        %v6162 = vpack.c.bf16 %v6056, %v6054
        %v6163 = vpack.c.bf16 %v6060, %v6058
        %v6164 = vpack.c.bf16 %v6064, %v6062
        %v6165 = vpack.c.bf16 %v6068, %v6066
        %v6166 = vpack.c.bf16 %v6072, %v6070
        %v6167 = vpack.c.bf16 %v6076, %v6074
        %v6168 = vpack.c.bf16 %v6080, %v6078
        %v6169 = vpack.c.bf16 %v6084, %v6082
        %v6170 = vpack.c.bf16 %v6088, %v6086
        %v6171 = vpack.c.bf16 %v6092, %v6090
        %v6172 = vpack.c.bf16 %v6096, %v6094
        %v6173 = vpack.c.bf16 %v6100, %v6098
        %v6174 = vpack.c.bf16 %v6104, %v6102
        %v6175 = vpack.c.bf16 %v6108, %v6106
        %v6176 = vpack.c.bf16 %v6112, %v6110
        %s6177 = scalar_lea.vmem %s3, 128
        %v6178 = vld [vmem:[%s6177] sm:$0xf]
        %v6179 = vld [vmem:[%s6177 + $0x4] sm:$0xf]
        %v6180 = vld [vmem:[%s6177 + $0x8] sm:$0xf]
        %v6181 = vld [vmem:[%s6177 + $0xc] sm:$0xf]
        %v6182 = vld [vmem:[%s6177 + $0x10] sm:$0xf]
        %v6183 = vld [vmem:[%s6177 + $0x14] sm:$0xf]
        %v6184 = vld [vmem:[%s6177 + $0x18] sm:$0xf]
        %v6185 = vld [vmem:[%s6177 + $0x1c] sm:$0xf]
        %v6186 = vld [vmem:[%s6177 + $0x20] sm:$0xf]
        %v6187 = vld [vmem:[%s6177 + $0x24] sm:$0xf]
        %v6188 = vld [vmem:[%s6177 + $0x28] sm:$0xf]
        %v6189 = vld [vmem:[%s6177 + $0x2c] sm:$0xf]
        %v6190 = vld [vmem:[%s6177 + $0x30] sm:$0xf]
        %v6191 = vld [vmem:[%s6177 + $0x34] sm:$0xf]
        %v6192 = vld [vmem:[%s6177 + $0x38] sm:$0xf]
        %v6193 = vld [vmem:[%s6177 + $0x3c] sm:$0xf]
        %s6194 = scalar_lea.vmem %s4, 2
        %v6195 = vld [vmem:[%s6194] sm:$0x1]
        %v6197 = vlaneseq
        %v6198 = vshrl.u32 %v6197, 7
        %v6199 = vsub.s32 0, %v6198
        %v6200 = vrot.slane %v6195, %v6199
        %v6218 = vunpack.c.l.b16 %v6178
        %v6219 = vunpack.c.l.b16 %v6179
        %v6220 = vunpack.c.l.b16 %v6180
        %v6221 = vunpack.c.l.b16 %v6181
        %v6222 = vunpack.c.l.b16 %v6182
        %v6223 = vunpack.c.l.b16 %v6183
        %v6224 = vunpack.c.l.b16 %v6184
        %v6225 = vunpack.c.l.b16 %v6185
        %v6226 = vunpack.c.l.b16 %v6186
        %v6227 = vunpack.c.l.b16 %v6187
        %v6228 = vunpack.c.l.b16 %v6188
        %v6229 = vunpack.c.l.b16 %v6189
        %v6230 = vunpack.c.l.b16 %v6190
        %v6231 = vunpack.c.l.b16 %v6191
        %v6232 = vunpack.c.l.b16 %v6192
        %v6233 = vunpack.c.l.b16 %v6193
        %v6234 = vpack.c.b16 %v6219, %v6218
        %v6235 = vpack.c.b16 %v6221, %v6220
        %v6236 = vpack.c.b16 %v6223, %v6222
        %v6237 = vpack.c.b16 %v6225, %v6224
        %v6238 = vpack.c.b16 %v6227, %v6226
        %v6239 = vpack.c.b16 %v6229, %v6228
        %v6240 = vpack.c.b16 %v6231, %v6230
        %v6241 = vpack.c.b16 %v6233, %v6232
        %6250 = vmatprep.subr.bf16.mxu0 0
        %6251 = vmatpush1.bf16.msra.mxu0 %v6234
        %6252 = vmatprep.subr.bf16.mxu0 0
        %6253 = vmatpush1.bf16.msra.mxu0 %v6235
        %6254 = vmatprep.subr.bf16.mxu0 0
        %6255 = vmatpush1.bf16.msra.mxu0 %v6236
        %6256 = vmatprep.subr.bf16.mxu0 0
        %6257 = vmatpush1.bf16.msra.mxu0 %v6237
        %6258 = vmatprep.subr.bf16.mxu0 0
        %6259 = vmatpush1.bf16.msra.mxu0 %v6238
        %6260 = vmatprep.subr.bf16.mxu0 0
        %6261 = vmatpush1.bf16.msra.mxu0 %v6239
        %6262 = vmatprep.subr.bf16.mxu0 0
        %6263 = vmatpush1.bf16.msra.mxu0 %v6240
        %6264 = vmatprep.subr.bf16.mxu0 0
        %6265 = vmatpush1.bf16.msra.mxu0 %v6241
        %6266 = vmatprep.subr.bf16.mxu0 0
        %6267 = vmatpush1.bf16.msra.mxu0 0
        %6268 = vmatprep.subr.bf16.mxu0 0
        %6269 = vmatpush1.bf16.msra.mxu0 0
        %6270 = vmatprep.subr.bf16.mxu0 0
        %6271 = vmatpush1.bf16.msra.mxu0 0
        %6272 = vmatprep.subr.bf16.mxu0 0
        %6273 = vmatpush1.bf16.msra.mxu0 0
        %6274 = vmatprep.subr.bf16.mxu0 0
        %6275 = vmatpush1.bf16.msra.mxu0 0
        %6276 = vmatprep.subr.bf16.mxu0 0
        %6277 = vmatpush1.bf16.msra.mxu0 0
        %6278 = vmatprep.subr.bf16.mxu0 0
        %6279 = vmatpush1.bf16.msra.mxu0 0
        %6280 = vmatprep.subr.bf16.mxu0 0
        %6281 = vmatpush1.bf16.msra.mxu0 0
        %6282 = vmatprep.mubr.bf16.mxu0 0
        %6283 = vmatmul.mubr.bf16.gmra.mrb[0].mxu0 %v6113
        %v6284 = vpop.f32.mrb[0].mxu0
        %v6285 = vadd.f32 %v6200, %v6284
        %v6286 = vpop.f32.mrb[0].mxu0
        %v6287 = vpop.f32.mrb[0].mxu0
        %v6288 = vadd.f32 %v6200, %v6287
        %v6289 = vpop.f32.mrb[0].mxu0
        %6290 = vmatprep.mubr.bf16.mxu0 0
        %6291 = vmatmul.mubr.bf16.gmra.mrb[0].mxu0 %v6114
        %v6292 = vpop.f32.mrb[0].mxu0
        %v6293 = vadd.f32 %v6200, %v6292
        %v6294 = vpop.f32.mrb[0].mxu0
        %v6295 = vpop.f32.mrb[0].mxu0
        %v6296 = vadd.f32 %v6200, %v6295
        %v6297 = vpop.f32.mrb[0].mxu0
        %6298 = vmatprep.mubr.bf16.mxu0 0
        %6299 = vmatmul.mubr.bf16.gmra.mrb[0].mxu0 %v6115
        %v6300 = vpop.f32.mrb[0].mxu0
        %v6301 = vadd.f32 %v6200, %v6300
        %v6302 = vpop.f32.mrb[0].mxu0
        %v6303 = vpop.f32.mrb[0].mxu0
        %v6304 = vadd.f32 %v6200, %v6303
        %v6305 = vpop.f32.mrb[0].mxu0
        %6306 = vmatprep.mubr.bf16.mxu0 0
        %6307 = vmatmul.mubr.bf16.gmra.mrb[0].mxu0 %v6116
        %v6308 = vpop.f32.mrb[0].mxu0
        %v6309 = vadd.f32 %v6200, %v6308
        %v6310 = vpop.f32.mrb[0].mxu0
        %v6311 = vpop.f32.mrb[0].mxu0
        %v6312 = vadd.f32 %v6200, %v6311
        %v6313 = vpop.f32.mrb[0].mxu0
        %6314 = vmatprep.mubr.bf16.mxu0 0
        %6315 = vmatmul.mubr.bf16.gmra.mrb[0].mxu0 %v6117
        %v6316 = vpop.f32.mrb[0].mxu0
        %v6317 = vadd.f32 %v6200, %v6316
        %v6318 = vpop.f32.mrb[0].mxu0
        %v6319 = vpop.f32.mrb[0].mxu0
        %v6320 = vadd.f32 %v6200, %v6319
        %v6321 = vpop.f32.mrb[0].mxu0
        %6322 = vmatprep.mubr.bf16.mxu0 0
        %6323 = vmatmul.mubr.bf16.gmra.mrb[0].mxu0 %v6118
        %v6324 = vpop.f32.mrb[0].mxu0
        %v6325 = vadd.f32 %v6200, %v6324
        %v6326 = vpop.f32.mrb[0].mxu0
        %v6327 = vpop.f32.mrb[0].mxu0
        %v6328 = vadd.f32 %v6200, %v6327
        %v6329 = vpop.f32.mrb[0].mxu0
        %6330 = vmatprep.mubr.bf16.mxu0 0
        %6331 = vmatmul.mubr.bf16.gmra.mrb[0].mxu0 %v6119
        %v6332 = vpop.f32.mrb[0].mxu0
        %v6333 = vadd.f32 %v6200, %v6332
        %v6334 = vpop.f32.mrb[0].mxu0
        %v6335 = vpop.f32.mrb[0].mxu0
        %v6336 = vadd.f32 %v6200, %v6335
        %v6337 = vpop.f32.mrb[0].mxu0
        %6338 = vmatprep.mubr.bf16.mxu0 0
        %6339 = vmatmul.mubr.bf16.gmra.mrb[0].mxu0 %v6120
        %v6340 = vpop.f32.mrb[0].mxu0
        %v6341 = vadd.f32 %v6200, %v6340
        %v6342 = vpop.f32.mrb[0].mxu0
        %v6343 = vpop.f32.mrb[0].mxu0
        %v6344 = vadd.f32 %v6200, %v6343
        %v6345 = vpop.f32.mrb[0].mxu0
        %6346 = vmatprep.mubr.bf16.mxu0 0
        %6347 = vmatmul.mubr.bf16.gmra.mrb[0].mxu0 %v6121
        %v6348 = vpop.f32.mrb[0].mxu0
        %v6349 = vadd.f32 %v6200, %v6348
        %v6350 = vpop.f32.mrb[0].mxu0
        %v6351 = vpop.f32.mrb[0].mxu0
        %v6352 = vadd.f32 %v6200, %v6351
        %v6353 = vpop.f32.mrb[0].mxu0
        %6354 = vmatprep.mubr.bf16.mxu0 0
        %6355 = vmatmul.mubr.bf16.gmra.mrb[0].mxu0 %v6122
        %v6356 = vpop.f32.mrb[0].mxu0
        %v6357 = vadd.f32 %v6200, %v6356
        %v6358 = vpop.f32.mrb[0].mxu0
        %v6359 = vpop.f32.mrb[0].mxu0
        %v6360 = vadd.f32 %v6200, %v6359
        %v6361 = vpop.f32.mrb[0].mxu0
        %6362 = vmatprep.mubr.bf16.mxu0 0
        %6363 = vmatmul.mubr.bf16.gmra.mrb[0].mxu0 %v6123
        %v6364 = vpop.f32.mrb[0].mxu0
        %v6365 = vadd.f32 %v6200, %v6364
        %v6366 = vpop.f32.mrb[0].mxu0
        %v6367 = vpop.f32.mrb[0].mxu0
        %v6368 = vadd.f32 %v6200, %v6367
        %v6369 = vpop.f32.mrb[0].mxu0
        %6370 = vmatprep.mubr.bf16.mxu0 0
        %6371 = vmatmul.mubr.bf16.gmra.mrb[0].mxu0 %v6124
        %v6372 = vpop.f32.mrb[0].mxu0
        %v6373 = vadd.f32 %v6200, %v6372
        %v6374 = vpop.f32.mrb[0].mxu0
        %v6375 = vpop.f32.mrb[0].mxu0
        %v6376 = vadd.f32 %v6200, %v6375
        %v6377 = vpop.f32.mrb[0].mxu0
        %6378 = vmatprep.mubr.bf16.mxu0 0
        %6379 = vmatmul.mubr.bf16.gmra.mrb[0].mxu0 %v6125
        %v6380 = vpop.f32.mrb[0].mxu0
        %v6381 = vadd.f32 %v6200, %v6380
        %v6382 = vpop.f32.mrb[0].mxu0
        %v6383 = vpop.f32.mrb[0].mxu0
        %v6384 = vadd.f32 %v6200, %v6383
        %v6385 = vpop.f32.mrb[0].mxu0
        %6386 = vmatprep.mubr.bf16.mxu0 0
        %6387 = vmatmul.mubr.bf16.gmra.mrb[0].mxu0 %v6126
        %v6388 = vpop.f32.mrb[0].mxu0
        %v6389 = vadd.f32 %v6200, %v6388
        %v6390 = vpop.f32.mrb[0].mxu0
        %v6391 = vpop.f32.mrb[0].mxu0
        %v6392 = vadd.f32 %v6200, %v6391
        %v6393 = vpop.f32.mrb[0].mxu0
        %6394 = vmatprep.mubr.bf16.mxu0 0
        %6395 = vmatmul.mubr.bf16.gmra.mrb[0].mxu0 %v6127
        %v6396 = vpop.f32.mrb[0].mxu0
        %v6397 = vadd.f32 %v6200, %v6396
        %v6398 = vpop.f32.mrb[0].mxu0
        %v6399 = vpop.f32.mrb[0].mxu0
        %v6400 = vadd.f32 %v6200, %v6399
        %v6401 = vpop.f32.mrb[0].mxu0
        %6402 = vmatprep.mubr.bf16.mxu0 0
        %6403 = vmatmul.mubr.bf16.gmra.mrb[0].mxu0 %v6128
        %v6404 = vpop.f32.mrb[0].mxu0
        %v6405 = vadd.f32 %v6200, %v6404
        %v6406 = vpop.f32.mrb[0].mxu0
        %v6407 = vpop.f32.mrb[0].mxu0
        %v6408 = vadd.f32 %v6200, %v6407
        %v6409 = vpop.f32.mrb[0].mxu0
        %6410 = vmatprep.mubr.bf16.mxu0 0
        %6411 = vmatmul.mubr.bf16.gmra.mrb[0].mxu0 %v6129
        %v6412 = vpop.f32.mrb[0].mxu0
        %v6413 = vadd.f32 %v6200, %v6412
        %v6414 = vpop.f32.mrb[0].mxu0
        %v6415 = vpop.f32.mrb[0].mxu0
        %v6416 = vadd.f32 %v6200, %v6415
        %v6417 = vpop.f32.mrb[0].mxu0
        %6418 = vmatprep.mubr.bf16.mxu0 0
        %6419 = vmatmul.mubr.bf16.gmra.mrb[0].mxu0 %v6130
        %v6420 = vpop.f32.mrb[0].mxu0
        %v6421 = vadd.f32 %v6200, %v6420
        %v6422 = vpop.f32.mrb[0].mxu0
        %v6423 = vpop.f32.mrb[0].mxu0
        %v6424 = vadd.f32 %v6200, %v6423
        %v6425 = vpop.f32.mrb[0].mxu0
        %6426 = vmatprep.mubr.bf16.mxu0 0
        %6427 = vmatmul.mubr.bf16.gmra.mrb[0].mxu0 %v6131
        %v6428 = vpop.f32.mrb[0].mxu0
        %v6429 = vadd.f32 %v6200, %v6428
        %v6430 = vpop.f32.mrb[0].mxu0
        %v6431 = vpop.f32.mrb[0].mxu0
        %v6432 = vadd.f32 %v6200, %v6431
        %v6433 = vpop.f32.mrb[0].mxu0
        %6434 = vmatprep.mubr.bf16.mxu0 0
        %6435 = vmatmul.mubr.bf16.gmra.mrb[0].mxu0 %v6132
        %v6436 = vpop.f32.mrb[0].mxu0
        %v6437 = vadd.f32 %v6200, %v6436
        %v6438 = vpop.f32.mrb[0].mxu0
        %v6439 = vpop.f32.mrb[0].mxu0
        %v6440 = vadd.f32 %v6200, %v6439
        %v6441 = vpop.f32.mrb[0].mxu0
        %6442 = vmatprep.mubr.bf16.mxu0 0
        %6443 = vmatmul.mubr.bf16.gmra.mrb[0].mxu0 %v6133
        %v6444 = vpop.f32.mrb[0].mxu0
        %v6445 = vadd.f32 %v6200, %v6444
        %v6446 = vpop.f32.mrb[0].mxu0
        %v6447 = vpop.f32.mrb[0].mxu0
        %v6448 = vadd.f32 %v6200, %v6447
        %v6449 = vpop.f32.mrb[0].mxu0
        %6450 = vmatprep.mubr.bf16.mxu0 0
        %6451 = vmatmul.mubr.bf16.gmra.mrb[0].mxu0 %v6134
        %v6452 = vpop.f32.mrb[0].mxu0
        %v6453 = vadd.f32 %v6200, %v6452
        %v6454 = vpop.f32.mrb[0].mxu0
        %v6455 = vpop.f32.mrb[0].mxu0
        %v6456 = vadd.f32 %v6200, %v6455
        %v6457 = vpop.f32.mrb[0].mxu0
        %6458 = vmatprep.mubr.bf16.mxu0 0
        %6459 = vmatmul.mubr.bf16.gmra.mrb[0].mxu0 %v6135
        %v6460 = vpop.f32.mrb[0].mxu0
        %v6461 = vadd.f32 %v6200, %v6460
        %v6462 = vpop.f32.mrb[0].mxu0
        %v6463 = vpop.f32.mrb[0].mxu0
        %v6464 = vadd.f32 %v6200, %v6463
        %v6465 = vpop.f32.mrb[0].mxu0
        %6466 = vmatprep.mubr.bf16.mxu0 0
        %6467 = vmatmul.mubr.bf16.gmra.mrb[0].mxu0 %v6136
        %v6468 = vpop.f32.mrb[0].mxu0
        %v6469 = vadd.f32 %v6200, %v6468
        %v6470 = vpop.f32.mrb[0].mxu0
        %v6471 = vpop.f32.mrb[0].mxu0
        %v6472 = vadd.f32 %v6200, %v6471
        %v6473 = vpop.f32.mrb[0].mxu0
        %6474 = vmatprep.mubr.bf16.mxu0 0
        %6475 = vmatmul.mubr.bf16.gmra.mrb[0].mxu0 %v6137
        %v6476 = vpop.f32.mrb[0].mxu0
        %v6477 = vadd.f32 %v6200, %v6476
        %v6478 = vpop.f32.mrb[0].mxu0
        %v6479 = vpop.f32.mrb[0].mxu0
        %v6480 = vadd.f32 %v6200, %v6479
        %v6481 = vpop.f32.mrb[0].mxu0
        %6482 = vmatprep.mubr.bf16.mxu0 0
        %6483 = vmatmul.mubr.bf16.gmra.mrb[0].mxu0 %v6138
        %v6484 = vpop.f32.mrb[0].mxu0
        %v6485 = vadd.f32 %v6200, %v6484
        %v6486 = vpop.f32.mrb[0].mxu0
        %v6487 = vpop.f32.mrb[0].mxu0
        %v6488 = vadd.f32 %v6200, %v6487
        %v6489 = vpop.f32.mrb[0].mxu0
        %6490 = vmatprep.mubr.bf16.mxu0 0
        %6491 = vmatmul.mubr.bf16.gmra.mrb[0].mxu0 %v6139
        %v6492 = vpop.f32.mrb[0].mxu0
        %v6493 = vadd.f32 %v6200, %v6492
        %v6494 = vpop.f32.mrb[0].mxu0
        %v6495 = vpop.f32.mrb[0].mxu0
        %v6496 = vadd.f32 %v6200, %v6495
        %v6497 = vpop.f32.mrb[0].mxu0
        %6498 = vmatprep.mubr.bf16.mxu0 0
        %6499 = vmatmul.mubr.bf16.gmra.mrb[0].mxu0 %v6140
        %v6500 = vpop.f32.mrb[0].mxu0
        %v6501 = vadd.f32 %v6200, %v6500
        %v6502 = vpop.f32.mrb[0].mxu0
        %v6503 = vpop.f32.mrb[0].mxu0
        %v6504 = vadd.f32 %v6200, %v6503
        %v6505 = vpop.f32.mrb[0].mxu0
        %6506 = vmatprep.mubr.bf16.mxu0 0
        %6507 = vmatmul.mubr.bf16.gmra.mrb[0].mxu0 %v6141
        %v6508 = vpop.f32.mrb[0].mxu0
        %v6509 = vadd.f32 %v6200, %v6508
        %v6510 = vpop.f32.mrb[0].mxu0
        %v6511 = vpop.f32.mrb[0].mxu0
        %v6512 = vadd.f32 %v6200, %v6511
        %v6513 = vpop.f32.mrb[0].mxu0
        %6514 = vmatprep.mubr.bf16.mxu0 0
        %6515 = vmatmul.mubr.bf16.gmra.mrb[0].mxu0 %v6142
        %v6516 = vpop.f32.mrb[0].mxu0
        %v6517 = vadd.f32 %v6200, %v6516
        %v6518 = vpop.f32.mrb[0].mxu0
        %v6519 = vpop.f32.mrb[0].mxu0
        %v6520 = vadd.f32 %v6200, %v6519
        %v6521 = vpop.f32.mrb[0].mxu0
        %6522 = vmatprep.mubr.bf16.mxu0 0
        %6523 = vmatmul.mubr.bf16.gmra.mrb[0].mxu0 %v6143
        %v6524 = vpop.f32.mrb[0].mxu0
        %v6525 = vadd.f32 %v6200, %v6524
        %v6526 = vpop.f32.mrb[0].mxu0
        %v6527 = vpop.f32.mrb[0].mxu0
        %v6528 = vadd.f32 %v6200, %v6527
        %v6529 = vpop.f32.mrb[0].mxu0
        %6530 = vmatprep.mubr.bf16.mxu0 0
        %6531 = vmatmul.mubr.bf16.gmra.mrb[0].mxu0 %v6144
        %v6532 = vpop.f32.mrb[0].mxu0
        %v6533 = vadd.f32 %v6200, %v6532
        %v6534 = vpop.f32.mrb[0].mxu0
        %v6535 = vpop.f32.mrb[0].mxu0
        %v6536 = vadd.f32 %v6200, %v6535
        %v6537 = vpop.f32.mrb[0].mxu0
        %6538 = vmatprep.mubr.bf16.mxu0 0
        %6539 = vmatmul.mubr.bf16.gmra.mrb[0].mxu0 %v6145
        %v6540 = vpop.f32.mrb[0].mxu0
        %v6541 = vadd.f32 %v6200, %v6540
        %v6542 = vpop.f32.mrb[0].mxu0
        %v6543 = vpop.f32.mrb[0].mxu0
        %v6544 = vadd.f32 %v6200, %v6543
        %v6545 = vpop.f32.mrb[0].mxu0
        %6546 = vmatprep.mubr.bf16.mxu0 0
        %6547 = vmatmul.mubr.bf16.gmra.mrb[0].mxu0 %v6146
        %v6548 = vpop.f32.mrb[0].mxu0
        %v6549 = vadd.f32 %v6200, %v6548
        %v6550 = vpop.f32.mrb[0].mxu0
        %v6551 = vpop.f32.mrb[0].mxu0
        %v6552 = vadd.f32 %v6200, %v6551
        %v6553 = vpop.f32.mrb[0].mxu0
        %6554 = vmatprep.mubr.bf16.mxu0 0
        %6555 = vmatmul.mubr.bf16.gmra.mrb[0].mxu0 %v6147
        %v6556 = vpop.f32.mrb[0].mxu0
        %v6557 = vadd.f32 %v6200, %v6556
        %v6558 = vpop.f32.mrb[0].mxu0
        %v6559 = vpop.f32.mrb[0].mxu0
        %v6560 = vadd.f32 %v6200, %v6559
        %v6561 = vpop.f32.mrb[0].mxu0
        %6562 = vmatprep.mubr.bf16.mxu0 0
        %6563 = vmatmul.mubr.bf16.gmra.mrb[0].mxu0 %v6148
        %v6564 = vpop.f32.mrb[0].mxu0
        %v6565 = vadd.f32 %v6200, %v6564
        %v6566 = vpop.f32.mrb[0].mxu0
        %v6567 = vpop.f32.mrb[0].mxu0
        %v6568 = vadd.f32 %v6200, %v6567
        %v6569 = vpop.f32.mrb[0].mxu0
        %6570 = vmatprep.mubr.bf16.mxu0 0
        %6571 = vmatmul.mubr.bf16.gmra.mrb[0].mxu0 %v6149
        %v6572 = vpop.f32.mrb[0].mxu0
        %v6573 = vadd.f32 %v6200, %v6572
        %v6574 = vpop.f32.mrb[0].mxu0
        %v6575 = vpop.f32.mrb[0].mxu0
        %v6576 = vadd.f32 %v6200, %v6575
        %v6577 = vpop.f32.mrb[0].mxu0
        %6578 = vmatprep.mubr.bf16.mxu0 0
        %6579 = vmatmul.mubr.bf16.gmra.mrb[0].mxu0 %v6150
        %v6580 = vpop.f32.mrb[0].mxu0
        %v6581 = vadd.f32 %v6200, %v6580
        %v6582 = vpop.f32.mrb[0].mxu0
        %v6583 = vpop.f32.mrb[0].mxu0
        %v6584 = vadd.f32 %v6200, %v6583
        %v6585 = vpop.f32.mrb[0].mxu0
        %6586 = vmatprep.mubr.bf16.mxu0 0
        %6587 = vmatmul.mubr.bf16.gmra.mrb[0].mxu0 %v6151
        %v6588 = vpop.f32.mrb[0].mxu0
        %v6589 = vadd.f32 %v6200, %v6588
        %v6590 = vpop.f32.mrb[0].mxu0
        %v6591 = vpop.f32.mrb[0].mxu0
        %v6592 = vadd.f32 %v6200, %v6591
        %v6593 = vpop.f32.mrb[0].mxu0
        %6594 = vmatprep.mubr.bf16.mxu0 0
        %6595 = vmatmul.mubr.bf16.gmra.mrb[0].mxu0 %v6152
        %v6596 = vpop.f32.mrb[0].mxu0
        %v6597 = vadd.f32 %v6200, %v6596
        %v6598 = vpop.f32.mrb[0].mxu0
        %v6599 = vpop.f32.mrb[0].mxu0
        %v6600 = vadd.f32 %v6200, %v6599
        %v6601 = vpop.f32.mrb[0].mxu0
        %6602 = vmatprep.mubr.bf16.mxu0 0
        %6603 = vmatmul.mubr.bf16.gmra.mrb[0].mxu0 %v6153
        %v6604 = vpop.f32.mrb[0].mxu0
        %v6605 = vadd.f32 %v6200, %v6604
        %v6606 = vpop.f32.mrb[0].mxu0
        %v6607 = vpop.f32.mrb[0].mxu0
        %v6608 = vadd.f32 %v6200, %v6607
        %v6609 = vpop.f32.mrb[0].mxu0
        %6610 = vmatprep.mubr.bf16.mxu0 0
        %6611 = vmatmul.mubr.bf16.gmra.mrb[0].mxu0 %v6154
        %v6612 = vpop.f32.mrb[0].mxu0
        %v6613 = vadd.f32 %v6200, %v6612
        %v6614 = vpop.f32.mrb[0].mxu0
        %v6615 = vpop.f32.mrb[0].mxu0
        %v6616 = vadd.f32 %v6200, %v6615
        %v6617 = vpop.f32.mrb[0].mxu0
        %6618 = vmatprep.mubr.bf16.mxu0 0
        %6619 = vmatmul.mubr.bf16.gmra.mrb[0].mxu0 %v6155
        %v6620 = vpop.f32.mrb[0].mxu0
        %v6621 = vadd.f32 %v6200, %v6620
        %v6622 = vpop.f32.mrb[0].mxu0
        %v6623 = vpop.f32.mrb[0].mxu0
        %v6624 = vadd.f32 %v6200, %v6623
        %v6625 = vpop.f32.mrb[0].mxu0
        %6626 = vmatprep.mubr.bf16.mxu0 0
        %6627 = vmatmul.mubr.bf16.gmra.mrb[0].mxu0 %v6156
        %v6628 = vpop.f32.mrb[0].mxu0
        %v6629 = vadd.f32 %v6200, %v6628
        %v6630 = vpop.f32.mrb[0].mxu0
        %v6631 = vpop.f32.mrb[0].mxu0
        %v6632 = vadd.f32 %v6200, %v6631
        %v6633 = vpop.f32.mrb[0].mxu0
        %6634 = vmatprep.mubr.bf16.mxu0 0
        %6635 = vmatmul.mubr.bf16.gmra.mrb[0].mxu0 %v6157
        %v6636 = vpop.f32.mrb[0].mxu0
        %v6637 = vadd.f32 %v6200, %v6636
        %v6638 = vpop.f32.mrb[0].mxu0
        %v6639 = vpop.f32.mrb[0].mxu0
        %v6640 = vadd.f32 %v6200, %v6639
        %v6641 = vpop.f32.mrb[0].mxu0
        %6642 = vmatprep.mubr.bf16.mxu0 0
        %6643 = vmatmul.mubr.bf16.gmra.mrb[0].mxu0 %v6158
        %v6644 = vpop.f32.mrb[0].mxu0
        %v6645 = vadd.f32 %v6200, %v6644
        %v6646 = vpop.f32.mrb[0].mxu0
        %v6647 = vpop.f32.mrb[0].mxu0
        %v6648 = vadd.f32 %v6200, %v6647
        %v6649 = vpop.f32.mrb[0].mxu0
        %6650 = vmatprep.mubr.bf16.mxu0 0
        %6651 = vmatmul.mubr.bf16.gmra.mrb[0].mxu0 %v6159
        %v6652 = vpop.f32.mrb[0].mxu0
        %v6653 = vadd.f32 %v6200, %v6652
        %v6654 = vpop.f32.mrb[0].mxu0
        %v6655 = vpop.f32.mrb[0].mxu0
        %v6656 = vadd.f32 %v6200, %v6655
        %v6657 = vpop.f32.mrb[0].mxu0
        %6658 = vmatprep.mubr.bf16.mxu0 0
        %6659 = vmatmul.mubr.bf16.gmra.mrb[0].mxu0 %v6160
        %v6660 = vpop.f32.mrb[0].mxu0
        %v6661 = vadd.f32 %v6200, %v6660
        %v6662 = vpop.f32.mrb[0].mxu0
        %v6663 = vpop.f32.mrb[0].mxu0
        %v6664 = vadd.f32 %v6200, %v6663
        %v6665 = vpop.f32.mrb[0].mxu0
        %6666 = vmatprep.mubr.bf16.mxu0 0
        %6667 = vmatmul.mubr.bf16.gmra.mrb[0].mxu0 %v6161
        %v6668 = vpop.f32.mrb[0].mxu0
        %v6669 = vadd.f32 %v6200, %v6668
        %v6670 = vpop.f32.mrb[0].mxu0
        %v6671 = vpop.f32.mrb[0].mxu0
        %v6672 = vadd.f32 %v6200, %v6671
        %v6673 = vpop.f32.mrb[0].mxu0
        %6674 = vmatprep.mubr.bf16.mxu0 0
        %6675 = vmatmul.mubr.bf16.gmra.mrb[0].mxu0 %v6162
        %v6676 = vpop.f32.mrb[0].mxu0
        %v6677 = vadd.f32 %v6200, %v6676
        %v6678 = vpop.f32.mrb[0].mxu0
        %v6679 = vpop.f32.mrb[0].mxu0
        %v6680 = vadd.f32 %v6200, %v6679
        %v6681 = vpop.f32.mrb[0].mxu0
        %6682 = vmatprep.mubr.bf16.mxu0 0
        %6683 = vmatmul.mubr.bf16.gmra.mrb[0].mxu0 %v6163
        %v6684 = vpop.f32.mrb[0].mxu0
        %v6685 = vadd.f32 %v6200, %v6684
        %v6686 = vpop.f32.mrb[0].mxu0
        %v6687 = vpop.f32.mrb[0].mxu0
        %v6688 = vadd.f32 %v6200, %v6687
        %v6689 = vpop.f32.mrb[0].mxu0
        %6690 = vmatprep.mubr.bf16.mxu0 0
        %6691 = vmatmul.mubr.bf16.gmra.mrb[0].mxu0 %v6164
        %v6692 = vpop.f32.mrb[0].mxu0
        %v6693 = vadd.f32 %v6200, %v6692
        %v6694 = vpop.f32.mrb[0].mxu0
        %v6695 = vpop.f32.mrb[0].mxu0
        %v6696 = vadd.f32 %v6200, %v6695
        %v6697 = vpop.f32.mrb[0].mxu0
        %6698 = vmatprep.mubr.bf16.mxu0 0
        %6699 = vmatmul.mubr.bf16.gmra.mrb[0].mxu0 %v6165
        %v6700 = vpop.f32.mrb[0].mxu0
        %v6701 = vadd.f32 %v6200, %v6700
        %v6702 = vpop.f32.mrb[0].mxu0
        %v6703 = vpop.f32.mrb[0].mxu0
        %v6704 = vadd.f32 %v6200, %v6703
        %v6705 = vpop.f32.mrb[0].mxu0
        %6706 = vmatprep.mubr.bf16.mxu0 0
        %6707 = vmatmul.mubr.bf16.gmra.mrb[0].mxu0 %v6166
        %v6708 = vpop.f32.mrb[0].mxu0
        %v6709 = vadd.f32 %v6200, %v6708
        %v6710 = vpop.f32.mrb[0].mxu0
        %v6711 = vpop.f32.mrb[0].mxu0
        %v6712 = vadd.f32 %v6200, %v6711
        %v6713 = vpop.f32.mrb[0].mxu0
        %6714 = vmatprep.mubr.bf16.mxu0 0
        %6715 = vmatmul.mubr.bf16.gmra.mrb[0].mxu0 %v6167
        %v6716 = vpop.f32.mrb[0].mxu0
        %v6717 = vadd.f32 %v6200, %v6716
        %v6718 = vpop.f32.mrb[0].mxu0
        %v6719 = vpop.f32.mrb[0].mxu0
        %v6720 = vadd.f32 %v6200, %v6719
        %v6721 = vpop.f32.mrb[0].mxu0
        %6722 = vmatprep.mubr.bf16.mxu0 0
        %6723 = vmatmul.mubr.bf16.gmra.mrb[0].mxu0 %v6168
        %v6724 = vpop.f32.mrb[0].mxu0
        %v6725 = vadd.f32 %v6200, %v6724
        %v6726 = vpop.f32.mrb[0].mxu0
        %v6727 = vpop.f32.mrb[0].mxu0
        %v6728 = vadd.f32 %v6200, %v6727
        %v6729 = vpop.f32.mrb[0].mxu0
        %6730 = vmatprep.mubr.bf16.mxu0 0
        %6731 = vmatmul.mubr.bf16.gmra.mrb[0].mxu0 %v6169
        %v6732 = vpop.f32.mrb[0].mxu0
        %v6733 = vadd.f32 %v6200, %v6732
        %v6734 = vpop.f32.mrb[0].mxu0
        %v6735 = vpop.f32.mrb[0].mxu0
        %v6736 = vadd.f32 %v6200, %v6735
        %v6737 = vpop.f32.mrb[0].mxu0
        %6738 = vmatprep.mubr.bf16.mxu0 0
        %6739 = vmatmul.mubr.bf16.gmra.mrb[0].mxu0 %v6170
        %v6740 = vpop.f32.mrb[0].mxu0
        %v6741 = vadd.f32 %v6200, %v6740
        %v6742 = vpop.f32.mrb[0].mxu0
        %v6743 = vpop.f32.mrb[0].mxu0
        %v6744 = vadd.f32 %v6200, %v6743
        %v6745 = vpop.f32.mrb[0].mxu0
        %6746 = vmatprep.mubr.bf16.mxu0 0
        %6747 = vmatmul.mubr.bf16.gmra.mrb[0].mxu0 %v6171
        %v6748 = vpop.f32.mrb[0].mxu0
        %v6749 = vadd.f32 %v6200, %v6748
        %v6750 = vpop.f32.mrb[0].mxu0
        %v6751 = vpop.f32.mrb[0].mxu0
        %v6752 = vadd.f32 %v6200, %v6751
        %v6753 = vpop.f32.mrb[0].mxu0
        %6754 = vmatprep.mubr.bf16.mxu0 0
        %6755 = vmatmul.mubr.bf16.gmra.mrb[0].mxu0 %v6172
        %v6756 = vpop.f32.mrb[0].mxu0
        %v6757 = vadd.f32 %v6200, %v6756
        %v6758 = vpop.f32.mrb[0].mxu0
        %v6759 = vpop.f32.mrb[0].mxu0
        %v6760 = vadd.f32 %v6200, %v6759
        %v6761 = vpop.f32.mrb[0].mxu0
        %6762 = vmatprep.mubr.bf16.mxu0 0
        %6763 = vmatmul.mubr.bf16.gmra.mrb[0].mxu0 %v6173
        %v6764 = vpop.f32.mrb[0].mxu0
        %v6765 = vadd.f32 %v6200, %v6764
        %v6766 = vpop.f32.mrb[0].mxu0
        %v6767 = vpop.f32.mrb[0].mxu0
        %v6768 = vadd.f32 %v6200, %v6767
        %v6769 = vpop.f32.mrb[0].mxu0
        %6770 = vmatprep.mubr.bf16.mxu0 0
        %6771 = vmatmul.mubr.bf16.gmra.mrb[0].mxu0 %v6174
        %v6772 = vpop.f32.mrb[0].mxu0
        %v6773 = vadd.f32 %v6200, %v6772
        %v6774 = vpop.f32.mrb[0].mxu0
        %v6775 = vpop.f32.mrb[0].mxu0
        %v6776 = vadd.f32 %v6200, %v6775
        %v6777 = vpop.f32.mrb[0].mxu0
        %6778 = vmatprep.mubr.bf16.mxu0 0
        %6779 = vmatmul.mubr.bf16.gmra.mrb[0].mxu0 %v6175
        %v6780 = vpop.f32.mrb[0].mxu0
        %v6781 = vadd.f32 %v6200, %v6780
        %v6782 = vpop.f32.mrb[0].mxu0
        %v6783 = vpop.f32.mrb[0].mxu0
        %v6784 = vadd.f32 %v6200, %v6783
        %v6785 = vpop.f32.mrb[0].mxu0
        %6786 = vmatprep.mubr.bf16.mxu0 0
        %6787 = vmatmul.mubr.bf16.gmra.mrb[0].mxu0 %v6176
        %v6788 = vpop.f32.mrb[0].mxu0
        %v6789 = vadd.f32 %v6200, %v6788
        %v6790 = vpop.f32.mrb[0].mxu0
        %v6791 = vpop.f32.mrb[0].mxu0
        %v6792 = vadd.f32 %v6200, %v6791
        %v6793 = vpop.f32.mrb[0].mxu0
        %6794 = vdwg.mxu0
        %v6795 = vand.u32 2147483647, %v6285
        %v6796 = vand.u32 2147483647, %v6288
        %v6797 = vand.u32 2147483647, %v6293
        %v6798 = vand.u32 2147483647, %v6296
        %v6799 = vand.u32 2147483647, %v6301
        %v6800 = vand.u32 2147483647, %v6304
        %v6801 = vand.u32 2147483647, %v6309
        %v6802 = vand.u32 2147483647, %v6312
        %v6803 = vand.u32 2147483647, %v6317
        %v6804 = vand.u32 2147483647, %v6320
        %v6805 = vand.u32 2147483647, %v6325
        %v6806 = vand.u32 2147483647, %v6328
        %v6807 = vand.u32 2147483647, %v6333
        %v6808 = vand.u32 2147483647, %v6336
        %v6809 = vand.u32 2147483647, %v6341
        %v6810 = vand.u32 2147483647, %v6344
        %v6811 = vand.u32 2147483647, %v6349
        %v6812 = vand.u32 2147483647, %v6352
        %v6813 = vand.u32 2147483647, %v6357
        %v6814 = vand.u32 2147483647, %v6360
        %v6815 = vand.u32 2147483647, %v6365
        %v6816 = vand.u32 2147483647, %v6368
        %v6817 = vand.u32 2147483647, %v6373
        %v6818 = vand.u32 2147483647, %v6376
        %v6819 = vand.u32 2147483647, %v6381
        %v6820 = vand.u32 2147483647, %v6384
        %v6821 = vand.u32 2147483647, %v6389
        %v6822 = vand.u32 2147483647, %v6392
        %v6823 = vand.u32 2147483647, %v6397
        %v6824 = vand.u32 2147483647, %v6400
        %v6825 = vand.u32 2147483647, %v6405
        %v6826 = vand.u32 2147483647, %v6408
        %v6827 = vand.u32 2147483647, %v6413
        %v6828 = vand.u32 2147483647, %v6416
        %v6829 = vand.u32 2147483647, %v6421
        %v6830 = vand.u32 2147483647, %v6424
        %v6831 = vand.u32 2147483647, %v6429
        %v6832 = vand.u32 2147483647, %v6432
        %v6833 = vand.u32 2147483647, %v6437
        %v6834 = vand.u32 2147483647, %v6440
        %v6835 = vand.u32 2147483647, %v6445
        %v6836 = vand.u32 2147483647, %v6448
        %v6837 = vand.u32 2147483647, %v6453
        %v6838 = vand.u32 2147483647, %v6456
        %v6839 = vand.u32 2147483647, %v6461
        %v6840 = vand.u32 2147483647, %v6464
        %v6841 = vand.u32 2147483647, %v6469
        %v6842 = vand.u32 2147483647, %v6472
        %v6843 = vand.u32 2147483647, %v6477
        %v6844 = vand.u32 2147483647, %v6480
        %v6845 = vand.u32 2147483647, %v6485
        %v6846 = vand.u32 2147483647, %v6488
        %v6847 = vand.u32 2147483647, %v6493
        %v6848 = vand.u32 2147483647, %v6496
        %v6849 = vand.u32 2147483647, %v6501
        %v6850 = vand.u32 2147483647, %v6504
        %v6851 = vand.u32 2147483647, %v6509
        %v6852 = vand.u32 2147483647, %v6512
        %v6853 = vand.u32 2147483647, %v6517
        %v6854 = vand.u32 2147483647, %v6520
        %v6855 = vand.u32 2147483647, %v6525
        %v6856 = vand.u32 2147483647, %v6528
        %v6857 = vand.u32 2147483647, %v6533
        %v6858 = vand.u32 2147483647, %v6536
        %v6859 = vand.u32 2147483647, %v6541
        %v6860 = vand.u32 2147483647, %v6544
        %v6861 = vand.u32 2147483647, %v6549
        %v6862 = vand.u32 2147483647, %v6552
        %v6863 = vand.u32 2147483647, %v6557
        %v6864 = vand.u32 2147483647, %v6560
        %v6865 = vand.u32 2147483647, %v6565
        %v6866 = vand.u32 2147483647, %v6568
        %v6867 = vand.u32 2147483647, %v6573
        %v6868 = vand.u32 2147483647, %v6576
        %v6869 = vand.u32 2147483647, %v6581
        %v6870 = vand.u32 2147483647, %v6584
        %v6871 = vand.u32 2147483647, %v6589
        %v6872 = vand.u32 2147483647, %v6592
        %v6873 = vand.u32 2147483647, %v6597
        %v6874 = vand.u32 2147483647, %v6600
        %v6875 = vand.u32 2147483647, %v6605
        %v6876 = vand.u32 2147483647, %v6608
        %v6877 = vand.u32 2147483647, %v6613
        %v6878 = vand.u32 2147483647, %v6616
        %v6879 = vand.u32 2147483647, %v6621
        %v6880 = vand.u32 2147483647, %v6624
        %v6881 = vand.u32 2147483647, %v6629
        %v6882 = vand.u32 2147483647, %v6632
        %v6883 = vand.u32 2147483647, %v6637
        %v6884 = vand.u32 2147483647, %v6640
        %v6885 = vand.u32 2147483647, %v6645
        %v6886 = vand.u32 2147483647, %v6648
        %v6887 = vand.u32 2147483647, %v6653
        %v6888 = vand.u32 2147483647, %v6656
        %v6889 = vand.u32 2147483647, %v6661
        %v6890 = vand.u32 2147483647, %v6664
        %v6891 = vand.u32 2147483647, %v6669
        %v6892 = vand.u32 2147483647, %v6672
        %v6893 = vand.u32 2147483647, %v6677
        %v6894 = vand.u32 2147483647, %v6680
        %v6895 = vand.u32 2147483647, %v6685
        %v6896 = vand.u32 2147483647, %v6688
        %v6897 = vand.u32 2147483647, %v6693
        %v6898 = vand.u32 2147483647, %v6696
        %v6899 = vand.u32 2147483647, %v6701
        %v6900 = vand.u32 2147483647, %v6704
        %v6901 = vand.u32 2147483647, %v6709
        %v6902 = vand.u32 2147483647, %v6712
        %v6903 = vand.u32 2147483647, %v6717
        %v6904 = vand.u32 2147483647, %v6720
        %v6905 = vand.u32 2147483647, %v6725
        %v6906 = vand.u32 2147483647, %v6728
        %v6907 = vand.u32 2147483647, %v6733
        %v6908 = vand.u32 2147483647, %v6736
        %v6909 = vand.u32 2147483647, %v6741
        %v6910 = vand.u32 2147483647, %v6744
        %v6911 = vand.u32 2147483647, %v6749
        %v6912 = vand.u32 2147483647, %v6752
        %v6913 = vand.u32 2147483647, %v6757
        %v6914 = vand.u32 2147483647, %v6760
        %v6915 = vand.u32 2147483647, %v6765
        %v6916 = vand.u32 2147483647, %v6768
        %v6917 = vand.u32 2147483647, %v6773
        %v6918 = vand.u32 2147483647, %v6776
        %v6919 = vand.u32 2147483647, %v6781
        %v6920 = vand.u32 2147483647, %v6784
        %v6921 = vand.u32 2147483647, %v6789
        %v6922 = vand.u32 2147483647, %v6792
        %v6923 = vadd.f32 %v6795, 1.0
        %v6924 = vadd.f32 %v6796, 1.0
        %v6925 = vadd.f32 %v6797, 1.0
        %v6926 = vadd.f32 %v6798, 1.0
        %v6927 = vadd.f32 %v6799, 1.0
        %v6928 = vadd.f32 %v6800, 1.0
        %v6929 = vadd.f32 %v6801, 1.0
        %v6930 = vadd.f32 %v6802, 1.0
        %v6931 = vadd.f32 %v6803, 1.0
        %v6932 = vadd.f32 %v6804, 1.0
        %v6933 = vadd.f32 %v6805, 1.0
        %v6934 = vadd.f32 %v6806, 1.0
        %v6935 = vadd.f32 %v6807, 1.0
        %v6936 = vadd.f32 %v6808, 1.0
        %v6937 = vadd.f32 %v6809, 1.0
        %v6938 = vadd.f32 %v6810, 1.0
        %v6939 = vadd.f32 %v6811, 1.0
        %v6940 = vadd.f32 %v6812, 1.0
        %v6941 = vadd.f32 %v6813, 1.0
        %v6942 = vadd.f32 %v6814, 1.0
        %v6943 = vadd.f32 %v6815, 1.0
        %v6944 = vadd.f32 %v6816, 1.0
        %v6945 = vadd.f32 %v6817, 1.0
        %v6946 = vadd.f32 %v6818, 1.0
        %v6947 = vadd.f32 %v6819, 1.0
        %v6948 = vadd.f32 %v6820, 1.0
        %v6949 = vadd.f32 %v6821, 1.0
        %v6950 = vadd.f32 %v6822, 1.0
        %v6951 = vadd.f32 %v6823, 1.0
        %v6952 = vadd.f32 %v6824, 1.0
        %v6953 = vadd.f32 %v6825, 1.0
        %v6954 = vadd.f32 %v6826, 1.0
        %v6955 = vadd.f32 %v6827, 1.0
        %v6956 = vadd.f32 %v6828, 1.0
        %v6957 = vadd.f32 %v6829, 1.0
        %v6958 = vadd.f32 %v6830, 1.0
        %v6959 = vadd.f32 %v6831, 1.0
        %v6960 = vadd.f32 %v6832, 1.0
        %v6961 = vadd.f32 %v6833, 1.0
        %v6962 = vadd.f32 %v6834, 1.0
        %v6963 = vadd.f32 %v6835, 1.0
        %v6964 = vadd.f32 %v6836, 1.0
        %v6965 = vadd.f32 %v6837, 1.0
        %v6966 = vadd.f32 %v6838, 1.0
        %v6967 = vadd.f32 %v6839, 1.0
        %v6968 = vadd.f32 %v6840, 1.0
        %v6969 = vadd.f32 %v6841, 1.0
        %v6970 = vadd.f32 %v6842, 1.0
        %v6971 = vadd.f32 %v6843, 1.0
        %v6972 = vadd.f32 %v6844, 1.0
        %v6973 = vadd.f32 %v6845, 1.0
        %v6974 = vadd.f32 %v6846, 1.0
        %v6975 = vadd.f32 %v6847, 1.0
        %v6976 = vadd.f32 %v6848, 1.0
        %v6977 = vadd.f32 %v6849, 1.0
        %v6978 = vadd.f32 %v6850, 1.0
        %v6979 = vadd.f32 %v6851, 1.0
        %v6980 = vadd.f32 %v6852, 1.0
        %v6981 = vadd.f32 %v6853, 1.0
        %v6982 = vadd.f32 %v6854, 1.0
        %v6983 = vadd.f32 %v6855, 1.0
        %v6984 = vadd.f32 %v6856, 1.0
        %v6985 = vadd.f32 %v6857, 1.0
        %v6986 = vadd.f32 %v6858, 1.0
        %v6987 = vadd.f32 %v6859, 1.0
        %v6988 = vadd.f32 %v6860, 1.0
        %v6989 = vadd.f32 %v6861, 1.0
        %v6990 = vadd.f32 %v6862, 1.0
        %v6991 = vadd.f32 %v6863, 1.0
        %v6992 = vadd.f32 %v6864, 1.0
        %v6993 = vadd.f32 %v6865, 1.0
        %v6994 = vadd.f32 %v6866, 1.0
        %v6995 = vadd.f32 %v6867, 1.0
        %v6996 = vadd.f32 %v6868, 1.0
        %v6997 = vadd.f32 %v6869, 1.0
        %v6998 = vadd.f32 %v6870, 1.0
        %v6999 = vadd.f32 %v6871, 1.0
        %v7000 = vadd.f32 %v6872, 1.0
        %v7001 = vadd.f32 %v6873, 1.0
        %v7002 = vadd.f32 %v6874, 1.0
        %v7003 = vadd.f32 %v6875, 1.0
        %v7004 = vadd.f32 %v6876, 1.0
        %v7005 = vadd.f32 %v6877, 1.0
        %v7006 = vadd.f32 %v6878, 1.0
        %v7007 = vadd.f32 %v6879, 1.0
        %v7008 = vadd.f32 %v6880, 1.0
        %v7009 = vadd.f32 %v6881, 1.0
        %v7010 = vadd.f32 %v6882, 1.0
        %v7011 = vadd.f32 %v6883, 1.0
        %v7012 = vadd.f32 %v6884, 1.0
        %v7013 = vadd.f32 %v6885, 1.0
        %v7014 = vadd.f32 %v6886, 1.0
        %v7015 = vadd.f32 %v6887, 1.0
        %v7016 = vadd.f32 %v6888, 1.0
        %v7017 = vadd.f32 %v6889, 1.0
        %v7018 = vadd.f32 %v6890, 1.0
        %v7019 = vadd.f32 %v6891, 1.0
        %v7020 = vadd.f32 %v6892, 1.0
        %v7021 = vadd.f32 %v6893, 1.0
        %v7022 = vadd.f32 %v6894, 1.0
        %v7023 = vadd.f32 %v6895, 1.0
        %v7024 = vadd.f32 %v6896, 1.0
        %v7025 = vadd.f32 %v6897, 1.0
        %v7026 = vadd.f32 %v6898, 1.0
        %v7027 = vadd.f32 %v6899, 1.0
        %v7028 = vadd.f32 %v6900, 1.0
        %v7029 = vadd.f32 %v6901, 1.0
        %v7030 = vadd.f32 %v6902, 1.0
        %v7031 = vadd.f32 %v6903, 1.0
        %v7032 = vadd.f32 %v6904, 1.0
        %v7033 = vadd.f32 %v6905, 1.0
        %v7034 = vadd.f32 %v6906, 1.0
        %v7035 = vadd.f32 %v6907, 1.0
        %v7036 = vadd.f32 %v6908, 1.0
        %v7037 = vadd.f32 %v6909, 1.0
        %v7038 = vadd.f32 %v6910, 1.0
        %v7039 = vadd.f32 %v6911, 1.0
        %v7040 = vadd.f32 %v6912, 1.0
        %v7041 = vadd.f32 %v6913, 1.0
        %v7042 = vadd.f32 %v6914, 1.0
        %v7043 = vadd.f32 %v6915, 1.0
        %v7044 = vadd.f32 %v6916, 1.0
        %v7045 = vadd.f32 %v6917, 1.0
        %v7046 = vadd.f32 %v6918, 1.0
        %v7047 = vadd.f32 %v6919, 1.0
        %v7048 = vadd.f32 %v6920, 1.0
        %v7049 = vadd.f32 %v6921, 1.0
        %v7050 = vadd.f32 %v6922, 1.0
        %v7051 = vmul.f32 %v6923, %v6285
        %v7052 = vmul.f32 %v6924, %v6288
        %v7053 = vmul.f32 %v6925, %v6293
        %v7054 = vmul.f32 %v6926, %v6296
        %v7055 = vmul.f32 %v6927, %v6301
        %v7056 = vmul.f32 %v6928, %v6304
        %v7057 = vmul.f32 %v6929, %v6309
        %v7058 = vmul.f32 %v6930, %v6312
        %v7059 = vmul.f32 %v6931, %v6317
        %v7060 = vmul.f32 %v6932, %v6320
        %v7061 = vmul.f32 %v6933, %v6325
        %v7062 = vmul.f32 %v6934, %v6328
        %v7063 = vmul.f32 %v6935, %v6333
        %v7064 = vmul.f32 %v6936, %v6336
        %v7065 = vmul.f32 %v6937, %v6341
        %v7066 = vmul.f32 %v6938, %v6344
        %v7067 = vmul.f32 %v6939, %v6349
        %v7068 = vmul.f32 %v6940, %v6352
        %v7069 = vmul.f32 %v6941, %v6357
        %v7070 = vmul.f32 %v6942, %v6360
        %v7071 = vmul.f32 %v6943, %v6365
        %v7072 = vmul.f32 %v6944, %v6368
        %v7073 = vmul.f32 %v6945, %v6373
        %v7074 = vmul.f32 %v6946, %v6376
        %v7075 = vmul.f32 %v6947, %v6381
        %v7076 = vmul.f32 %v6948, %v6384
        %v7077 = vmul.f32 %v6949, %v6389
        %v7078 = vmul.f32 %v6950, %v6392
        %v7079 = vmul.f32 %v6951, %v6397
        %v7080 = vmul.f32 %v6952, %v6400
        %v7081 = vmul.f32 %v6953, %v6405
        %v7082 = vmul.f32 %v6954, %v6408
        %v7083 = vmul.f32 %v6955, %v6413
        %v7084 = vmul.f32 %v6956, %v6416
        %v7085 = vmul.f32 %v6957, %v6421
        %v7086 = vmul.f32 %v6958, %v6424
        %v7087 = vmul.f32 %v6959, %v6429
        %v7088 = vmul.f32 %v6960, %v6432
        %v7089 = vmul.f32 %v6961, %v6437
        %v7090 = vmul.f32 %v6962, %v6440
        %v7091 = vmul.f32 %v6963, %v6445
        %v7092 = vmul.f32 %v6964, %v6448
        %v7093 = vmul.f32 %v6965, %v6453
        %v7094 = vmul.f32 %v6966, %v6456
        %v7095 = vmul.f32 %v6967, %v6461
        %v7096 = vmul.f32 %v6968, %v6464
        %v7097 = vmul.f32 %v6969, %v6469
        %v7098 = vmul.f32 %v6970, %v6472
        %v7099 = vmul.f32 %v6971, %v6477
        %v7100 = vmul.f32 %v6972, %v6480
        %v7101 = vmul.f32 %v6973, %v6485
        %v7102 = vmul.f32 %v6974, %v6488
        %v7103 = vmul.f32 %v6975, %v6493
        %v7104 = vmul.f32 %v6976, %v6496
        %v7105 = vmul.f32 %v6977, %v6501
        %v7106 = vmul.f32 %v6978, %v6504
        %v7107 = vmul.f32 %v6979, %v6509
        %v7108 = vmul.f32 %v6980, %v6512
        %v7109 = vmul.f32 %v6981, %v6517
        %v7110 = vmul.f32 %v6982, %v6520
        %v7111 = vmul.f32 %v6983, %v6525
        %v7112 = vmul.f32 %v6984, %v6528
        %v7113 = vmul.f32 %v6985, %v6533
        %v7114 = vmul.f32 %v6986, %v6536
        %v7115 = vmul.f32 %v6987, %v6541
        %v7116 = vmul.f32 %v6988, %v6544
        %v7117 = vmul.f32 %v6989, %v6549
        %v7118 = vmul.f32 %v6990, %v6552
        %v7119 = vmul.f32 %v6991, %v6557
        %v7120 = vmul.f32 %v6992, %v6560
        %v7121 = vmul.f32 %v6993, %v6565
        %v7122 = vmul.f32 %v6994, %v6568
        %v7123 = vmul.f32 %v6995, %v6573
        %v7124 = vmul.f32 %v6996, %v6576
        %v7125 = vmul.f32 %v6997, %v6581
        %v7126 = vmul.f32 %v6998, %v6584
        %v7127 = vmul.f32 %v6999, %v6589
        %v7128 = vmul.f32 %v7000, %v6592
        %v7129 = vmul.f32 %v7001, %v6597
        %v7130 = vmul.f32 %v7002, %v6600
        %v7131 = vmul.f32 %v7003, %v6605
        %v7132 = vmul.f32 %v7004, %v6608
        %v7133 = vmul.f32 %v7005, %v6613
        %v7134 = vmul.f32 %v7006, %v6616
        %v7135 = vmul.f32 %v7007, %v6621
        %v7136 = vmul.f32 %v7008, %v6624
        %v7137 = vmul.f32 %v7009, %v6629
        %v7138 = vmul.f32 %v7010, %v6632
        %v7139 = vmul.f32 %v7011, %v6637
        %v7140 = vmul.f32 %v7012, %v6640
        %v7141 = vmul.f32 %v7013, %v6645
        %v7142 = vmul.f32 %v7014, %v6648
        %v7143 = vmul.f32 %v7015, %v6653
        %v7144 = vmul.f32 %v7016, %v6656
        %v7145 = vmul.f32 %v7017, %v6661
        %v7146 = vmul.f32 %v7018, %v6664
        %v7147 = vmul.f32 %v7019, %v6669
        %v7148 = vmul.f32 %v7020, %v6672
        %v7149 = vmul.f32 %v7021, %v6677
        %v7150 = vmul.f32 %v7022, %v6680
        %v7151 = vmul.f32 %v7023, %v6685
        %v7152 = vmul.f32 %v7024, %v6688
        %v7153 = vmul.f32 %v7025, %v6693
        %v7154 = vmul.f32 %v7026, %v6696
        %v7155 = vmul.f32 %v7027, %v6701
        %v7156 = vmul.f32 %v7028, %v6704
        %v7157 = vmul.f32 %v7029, %v6709
        %v7158 = vmul.f32 %v7030, %v6712
        %v7159 = vmul.f32 %v7031, %v6717
        %v7160 = vmul.f32 %v7032, %v6720
        %v7161 = vmul.f32 %v7033, %v6725
        %v7162 = vmul.f32 %v7034, %v6728
        %v7163 = vmul.f32 %v7035, %v6733
        %v7164 = vmul.f32 %v7036, %v6736
        %v7165 = vmul.f32 %v7037, %v6741
        %v7166 = vmul.f32 %v7038, %v6744
        %v7167 = vmul.f32 %v7039, %v6749
        %v7168 = vmul.f32 %v7040, %v6752
        %v7169 = vmul.f32 %v7041, %v6757
        %v7170 = vmul.f32 %v7042, %v6760
        %v7171 = vmul.f32 %v7043, %v6765
        %v7172 = vmul.f32 %v7044, %v6768
        %v7173 = vmul.f32 %v7045, %v6773
        %v7174 = vmul.f32 %v7046, %v6776
        %v7175 = vmul.f32 %v7047, %v6781
        %v7176 = vmul.f32 %v7048, %v6784
        %v7177 = vmul.f32 %v7049, %v6789
        %v7178 = vmul.f32 %v7050, %v6792
        %v7179 = vmul.f32 %v7051, %v7051
        %v7180 = vmul.f32 %v7052, %v7052
        %v7181 = vmul.f32 %v7053, %v7053
        %v7182 = vmul.f32 %v7054, %v7054
        %v7183 = vmul.f32 %v7055, %v7055
        %v7184 = vmul.f32 %v7056, %v7056
        %v7185 = vmul.f32 %v7057, %v7057
        %v7186 = vmul.f32 %v7058, %v7058
        %v7187 = vmul.f32 %v7059, %v7059
        %v7188 = vmul.f32 %v7060, %v7060
        %v7189 = vmul.f32 %v7061, %v7061
        %v7190 = vmul.f32 %v7062, %v7062
        %v7191 = vmul.f32 %v7063, %v7063
        %v7192 = vmul.f32 %v7064, %v7064
        %v7193 = vmul.f32 %v7065, %v7065
        %v7194 = vmul.f32 %v7066, %v7066
        %v7195 = vmul.f32 %v7067, %v7067
        %v7196 = vmul.f32 %v7068, %v7068
        %v7197 = vmul.f32 %v7069, %v7069
        %v7198 = vmul.f32 %v7070, %v7070
        %v7199 = vmul.f32 %v7071, %v7071
        %v7200 = vmul.f32 %v7072, %v7072
        %v7201 = vmul.f32 %v7073, %v7073
        %v7202 = vmul.f32 %v7074, %v7074
        %v7203 = vmul.f32 %v7075, %v7075
        %v7204 = vmul.f32 %v7076, %v7076
        %v7205 = vmul.f32 %v7077, %v7077
        %v7206 = vmul.f32 %v7078, %v7078
        %v7207 = vmul.f32 %v7079, %v7079
        %v7208 = vmul.f32 %v7080, %v7080
        %v7209 = vmul.f32 %v7081, %v7081
        %v7210 = vmul.f32 %v7082, %v7082
        %v7211 = vmul.f32 %v7083, %v7083
        %v7212 = vmul.f32 %v7084, %v7084
        %v7213 = vmul.f32 %v7085, %v7085
        %v7214 = vmul.f32 %v7086, %v7086
        %v7215 = vmul.f32 %v7087, %v7087
        %v7216 = vmul.f32 %v7088, %v7088
        %v7217 = vmul.f32 %v7089, %v7089
        %v7218 = vmul.f32 %v7090, %v7090
        %v7219 = vmul.f32 %v7091, %v7091
        %v7220 = vmul.f32 %v7092, %v7092
        %v7221 = vmul.f32 %v7093, %v7093
        %v7222 = vmul.f32 %v7094, %v7094
        %v7223 = vmul.f32 %v7095, %v7095
        %v7224 = vmul.f32 %v7096, %v7096
        %v7225 = vmul.f32 %v7097, %v7097
        %v7226 = vmul.f32 %v7098, %v7098
        %v7227 = vmul.f32 %v7099, %v7099
        %v7228 = vmul.f32 %v7100, %v7100
        %v7229 = vmul.f32 %v7101, %v7101
        %v7230 = vmul.f32 %v7102, %v7102
        %v7231 = vmul.f32 %v7103, %v7103
        %v7232 = vmul.f32 %v7104, %v7104
        %v7233 = vmul.f32 %v7105, %v7105
        %v7234 = vmul.f32 %v7106, %v7106
        %v7235 = vmul.f32 %v7107, %v7107
        %v7236 = vmul.f32 %v7108, %v7108
        %v7237 = vmul.f32 %v7109, %v7109
        %v7238 = vmul.f32 %v7110, %v7110
        %v7239 = vmul.f32 %v7111, %v7111
        %v7240 = vmul.f32 %v7112, %v7112
        %v7241 = vmul.f32 %v7113, %v7113
        %v7242 = vmul.f32 %v7114, %v7114
        %v7243 = vmul.f32 %v7115, %v7115
        %v7244 = vmul.f32 %v7116, %v7116
        %v7245 = vmul.f32 %v7117, %v7117
        %v7246 = vmul.f32 %v7118, %v7118
        %v7247 = vmul.f32 %v7119, %v7119
        %v7248 = vmul.f32 %v7120, %v7120
        %v7249 = vmul.f32 %v7121, %v7121
        %v7250 = vmul.f32 %v7122, %v7122
        %v7251 = vmul.f32 %v7123, %v7123
        %v7252 = vmul.f32 %v7124, %v7124
        %v7253 = vmul.f32 %v7125, %v7125
        %v7254 = vmul.f32 %v7126, %v7126
        %v7255 = vmul.f32 %v7127, %v7127
        %v7256 = vmul.f32 %v7128, %v7128
        %v7257 = vmul.f32 %v7129, %v7129
        %v7258 = vmul.f32 %v7130, %v7130
        %v7259 = vmul.f32 %v7131, %v7131
        %v7260 = vmul.f32 %v7132, %v7132
        %v7261 = vmul.f32 %v7133, %v7133
        %v7262 = vmul.f32 %v7134, %v7134
        %v7263 = vmul.f32 %v7135, %v7135
        %v7264 = vmul.f32 %v7136, %v7136
        %v7265 = vmul.f32 %v7137, %v7137
        %v7266 = vmul.f32 %v7138, %v7138
        %v7267 = vmul.f32 %v7139, %v7139
        %v7268 = vmul.f32 %v7140, %v7140
        %v7269 = vmul.f32 %v7141, %v7141
        %v7270 = vmul.f32 %v7142, %v7142
        %v7271 = vmul.f32 %v7143, %v7143
        %v7272 = vmul.f32 %v7144, %v7144
        %v7273 = vmul.f32 %v7145, %v7145
        %v7274 = vmul.f32 %v7146, %v7146
        %v7275 = vmul.f32 %v7147, %v7147
        %v7276 = vmul.f32 %v7148, %v7148
        %v7277 = vmul.f32 %v7149, %v7149
        %v7278 = vmul.f32 %v7150, %v7150
        %v7279 = vmul.f32 %v7151, %v7151
        %v7280 = vmul.f32 %v7152, %v7152
        %v7281 = vmul.f32 %v7153, %v7153
        %v7282 = vmul.f32 %v7154, %v7154
        %v7283 = vmul.f32 %v7155, %v7155
        %v7284 = vmul.f32 %v7156, %v7156
        %v7285 = vmul.f32 %v7157, %v7157
        %v7286 = vmul.f32 %v7158, %v7158
        %v7287 = vmul.f32 %v7159, %v7159
        %v7288 = vmul.f32 %v7160, %v7160
        %v7289 = vmul.f32 %v7161, %v7161
        %v7290 = vmul.f32 %v7162, %v7162
        %v7291 = vmul.f32 %v7163, %v7163
        %v7292 = vmul.f32 %v7164, %v7164
        %v7293 = vmul.f32 %v7165, %v7165
        %v7294 = vmul.f32 %v7166, %v7166
        %v7295 = vmul.f32 %v7167, %v7167
        %v7296 = vmul.f32 %v7168, %v7168
        %v7297 = vmul.f32 %v7169, %v7169
        %v7298 = vmul.f32 %v7170, %v7170
        %v7299 = vmul.f32 %v7171, %v7171
        %v7300 = vmul.f32 %v7172, %v7172
        %v7301 = vmul.f32 %v7173, %v7173
        %v7302 = vmul.f32 %v7174, %v7174
        %v7303 = vmul.f32 %v7175, %v7175
        %v7304 = vmul.f32 %v7176, %v7176
        %v7305 = vmul.f32 %v7177, %v7177
        %v7306 = vmul.f32 %v7178, %v7178
        %v7307 = vmul.f32 %v7179, -2812.5
        %v7308 = vmul.f32 %v7180, -2812.5
        %v7309 = vmul.f32 %v7181, -2812.5
        %v7310 = vmul.f32 %v7182, -2812.5
        %v7311 = vmul.f32 %v7183, -2812.5
        %v7312 = vmul.f32 %v7184, -2812.5
        %v7313 = vmul.f32 %v7185, -2812.5
        %v7314 = vmul.f32 %v7186, -2812.5
        %v7315 = vmul.f32 %v7187, -2812.5
        %v7316 = vmul.f32 %v7188, -2812.5
        %v7317 = vmul.f32 %v7189, -2812.5
        %v7318 = vmul.f32 %v7190, -2812.5
        %v7319 = vmul.f32 %v7191, -2812.5
        %v7320 = vmul.f32 %v7192, -2812.5
        %v7321 = vmul.f32 %v7193, -2812.5
        %v7322 = vmul.f32 %v7194, -2812.5
        %v7323 = vmul.f32 %v7195, -2812.5
        %v7324 = vmul.f32 %v7196, -2812.5
        %v7325 = vmul.f32 %v7197, -2812.5
        %v7326 = vmul.f32 %v7198, -2812.5
        %v7327 = vmul.f32 %v7199, -2812.5
        %v7328 = vmul.f32 %v7200, -2812.5
        %v7329 = vmul.f32 %v7201, -2812.5
        %v7330 = vmul.f32 %v7202, -2812.5
        %v7331 = vmul.f32 %v7203, -2812.5
        %v7332 = vmul.f32 %v7204, -2812.5
        %v7333 = vmul.f32 %v7205, -2812.5
        %v7334 = vmul.f32 %v7206, -2812.5
        %v7335 = vmul.f32 %v7207, -2812.5
        %v7336 = vmul.f32 %v7208, -2812.5
        %v7337 = vmul.f32 %v7209, -2812.5
        %v7338 = vmul.f32 %v7210, -2812.5
        %v7339 = vmul.f32 %v7211, -2812.5
        %v7340 = vmul.f32 %v7212, -2812.5
        %v7341 = vmul.f32 %v7213, -2812.5
        %v7342 = vmul.f32 %v7214, -2812.5
        %v7343 = vmul.f32 %v7215, -2812.5
        %v7344 = vmul.f32 %v7216, -2812.5
        %v7345 = vmul.f32 %v7217, -2812.5
        %v7346 = vmul.f32 %v7218, -2812.5
        %v7347 = vmul.f32 %v7219, -2812.5
        %v7348 = vmul.f32 %v7220, -2812.5
        %v7349 = vmul.f32 %v7221, -2812.5
        %v7350 = vmul.f32 %v7222, -2812.5
        %v7351 = vmul.f32 %v7223, -2812.5
        %v7352 = vmul.f32 %v7224, -2812.5
        %v7353 = vmul.f32 %v7225, -2812.5
        %v7354 = vmul.f32 %v7226, -2812.5
        %v7355 = vmul.f32 %v7227, -2812.5
        %v7356 = vmul.f32 %v7228, -2812.5
        %v7357 = vmul.f32 %v7229, -2812.5
        %v7358 = vmul.f32 %v7230, -2812.5
        %v7359 = vmul.f32 %v7231, -2812.5
        %v7360 = vmul.f32 %v7232, -2812.5
        %v7361 = vmul.f32 %v7233, -2812.5
        %v7362 = vmul.f32 %v7234, -2812.5
        %v7363 = vmul.f32 %v7235, -2812.5
        %v7364 = vmul.f32 %v7236, -2812.5
        %v7365 = vmul.f32 %v7237, -2812.5
        %v7366 = vmul.f32 %v7238, -2812.5
        %v7367 = vmul.f32 %v7239, -2812.5
        %v7368 = vmul.f32 %v7240, -2812.5
        %v7369 = vmul.f32 %v7241, -2812.5
        %v7370 = vmul.f32 %v7242, -2812.5
        %v7371 = vmul.f32 %v7243, -2812.5
        %v7372 = vmul.f32 %v7244, -2812.5
        %v7373 = vmul.f32 %v7245, -2812.5
        %v7374 = vmul.f32 %v7246, -2812.5
        %v7375 = vmul.f32 %v7247, -2812.5
        %v7376 = vmul.f32 %v7248, -2812.5
        %v7377 = vmul.f32 %v7249, -2812.5
        %v7378 = vmul.f32 %v7250, -2812.5
        %v7379 = vmul.f32 %v7251, -2812.5
        %v7380 = vmul.f32 %v7252, -2812.5
        %v7381 = vmul.f32 %v7253, -2812.5
        %v7382 = vmul.f32 %v7254, -2812.5
        %v7383 = vmul.f32 %v7255, -2812.5
        %v7384 = vmul.f32 %v7256, -2812.5
        %v7385 = vmul.f32 %v7257, -2812.5
        %v7386 = vmul.f32 %v7258, -2812.5
        %v7387 = vmul.f32 %v7259, -2812.5
        %v7388 = vmul.f32 %v7260, -2812.5
        %v7389 = vmul.f32 %v7261, -2812.5
        %v7390 = vmul.f32 %v7262, -2812.5
        %v7391 = vmul.f32 %v7263, -2812.5
        %v7392 = vmul.f32 %v7264, -2812.5
        %v7393 = vmul.f32 %v7265, -2812.5
        %v7394 = vmul.f32 %v7266, -2812.5
        %v7395 = vmul.f32 %v7267, -2812.5
        %v7396 = vmul.f32 %v7268, -2812.5
        %v7397 = vmul.f32 %v7269, -2812.5
        %v7398 = vmul.f32 %v7270, -2812.5
        %v7399 = vmul.f32 %v7271, -2812.5
        %v7400 = vmul.f32 %v7272, -2812.5
        %v7401 = vmul.f32 %v7273, -2812.5
        %v7402 = vmul.f32 %v7274, -2812.5
        %v7403 = vmul.f32 %v7275, -2812.5
        %v7404 = vmul.f32 %v7276, -2812.5
        %v7405 = vmul.f32 %v7277, -2812.5
        %v7406 = vmul.f32 %v7278, -2812.5
        %v7407 = vmul.f32 %v7279, -2812.5
        %v7408 = vmul.f32 %v7280, -2812.5
        %v7409 = vmul.f32 %v7281, -2812.5
        %v7410 = vmul.f32 %v7282, -2812.5
        %v7411 = vmul.f32 %v7283, -2812.5
        %v7412 = vmul.f32 %v7284, -2812.5
        %v7413 = vmul.f32 %v7285, -2812.5
        %v7414 = vmul.f32 %v7286, -2812.5
        %v7415 = vmul.f32 %v7287, -2812.5
        %v7416 = vmul.f32 %v7288, -2812.5
        %v7417 = vmul.f32 %v7289, -2812.5
        %v7418 = vmul.f32 %v7290, -2812.5
        %v7419 = vmul.f32 %v7291, -2812.5
        %v7420 = vmul.f32 %v7292, -2812.5
        %v7421 = vmul.f32 %v7293, -2812.5
        %v7422 = vmul.f32 %v7294, -2812.5
        %v7423 = vmul.f32 %v7295, -2812.5
        %v7424 = vmul.f32 %v7296, -2812.5
        %v7425 = vmul.f32 %v7297, -2812.5
        %v7426 = vmul.f32 %v7298, -2812.5
        %v7427 = vmul.f32 %v7299, -2812.5
        %v7428 = vmul.f32 %v7300, -2812.5
        %v7429 = vmul.f32 %v7301, -2812.5
        %v7430 = vmul.f32 %v7302, -2812.5
        %v7431 = vmul.f32 %v7303, -2812.5
        %v7432 = vmul.f32 %v7304, -2812.5
        %v7433 = vmul.f32 %v7305, -2812.5
        %v7434 = vmul.f32 %v7306, -2812.5
        %v7435 = vmul.f32 %v7307, 1.442695
        %v7436 = vpow.pop %v7435
        %v7437 = vmul.f32 %v7308, 1.442695
        %v7438 = vpow.pop %v7437
        %v7439 = vmul.f32 %v7309, 1.442695
        %v7440 = vpow.pop %v7439
        %v7441 = vmul.f32 %v7310, 1.442695
        %v7442 = vpow.pop %v7441
        %v7443 = vmul.f32 %v7311, 1.442695
        %v7444 = vpow.pop %v7443
        %v7445 = vmul.f32 %v7312, 1.442695
        %v7446 = vpow.pop %v7445
        %v7447 = vmul.f32 %v7313, 1.442695
        %v7448 = vpow.pop %v7447
        %v7449 = vmul.f32 %v7314, 1.442695
        %v7450 = vpow.pop %v7449
        %v7451 = vmul.f32 %v7315, 1.442695
        %v7452 = vpow.pop %v7451
        %v7453 = vmul.f32 %v7316, 1.442695
        %v7454 = vpow.pop %v7453
        %v7455 = vmul.f32 %v7317, 1.442695
        %v7456 = vpow.pop %v7455
        %v7457 = vmul.f32 %v7318, 1.442695
        %v7458 = vpow.pop %v7457
        %v7459 = vmul.f32 %v7319, 1.442695
        %v7460 = vpow.pop %v7459
        %v7461 = vmul.f32 %v7320, 1.442695
        %v7462 = vpow.pop %v7461
        %v7463 = vmul.f32 %v7321, 1.442695
        %v7464 = vpow.pop %v7463
        %v7465 = vmul.f32 %v7322, 1.442695
        %v7466 = vpow.pop %v7465
        %v7467 = vmul.f32 %v7323, 1.442695
        %v7468 = vpow.pop %v7467
        %v7469 = vmul.f32 %v7324, 1.442695
        %v7470 = vpow.pop %v7469
        %v7471 = vmul.f32 %v7325, 1.442695
        %v7472 = vpow.pop %v7471
        %v7473 = vmul.f32 %v7326, 1.442695
        %v7474 = vpow.pop %v7473
        %v7475 = vmul.f32 %v7327, 1.442695
        %v7476 = vpow.pop %v7475
        %v7477 = vmul.f32 %v7328, 1.442695
        %v7478 = vpow.pop %v7477
        %v7479 = vmul.f32 %v7329, 1.442695
        %v7480 = vpow.pop %v7479
        %v7481 = vmul.f32 %v7330, 1.442695
        %v7482 = vpow.pop %v7481
        %v7483 = vmul.f32 %v7331, 1.442695
        %v7484 = vpow.pop %v7483
        %v7485 = vmul.f32 %v7332, 1.442695
        %v7486 = vpow.pop %v7485
        %v7487 = vmul.f32 %v7333, 1.442695
        %v7488 = vpow.pop %v7487
        %v7489 = vmul.f32 %v7334, 1.442695
        %v7490 = vpow.pop %v7489
        %v7491 = vmul.f32 %v7335, 1.442695
        %v7492 = vpow.pop %v7491
        %v7493 = vmul.f32 %v7336, 1.442695
        %v7494 = vpow.pop %v7493
        %v7495 = vmul.f32 %v7337, 1.442695
        %v7496 = vpow.pop %v7495
        %v7497 = vmul.f32 %v7338, 1.442695
        %v7498 = vpow.pop %v7497
        %v7499 = vmul.f32 %v7339, 1.442695
        %v7500 = vpow.pop %v7499
        %v7501 = vmul.f32 %v7340, 1.442695
        %v7502 = vpow.pop %v7501
        %v7503 = vmul.f32 %v7341, 1.442695
        %v7504 = vpow.pop %v7503
        %v7505 = vmul.f32 %v7342, 1.442695
        %v7506 = vpow.pop %v7505
        %v7507 = vmul.f32 %v7343, 1.442695
        %v7508 = vpow.pop %v7507
        %v7509 = vmul.f32 %v7344, 1.442695
        %v7510 = vpow.pop %v7509
        %v7511 = vmul.f32 %v7345, 1.442695
        %v7512 = vpow.pop %v7511
        %v7513 = vmul.f32 %v7346, 1.442695
        %v7514 = vpow.pop %v7513
        %v7515 = vmul.f32 %v7347, 1.442695
        %v7516 = vpow.pop %v7515
        %v7517 = vmul.f32 %v7348, 1.442695
        %v7518 = vpow.pop %v7517
        %v7519 = vmul.f32 %v7349, 1.442695
        %v7520 = vpow.pop %v7519
        %v7521 = vmul.f32 %v7350, 1.442695
        %v7522 = vpow.pop %v7521
        %v7523 = vmul.f32 %v7351, 1.442695
        %v7524 = vpow.pop %v7523
        %v7525 = vmul.f32 %v7352, 1.442695
        %v7526 = vpow.pop %v7525
        %v7527 = vmul.f32 %v7353, 1.442695
        %v7528 = vpow.pop %v7527
        %v7529 = vmul.f32 %v7354, 1.442695
        %v7530 = vpow.pop %v7529
        %v7531 = vmul.f32 %v7355, 1.442695
        %v7532 = vpow.pop %v7531
        %v7533 = vmul.f32 %v7356, 1.442695
        %v7534 = vpow.pop %v7533
        %v7535 = vmul.f32 %v7357, 1.442695
        %v7536 = vpow.pop %v7535
        %v7537 = vmul.f32 %v7358, 1.442695
        %v7538 = vpow.pop %v7537
        %v7539 = vmul.f32 %v7359, 1.442695
        %v7540 = vpow.pop %v7539
        %v7541 = vmul.f32 %v7360, 1.442695
        %v7542 = vpow.pop %v7541
        %v7543 = vmul.f32 %v7361, 1.442695
        %v7544 = vpow.pop %v7543
        %v7545 = vmul.f32 %v7362, 1.442695
        %v7546 = vpow.pop %v7545
        %v7547 = vmul.f32 %v7363, 1.442695
        %v7548 = vpow.pop %v7547
        %v7549 = vmul.f32 %v7364, 1.442695
        %v7550 = vpow.pop %v7549
        %v7551 = vmul.f32 %v7365, 1.442695
        %v7552 = vpow.pop %v7551
        %v7553 = vmul.f32 %v7366, 1.442695
        %v7554 = vpow.pop %v7553
        %v7555 = vmul.f32 %v7367, 1.442695
        %v7556 = vpow.pop %v7555
        %v7557 = vmul.f32 %v7368, 1.442695
        %v7558 = vpow.pop %v7557
        %v7559 = vmul.f32 %v7369, 1.442695
        %v7560 = vpow.pop %v7559
        %v7561 = vmul.f32 %v7370, 1.442695
        %v7562 = vpow.pop %v7561
        %v7563 = vmul.f32 %v7371, 1.442695
        %v7564 = vpow.pop %v7563
        %v7565 = vmul.f32 %v7372, 1.442695
        %v7566 = vpow.pop %v7565
        %v7567 = vmul.f32 %v7373, 1.442695
        %v7568 = vpow.pop %v7567
        %v7569 = vmul.f32 %v7374, 1.442695
        %v7570 = vpow.pop %v7569
        %v7571 = vmul.f32 %v7375, 1.442695
        %v7572 = vpow.pop %v7571
        %v7573 = vmul.f32 %v7376, 1.442695
        %v7574 = vpow.pop %v7573
        %v7575 = vmul.f32 %v7377, 1.442695
        %v7576 = vpow.pop %v7575
        %v7577 = vmul.f32 %v7378, 1.442695
        %v7578 = vpow.pop %v7577
        %v7579 = vmul.f32 %v7379, 1.442695
        %v7580 = vpow.pop %v7579
        %v7581 = vmul.f32 %v7380, 1.442695
        %v7582 = vpow.pop %v7581
        %v7583 = vmul.f32 %v7381, 1.442695
        %v7584 = vpow.pop %v7583
        %v7585 = vmul.f32 %v7382, 1.442695
        %v7586 = vpow.pop %v7585
        %v7587 = vmul.f32 %v7383, 1.442695
        %v7588 = vpow.pop %v7587
        %v7589 = vmul.f32 %v7384, 1.442695
        %v7590 = vpow.pop %v7589
        %v7591 = vmul.f32 %v7385, 1.442695
        %v7592 = vpow.pop %v7591
        %v7593 = vmul.f32 %v7386, 1.442695
        %v7594 = vpow.pop %v7593
        %v7595 = vmul.f32 %v7387, 1.442695
        %v7596 = vpow.pop %v7595
        %v7597 = vmul.f32 %v7388, 1.442695
        %v7598 = vpow.pop %v7597
        %v7599 = vmul.f32 %v7389, 1.442695
        %v7600 = vpow.pop %v7599
        %v7601 = vmul.f32 %v7390, 1.442695
        %v7602 = vpow.pop %v7601
        %v7603 = vmul.f32 %v7391, 1.442695
        %v7604 = vpow.pop %v7603
        %v7605 = vmul.f32 %v7392, 1.442695
        %v7606 = vpow.pop %v7605
        %v7607 = vmul.f32 %v7393, 1.442695
        %v7608 = vpow.pop %v7607
        %v7609 = vmul.f32 %v7394, 1.442695
        %v7610 = vpow.pop %v7609
        %v7611 = vmul.f32 %v7395, 1.442695
        %v7612 = vpow.pop %v7611
        %v7613 = vmul.f32 %v7396, 1.442695
        %v7614 = vpow.pop %v7613
        %v7615 = vmul.f32 %v7397, 1.442695
        %v7616 = vpow.pop %v7615
        %v7617 = vmul.f32 %v7398, 1.442695
        %v7618 = vpow.pop %v7617
        %v7619 = vmul.f32 %v7399, 1.442695
        %v7620 = vpow.pop %v7619
        %v7621 = vmul.f32 %v7400, 1.442695
        %v7622 = vpow.pop %v7621
        %v7623 = vmul.f32 %v7401, 1.442695
        %v7624 = vpow.pop %v7623
        %v7625 = vmul.f32 %v7402, 1.442695
        %v7626 = vpow.pop %v7625
        %v7627 = vmul.f32 %v7403, 1.442695
        %v7628 = vpow.pop %v7627
        %v7629 = vmul.f32 %v7404, 1.442695
        %v7630 = vpow.pop %v7629
        %v7631 = vmul.f32 %v7405, 1.442695
        %v7632 = vpow.pop %v7631
        %v7633 = vmul.f32 %v7406, 1.442695
        %v7634 = vpow.pop %v7633
        %v7635 = vmul.f32 %v7407, 1.442695
        %v7636 = vpow.pop %v7635
        %v7637 = vmul.f32 %v7408, 1.442695
        %v7638 = vpow.pop %v7637
        %v7639 = vmul.f32 %v7409, 1.442695
        %v7640 = vpow.pop %v7639
        %v7641 = vmul.f32 %v7410, 1.442695
        %v7642 = vpow.pop %v7641
        %v7643 = vmul.f32 %v7411, 1.442695
        %v7644 = vpow.pop %v7643
        %v7645 = vmul.f32 %v7412, 1.442695
        %v7646 = vpow.pop %v7645
        %v7647 = vmul.f32 %v7413, 1.442695
        %v7648 = vpow.pop %v7647
        %v7649 = vmul.f32 %v7414, 1.442695
        %v7650 = vpow.pop %v7649
        %v7651 = vmul.f32 %v7415, 1.442695
        %v7652 = vpow.pop %v7651
        %v7653 = vmul.f32 %v7416, 1.442695
        %v7654 = vpow.pop %v7653
        %v7655 = vmul.f32 %v7417, 1.442695
        %v7656 = vpow.pop %v7655
        %v7657 = vmul.f32 %v7418, 1.442695
        %v7658 = vpow.pop %v7657
        %v7659 = vmul.f32 %v7419, 1.442695
        %v7660 = vpow.pop %v7659
        %v7661 = vmul.f32 %v7420, 1.442695
        %v7662 = vpow.pop %v7661
        %v7663 = vmul.f32 %v7421, 1.442695
        %v7664 = vpow.pop %v7663
        %v7665 = vmul.f32 %v7422, 1.442695
        %v7666 = vpow.pop %v7665
        %v7667 = vmul.f32 %v7423, 1.442695
        %v7668 = vpow.pop %v7667
        %v7669 = vmul.f32 %v7424, 1.442695
        %v7670 = vpow.pop %v7669
        %v7671 = vmul.f32 %v7425, 1.442695
        %v7672 = vpow.pop %v7671
        %v7673 = vmul.f32 %v7426, 1.442695
        %v7674 = vpow.pop %v7673
        %v7675 = vmul.f32 %v7427, 1.442695
        %v7676 = vpow.pop %v7675
        %v7677 = vmul.f32 %v7428, 1.442695
        %v7678 = vpow.pop %v7677
        %v7679 = vmul.f32 %v7429, 1.442695
        %v7680 = vpow.pop %v7679
        %v7681 = vmul.f32 %v7430, 1.442695
        %v7682 = vpow.pop %v7681
        %v7683 = vmul.f32 %v7431, 1.442695
        %v7684 = vpow.pop %v7683
        %v7685 = vmul.f32 %v7432, 1.442695
        %v7686 = vpow.pop %v7685
        %v7687 = vmul.f32 %v7433, 1.442695
        %v7688 = vpow.pop %v7687
        %v7689 = vmul.f32 %v7434, 1.442695
        %v7690 = vpow.pop %v7689
        %v7691 = vpack.c.bf16 %v7438, %v7436
        %v7692 = vpack.c.bf16 %v7442, %v7440
        %v7693 = vpack.c.bf16 %v7446, %v7444
        %v7694 = vpack.c.bf16 %v7450, %v7448
        %v7695 = vpack.c.bf16 %v7454, %v7452
        %v7696 = vpack.c.bf16 %v7458, %v7456
        %v7697 = vpack.c.bf16 %v7462, %v7460
        %v7698 = vpack.c.bf16 %v7466, %v7464
        %v7699 = vpack.c.bf16 %v7470, %v7468
        %v7700 = vpack.c.bf16 %v7474, %v7472
        %v7701 = vpack.c.bf16 %v7478, %v7476
        %v7702 = vpack.c.bf16 %v7482, %v7480
        %v7703 = vpack.c.bf16 %v7486, %v7484
        %v7704 = vpack.c.bf16 %v7490, %v7488
        %v7705 = vpack.c.bf16 %v7494, %v7492
        %v7706 = vpack.c.bf16 %v7498, %v7496
        %v7707 = vpack.c.bf16 %v7502, %v7500
        %v7708 = vpack.c.bf16 %v7506, %v7504
        %v7709 = vpack.c.bf16 %v7510, %v7508
        %v7710 = vpack.c.bf16 %v7514, %v7512
        %v7711 = vpack.c.bf16 %v7518, %v7516
        %v7712 = vpack.c.bf16 %v7522, %v7520
        %v7713 = vpack.c.bf16 %v7526, %v7524
        %v7714 = vpack.c.bf16 %v7530, %v7528
        %v7715 = vpack.c.bf16 %v7534, %v7532
        %v7716 = vpack.c.bf16 %v7538, %v7536
        %v7717 = vpack.c.bf16 %v7542, %v7540
        %v7718 = vpack.c.bf16 %v7546, %v7544
        %v7719 = vpack.c.bf16 %v7550, %v7548
        %v7720 = vpack.c.bf16 %v7554, %v7552
        %v7721 = vpack.c.bf16 %v7558, %v7556
        %v7722 = vpack.c.bf16 %v7562, %v7560
        %v7723 = vpack.c.bf16 %v7566, %v7564
        %v7724 = vpack.c.bf16 %v7570, %v7568
        %v7725 = vpack.c.bf16 %v7574, %v7572
        %v7726 = vpack.c.bf16 %v7578, %v7576
        %v7727 = vpack.c.bf16 %v7582, %v7580
        %v7728 = vpack.c.bf16 %v7586, %v7584
        %v7729 = vpack.c.bf16 %v7590, %v7588
        %v7730 = vpack.c.bf16 %v7594, %v7592
        %v7731 = vpack.c.bf16 %v7598, %v7596
        %v7732 = vpack.c.bf16 %v7602, %v7600
        %v7733 = vpack.c.bf16 %v7606, %v7604
        %v7734 = vpack.c.bf16 %v7610, %v7608
        %v7735 = vpack.c.bf16 %v7614, %v7612
        %v7736 = vpack.c.bf16 %v7618, %v7616
        %v7737 = vpack.c.bf16 %v7622, %v7620
        %v7738 = vpack.c.bf16 %v7626, %v7624
        %v7739 = vpack.c.bf16 %v7630, %v7628
        %v7740 = vpack.c.bf16 %v7634, %v7632
        %v7741 = vpack.c.bf16 %v7638, %v7636
        %v7742 = vpack.c.bf16 %v7642, %v7640
        %v7743 = vpack.c.bf16 %v7646, %v7644
        %v7744 = vpack.c.bf16 %v7650, %v7648
        %v7745 = vpack.c.bf16 %v7654, %v7652
        %v7746 = vpack.c.bf16 %v7658, %v7656
        %v7747 = vpack.c.bf16 %v7662, %v7660
        %v7748 = vpack.c.bf16 %v7666, %v7664
        %v7749 = vpack.c.bf16 %v7670, %v7668
        %v7750 = vpack.c.bf16 %v7674, %v7672
        %v7751 = vpack.c.bf16 %v7678, %v7676
        %v7752 = vpack.c.bf16 %v7682, %v7680
        %v7753 = vpack.c.bf16 %v7686, %v7684
        %v7754 = vpack.c.bf16 %v7690, %v7688
        %v7755 = vld [vmem:[%s5] sm:$0xf]
        %v7756 = vld [vmem:[%s5 + $0x4] sm:$0xf]
        %v7757 = vld [vmem:[%s5 + $0x8] sm:$0xf]
        %v7758 = vld [vmem:[%s5 + $0xc] sm:$0xf]
        %v7759 = vld [vmem:[%s5 + $0x10] sm:$0xf]
        %v7760 = vld [vmem:[%s5 + $0x14] sm:$0xf]
        %v7761 = vld [vmem:[%s5 + $0x18] sm:$0xf]
        %v7762 = vld [vmem:[%s5 + $0x1c] sm:$0xf]
        %v7763 = vld [vmem:[%s5 + $0x20] sm:$0xf]
        %v7764 = vld [vmem:[%s5 + $0x24] sm:$0xf]
        %v7765 = vld [vmem:[%s5 + $0x28] sm:$0xf]
        %v7766 = vld [vmem:[%s5 + $0x2c] sm:$0xf]
        %v7767 = vld [vmem:[%s5 + $0x30] sm:$0xf]
        %v7768 = vld [vmem:[%s5 + $0x34] sm:$0xf]
        %v7769 = vld [vmem:[%s5 + $0x38] sm:$0xf]
        %v7770 = vld [vmem:[%s5 + $0x3c] sm:$0xf]
        %v7787 = vunpack.c.l.b16 %v7755
        %v7788 = vunpack.c.l.b16 %v7756
        %v7789 = vunpack.c.l.b16 %v7757
        %v7790 = vunpack.c.l.b16 %v7758
        %v7791 = vunpack.c.l.b16 %v7759
        %v7792 = vunpack.c.l.b16 %v7760
        %v7793 = vunpack.c.l.b16 %v7761
        %v7794 = vunpack.c.l.b16 %v7762
        %v7795 = vunpack.c.l.b16 %v7763
        %v7796 = vunpack.c.l.b16 %v7764
        %v7797 = vunpack.c.l.b16 %v7765
        %v7798 = vunpack.c.l.b16 %v7766
        %v7799 = vunpack.c.l.b16 %v7767
        %v7800 = vunpack.c.l.b16 %v7768
        %v7801 = vunpack.c.l.b16 %v7769
        %v7802 = vunpack.c.l.b16 %v7770
        %v7803 = vpack.c.b16 %v7788, %v7787
        %v7804 = vpack.c.b16 %v7790, %v7789
        %v7805 = vpack.c.b16 %v7792, %v7791
        %v7806 = vpack.c.b16 %v7794, %v7793
        %v7807 = vpack.c.b16 %v7796, %v7795
        %v7808 = vpack.c.b16 %v7798, %v7797
        %v7809 = vpack.c.b16 %v7800, %v7799
        %v7810 = vpack.c.b16 %v7802, %v7801
        %7819 = vmatprep.subr.bf16.mxu0 0
        %7820 = vmatpush1.bf16.msra.mxu0 %v7803
        %7821 = vmatprep.subr.bf16.mxu0 0
        %7822 = vmatpush1.bf16.msra.mxu0 %v7804
        %7823 = vmatprep.subr.bf16.mxu0 0
        %7824 = vmatpush1.bf16.msra.mxu0 %v7805
        %7825 = vmatprep.subr.bf16.mxu0 0
        %7826 = vmatpush1.bf16.msra.mxu0 %v7806
        %7827 = vmatprep.subr.bf16.mxu0 0
        %7828 = vmatpush1.bf16.msra.mxu0 %v7807
        %7829 = vmatprep.subr.bf16.mxu0 0
        %7830 = vmatpush1.bf16.msra.mxu0 %v7808
        %7831 = vmatprep.subr.bf16.mxu0 0
        %7832 = vmatpush1.bf16.msra.mxu0 %v7809
        %7833 = vmatprep.subr.bf16.mxu0 0
        %7834 = vmatpush1.bf16.msra.mxu0 %v7810
        %7835 = vmatprep.subr.bf16.mxu0 0
        %7836 = vmatpush1.bf16.msra.mxu0 0
        %7837 = vmatprep.subr.bf16.mxu0 0
        %7838 = vmatpush1.bf16.msra.mxu0 0
        %7839 = vmatprep.subr.bf16.mxu0 0
        %7840 = vmatpush1.bf16.msra.mxu0 0
        %7841 = vmatprep.subr.bf16.mxu0 0
        %7842 = vmatpush1.bf16.msra.mxu0 0
        %7843 = vmatprep.subr.bf16.mxu0 0
        %7844 = vmatpush1.bf16.msra.mxu0 0
        %7845 = vmatprep.subr.bf16.mxu0 0
        %7846 = vmatpush1.bf16.msra.mxu0 0
        %7847 = vmatprep.subr.bf16.mxu0 0
        %7848 = vmatpush1.bf16.msra.mxu0 0
        %7849 = vmatprep.subr.bf16.mxu0 0
        %7850 = vmatpush1.bf16.msra.mxu0 0
        %7851 = vmatprep.mubr.bf16.mxu0 0
        %7852 = vmatmul.mubr.bf16.gmra.mrb[0].mxu0 %v7691
        %v7853 = vpop.f32.mrb[0].mxu0
        %v7854 = vadd.f32 0.0, %v7853
        %v7855 = vpop.f32.mrb[0].mxu0
        %v7856 = vpop.f32.mrb[0].mxu0
        %v7857 = vadd.f32 0.0, %v7856
        %v7858 = vpop.f32.mrb[0].mxu0
        %7859 = vmatprep.mubr.bf16.mxu0 0
        %7860 = vmatmul.mubr.bf16.gmra.mrb[0].mxu0 %v7692
        %v7861 = vpop.f32.mrb[0].mxu0
        %v7862 = vadd.f32 0.0, %v7861
        %v7863 = vpop.f32.mrb[0].mxu0
        %v7864 = vpop.f32.mrb[0].mxu0
        %v7865 = vadd.f32 0.0, %v7864
        %v7866 = vpop.f32.mrb[0].mxu0
        %7867 = vmatprep.mubr.bf16.mxu0 0
        %7868 = vmatmul.mubr.bf16.gmra.mrb[0].mxu0 %v7693
        %v7869 = vpop.f32.mrb[0].mxu0
        %v7870 = vadd.f32 0.0, %v7869
        %v7871 = vpop.f32.mrb[0].mxu0
        %v7872 = vpop.f32.mrb[0].mxu0
        %v7873 = vadd.f32 0.0, %v7872
        %v7874 = vpop.f32.mrb[0].mxu0
        %7875 = vmatprep.mubr.bf16.mxu0 0
        %7876 = vmatmul.mubr.bf16.gmra.mrb[0].mxu0 %v7694
        %v7877 = vpop.f32.mrb[0].mxu0
        %v7878 = vadd.f32 0.0, %v7877
        %v7879 = vpop.f32.mrb[0].mxu0
        %v7880 = vpop.f32.mrb[0].mxu0
        %v7881 = vadd.f32 0.0, %v7880
        %v7882 = vpop.f32.mrb[0].mxu0
        %7883 = vmatprep.mubr.bf16.mxu0 0
        %7884 = vmatmul.mubr.bf16.gmra.mrb[0].mxu0 %v7695
        %v7885 = vpop.f32.mrb[0].mxu0
        %v7886 = vadd.f32 0.0, %v7885
        %v7887 = vpop.f32.mrb[0].mxu0
        %v7888 = vpop.f32.mrb[0].mxu0
        %v7889 = vadd.f32 0.0, %v7888
        %v7890 = vpop.f32.mrb[0].mxu0
        %7891 = vmatprep.mubr.bf16.mxu0 0
        %7892 = vmatmul.mubr.bf16.gmra.mrb[0].mxu0 %v7696
        %v7893 = vpop.f32.mrb[0].mxu0
        %v7894 = vadd.f32 0.0, %v7893
        %v7895 = vpop.f32.mrb[0].mxu0
        %v7896 = vpop.f32.mrb[0].mxu0
        %v7897 = vadd.f32 0.0, %v7896
        %v7898 = vpop.f32.mrb[0].mxu0
        %7899 = vmatprep.mubr.bf16.mxu0 0
        %7900 = vmatmul.mubr.bf16.gmra.mrb[0].mxu0 %v7697
        %v7901 = vpop.f32.mrb[0].mxu0
        %v7902 = vadd.f32 0.0, %v7901
        %v7903 = vpop.f32.mrb[0].mxu0
        %v7904 = vpop.f32.mrb[0].mxu0
        %v7905 = vadd.f32 0.0, %v7904
        %v7906 = vpop.f32.mrb[0].mxu0
        %7907 = vmatprep.mubr.bf16.mxu0 0
        %7908 = vmatmul.mubr.bf16.gmra.mrb[0].mxu0 %v7698
        %v7909 = vpop.f32.mrb[0].mxu0
        %v7910 = vadd.f32 0.0, %v7909
        %v7911 = vpop.f32.mrb[0].mxu0
        %v7912 = vpop.f32.mrb[0].mxu0
        %v7913 = vadd.f32 0.0, %v7912
        %v7914 = vpop.f32.mrb[0].mxu0
        %7915 = vmatprep.mubr.bf16.mxu0 0
        %7916 = vmatmul.mubr.bf16.gmra.mrb[0].mxu0 %v7699
        %v7917 = vpop.f32.mrb[0].mxu0
        %v7918 = vadd.f32 0.0, %v7917
        %v7919 = vpop.f32.mrb[0].mxu0
        %v7920 = vpop.f32.mrb[0].mxu0
        %v7921 = vadd.f32 0.0, %v7920
        %v7922 = vpop.f32.mrb[0].mxu0
        %7923 = vmatprep.mubr.bf16.mxu0 0
        %7924 = vmatmul.mubr.bf16.gmra.mrb[0].mxu0 %v7700
        %v7925 = vpop.f32.mrb[0].mxu0
        %v7926 = vadd.f32 0.0, %v7925
        %v7927 = vpop.f32.mrb[0].mxu0
        %v7928 = vpop.f32.mrb[0].mxu0
        %v7929 = vadd.f32 0.0, %v7928
        %v7930 = vpop.f32.mrb[0].mxu0
        %7931 = vmatprep.mubr.bf16.mxu0 0
        %7932 = vmatmul.mubr.bf16.gmra.mrb[0].mxu0 %v7701
        %v7933 = vpop.f32.mrb[0].mxu0
        %v7934 = vadd.f32 0.0, %v7933
        %v7935 = vpop.f32.mrb[0].mxu0
        %v7936 = vpop.f32.mrb[0].mxu0
        %v7937 = vadd.f32 0.0, %v7936
        %v7938 = vpop.f32.mrb[0].mxu0
        %7939 = vmatprep.mubr.bf16.mxu0 0
        %7940 = vmatmul.mubr.bf16.gmra.mrb[0].mxu0 %v7702
        %v7941 = vpop.f32.mrb[0].mxu0
        %v7942 = vadd.f32 0.0, %v7941
        %v7943 = vpop.f32.mrb[0].mxu0
        %v7944 = vpop.f32.mrb[0].mxu0
        %v7945 = vadd.f32 0.0, %v7944
        %v7946 = vpop.f32.mrb[0].mxu0
        %7947 = vmatprep.mubr.bf16.mxu0 0
        %7948 = vmatmul.mubr.bf16.gmra.mrb[0].mxu0 %v7703
        %v7949 = vpop.f32.mrb[0].mxu0
        %v7950 = vadd.f32 0.0, %v7949
        %v7951 = vpop.f32.mrb[0].mxu0
        %v7952 = vpop.f32.mrb[0].mxu0
        %v7953 = vadd.f32 0.0, %v7952
        %v7954 = vpop.f32.mrb[0].mxu0
        %7955 = vmatprep.mubr.bf16.mxu0 0
        %7956 = vmatmul.mubr.bf16.gmra.mrb[0].mxu0 %v7704
        %v7957 = vpop.f32.mrb[0].mxu0
        %v7958 = vadd.f32 0.0, %v7957
        %v7959 = vpop.f32.mrb[0].mxu0
        %v7960 = vpop.f32.mrb[0].mxu0
        %v7961 = vadd.f32 0.0, %v7960
        %v7962 = vpop.f32.mrb[0].mxu0
        %7963 = vmatprep.mubr.bf16.mxu0 0
        %7964 = vmatmul.mubr.bf16.gmra.mrb[0].mxu0 %v7705
        %v7965 = vpop.f32.mrb[0].mxu0
        %v7966 = vadd.f32 0.0, %v7965
        %v7967 = vpop.f32.mrb[0].mxu0
        %v7968 = vpop.f32.mrb[0].mxu0
        %v7969 = vadd.f32 0.0, %v7968
        %v7970 = vpop.f32.mrb[0].mxu0
        %7971 = vmatprep.mubr.bf16.mxu0 0
        %7972 = vmatmul.mubr.bf16.gmra.mrb[0].mxu0 %v7706
        %v7973 = vpop.f32.mrb[0].mxu0
        %v7974 = vadd.f32 0.0, %v7973
        %v7975 = vpop.f32.mrb[0].mxu0
        %v7976 = vpop.f32.mrb[0].mxu0
        %v7977 = vadd.f32 0.0, %v7976
        %v7978 = vpop.f32.mrb[0].mxu0
        %7979 = vmatprep.mubr.bf16.mxu0 0
        %7980 = vmatmul.mubr.bf16.gmra.mrb[0].mxu0 %v7707
        %v7981 = vpop.f32.mrb[0].mxu0
        %v7982 = vadd.f32 0.0, %v7981
        %v7983 = vpop.f32.mrb[0].mxu0
        %v7984 = vpop.f32.mrb[0].mxu0
        %v7985 = vadd.f32 0.0, %v7984
        %v7986 = vpop.f32.mrb[0].mxu0
        %7987 = vmatprep.mubr.bf16.mxu0 0
        %7988 = vmatmul.mubr.bf16.gmra.mrb[0].mxu0 %v7708
        %v7989 = vpop.f32.mrb[0].mxu0
        %v7990 = vadd.f32 0.0, %v7989
        %v7991 = vpop.f32.mrb[0].mxu0
        %v7992 = vpop.f32.mrb[0].mxu0
        %v7993 = vadd.f32 0.0, %v7992
        %v7994 = vpop.f32.mrb[0].mxu0
        %7995 = vmatprep.mubr.bf16.mxu0 0
        %7996 = vmatmul.mubr.bf16.gmra.mrb[0].mxu0 %v7709
        %v7997 = vpop.f32.mrb[0].mxu0
        %v7998 = vadd.f32 0.0, %v7997
        %v7999 = vpop.f32.mrb[0].mxu0
        %v8000 = vpop.f32.mrb[0].mxu0
        %v8001 = vadd.f32 0.0, %v8000
        %v8002 = vpop.f32.mrb[0].mxu0
        %8003 = vmatprep.mubr.bf16.mxu0 0
        %8004 = vmatmul.mubr.bf16.gmra.mrb[0].mxu0 %v7710
        %v8005 = vpop.f32.mrb[0].mxu0
        %v8006 = vadd.f32 0.0, %v8005
        %v8007 = vpop.f32.mrb[0].mxu0
        %v8008 = vpop.f32.mrb[0].mxu0
        %v8009 = vadd.f32 0.0, %v8008
        %v8010 = vpop.f32.mrb[0].mxu0
        %8011 = vmatprep.mubr.bf16.mxu0 0
        %8012 = vmatmul.mubr.bf16.gmra.mrb[0].mxu0 %v7711
        %v8013 = vpop.f32.mrb[0].mxu0
        %v8014 = vadd.f32 0.0, %v8013
        %v8015 = vpop.f32.mrb[0].mxu0
        %v8016 = vpop.f32.mrb[0].mxu0
        %v8017 = vadd.f32 0.0, %v8016
        %v8018 = vpop.f32.mrb[0].mxu0
        %8019 = vmatprep.mubr.bf16.mxu0 0
        %8020 = vmatmul.mubr.bf16.gmra.mrb[0].mxu0 %v7712
        %v8021 = vpop.f32.mrb[0].mxu0
        %v8022 = vadd.f32 0.0, %v8021
        %v8023 = vpop.f32.mrb[0].mxu0
        %v8024 = vpop.f32.mrb[0].mxu0
        %v8025 = vadd.f32 0.0, %v8024
        %v8026 = vpop.f32.mrb[0].mxu0
        %8027 = vmatprep.mubr.bf16.mxu0 0
        %8028 = vmatmul.mubr.bf16.gmra.mrb[0].mxu0 %v7713
        %v8029 = vpop.f32.mrb[0].mxu0
        %v8030 = vadd.f32 0.0, %v8029
        %v8031 = vpop.f32.mrb[0].mxu0
        %v8032 = vpop.f32.mrb[0].mxu0
        %v8033 = vadd.f32 0.0, %v8032
        %v8034 = vpop.f32.mrb[0].mxu0
        %8035 = vmatprep.mubr.bf16.mxu0 0
        %8036 = vmatmul.mubr.bf16.gmra.mrb[0].mxu0 %v7714
        %v8037 = vpop.f32.mrb[0].mxu0
        %v8038 = vadd.f32 0.0, %v8037
        %v8039 = vpop.f32.mrb[0].mxu0
        %v8040 = vpop.f32.mrb[0].mxu0
        %v8041 = vadd.f32 0.0, %v8040
        %v8042 = vpop.f32.mrb[0].mxu0
        %8043 = vmatprep.mubr.bf16.mxu0 0
        %8044 = vmatmul.mubr.bf16.gmra.mrb[0].mxu0 %v7715
        %v8045 = vpop.f32.mrb[0].mxu0
        %v8046 = vadd.f32 0.0, %v8045
        %v8047 = vpop.f32.mrb[0].mxu0
        %v8048 = vpop.f32.mrb[0].mxu0
        %v8049 = vadd.f32 0.0, %v8048
        %v8050 = vpop.f32.mrb[0].mxu0
        %8051 = vmatprep.mubr.bf16.mxu0 0
        %8052 = vmatmul.mubr.bf16.gmra.mrb[0].mxu0 %v7716
        %v8053 = vpop.f32.mrb[0].mxu0
        %v8054 = vadd.f32 0.0, %v8053
        %v8055 = vpop.f32.mrb[0].mxu0
        %v8056 = vpop.f32.mrb[0].mxu0
        %v8057 = vadd.f32 0.0, %v8056
        %v8058 = vpop.f32.mrb[0].mxu0
        %8059 = vmatprep.mubr.bf16.mxu0 0
        %8060 = vmatmul.mubr.bf16.gmra.mrb[0].mxu0 %v7717
        %v8061 = vpop.f32.mrb[0].mxu0
        %v8062 = vadd.f32 0.0, %v8061
        %v8063 = vpop.f32.mrb[0].mxu0
        %v8064 = vpop.f32.mrb[0].mxu0
        %v8065 = vadd.f32 0.0, %v8064
        %v8066 = vpop.f32.mrb[0].mxu0
        %8067 = vmatprep.mubr.bf16.mxu0 0
        %8068 = vmatmul.mubr.bf16.gmra.mrb[0].mxu0 %v7718
        %v8069 = vpop.f32.mrb[0].mxu0
        %v8070 = vadd.f32 0.0, %v8069
        %v8071 = vpop.f32.mrb[0].mxu0
        %v8072 = vpop.f32.mrb[0].mxu0
        %v8073 = vadd.f32 0.0, %v8072
        %v8074 = vpop.f32.mrb[0].mxu0
        %8075 = vmatprep.mubr.bf16.mxu0 0
        %8076 = vmatmul.mubr.bf16.gmra.mrb[0].mxu0 %v7719
        %v8077 = vpop.f32.mrb[0].mxu0
        %v8078 = vadd.f32 0.0, %v8077
        %v8079 = vpop.f32.mrb[0].mxu0
        %v8080 = vpop.f32.mrb[0].mxu0
        %v8081 = vadd.f32 0.0, %v8080
        %v8082 = vpop.f32.mrb[0].mxu0
        %8083 = vmatprep.mubr.bf16.mxu0 0
        %8084 = vmatmul.mubr.bf16.gmra.mrb[0].mxu0 %v7720
        %v8085 = vpop.f32.mrb[0].mxu0
        %v8086 = vadd.f32 0.0, %v8085
        %v8087 = vpop.f32.mrb[0].mxu0
        %v8088 = vpop.f32.mrb[0].mxu0
        %v8089 = vadd.f32 0.0, %v8088
        %v8090 = vpop.f32.mrb[0].mxu0
        %8091 = vmatprep.mubr.bf16.mxu0 0
        %8092 = vmatmul.mubr.bf16.gmra.mrb[0].mxu0 %v7721
        %v8093 = vpop.f32.mrb[0].mxu0
        %v8094 = vadd.f32 0.0, %v8093
        %v8095 = vpop.f32.mrb[0].mxu0
        %v8096 = vpop.f32.mrb[0].mxu0
        %v8097 = vadd.f32 0.0, %v8096
        %v8098 = vpop.f32.mrb[0].mxu0
        %8099 = vmatprep.mubr.bf16.mxu0 0
        %8100 = vmatmul.mubr.bf16.gmra.mrb[0].mxu0 %v7722
        %v8101 = vpop.f32.mrb[0].mxu0
        %v8102 = vadd.f32 0.0, %v8101
        %v8103 = vpop.f32.mrb[0].mxu0
        %v8104 = vpop.f32.mrb[0].mxu0
        %v8105 = vadd.f32 0.0, %v8104
        %v8106 = vpop.f32.mrb[0].mxu0
        %8107 = vmatprep.mubr.bf16.mxu0 0
        %8108 = vmatmul.mubr.bf16.gmra.mrb[0].mxu0 %v7723
        %v8109 = vpop.f32.mrb[0].mxu0
        %v8110 = vadd.f32 0.0, %v8109
        %v8111 = vpop.f32.mrb[0].mxu0
        %v8112 = vpop.f32.mrb[0].mxu0
        %v8113 = vadd.f32 0.0, %v8112
        %v8114 = vpop.f32.mrb[0].mxu0
        %8115 = vmatprep.mubr.bf16.mxu0 0
        %8116 = vmatmul.mubr.bf16.gmra.mrb[0].mxu0 %v7724
        %v8117 = vpop.f32.mrb[0].mxu0
        %v8118 = vadd.f32 0.0, %v8117
        %v8119 = vpop.f32.mrb[0].mxu0
        %v8120 = vpop.f32.mrb[0].mxu0
        %v8121 = vadd.f32 0.0, %v8120
        %v8122 = vpop.f32.mrb[0].mxu0
        %8123 = vmatprep.mubr.bf16.mxu0 0
        %8124 = vmatmul.mubr.bf16.gmra.mrb[0].mxu0 %v7725
        %v8125 = vpop.f32.mrb[0].mxu0
        %v8126 = vadd.f32 0.0, %v8125
        %v8127 = vpop.f32.mrb[0].mxu0
        %v8128 = vpop.f32.mrb[0].mxu0
        %v8129 = vadd.f32 0.0, %v8128
        %v8130 = vpop.f32.mrb[0].mxu0
        %8131 = vmatprep.mubr.bf16.mxu0 0
        %8132 = vmatmul.mubr.bf16.gmra.mrb[0].mxu0 %v7726
        %v8133 = vpop.f32.mrb[0].mxu0
        %v8134 = vadd.f32 0.0, %v8133
        %v8135 = vpop.f32.mrb[0].mxu0
        %v8136 = vpop.f32.mrb[0].mxu0
        %v8137 = vadd.f32 0.0, %v8136
        %v8138 = vpop.f32.mrb[0].mxu0
        %8139 = vmatprep.mubr.bf16.mxu0 0
        %8140 = vmatmul.mubr.bf16.gmra.mrb[0].mxu0 %v7727
        %v8141 = vpop.f32.mrb[0].mxu0
        %v8142 = vadd.f32 0.0, %v8141
        %v8143 = vpop.f32.mrb[0].mxu0
        %v8144 = vpop.f32.mrb[0].mxu0
        %v8145 = vadd.f32 0.0, %v8144
        %v8146 = vpop.f32.mrb[0].mxu0
        %8147 = vmatprep.mubr.bf16.mxu0 0
        %8148 = vmatmul.mubr.bf16.gmra.mrb[0].mxu0 %v7728
        %v8149 = vpop.f32.mrb[0].mxu0
        %v8150 = vadd.f32 0.0, %v8149
        %v8151 = vpop.f32.mrb[0].mxu0
        %v8152 = vpop.f32.mrb[0].mxu0
        %v8153 = vadd.f32 0.0, %v8152
        %v8154 = vpop.f32.mrb[0].mxu0
        %8155 = vmatprep.mubr.bf16.mxu0 0
        %8156 = vmatmul.mubr.bf16.gmra.mrb[0].mxu0 %v7729
        %v8157 = vpop.f32.mrb[0].mxu0
        %v8158 = vadd.f32 0.0, %v8157
        %v8159 = vpop.f32.mrb[0].mxu0
        %v8160 = vpop.f32.mrb[0].mxu0
        %v8161 = vadd.f32 0.0, %v8160
        %v8162 = vpop.f32.mrb[0].mxu0
        %8163 = vmatprep.mubr.bf16.mxu0 0
        %8164 = vmatmul.mubr.bf16.gmra.mrb[0].mxu0 %v7730
        %v8165 = vpop.f32.mrb[0].mxu0
        %v8166 = vadd.f32 0.0, %v8165
        %v8167 = vpop.f32.mrb[0].mxu0
        %v8168 = vpop.f32.mrb[0].mxu0
        %v8169 = vadd.f32 0.0, %v8168
        %v8170 = vpop.f32.mrb[0].mxu0
        %8171 = vmatprep.mubr.bf16.mxu0 0
        %8172 = vmatmul.mubr.bf16.gmra.mrb[0].mxu0 %v7731
        %v8173 = vpop.f32.mrb[0].mxu0
        %v8174 = vadd.f32 0.0, %v8173
        %v8175 = vpop.f32.mrb[0].mxu0
        %v8176 = vpop.f32.mrb[0].mxu0
        %v8177 = vadd.f32 0.0, %v8176
        %v8178 = vpop.f32.mrb[0].mxu0
        %8179 = vmatprep.mubr.bf16.mxu0 0
        %8180 = vmatmul.mubr.bf16.gmra.mrb[0].mxu0 %v7732
        %v8181 = vpop.f32.mrb[0].mxu0
        %v8182 = vadd.f32 0.0, %v8181
        %v8183 = vpop.f32.mrb[0].mxu0
        %v8184 = vpop.f32.mrb[0].mxu0
        %v8185 = vadd.f32 0.0, %v8184
        %v8186 = vpop.f32.mrb[0].mxu0
        %8187 = vmatprep.mubr.bf16.mxu0 0
        %8188 = vmatmul.mubr.bf16.gmra.mrb[0].mxu0 %v7733
        %v8189 = vpop.f32.mrb[0].mxu0
        %v8190 = vadd.f32 0.0, %v8189
        %v8191 = vpop.f32.mrb[0].mxu0
        %v8192 = vpop.f32.mrb[0].mxu0
        %v8193 = vadd.f32 0.0, %v8192
        %v8194 = vpop.f32.mrb[0].mxu0
        %8195 = vmatprep.mubr.bf16.mxu0 0
        %8196 = vmatmul.mubr.bf16.gmra.mrb[0].mxu0 %v7734
        %v8197 = vpop.f32.mrb[0].mxu0
        %v8198 = vadd.f32 0.0, %v8197
        %v8199 = vpop.f32.mrb[0].mxu0
        %v8200 = vpop.f32.mrb[0].mxu0
        %v8201 = vadd.f32 0.0, %v8200
        %v8202 = vpop.f32.mrb[0].mxu0
        %8203 = vmatprep.mubr.bf16.mxu0 0
        %8204 = vmatmul.mubr.bf16.gmra.mrb[0].mxu0 %v7735
        %v8205 = vpop.f32.mrb[0].mxu0
        %v8206 = vadd.f32 0.0, %v8205
        %v8207 = vpop.f32.mrb[0].mxu0
        %v8208 = vpop.f32.mrb[0].mxu0
        %v8209 = vadd.f32 0.0, %v8208
        %v8210 = vpop.f32.mrb[0].mxu0
        %8211 = vmatprep.mubr.bf16.mxu0 0
        %8212 = vmatmul.mubr.bf16.gmra.mrb[0].mxu0 %v7736
        %v8213 = vpop.f32.mrb[0].mxu0
        %v8214 = vadd.f32 0.0, %v8213
        %v8215 = vpop.f32.mrb[0].mxu0
        %v8216 = vpop.f32.mrb[0].mxu0
        %v8217 = vadd.f32 0.0, %v8216
        %v8218 = vpop.f32.mrb[0].mxu0
        %8219 = vmatprep.mubr.bf16.mxu0 0
        %8220 = vmatmul.mubr.bf16.gmra.mrb[0].mxu0 %v7737
        %v8221 = vpop.f32.mrb[0].mxu0
        %v8222 = vadd.f32 0.0, %v8221
        %v8223 = vpop.f32.mrb[0].mxu0
        %v8224 = vpop.f32.mrb[0].mxu0
        %v8225 = vadd.f32 0.0, %v8224
        %v8226 = vpop.f32.mrb[0].mxu0
        %8227 = vmatprep.mubr.bf16.mxu0 0
        %8228 = vmatmul.mubr.bf16.gmra.mrb[0].mxu0 %v7738
        %v8229 = vpop.f32.mrb[0].mxu0
        %v8230 = vadd.f32 0.0, %v8229
        %v8231 = vpop.f32.mrb[0].mxu0
        %v8232 = vpop.f32.mrb[0].mxu0
        %v8233 = vadd.f32 0.0, %v8232
        %v8234 = vpop.f32.mrb[0].mxu0
        %8235 = vmatprep.mubr.bf16.mxu0 0
        %8236 = vmatmul.mubr.bf16.gmra.mrb[0].mxu0 %v7739
        %v8237 = vpop.f32.mrb[0].mxu0
        %v8238 = vadd.f32 0.0, %v8237
        %v8239 = vpop.f32.mrb[0].mxu0
        %v8240 = vpop.f32.mrb[0].mxu0
        %v8241 = vadd.f32 0.0, %v8240
        %v8242 = vpop.f32.mrb[0].mxu0
        %8243 = vmatprep.mubr.bf16.mxu0 0
        %8244 = vmatmul.mubr.bf16.gmra.mrb[0].mxu0 %v7740
        %v8245 = vpop.f32.mrb[0].mxu0
        %v8246 = vadd.f32 0.0, %v8245
        %v8247 = vpop.f32.mrb[0].mxu0
        %v8248 = vpop.f32.mrb[0].mxu0
        %v8249 = vadd.f32 0.0, %v8248
        %v8250 = vpop.f32.mrb[0].mxu0
        %8251 = vmatprep.mubr.bf16.mxu0 0
        %8252 = vmatmul.mubr.bf16.gmra.mrb[0].mxu0 %v7741
        %v8253 = vpop.f32.mrb[0].mxu0
        %v8254 = vadd.f32 0.0, %v8253
        %v8255 = vpop.f32.mrb[0].mxu0
        %v8256 = vpop.f32.mrb[0].mxu0
        %v8257 = vadd.f32 0.0, %v8256
        %v8258 = vpop.f32.mrb[0].mxu0
        %8259 = vmatprep.mubr.bf16.mxu0 0
        %8260 = vmatmul.mubr.bf16.gmra.mrb[0].mxu0 %v7742
        %v8261 = vpop.f32.mrb[0].mxu0
        %v8262 = vadd.f32 0.0, %v8261
        %v8263 = vpop.f32.mrb[0].mxu0
        %v8264 = vpop.f32.mrb[0].mxu0
        %v8265 = vadd.f32 0.0, %v8264
        %v8266 = vpop.f32.mrb[0].mxu0
        %8267 = vmatprep.mubr.bf16.mxu0 0
        %8268 = vmatmul.mubr.bf16.gmra.mrb[0].mxu0 %v7743
        %v8269 = vpop.f32.mrb[0].mxu0
        %v8270 = vadd.f32 0.0, %v8269
        %v8271 = vpop.f32.mrb[0].mxu0
        %v8272 = vpop.f32.mrb[0].mxu0
        %v8273 = vadd.f32 0.0, %v8272
        %v8274 = vpop.f32.mrb[0].mxu0
        %8275 = vmatprep.mubr.bf16.mxu0 0
        %8276 = vmatmul.mubr.bf16.gmra.mrb[0].mxu0 %v7744
        %v8277 = vpop.f32.mrb[0].mxu0
        %v8278 = vadd.f32 0.0, %v8277
        %v8279 = vpop.f32.mrb[0].mxu0
        %v8280 = vpop.f32.mrb[0].mxu0
        %v8281 = vadd.f32 0.0, %v8280
        %v8282 = vpop.f32.mrb[0].mxu0
        %8283 = vmatprep.mubr.bf16.mxu0 0
        %8284 = vmatmul.mubr.bf16.gmra.mrb[0].mxu0 %v7745
        %v8285 = vpop.f32.mrb[0].mxu0
        %v8286 = vadd.f32 0.0, %v8285
        %v8287 = vpop.f32.mrb[0].mxu0
        %v8288 = vpop.f32.mrb[0].mxu0
        %v8289 = vadd.f32 0.0, %v8288
        %v8290 = vpop.f32.mrb[0].mxu0
        %8291 = vmatprep.mubr.bf16.mxu0 0
        %8292 = vmatmul.mubr.bf16.gmra.mrb[0].mxu0 %v7746
        %v8293 = vpop.f32.mrb[0].mxu0
        %v8294 = vadd.f32 0.0, %v8293
        %v8295 = vpop.f32.mrb[0].mxu0
        %v8296 = vpop.f32.mrb[0].mxu0
        %v8297 = vadd.f32 0.0, %v8296
        %v8298 = vpop.f32.mrb[0].mxu0
        %8299 = vmatprep.mubr.bf16.mxu0 0
        %8300 = vmatmul.mubr.bf16.gmra.mrb[0].mxu0 %v7747
        %v8301 = vpop.f32.mrb[0].mxu0
        %v8302 = vadd.f32 0.0, %v8301
        %v8303 = vpop.f32.mrb[0].mxu0
        %v8304 = vpop.f32.mrb[0].mxu0
        %v8305 = vadd.f32 0.0, %v8304
        %v8306 = vpop.f32.mrb[0].mxu0
        %8307 = vmatprep.mubr.bf16.mxu0 0
        %8308 = vmatmul.mubr.bf16.gmra.mrb[0].mxu0 %v7748
        %v8309 = vpop.f32.mrb[0].mxu0
        %v8310 = vadd.f32 0.0, %v8309
        %v8311 = vpop.f32.mrb[0].mxu0
        %v8312 = vpop.f32.mrb[0].mxu0
        %v8313 = vadd.f32 0.0, %v8312
        %v8314 = vpop.f32.mrb[0].mxu0
        %8315 = vmatprep.mubr.bf16.mxu0 0
        %8316 = vmatmul.mubr.bf16.gmra.mrb[0].mxu0 %v7749
        %v8317 = vpop.f32.mrb[0].mxu0
        %v8318 = vadd.f32 0.0, %v8317
        %v8319 = vpop.f32.mrb[0].mxu0
        %v8320 = vpop.f32.mrb[0].mxu0
        %v8321 = vadd.f32 0.0, %v8320
        %v8322 = vpop.f32.mrb[0].mxu0
        %8323 = vmatprep.mubr.bf16.mxu0 0
        %8324 = vmatmul.mubr.bf16.gmra.mrb[0].mxu0 %v7750
        %v8325 = vpop.f32.mrb[0].mxu0
        %v8326 = vadd.f32 0.0, %v8325
        %v8327 = vpop.f32.mrb[0].mxu0
        %v8328 = vpop.f32.mrb[0].mxu0
        %v8329 = vadd.f32 0.0, %v8328
        %v8330 = vpop.f32.mrb[0].mxu0
        %8331 = vmatprep.mubr.bf16.mxu0 0
        %8332 = vmatmul.mubr.bf16.gmra.mrb[0].mxu0 %v7751
        %v8333 = vpop.f32.mrb[0].mxu0
        %v8334 = vadd.f32 0.0, %v8333
        %v8335 = vpop.f32.mrb[0].mxu0
        %v8336 = vpop.f32.mrb[0].mxu0
        %v8337 = vadd.f32 0.0, %v8336
        %v8338 = vpop.f32.mrb[0].mxu0
        %8339 = vmatprep.mubr.bf16.mxu0 0
        %8340 = vmatmul.mubr.bf16.gmra.mrb[0].mxu0 %v7752
        %v8341 = vpop.f32.mrb[0].mxu0
        %v8342 = vadd.f32 0.0, %v8341
        %v8343 = vpop.f32.mrb[0].mxu0
        %v8344 = vpop.f32.mrb[0].mxu0
        %v8345 = vadd.f32 0.0, %v8344
        %v8346 = vpop.f32.mrb[0].mxu0
        %8347 = vmatprep.mubr.bf16.mxu0 0
        %8348 = vmatmul.mubr.bf16.gmra.mrb[0].mxu0 %v7753
        %v8349 = vpop.f32.mrb[0].mxu0
        %v8350 = vadd.f32 0.0, %v8349
        %v8351 = vpop.f32.mrb[0].mxu0
        %v8352 = vpop.f32.mrb[0].mxu0
        %v8353 = vadd.f32 0.0, %v8352
        %v8354 = vpop.f32.mrb[0].mxu0
        %8355 = vmatprep.mubr.bf16.mxu0 0
        %8356 = vmatmul.mubr.bf16.gmra.mrb[0].mxu0 %v7754
        %v8357 = vpop.f32.mrb[0].mxu0
        %v8358 = vadd.f32 0.0, %v8357
        %v8359 = vpop.f32.mrb[0].mxu0
        %v8360 = vpop.f32.mrb[0].mxu0
        %v8361 = vadd.f32 0.0, %v8360
        %v8362 = vpop.f32.mrb[0].mxu0
        %8363 = vdwg.mxu0
        %8364 = vst [vmem:[%s245] sm:$0xff] %v7854
        %8365 = vst [vmem:[%s245 + $0x8] sm:$0xff] %v7857
        %8366 = vst [vmem:[%s245 + $0x10] sm:$0xff] %v7862
        %8367 = vst [vmem:[%s245 + $0x18] sm:$0xff] %v7865
        %8368 = vst [vmem:[%s245 + $0x20] sm:$0xff] %v7870
        %8369 = vst [vmem:[%s245 + $0x28] sm:$0xff] %v7873
        %8370 = vst [vmem:[%s245 + $0x30] sm:$0xff] %v7878
        %8371 = vst [vmem:[%s245 + $0x38] sm:$0xff] %v7881
        %8372 = vst [vmem:[%s245 + $0x40] sm:$0xff] %v7886
        %8373 = vst [vmem:[%s245 + $0x48] sm:$0xff] %v7889
        %8374 = vst [vmem:[%s245 + $0x50] sm:$0xff] %v7894
        %8375 = vst [vmem:[%s245 + $0x58] sm:$0xff] %v7897
        %8376 = vst [vmem:[%s245 + $0x60] sm:$0xff] %v7902
        %8377 = vst [vmem:[%s245 + $0x68] sm:$0xff] %v7905
        %8378 = vst [vmem:[%s245 + $0x70] sm:$0xff] %v7910
        %8379 = vst [vmem:[%s245 + $0x78] sm:$0xff] %v7913
        %8380 = vst [vmem:[%s245 + $0x80] sm:$0xff] %v7918
        %8381 = vst [vmem:[%s245 + $0x88] sm:$0xff] %v7921
        %8382 = vst [vmem:[%s245 + $0x90] sm:$0xff] %v7926
        %8383 = vst [vmem:[%s245 + $0x98] sm:$0xff] %v7929
        %8384 = vst [vmem:[%s245 + $0xa0] sm:$0xff] %v7934
        %8385 = vst [vmem:[%s245 + $0xa8] sm:$0xff] %v7937
        %8386 = vst [vmem:[%s245 + $0xb0] sm:$0xff] %v7942
        %8387 = vst [vmem:[%s245 + $0xb8] sm:$0xff] %v7945
        %8388 = vst [vmem:[%s245 + $0xc0] sm:$0xff] %v7950
        %8389 = vst [vmem:[%s245 + $0xc8] sm:$0xff] %v7953
        %8390 = vst [vmem:[%s245 + $0xd0] sm:$0xff] %v7958
        %8391 = vst [vmem:[%s245 + $0xd8] sm:$0xff] %v7961
        %8392 = vst [vmem:[%s245 + $0xe0] sm:$0xff] %v7966
        %8393 = vst [vmem:[%s245 + $0xe8] sm:$0xff] %v7969
        %8394 = vst [vmem:[%s245 + $0xf0] sm:$0xff] %v7974
        %8395 = vst [vmem:[%s245 + $0xf8] sm:$0xff] %v7977
        %8396 = vst [vmem:[%s245 + $0x100] sm:$0xff] %v7982
        %8397 = vst [vmem:[%s245 + $0x108] sm:$0xff] %v7985
        %8398 = vst [vmem:[%s245 + $0x110] sm:$0xff] %v7990
        %8399 = vst [vmem:[%s245 + $0x118] sm:$0xff] %v7993
        %8400 = vst [vmem:[%s245 + $0x120] sm:$0xff] %v7998
        %8401 = vst [vmem:[%s245 + $0x128] sm:$0xff] %v8001
        %8402 = vst [vmem:[%s245 + $0x130] sm:$0xff] %v8006
        %8403 = vst [vmem:[%s245 + $0x138] sm:$0xff] %v8009
        %8404 = vst [vmem:[%s245 + $0x140] sm:$0xff] %v8014
        %8405 = vst [vmem:[%s245 + $0x148] sm:$0xff] %v8017
        %8406 = vst [vmem:[%s245 + $0x150] sm:$0xff] %v8022
        %8407 = vst [vmem:[%s245 + $0x158] sm:$0xff] %v8025
        %8408 = vst [vmem:[%s245 + $0x160] sm:$0xff] %v8030
        %8409 = vst [vmem:[%s245 + $0x168] sm:$0xff] %v8033
        %8410 = vst [vmem:[%s245 + $0x170] sm:$0xff] %v8038
        %8411 = vst [vmem:[%s245 + $0x178] sm:$0xff] %v8041
        %8412 = vst [vmem:[%s245 + $0x180] sm:$0xff] %v8046
        %8413 = vst [vmem:[%s245 + $0x188] sm:$0xff] %v8049
        %8414 = vst [vmem:[%s245 + $0x190] sm:$0xff] %v8054
        %8415 = vst [vmem:[%s245 + $0x198] sm:$0xff] %v8057
        %8416 = vst [vmem:[%s245 + $0x1a0] sm:$0xff] %v8062
        %8417 = vst [vmem:[%s245 + $0x1a8] sm:$0xff] %v8065
        %8418 = vst [vmem:[%s245 + $0x1b0] sm:$0xff] %v8070
        %8419 = vst [vmem:[%s245 + $0x1b8] sm:$0xff] %v8073
        %8420 = vst [vmem:[%s245 + $0x1c0] sm:$0xff] %v8078
        %8421 = vst [vmem:[%s245 + $0x1c8] sm:$0xff] %v8081
        %8422 = vst [vmem:[%s245 + $0x1d0] sm:$0xff] %v8086
        %8423 = vst [vmem:[%s245 + $0x1d8] sm:$0xff] %v8089
        %8424 = vst [vmem:[%s245 + $0x1e0] sm:$0xff] %v8094
        %8425 = vst [vmem:[%s245 + $0x1e8] sm:$0xff] %v8097
        %8426 = vst [vmem:[%s245 + $0x1f0] sm:$0xff] %v8102
        %8427 = vst [vmem:[%s245 + $0x1f8] sm:$0xff] %v8105
        %8428 = vst [vmem:[%s245 + $0x200] sm:$0xff] %v8110
        %8429 = vst [vmem:[%s245 + $0x208] sm:$0xff] %v8113
        %8430 = vst [vmem:[%s245 + $0x210] sm:$0xff] %v8118
        %8431 = vst [vmem:[%s245 + $0x218] sm:$0xff] %v8121
        %8432 = vst [vmem:[%s245 + $0x220] sm:$0xff] %v8126
        %8433 = vst [vmem:[%s245 + $0x228] sm:$0xff] %v8129
        %8434 = vst [vmem:[%s245 + $0x230] sm:$0xff] %v8134
        %8435 = vst [vmem:[%s245 + $0x238] sm:$0xff] %v8137
        %8436 = vst [vmem:[%s245 + $0x240] sm:$0xff] %v8142
        %8437 = vst [vmem:[%s245 + $0x248] sm:$0xff] %v8145
        %8438 = vst [vmem:[%s245 + $0x250] sm:$0xff] %v8150
        %8439 = vst [vmem:[%s245 + $0x258] sm:$0xff] %v8153
        %8440 = vst [vmem:[%s245 + $0x260] sm:$0xff] %v8158
        %8441 = vst [vmem:[%s245 + $0x268] sm:$0xff] %v8161
        %8442 = vst [vmem:[%s245 + $0x270] sm:$0xff] %v8166
        %8443 = vst [vmem:[%s245 + $0x278] sm:$0xff] %v8169
        %8444 = vst [vmem:[%s245 + $0x280] sm:$0xff] %v8174
        %8445 = vst [vmem:[%s245 + $0x288] sm:$0xff] %v8177
        %8446 = vst [vmem:[%s245 + $0x290] sm:$0xff] %v8182
        %8447 = vst [vmem:[%s245 + $0x298] sm:$0xff] %v8185
        %8448 = vst [vmem:[%s245 + $0x2a0] sm:$0xff] %v8190
        %8449 = vst [vmem:[%s245 + $0x2a8] sm:$0xff] %v8193
        %8450 = vst [vmem:[%s245 + $0x2b0] sm:$0xff] %v8198
        %8451 = vst [vmem:[%s245 + $0x2b8] sm:$0xff] %v8201
        %8452 = vst [vmem:[%s245 + $0x2c0] sm:$0xff] %v8206
        %8453 = vst [vmem:[%s245 + $0x2c8] sm:$0xff] %v8209
        %8454 = vst [vmem:[%s245 + $0x2d0] sm:$0xff] %v8214
        %8455 = vst [vmem:[%s245 + $0x2d8] sm:$0xff] %v8217
        %8456 = vst [vmem:[%s245 + $0x2e0] sm:$0xff] %v8222
        %8457 = vst [vmem:[%s245 + $0x2e8] sm:$0xff] %v8225
        %8458 = vst [vmem:[%s245 + $0x2f0] sm:$0xff] %v8230
        %8459 = vst [vmem:[%s245 + $0x2f8] sm:$0xff] %v8233
        %8460 = vst [vmem:[%s245 + $0x300] sm:$0xff] %v8238
        %8461 = vst [vmem:[%s245 + $0x308] sm:$0xff] %v8241
        %8462 = vst [vmem:[%s245 + $0x310] sm:$0xff] %v8246
        %8463 = vst [vmem:[%s245 + $0x318] sm:$0xff] %v8249
        %8464 = vst [vmem:[%s245 + $0x320] sm:$0xff] %v8254
        %8465 = vst [vmem:[%s245 + $0x328] sm:$0xff] %v8257
        %8466 = vst [vmem:[%s245 + $0x330] sm:$0xff] %v8262
        %8467 = vst [vmem:[%s245 + $0x338] sm:$0xff] %v8265
        %8468 = vst [vmem:[%s245 + $0x340] sm:$0xff] %v8270
        %8469 = vst [vmem:[%s245 + $0x348] sm:$0xff] %v8273
        %8470 = vst [vmem:[%s245 + $0x350] sm:$0xff] %v8278
        %8471 = vst [vmem:[%s245 + $0x358] sm:$0xff] %v8281
        %8472 = vst [vmem:[%s245 + $0x360] sm:$0xff] %v8286
        %8473 = vst [vmem:[%s245 + $0x368] sm:$0xff] %v8289
        %8474 = vst [vmem:[%s245 + $0x370] sm:$0xff] %v8294
        %8475 = vst [vmem:[%s245 + $0x378] sm:$0xff] %v8297
        %8476 = vst [vmem:[%s245 + $0x380] sm:$0xff] %v8302
        %8477 = vst [vmem:[%s245 + $0x388] sm:$0xff] %v8305
        %8478 = vst [vmem:[%s245 + $0x390] sm:$0xff] %v8310
        %8479 = vst [vmem:[%s245 + $0x398] sm:$0xff] %v8313
        %8480 = vst [vmem:[%s245 + $0x3a0] sm:$0xff] %v8318
        %8481 = vst [vmem:[%s245 + $0x3a8] sm:$0xff] %v8321
        %8482 = vst [vmem:[%s245 + $0x3b0] sm:$0xff] %v8326
        %8483 = vst [vmem:[%s245 + $0x3b8] sm:$0xff] %v8329
        %8484 = vst [vmem:[%s245 + $0x3c0] sm:$0xff] %v8334
        %8485 = vst [vmem:[%s245 + $0x3c8] sm:$0xff] %v8337
        %8486 = vst [vmem:[%s245 + $0x3d0] sm:$0xff] %v8342
        %8487 = vst [vmem:[%s245 + $0x3d8] sm:$0xff] %v8345
        %8488 = vst [vmem:[%s245 + $0x3e0] sm:$0xff] %v8350
        %8489 = vst [vmem:[%s245 + $0x3e8] sm:$0xff] %v8353
        %8490 = vst [vmem:[%s245 + $0x3f0] sm:$0xff] %v8358
        %8491 = vst [vmem:[%s245 + $0x3f8] sm:$0xff] %v8361
        %s8492 = sand.u32 %s159, 1
        %s8493 = scalar_lea.sflag [#allocation3], %s8492
        %s8494 = sand.u32 %s159, 1
        %s8495 = smul.addr %s8494, 1024
        %s8496 = scalar_lea.vmem [#allocation2], %s8495
        // Predicated region
        $region45: #{tpu_custom_call.1} parent=43 // pred_check
          %p8497 = pneg %p169
        $region46: #{tpu_custom_call.1} parent=43 // pred_check_branch
          %8499 = sbr.rel (%p8497) target = $region48
        $region47: #{tpu_custom_call.1} parent=43 // pred_region
          %s8500 = smul.u32 128, %s20
          %s8502 = ssub.s32 16384, 16384
          %8503 = vsyncadd %s8493, %s8502
          %s8504 = smul.addr %s8500, 128
          %s8505 = scalar_lea.hbm %s6, %s8504
          %s8506 = sshll.u32 %s8496, 4
          %s8507 = int_to_ptr.vmem [resolvable:$true] %s8506
          %8512 = dma.vmem_to_hbm [thread:$0]  %s8507, 16384, %s8505, %s8493, 128, 128, 8
        $region48: #{tpu_custom_call.1} parent=43 // pred_fallthru
          _
      $region44: #{tpu_custom_call.1} parent=5 // pred_fallthru
        _
      %p8513 = scmp.le.s32.totalorder 2, %s15
      // Predicated region
      $region49: #{tpu_custom_call.1} parent=5 // pred_check
        %p8514 = pneg %p8513
      $region50: #{tpu_custom_call.1} parent=5 // pred_check_branch
        %8516 = sbr.rel (%p8514) target = $region52
      $region51: #{tpu_custom_call.1} parent=5 // pred_region
        %s8517 = ssub.s32 %s15, 2
        // Predicated region
        $region53: #{tpu_custom_call.1} parent=51 // pred_check
          %p8518 = pneg %p175
        $region54: #{tpu_custom_call.1} parent=51 // pred_check_branch
          %8520 = sbr.rel (%p8518) target = $region56
        $region55: #{tpu_custom_call.1} parent=51 // pred_region
          %s8521 = sand.u32 %s160, 1
          %s8522 = scalar_lea.sflag [#allocation3], %s8521
          %s8523 = sand.u32 %s160, 1
          %s8524 = smul.addr %s8523, 1024
          %s8525 = scalar_lea.vmem [#allocation2], %s8524
          %8526 = dma.done %s8522, 16384
        $region56: #{tpu_custom_call.1} parent=51 // pred_fallthru
          _
      $region52: #{tpu_custom_call.1} parent=5 // pred_fallthru
        _
    $region6: #{tpu_custom_call.1} parent=1 // loop_footer
      %s19 = sadd.s32 1, %s15
    $region7: #{tpu_custom_call.1} parent=1 // loop_footer_branch
      %14 = sbr.rel target = $region3
    $region8: #{tpu_custom_call.1} parent=1 // loop_exit
      _
    %8527 = vsyncpa [#allocation3], 1
    %s8528 = scalar_lea.sflag [#allocation3], 1
    %8529 = vsyncpa %s8528, 1

</llo_original>
